<compile_context>
chip_gen: v7x
topology: tpu7x:2x2x1
jax: 0.10.0
libtpu: 0.0.40
codegen_flags: <defaults>
</compile_context>

<pallas_src>
import math

import jax
import jax.numpy as jnp
from jax.experimental import pallas as pl
from jax.experimental.pallas import tpu as pltpu

D_MODEL = 256
N_LAYER = 8
N_HEAD = D_MODEL // 32          # 8
D_HEAD = D_MODEL // N_HEAD      # 32
D_FF = D_MODEL * 4              # 1024
VOCAB = 5
NUM_BUCKETS = 64
MAX_DISTANCE = 256
LN_EPS = 1e-5
VMEM_LIMIT = 48 * 1024 * 1024   # explicit scoped-VMEM limit (fits v5e/v6e/v7x)


# ----------------------------- shared math helpers -----------------------------
def _layer_norm(x, w, b):
    mu = jnp.mean(x, axis=-1, keepdims=True)
    var = jnp.mean((x - mu) ** 2, axis=-1, keepdims=True)
    return (x - mu) * jax.lax.rsqrt(var + LN_EPS) * w + b


def _erf_approx(x):
    # Abramowitz & Stegun 7.1.26 (|abs err| <= 1.5e-7); uses only exp/mul/div (Mosaic-safe).
    p = 0.3275911
    a1, a2, a3, a4, a5 = 0.254829592, -0.284496736, 1.421413741, -1.453152027, 1.061405429
    ax = jnp.abs(x)
    t = 1.0 / (1.0 + p * ax)
    poly = ((((a5 * t + a4) * t + a3) * t + a2) * t + a1) * t
    y = 1.0 - poly * jnp.exp(-ax * ax)
    return jnp.where(x >= 0, y, -y)


def _gelu_kernel(x):        # in-kernel GELU (erf form via approximation)
    return 0.5 * x * (1.0 + _erf_approx(x * (1.0 / math.sqrt(2.0))))


def _gelu_ref(x):           # reference GELU (exact erf, plain XLA)
    return 0.5 * x * (1.0 + jax.lax.erf(x * (1.0 / math.sqrt(2.0))))


def relative_position_bucket(rel_pos, num_buckets=NUM_BUCKETS, max_distance=MAX_DISTANCE):
    """T5-style bucketing; written with ops that lower both in XLA and Mosaic."""
    num_buckets = num_buckets // 2
    ret = jnp.where(rel_pos < 0, num_buckets, 0)
    n = jnp.where(rel_pos < 0, -rel_pos, rel_pos)
    max_exact = num_buckets // 2
    safe_n = jnp.maximum(n, 1).astype(jnp.float32)
    val_if_large = max_exact + (
        jnp.log(safe_n * (1.0 / max_exact))
        * (1.0 / math.log(max_distance / max_exact))
        * (num_buckets - max_exact)
    ).astype(jnp.int32)
    val_if_large = jnp.minimum(val_if_large, num_buckets - 1)
    return ret + jnp.where(n < max_exact, n, val_if_large)


# --------------------------------- Pallas kernels -------------------------------
def fused_encoder_kernel(x_ref, bias_ref,
                         ln1w_ref, ln1b_ref, wqkv_ref, wo_ref,
                         ln2w_ref, ln2b_ref, w1_ref, b1_ref, w2_ref, b2_ref,
                         lnfw_ref, lnfb_ref, wqp_ref, bqp_ref, wkp_ref, bkp_ref,
                         q_ref, k_ref):
    """Grid axis 0 = layer index.  q_ref (constant block index) is the resident residual
    stream across layers; per-layer weights are streamed by the Pallas pipeline.  The last
    grid step applies layer_norm_after + fc_pair_q / fc_pair_k and emits q and k."""
    layer = pl.program_id(0)
    n_layers = pl.num_programs(0)

    @pl.when(layer == 0)
    def _():
        q_ref[...] = x_ref[...]                      # seed the resident residual stream

    x = q_ref[...]                                   # (L, D) f32
    L, D = x.shape
    H = bias_ref.shape[0]
    dk = D // H

    # --- attention branch (pre-LN); 1/sqrt(dk) is folded into the q part of wqkv ---
    xn = _layer_norm(x, ln1w_ref[0], ln1b_ref[0]).astype(jnp.bfloat16)
    qkv = jnp.dot(xn, wqkv_ref[0], preferred_element_type=jnp.float32)   # (L, 3D)
    qb = qkv[:, 0:D].astype(jnp.bfloat16)
    kb = qkv[:, D:2 * D].astype(jnp.bfloat16)
    vb = qkv[:, 2 * D:3 * D].astype(jnp.bfloat16)

    # TODO(synk): for L >~ 256 convert this static head unroll to a fori_loop + VMEM
    # scratch writes to bound liveness of the (L,L) temporaries.
    ctx_heads = []
    for h in range(H):
        sl = slice(h * dk, (h + 1) * dk)
        s = jax.lax.dot_general(qb[:, sl], kb[:, sl], (((1,), (1,)), ((), ())),
                                preferred_element_type=jnp.float32)      # (L, L)
        s = s + bias_ref[h]
        s = s - jnp.max(s, axis=-1, keepdims=True)
        p = jnp.exp(s)
        p = p * pl.reciprocal(jnp.sum(p, axis=-1, keepdims=True), approx=True)
        ctx_heads.append(jnp.dot(p.astype(jnp.bfloat16), vb[:, sl],
                                 preferred_element_type=jnp.float32))    # (L, dk)
    ctx = jnp.concatenate(ctx_heads, axis=-1).astype(jnp.bfloat16)       # (L, D)
    x = x + jnp.dot(ctx, wo_ref[0], preferred_element_type=jnp.float32)

    # --- feed-forward branch (pre-LN) ---
    xn2 = _layer_norm(x, ln2w_ref[0], ln2b_ref[0]).astype(jnp.bfloat16)
    hdn = jnp.dot(xn2, w1_ref[0], preferred_element_type=jnp.float32) + b1_ref[0]
    hdn = _gelu_kernel(hdn).astype(jnp.bfloat16)
    x_new = x + jnp.dot(hdn, w2_ref[0], preferred_element_type=jnp.float32) + b2_ref[0]

    @pl.when(layer < n_layers - 1)
    def _():
        q_ref[...] = x_new                           # carry the residual stream forward

    @pl.when(layer == n_layers - 1)
    def _():
        # fused layer_norm_after + fc_pair_q / fc_pair_k
        xn_f = _layer_norm(x_new, lnfw_ref[...], lnfb_ref[...]).astype(jnp.bfloat16)
        q_ref[...] = jnp.dot(xn_f, wqp_ref[...],
                             preferred_element_type=jnp.float32) + bqp_ref[...]
        k_ref[...] = jnp.dot(xn_f, wkp_ref[...],
                             preferred_element_type=jnp.float32) + bkp_ref[...]
    # TODO(synk): per-layer attention weights (torch.cat(attn_weight)) are unused in the
    # returned dict and are not materialized.


def pair_kernel(q_ref, k_ref, rpt_ref, w1_ref, b1_ref, w2t_ref, b2t_ref, out_ref):
    """TM query rows per grid step.  Relative-position embeddings are gathered in-kernel
    from the resident (64, D) table (one-hot MXU matmul) — no (L*L, D) HBM table.  The
    output is produced lane-dense as (2, TM*L)."""
    i = pl.program_id(0)
    TM, D = q_ref.shape
    L = k_ref.shape[0]
    NB = rpt_ref.shape[0]

    # Bucket indices for this row block, computed in-kernel.  (Bucket math is replicated
    # along the NB lane axis so everything stays element-wise — no lane->sublane relayout.
    # TODO(synk): for large L compute bucket once at (TM, L) and gather.)
    rows = jax.lax.broadcasted_iota(jnp.int32, (TM, L, NB), 0) + i * TM
    cols = jax.lax.broadcasted_iota(jnp.int32, (TM, L, NB), 1)
    nb_ids = jax.lax.broadcasted_iota(jnp.int32, (TM, L, NB), 2)
    bucket = relative_position_bucket(rows - cols)                       # (TM, L, NB)
    onehot = jnp.where(bucket == nb_ids, 1.0, 0.0).astype(jnp.bfloat16)
    rp = jnp.dot(onehot.reshape(TM * L, NB), rpt_ref[...],
                 preferred_element_type=jnp.float32)                     # (TM*L, D) f32

    # px[m*L + l, :] = q[m, :] * k[l, :] + rp[m*L + l, :]
    qb = jax.lax.broadcast_in_dim(q_ref[...], (TM, L, D), (0, 2))
    kb = jax.lax.broadcast_in_dim(k_ref[...], (TM, L, D), (1, 2))
    qk = (qb * kb).reshape(TM * L, D)
    px = (qk + rp).astype(jnp.bfloat16)                                  # single cast

    h = jnp.dot(px, w1_ref[...], preferred_element_type=jnp.float32) + b1_ref[...]
    h = jnp.maximum(h, 0.0).astype(jnp.bfloat16)                         # ReLU

    # lane-dense (2, TM*L) result: out = w2^T @ h^T + b2
    out_ref[...] = jax.lax.dot_general(
        w2t_ref[...], h, (((1,), (1,)), ((), ())),
        preferred_element_type=jnp.float32) + b2t_ref[...]


# ----------------------------------- wrappers -----------------------------------
def run_encoder_and_qk(x, bias, params):
    """Fused 8-layer encoder + final LN + pair q/k projections.  Returns (q, k)."""
    L, D = x.shape
    H = bias.shape[0]
    sw = params['stack']
    DF = sw['w1'].shape[2]
    # TODO(synk): for very long sequences (L >~ 1k) the resident (H,L,L) bias and (L,L)
    # score temporaries should be query-tiled (flash-style) / built on the fly.
    return pl.pallas_call(
        fused_encoder_kernel,
        out_shape=(jax.ShapeDtypeStruct((L, D), jnp.float32),
                   jax.ShapeDtypeStruct((L, D), jnp.float32)),
        grid=(N_LAYER,),
        in_specs=[
            pl.BlockSpec((L, D), lambda l: (0, 0)),            # x (resident)
            pl.BlockSpec((H, L, L), lambda l: (0, 0, 0)),      # bias (resident)
            pl.BlockSpec((1, 1, D), lambda l: (l, 0, 0)),      # ln1_w
            pl.BlockSpec((1, 1, D), lambda l: (l, 0, 0)),      # ln1_b
            pl.BlockSpec((1, D, 3 * D), lambda l: (l, 0, 0)),  # wqkv (q pre-scaled)
            pl.BlockSpec((1, D, D), lambda l: (l, 0, 0)),      # wo
            pl.BlockSpec((1, 1, D), lambda l: (l, 0, 0)),      # ln2_w
            pl.BlockSpec((1, 1, D), lambda l: (l, 0, 0)),      # ln2_b
            pl.BlockSpec((1, D, DF), lambda l: (l, 0, 0)),     # w1
            pl.BlockSpec((1, 1, DF), lambda l: (l, 0, 0)),     # b1
            pl.BlockSpec((1, DF, D), lambda l: (l, 0, 0)),     # w2
            pl.BlockSpec((1, 1, D), lambda l: (l, 0, 0)),      # b2
            pl.BlockSpec((1, D), lambda l: (0, 0)),            # ln_f_w (resident)
            pl.BlockSpec((1, D), lambda l: (0, 0)),            # ln_f_b
            pl.BlockSpec((D, D), lambda l: (0, 0)),            # wq_p
            pl.BlockSpec((1, D), lambda l: (0, 0)),            # bq_p
            pl.BlockSpec((D, D), lambda l: (0, 0)),            # wk_p
            pl.BlockSpec((1, D), lambda l: (0, 0)),            # bk_p
        ],
        out_specs=(pl.BlockSpec((L, D), lambda l: (0, 0)),     # q (residual stream / final q)
                   pl.BlockSpec((L, D), lambda l: (0, 0))),    # k (written at last layer)
        compiler_params=pltpu.CompilerParams(
            dimension_semantics=("arbitrary",),
            vmem_limit_bytes=VMEM_LIMIT),
    )(x, bias, sw['ln1_w'], sw['ln1_b'], sw['wqkv'], sw['wo'],
      sw['ln2_w'], sw['ln2_b'], sw['w1'], sw['b1'], sw['w2'], sw['b2'],
      params['ln_f_w'], params['ln_f_b'], params['wq_p'], params['bq_p'],
      params['wk_p'], params['bk_p'])


def _choose_tm(L):
    """Largest divisor of L with a (8,128)-legal block and TM*L <= 2048 (v5e-safe)."""
    best = None
    for c in range(1, L + 1):
        if L % c:
            continue
        ok_sub = (c % 8 == 0) or (c == L)
        ok_lane = ((c * L) % 128 == 0) or (c == L)
        if ok_sub and ok_lane and c * L <= 2048:
            best = c
    if best is None:
        best = L   # TODO(synk): flash-style two-level tiling for very large L
    return best


def pair_cls(q, k, p, L, TM):
    """Pairwise contact head.  Returns lane-dense (2, L*L) logits."""
    D = q.shape[1]
    NB = p['rp_pair_emb'].shape[0]
    return pl.pallas_call(
        pair_kernel,
        out_shape=jax.ShapeDtypeStruct((2, L * L), jnp.float32),
        grid=(L // TM,),
        in_specs=[
            pl.BlockSpec((TM, D), lambda i: (i, 0)),   # q rows for this block
            pl.BlockSpec((L, D), lambda i: (0, 0)),    # k (resident)
            pl.BlockSpec((NB, D), lambda i: (0, 0)),   # rp table (resident, 32 KiB bf16)
            pl.BlockSpec((D, D), lambda i: (0, 0)),    # w1 (resident, bf16)
            pl.BlockSpec((1, D), lambda i: (0, 0)),    # b1
            pl.BlockSpec((2, D), lambda i: (0, 0)),    # w2^T (bf16)
            pl.BlockSpec((2, 1), lambda i: (0, 0)),    # b2 (column)
        ],
        out_specs=pl.BlockSpec((2, TM * L), lambda i: (0, i)),
        compiler_params=pltpu.CompilerParams(
            dimension_semantics=("parallel",),         # megacore-shards on v7x
            vmem_limit_bytes=VMEM_LIMIT),
    )(q, k, p['rp_pair_emb'], p['w1_p'], p['b1_p'], p['w2t_p'], p['b2t_p'])


def main_model_forward(tokens, params):
    """tokens: (1, L) int32 in [0, 5).  Returns contact_logits (1, L, L, 2)."""
    L = tokens.shape[1]
    x = params['tok_emb'][tokens[0]]                              # (L, D) embedding lookup
    pos = jnp.arange(L)
    bucket = relative_position_bucket(pos[:, None] - pos[None, :])
    bias = jnp.transpose(params['rp_emb'][bucket], (2, 0, 1))     # (H, L, L) f32

    q, k = run_encoder_and_qk(x, bias, params)                    # fused encoder + q/k
    TM = _choose_tm(L)
    logits2 = pair_cls(q, k, params, L, TM)                       # (2, L*L) lane-dense
    return logits2.T.reshape(L, L, 2)[None]                       # (1, L, L, 2)


# --------------------------- deterministic parameter init -----------------------
def init_params(key):
    keys = iter(jax.random.split(key, 48))

    def nrm(shape, scale=0.02):
        return (scale * jax.random.normal(next(keys), shape)).astype(jnp.float32)

    inv_scale = 1.0 / math.sqrt(D_HEAD)
    wq = nrm((N_LAYER, D_MODEL, D_MODEL))
    wk = nrm((N_LAYER, D_MODEL, D_MODEL))
    wv = nrm((N_LAYER, D_MODEL, D_MODEL))
    # fuse q/k/v and fold the 1/sqrt(d_k) attention scale into the q columns
    wqkv = jnp.concatenate([wq * inv_scale, wk, wv], axis=-1).astype(jnp.bfloat16)

    stack = dict(
        ln1_w=jnp.ones((N_LAYER, 1, D_MODEL), jnp.float32),
        ln1_b=jnp.zeros((N_LAYER, 1, D_MODEL), jnp.float32),
        wqkv=wqkv,
        wo=nrm((N_LAYER, D_MODEL, D_MODEL)).astype(jnp.bfloat16),
        ln2_w=jnp.ones((N_LAYER, 1, D_MODEL), jnp.float32),
        ln2_b=jnp.zeros((N_LAYER, 1, D_MODEL), jnp.float32),
        w1=nrm((N_LAYER, D_MODEL, D_FF)).astype(jnp.bfloat16),
        b1=nrm((N_LAYER, 1, D_FF)),
        w2=nrm((N_LAYER, D_FF, D_MODEL)).astype(jnp.bfloat16),
        b2=nrm((N_LAYER, 1, D_MODEL)),
    )
    params = dict(
        tok_emb=nrm((VOCAB, D_MODEL)),
        rp_emb=nrm((NUM_BUCKETS, N_HEAD)),
        rp_pair_emb=nrm((NUM_BUCKETS, D_MODEL)).astype(jnp.bfloat16),
        ln_f_w=jnp.ones((1, D_MODEL), jnp.float32),
        ln_f_b=jnp.zeros((1, D_MODEL), jnp.float32),
        wq_p=nrm((D_MODEL, D_MODEL)).astype(jnp.bfloat16), bq_p=nrm((1, D_MODEL)),
        wk_p=nrm((D_MODEL, D_MODEL)).astype(jnp.bfloat16), bk_p=nrm((1, D_MODEL)),
        w1_p=nrm((D_MODEL, D_MODEL)).astype(jnp.bfloat16), b1_p=nrm((1, D_MODEL)),
        w2t_p=nrm((2, D_MODEL)).astype(jnp.bfloat16), b2t_p=nrm((2, 1)),
        stack=stack,
    )
    return params


# ------------------------------ pure-JAX reference -------------------------------
def reference_forward(tokens, params):
    """f32-activation reference using the same (bf16-stored) weights as the kernels."""
    L = tokens.shape[1]
    D = D_MODEL
    x = params['tok_emb'][tokens[0]]
    pos = jnp.arange(L)
    bucket = relative_position_bucket(pos[:, None] - pos[None, :])
    bias = jnp.transpose(params['rp_emb'][bucket], (2, 0, 1))
    sw = params['stack']
    for l in range(N_LAYER):
        wqkv = sw['wqkv'][l].astype(jnp.float32)      # q part is already pre-scaled
        wo = sw['wo'][l].astype(jnp.float32)
        w1 = sw['w1'][l].astype(jnp.float32)
        w2 = sw['w2'][l].astype(jnp.float32)
        b1, b2 = sw['b1'][l], sw['b2'][l]
        xn = _layer_norm(x, sw['ln1_w'][l], sw['ln1_b'][l])
        qkv = xn @ wqkv
        q, k, v = qkv[:, :D], qkv[:, D:2 * D], qkv[:, 2 * D:]
        qh = q.reshape(L, N_HEAD, D_HEAD).transpose(1, 0, 2)
        kh = k.reshape(L, N_HEAD, D_HEAD).transpose(1, 0, 2)
        vh = v.reshape(L, N_HEAD, D_HEAD).transpose(1, 0, 2)
        s = jnp.einsum('hqd,hkd->hqk', qh, kh) + bias
        p = jax.nn.softmax(s, axis=-1)
        ctx = jnp.einsum('hqk,hkd->hqd', p, vh).transpose(1, 0, 2).reshape(L, D)
        x = x + ctx @ wo
        xn2 = _layer_norm(x, sw['ln2_w'][l], sw['ln2_b'][l])
        x = x + _gelu_ref(xn2 @ w1 + b1) @ w2 + b2
    x = _layer_norm(x, params['ln_f_w'], params['ln_f_b'])
    q = x @ params['wq_p'].astype(jnp.float32) + params['bq_p']
    k = x @ params['wk_p'].astype(jnp.float32) + params['bk_p']
    rp = params['rp_pair_emb'].astype(jnp.float32)[bucket]
    px = q[:, None, :] * k[None, :, :] + rp
    h = jnp.maximum(px @ params['w1_p'].astype(jnp.float32) + params['b1_p'], 0.0)
    w2t = params['w2t_p'].astype(jnp.float32)                     # (2, D)
    out = h @ w2t.T + params['b2t_p'].reshape(2)
    return out[None]


# --------------------------------------- main ------------------------------------
if __name__ == "__main__":
    key = jax.random.PRNGKey(0)
    pkey, tkey = jax.random.split(key)
    params = init_params(pkey)

    L = 16
    tokens = jax.random.randint(tkey, (1, L), 0, VOCAB, dtype=jnp.int32)  # data['seq']

    out = jax.jit(main_model_forward)(tokens, params)
    out = jax.block_until_ready(out)

    assert out.shape == (1, L, L, 2), out.shape
    assert bool(jnp.all(jnp.isfinite(out))), "non-finite output"

    ref = reference_forward(tokens, params)
    err = float(jnp.max(jnp.abs(out - ref)))
    scale = float(jnp.max(jnp.abs(ref))) + 1e-6
    assert err / scale < 3e-2, f"mismatch vs reference: abs_err={err}, scale={scale}"

    print("KERNEL_OK")
</pallas_src>

<mosaic_0001>
module attributes {stable_mosaic.version = 11 : i64} {
  func.func @fused_encoder_kernel(%arg0: i32, %arg1: memref<16x256xf32, #tpu.memory_space<vmem>>, %arg2: memref<8x16x16xf32, #tpu.memory_space<vmem>>, %arg3: memref<1x1x256xf32, #tpu.memory_space<vmem>>, %arg4: memref<1x1x256xf32, #tpu.memory_space<vmem>>, %arg5: memref<1x256x768xbf16, #tpu.memory_space<vmem>>, %arg6: memref<1x256x256xbf16, #tpu.memory_space<vmem>>, %arg7: memref<1x1x256xf32, #tpu.memory_space<vmem>>, %arg8: memref<1x1x256xf32, #tpu.memory_space<vmem>>, %arg9: memref<1x256x1024xbf16, #tpu.memory_space<vmem>>, %arg10: memref<1x1x1024xf32, #tpu.memory_space<vmem>>, %arg11: memref<1x1024x256xbf16, #tpu.memory_space<vmem>>, %arg12: memref<1x1x256xf32, #tpu.memory_space<vmem>>, %arg13: memref<1x256xf32, #tpu.memory_space<vmem>>, %arg14: memref<1x256xf32, #tpu.memory_space<vmem>>, %arg15: memref<256x256xbf16, #tpu.memory_space<vmem>>, %arg16: memref<1x256xf32, #tpu.memory_space<vmem>>, %arg17: memref<256x256xbf16, #tpu.memory_space<vmem>>, %arg18: memref<1x256xf32, #tpu.memory_space<vmem>>, %arg19: memref<16x256xf32, #tpu.memory_space<vmem>>, %arg20: memref<16x256xf32, #tpu.memory_space<vmem>>) attributes {dimension_semantics = [#tpu.dimension_semantics<arbitrary>], iteration_bounds = array<i64: 8>, scalar_prefetch = 0 : i64, scratch_operands = 0 : i64, tpu.core_type = #tpu.core_type<tc>, window_params = [{pipeline_mode = #tpu.pipeline_mode<synchronous>, transform_indices = @transform_0, window_bounds = array<i64: 16, 256>}, {pipeline_mode = #tpu.pipeline_mode<synchronous>, transform_indices = @transform_1, window_bounds = array<i64: 8, 16, 16>}, {transform_indices = @transform_2, window_bounds = array<i64: 1, 1, 256>}, {transform_indices = @transform_3, window_bounds = array<i64: 1, 1, 256>}, {transform_indices = @transform_4, window_bounds = array<i64: 1, 256, 768>}, {transform_indices = @transform_5, window_bounds = array<i64: 1, 256, 256>}, {transform_indices = @transform_6, window_bounds = array<i64: 1, 1, 256>}, {transform_indices = @transform_7, window_bounds = array<i64: 1, 1, 256>}, {transform_indices = @transform_8, window_bounds = array<i64: 1, 256, 1024>}, {transform_indices = @transform_9, window_bounds = array<i64: 1, 1, 1024>}, {transform_indices = @transform_10, window_bounds = array<i64: 1, 1024, 256>}, {transform_indices = @transform_11, window_bounds = array<i64: 1, 1, 256>}, {pipeline_mode = #tpu.pipeline_mode<synchronous>, transform_indices = @transform_12, window_bounds = array<i64: 1, 256>}, {pipeline_mode = #tpu.pipeline_mode<synchronous>, transform_indices = @transform_13, window_bounds = array<i64: 1, 256>}, {pipeline_mode = #tpu.pipeline_mode<synchronous>, transform_indices = @transform_14, window_bounds = array<i64: 256, 256>}, {pipeline_mode = #tpu.pipeline_mode<synchronous>, transform_indices = @transform_15, window_bounds = array<i64: 1, 256>}, {pipeline_mode = #tpu.pipeline_mode<synchronous>, transform_indices = @transform_16, window_bounds = array<i64: 256, 256>}, {pipeline_mode = #tpu.pipeline_mode<synchronous>, transform_indices = @transform_17, window_bounds = array<i64: 1, 256>}, {pipeline_mode = #tpu.pipeline_mode<synchronous>, transform_indices = @transform_18, window_bounds = array<i64: 16, 256>}, {pipeline_mode = #tpu.pipeline_mode<synchronous>, transform_indices = @transform_19, window_bounds = array<i64: 16, 256>}]} {
    %c0_i32 = arith.constant 0 : i32
    %0 = arith.cmpi eq, %arg0, %c0_i32 : i32
    %1 = arith.extui %0 : i1 to i32
    %c0_i32_0 = arith.constant 0 : i32
    %2 = arith.cmpi ne, %1, %c0_i32_0 : i32
    scf.if %2 {
      %c0_112 = arith.constant 0 : index
      %c0_113 = arith.constant 0 : index
      %287 = vector.load %arg1[%c0_112, %c0_113] : memref<16x256xf32, #tpu.memory_space<vmem>>, vector<16x256xf32>
      %c0_114 = arith.constant 0 : index
      %c0_115 = arith.constant 0 : index
      %288 = vector.load %arg19[%c0_114, %c0_115] : memref<16x256xf32, #tpu.memory_space<vmem>>, vector<16x256xf32>
      tpu.vector_store %arg19[%c0_114, %c0_115], %287 {strides = array<i32>} : memref<16x256xf32, #tpu.memory_space<vmem>>, vector<16x256xf32>,
    } else {
    }
    %c0 = arith.constant 0 : index
    %c0_1 = arith.constant 0 : index
    %3 = vector.load %arg19[%c0, %c0_1] : memref<16x256xf32, #tpu.memory_space<vmem>>, vector<16x256xf32>
    %c0_2 = arith.constant 0 : index
    %c0_3 = arith.constant 0 : index
    %c0_4 = arith.constant 0 : index
    %4 = vector.load %arg3[%c0_2, %c0_3, %c0_4] : memref<1x1x256xf32, #tpu.memory_space<vmem>>, vector<1x1x256xf32>
    %5 = vector.shape_cast %4 : vector<1x1x256xf32> to vector<1x256xf32>
    %c0_5 = arith.constant 0 : index
    %c0_6 = arith.constant 0 : index
    %c0_7 = arith.constant 0 : index
    %6 = vector.load %arg4[%c0_5, %c0_6, %c0_7] : memref<1x1x256xf32, #tpu.memory_space<vmem>>, vector<1x1x256xf32>
    %7 = vector.shape_cast %6 : vector<1x1x256xf32> to vector<1x256xf32>
    %cst = arith.constant dense<0.000000e+00> : vector<16xf32>
    %8 = vector.multi_reduction <add>, %3, %cst [1] : vector<16x256xf32> to vector<16xf32>
    %9 = vector.shape_cast %8 : vector<16xf32> to vector<16x1xf32>
    %cst_8 = arith.constant 2.560000e+02 : f32
    %10 = vector.broadcast %cst_8 : f32 to vector<16x1xf32>
    %11 = arith.divf %9, %10 : vector<16x1xf32>
    %12 = vector.broadcast %11 : vector<16x1xf32> to vector<16x256xf32>
    %13 = arith.subf %3, %12 : vector<16x256xf32>
    %14 = arith.mulf %13, %13 : vector<16x256xf32>
    %cst_9 = arith.constant dense<0.000000e+00> : vector<16xf32>
    %15 = vector.multi_reduction <add>, %14, %cst_9 [1] : vector<16x256xf32> to vector<16xf32>
    %16 = vector.shape_cast %15 : vector<16xf32> to vector<16x1xf32>
    %cst_10 = arith.constant 2.560000e+02 : f32
    %17 = vector.broadcast %cst_10 : f32 to vector<16x1xf32>
    %18 = arith.divf %16, %17 : vector<16x1xf32>
    %19 = vector.broadcast %11 : vector<16x1xf32> to vector<16x256xf32>
    %20 = arith.subf %3, %19 : vector<16x256xf32>
    %cst_11 = arith.constant 9.99999974E-6 : f32
    %21 = vector.broadcast %cst_11 : f32 to vector<16x1xf32>
    %22 = arith.addf %18, %21 : vector<16x1xf32>
    %23 = math.rsqrt %22 : vector<16x1xf32>
    %24 = vector.broadcast %23 : vector<16x1xf32> to vector<16x256xf32>
    %25 = arith.mulf %20, %24 : vector<16x256xf32>
    %26 = vector.broadcast %5 : vector<1x256xf32> to vector<16x256xf32>
    %27 = arith.mulf %25, %26 : vector<16x256xf32>
    %28 = vector.broadcast %7 : vector<1x256xf32> to vector<16x256xf32>
    %29 = arith.addf %27, %28 : vector<16x256xf32>
    %30 = arith.truncf %29 : vector<16x256xf32> to vector<16x256xbf16>
    %c0_12 = arith.constant 0 : index
    %c0_13 = arith.constant 0 : index
    %c0_14 = arith.constant 0 : index
    %31 = vector.load %arg5[%c0_12, %c0_13, %c0_14] : memref<1x256x768xbf16, #tpu.memory_space<vmem>>, vector<1x256x768xbf16>
    %32 = vector.shape_cast %31 : vector<1x256x768xbf16> to vector<256x768xbf16>
    %cst_15 = arith.constant dense<0.000000e+00> : vector<16x768xf32>
    %33 = tpu.matmul %30, %32, %cst_15 {dimension_numbers = #tpu.dot_dimension_numbers<[1], [0], [0], [1], [0, 0, 1, 1], [], []>} : vector<16x256xbf16>, vector<256x768xbf16>, vector<16x768xf32> -> vector<16x768xf32>
    %34 = vector.extract_strided_slice %33 {offsets = [0, 0], sizes = [16, 256], strides = [1, 1]} : vector<16x768xf32> to vector<16x256xf32>
    %35 = arith.truncf %34 : vector<16x256xf32> to vector<16x256xbf16>
    %36 = vector.extract_strided_slice %33 {offsets = [0, 256], sizes = [16, 256], strides = [1, 1]} : vector<16x768xf32> to vector<16x256xf32>
    %37 = arith.truncf %36 : vector<16x256xf32> to vector<16x256xbf16>
    %38 = vector.extract_strided_slice %33 {offsets = [0, 512], sizes = [16, 256], strides = [1, 1]} : vector<16x768xf32> to vector<16x256xf32>
    %39 = arith.truncf %38 : vector<16x256xf32> to vector<16x256xbf16>
    %40 = vector.extract_strided_slice %35 {offsets = [0, 0], sizes = [16, 32], strides = [1, 1]} : vector<16x256xbf16> to vector<16x32xbf16>
    %41 = vector.extract_strided_slice %37 {offsets = [0, 0], sizes = [16, 32], strides = [1, 1]} : vector<16x256xbf16> to vector<16x32xbf16>
    %cst_16 = arith.constant dense<0.000000e+00> : vector<16x16xf32>
    %42 = tpu.matmul %40, %41, %cst_16 {dimension_numbers = #tpu.dot_dimension_numbers<[1], [1], [0], [0], [0, 0, 1, 0], [], []>} : vector<16x32xbf16>, vector<16x32xbf16>, vector<16x16xf32> -> vector<16x16xf32>
    %c0_17 = arith.constant 0 : index
    %c0_18 = arith.constant 0 : index
    %c0_19 = arith.constant 0 : index
    %43 = vector.load %arg2[%c0_17, %c0_18, %c0_19] : memref<8x16x16xf32, #tpu.memory_space<vmem>>, vector<1x16x16xf32>
    %44 = vector.shape_cast %43 : vector<1x16x16xf32> to vector<16x16xf32>
    %45 = arith.addf %42, %44 : vector<16x16xf32>
    %cst_20 = arith.constant dense<0xFF800000> : vector<16xf32>
    %46 = vector.multi_reduction <maximumf>, %45, %cst_20 [1] : vector<16x16xf32> to vector<16xf32>
    %47 = vector.shape_cast %46 : vector<16xf32> to vector<16x1xf32>
    %48 = vector.broadcast %47 : vector<16x1xf32> to vector<16x16xf32>
    %49 = arith.subf %45, %48 : vector<16x16xf32>
    %50 = math.exp %49 : vector<16x16xf32>
    %cst_21 = arith.constant dense<0.000000e+00> : vector<16xf32>
    %51 = vector.multi_reduction <add>, %50, %cst_21 [1] : vector<16x16xf32> to vector<16xf32>
    %52 = vector.shape_cast %51 : vector<16xf32> to vector<16x1xf32>
    %53 = tpu.reciprocal %52 {approx = true} : vector<16x1xf32> -> vector<16x1xf32>
    %54 = vector.broadcast %53 : vector<16x1xf32> to vector<16x16xf32>
    %55 = arith.mulf %50, %54 : vector<16x16xf32>
    %56 = arith.truncf %55 : vector<16x16xf32> to vector<16x16xbf16>
    %57 = vector.extract_strided_slice %39 {offsets = [0, 0], sizes = [16, 32], strides = [1, 1]} : vector<16x256xbf16> to vector<16x32xbf16>
    %cst_22 = arith.constant dense<0.000000e+00> : vector<16x32xf32>
    %58 = tpu.matmul %56, %57, %cst_22 {dimension_numbers = #tpu.dot_dimension_numbers<[1], [0], [0], [1], [0, 0, 1, 1], [], []>} : vector<16x16xbf16>, vector<16x32xbf16>, vector<16x32xf32> -> vector<16x32xf32>
    %59 = vector.extract_strided_slice %35 {offsets = [0, 32], sizes = [16, 32], strides = [1, 1]} : vector<16x256xbf16> to vector<16x32xbf16>
    %60 = vector.extract_strided_slice %37 {offsets = [0, 32], sizes = [16, 32], strides = [1, 1]} : vector<16x256xbf16> to vector<16x32xbf16>
    %cst_23 = arith.constant dense<0.000000e+00> : vector<16x16xf32>
    %61 = tpu.matmul %59, %60, %cst_23 {dimension_numbers = #tpu.dot_dimension_numbers<[1], [1], [0], [0], [0, 0, 1, 0], [], []>} : vector<16x32xbf16>, vector<16x32xbf16>, vector<16x16xf32> -> vector<16x16xf32>
    %c1 = arith.constant 1 : index
    %c0_24 = arith.constant 0 : index
    %c0_25 = arith.constant 0 : index
    %62 = vector.load %arg2[%c1, %c0_24, %c0_25] : memref<8x16x16xf32, #tpu.memory_space<vmem>>, vector<1x16x16xf32>
    %63 = vector.shape_cast %62 : vector<1x16x16xf32> to vector<16x16xf32>
    %64 = arith.addf %61, %63 : vector<16x16xf32>
    %cst_26 = arith.constant dense<0xFF800000> : vector<16xf32>
    %65 = vector.multi_reduction <maximumf>, %64, %cst_26 [1] : vector<16x16xf32> to vector<16xf32>
    %66 = vector.shape_cast %65 : vector<16xf32> to vector<16x1xf32>
    %67 = vector.broadcast %66 : vector<16x1xf32> to vector<16x16xf32>
    %68 = arith.subf %64, %67 : vector<16x16xf32>
    %69 = math.exp %68 : vector<16x16xf32>
    %cst_27 = arith.constant dense<0.000000e+00> : vector<16xf32>
    %70 = vector.multi_reduction <add>, %69, %cst_27 [1] : vector<16x16xf32> to vector<16xf32>
    %71 = vector.shape_cast %70 : vector<16xf32> to vector<16x1xf32>
    %72 = tpu.reciprocal %71 {approx = true} : vector<16x1xf32> -> vector<16x1xf32>
    %73 = vector.broadcast %72 : vector<16x1xf32> to vector<16x16xf32>
    %74 = arith.mulf %69, %73 : vector<16x16xf32>
    %75 = arith.truncf %74 : vector<16x16xf32> to vector<16x16xbf16>
    %76 = vector.extract_strided_slice %39 {offsets = [0, 32], sizes = [16, 32], strides = [1, 1]} : vector<16x256xbf16> to vector<16x32xbf16>
    %cst_28 = arith.constant dense<0.000000e+00> : vector<16x32xf32>
    %77 = tpu.matmul %75, %76, %cst_28 {dimension_numbers = #tpu.dot_dimension_numbers<[1], [0], [0], [1], [0, 0, 1, 1], [], []>} : vector<16x16xbf16>, vector<16x32xbf16>, vector<16x32xf32> -> vector<16x32xf32>
    %78 = vector.extract_strided_slice %35 {offsets = [0, 64], sizes = [16, 32], strides = [1, 1]} : vector<16x256xbf16> to vector<16x32xbf16>
    %79 = vector.extract_strided_slice %37 {offsets = [0, 64], sizes = [16, 32], strides = [1, 1]} : vector<16x256xbf16> to vector<16x32xbf16>
    %cst_29 = arith.constant dense<0.000000e+00> : vector<16x16xf32>
    %80 = tpu.matmul %78, %79, %cst_29 {dimension_numbers = #tpu.dot_dimension_numbers<[1], [1], [0], [0], [0, 0, 1, 0], [], []>} : vector<16x32xbf16>, vector<16x32xbf16>, vector<16x16xf32> -> vector<16x16xf32>
    %c2 = arith.constant 2 : index
    %c0_30 = arith.constant 0 : index
    %c0_31 = arith.constant 0 : index
    %81 = vector.load %arg2[%c2, %c0_30, %c0_31] : memref<8x16x16xf32, #tpu.memory_space<vmem>>, vector<1x16x16xf32>
    %82 = vector.shape_cast %81 : vector<1x16x16xf32> to vector<16x16xf32>
    %83 = arith.addf %80, %82 : vector<16x16xf32>
    %cst_32 = arith.constant dense<0xFF800000> : vector<16xf32>
    %84 = vector.multi_reduction <maximumf>, %83, %cst_32 [1] : vector<16x16xf32> to vector<16xf32>
    %85 = vector.shape_cast %84 : vector<16xf32> to vector<16x1xf32>
    %86 = vector.broadcast %85 : vector<16x1xf32> to vector<16x16xf32>
    %87 = arith.subf %83, %86 : vector<16x16xf32>
    %88 = math.exp %87 : vector<16x16xf32>
    %cst_33 = arith.constant dense<0.000000e+00> : vector<16xf32>
    %89 = vector.multi_reduction <add>, %88, %cst_33 [1] : vector<16x16xf32> to vector<16xf32>
    %90 = vector.shape_cast %89 : vector<16xf32> to vector<16x1xf32>
    %91 = tpu.reciprocal %90 {approx = true} : vector<16x1xf32> -> vector<16x1xf32>
    %92 = vector.broadcast %91 : vector<16x1xf32> to vector<16x16xf32>
    %93 = arith.mulf %88, %92 : vector<16x16xf32>
    %94 = arith.truncf %93 : vector<16x16xf32> to vector<16x16xbf16>
    %95 = vector.extract_strided_slice %39 {offsets = [0, 64], sizes = [16, 32], strides = [1, 1]} : vector<16x256xbf16> to vector<16x32xbf16>
    %cst_34 = arith.constant dense<0.000000e+00> : vector<16x32xf32>
    %96 = tpu.matmul %94, %95, %cst_34 {dimension_numbers = #tpu.dot_dimension_numbers<[1], [0], [0], [1], [0, 0, 1, 1], [], []>} : vector<16x16xbf16>, vector<16x32xbf16>, vector<16x32xf32> -> vector<16x32xf32>
    %97 = vector.extract_strided_slice %35 {offsets = [0, 96], sizes = [16, 32], strides = [1, 1]} : vector<16x256xbf16> to vector<16x32xbf16>
    %98 = vector.extract_strided_slice %37 {offsets = [0, 96], sizes = [16, 32], strides = [1, 1]} : vector<16x256xbf16> to vector<16x32xbf16>
    %cst_35 = arith.constant dense<0.000000e+00> : vector<16x16xf32>
    %99 = tpu.matmul %97, %98, %cst_35 {dimension_numbers = #tpu.dot_dimension_numbers<[1], [1], [0], [0], [0, 0, 1, 0], [], []>} : vector<16x32xbf16>, vector<16x32xbf16>, vector<16x16xf32> -> vector<16x16xf32>
    %c3 = arith.constant 3 : index
    %c0_36 = arith.constant 0 : index
    %c0_37 = arith.constant 0 : index
    %100 = vector.load %arg2[%c3, %c0_36, %c0_37] : memref<8x16x16xf32, #tpu.memory_space<vmem>>, vector<1x16x16xf32>
    %101 = vector.shape_cast %100 : vector<1x16x16xf32> to vector<16x16xf32>
    %102 = arith.addf %99, %101 : vector<16x16xf32>
    %cst_38 = arith.constant dense<0xFF800000> : vector<16xf32>
    %103 = vector.multi_reduction <maximumf>, %102, %cst_38 [1] : vector<16x16xf32> to vector<16xf32>
    %104 = vector.shape_cast %103 : vector<16xf32> to vector<16x1xf32>
    %105 = vector.broadcast %104 : vector<16x1xf32> to vector<16x16xf32>
    %106 = arith.subf %102, %105 : vector<16x16xf32>
    %107 = math.exp %106 : vector<16x16xf32>
    %cst_39 = arith.constant dense<0.000000e+00> : vector<16xf32>
    %108 = vector.multi_reduction <add>, %107, %cst_39 [1] : vector<16x16xf32> to vector<16xf32>
    %109 = vector.shape_cast %108 : vector<16xf32> to vector<16x1xf32>
    %110 = tpu.reciprocal %109 {approx = true} : vector<16x1xf32> -> vector<16x1xf32>
    %111 = vector.broadcast %110 : vector<16x1xf32> to vector<16x16xf32>
    %112 = arith.mulf %107, %111 : vector<16x16xf32>
    %113 = arith.truncf %112 : vector<16x16xf32> to vector<16x16xbf16>
    %114 = vector.extract_strided_slice %39 {offsets = [0, 96], sizes = [16, 32], strides = [1, 1]} : vector<16x256xbf16> to vector<16x32xbf16>
    %cst_40 = arith.constant dense<0.000000e+00> : vector<16x32xf32>
    %115 = tpu.matmul %113, %114, %cst_40 {dimension_numbers = #tpu.dot_dimension_numbers<[1], [0], [0], [1], [0, 0, 1, 1], [], []>} : vector<16x16xbf16>, vector<16x32xbf16>, vector<16x32xf32> -> vector<16x32xf32>
    %116 = vector.extract_strided_slice %35 {offsets = [0, 128], sizes = [16, 32], strides = [1, 1]} : vector<16x256xbf16> to vector<16x32xbf16>
    %117 = vector.extract_strided_slice %37 {offsets = [0, 128], sizes = [16, 32], strides = [1, 1]} : vector<16x256xbf16> to vector<16x32xbf16>
    %cst_41 = arith.constant dense<0.000000e+00> : vector<16x16xf32>
    %118 = tpu.matmul %116, %117, %cst_41 {dimension_numbers = #tpu.dot_dimension_numbers<[1], [1], [0], [0], [0, 0, 1, 0], [], []>} : vector<16x32xbf16>, vector<16x32xbf16>, vector<16x16xf32> -> vector<16x16xf32>
    %c4 = arith.constant 4 : index
    %c0_42 = arith.constant 0 : index
    %c0_43 = arith.constant 0 : index
    %119 = vector.load %arg2[%c4, %c0_42, %c0_43] : memref<8x16x16xf32, #tpu.memory_space<vmem>>, vector<1x16x16xf32>
    %120 = vector.shape_cast %119 : vector<1x16x16xf32> to vector<16x16xf32>
    %121 = arith.addf %118, %120 : vector<16x16xf32>
    %cst_44 = arith.constant dense<0xFF800000> : vector<16xf32>
    %122 = vector.multi_reduction <maximumf>, %121, %cst_44 [1] : vector<16x16xf32> to vector<16xf32>
    %123 = vector.shape_cast %122 : vector<16xf32> to vector<16x1xf32>
    %124 = vector.broadcast %123 : vector<16x1xf32> to vector<16x16xf32>
    %125 = arith.subf %121, %124 : vector<16x16xf32>
    %126 = math.exp %125 : vector<16x16xf32>
    %cst_45 = arith.constant dense<0.000000e+00> : vector<16xf32>
    %127 = vector.multi_reduction <add>, %126, %cst_45 [1] : vector<16x16xf32> to vector<16xf32>
    %128 = vector.shape_cast %127 : vector<16xf32> to vector<16x1xf32>
    %129 = tpu.reciprocal %128 {approx = true} : vector<16x1xf32> -> vector<16x1xf32>
    %130 = vector.broadcast %129 : vector<16x1xf32> to vector<16x16xf32>
    %131 = arith.mulf %126, %130 : vector<16x16xf32>
    %132 = arith.truncf %131 : vector<16x16xf32> to vector<16x16xbf16>
    %133 = vector.extract_strided_slice %39 {offsets = [0, 128], sizes = [16, 32], strides = [1, 1]} : vector<16x256xbf16> to vector<16x32xbf16>
    %cst_46 = arith.constant dense<0.000000e+00> : vector<16x32xf32>
    %134 = tpu.matmul %132, %133, %cst_46 {dimension_numbers = #tpu.dot_dimension_numbers<[1], [0], [0], [1], [0, 0, 1, 1], [], []>} : vector<16x16xbf16>, vector<16x32xbf16>, vector<16x32xf32> -> vector<16x32xf32>
    %135 = vector.extract_strided_slice %35 {offsets = [0, 160], sizes = [16, 32], strides = [1, 1]} : vector<16x256xbf16> to vector<16x32xbf16>
    %136 = vector.extract_strided_slice %37 {offsets = [0, 160], sizes = [16, 32], strides = [1, 1]} : vector<16x256xbf16> to vector<16x32xbf16>
    %cst_47 = arith.constant dense<0.000000e+00> : vector<16x16xf32>
    %137 = tpu.matmul %135, %136, %cst_47 {dimension_numbers = #tpu.dot_dimension_numbers<[1], [1], [0], [0], [0, 0, 1, 0], [], []>} : vector<16x32xbf16>, vector<16x32xbf16>, vector<16x16xf32> -> vector<16x16xf32>
    %c5 = arith.constant 5 : index
    %c0_48 = arith.constant 0 : index
    %c0_49 = arith.constant 0 : index
    %138 = vector.load %arg2[%c5, %c0_48, %c0_49] : memref<8x16x16xf32, #tpu.memory_space<vmem>>, vector<1x16x16xf32>
    %139 = vector.shape_cast %138 : vector<1x16x16xf32> to vector<16x16xf32>
    %140 = arith.addf %137, %139 : vector<16x16xf32>
    %cst_50 = arith.constant dense<0xFF800000> : vector<16xf32>
    %141 = vector.multi_reduction <maximumf>, %140, %cst_50 [1] : vector<16x16xf32> to vector<16xf32>
    %142 = vector.shape_cast %141 : vector<16xf32> to vector<16x1xf32>
    %143 = vector.broadcast %142 : vector<16x1xf32> to vector<16x16xf32>
    %144 = arith.subf %140, %143 : vector<16x16xf32>
    %145 = math.exp %144 : vector<16x16xf32>
    %cst_51 = arith.constant dense<0.000000e+00> : vector<16xf32>
    %146 = vector.multi_reduction <add>, %145, %cst_51 [1] : vector<16x16xf32> to vector<16xf32>
    %147 = vector.shape_cast %146 : vector<16xf32> to vector<16x1xf32>
    %148 = tpu.reciprocal %147 {approx = true} : vector<16x1xf32> -> vector<16x1xf32>
    %149 = vector.broadcast %148 : vector<16x1xf32> to vector<16x16xf32>
    %150 = arith.mulf %145, %149 : vector<16x16xf32>
    %151 = arith.truncf %150 : vector<16x16xf32> to vector<16x16xbf16>
    %152 = vector.extract_strided_slice %39 {offsets = [0, 160], sizes = [16, 32], strides = [1, 1]} : vector<16x256xbf16> to vector<16x32xbf16>
    %cst_52 = arith.constant dense<0.000000e+00> : vector<16x32xf32>
    %153 = tpu.matmul %151, %152, %cst_52 {dimension_numbers = #tpu.dot_dimension_numbers<[1], [0], [0], [1], [0, 0, 1, 1], [], []>} : vector<16x16xbf16>, vector<16x32xbf16>, vector<16x32xf32> -> vector<16x32xf32>
    %154 = vector.extract_strided_slice %35 {offsets = [0, 192], sizes = [16, 32], strides = [1, 1]} : vector<16x256xbf16> to vector<16x32xbf16>
    %155 = vector.extract_strided_slice %37 {offsets = [0, 192], sizes = [16, 32], strides = [1, 1]} : vector<16x256xbf16> to vector<16x32xbf16>
    %cst_53 = arith.constant dense<0.000000e+00> : vector<16x16xf32>
    %156 = tpu.matmul %154, %155, %cst_53 {dimension_numbers = #tpu.dot_dimension_numbers<[1], [1], [0], [0], [0, 0, 1, 0], [], []>} : vector<16x32xbf16>, vector<16x32xbf16>, vector<16x16xf32> -> vector<16x16xf32>
    %c6 = arith.constant 6 : index
    %c0_54 = arith.constant 0 : index
    %c0_55 = arith.constant 0 : index
    %157 = vector.load %arg2[%c6, %c0_54, %c0_55] : memref<8x16x16xf32, #tpu.memory_space<vmem>>, vector<1x16x16xf32>
    %158 = vector.shape_cast %157 : vector<1x16x16xf32> to vector<16x16xf32>
    %159 = arith.addf %156, %158 : vector<16x16xf32>
    %cst_56 = arith.constant dense<0xFF800000> : vector<16xf32>
    %160 = vector.multi_reduction <maximumf>, %159, %cst_56 [1] : vector<16x16xf32> to vector<16xf32>
    %161 = vector.shape_cast %160 : vector<16xf32> to vector<16x1xf32>
    %162 = vector.broadcast %161 : vector<16x1xf32> to vector<16x16xf32>
    %163 = arith.subf %159, %162 : vector<16x16xf32>
    %164 = math.exp %163 : vector<16x16xf32>
    %cst_57 = arith.constant dense<0.000000e+00> : vector<16xf32>
    %165 = vector.multi_reduction <add>, %164, %cst_57 [1] : vector<16x16xf32> to vector<16xf32>
    %166 = vector.shape_cast %165 : vector<16xf32> to vector<16x1xf32>
    %167 = tpu.reciprocal %166 {approx = true} : vector<16x1xf32> -> vector<16x1xf32>
    %168 = vector.broadcast %167 : vector<16x1xf32> to vector<16x16xf32>
    %169 = arith.mulf %164, %168 : vector<16x16xf32>
    %170 = arith.truncf %169 : vector<16x16xf32> to vector<16x16xbf16>
    %171 = vector.extract_strided_slice %39 {offsets = [0, 192], sizes = [16, 32], strides = [1, 1]} : vector<16x256xbf16> to vector<16x32xbf16>
    %cst_58 = arith.constant dense<0.000000e+00> : vector<16x32xf32>
    %172 = tpu.matmul %170, %171, %cst_58 {dimension_numbers = #tpu.dot_dimension_numbers<[1], [0], [0], [1], [0, 0, 1, 1], [], []>} : vector<16x16xbf16>, vector<16x32xbf16>, vector<16x32xf32> -> vector<16x32xf32>
    %173 = vector.extract_strided_slice %35 {offsets = [0, 224], sizes = [16, 32], strides = [1, 1]} : vector<16x256xbf16> to vector<16x32xbf16>
    %174 = vector.extract_strided_slice %37 {offsets = [0, 224], sizes = [16, 32], strides = [1, 1]} : vector<16x256xbf16> to vector<16x32xbf16>
    %cst_59 = arith.constant dense<0.000000e+00> : vector<16x16xf32>
    %175 = tpu.matmul %173, %174, %cst_59 {dimension_numbers = #tpu.dot_dimension_numbers<[1], [1], [0], [0], [0, 0, 1, 0], [], []>} : vector<16x32xbf16>, vector<16x32xbf16>, vector<16x16xf32> -> vector<16x16xf32>
    %c7 = arith.constant 7 : index
    %c0_60 = arith.constant 0 : index
    %c0_61 = arith.constant 0 : index
    %176 = vector.load %arg2[%c7, %c0_60, %c0_61] : memref<8x16x16xf32, #tpu.memory_space<vmem>>, vector<1x16x16xf32>
    %177 = vector.shape_cast %176 : vector<1x16x16xf32> to vector<16x16xf32>
    %178 = arith.addf %175, %177 : vector<16x16xf32>
    %cst_62 = arith.constant dense<0xFF800000> : vector<16xf32>
    %179 = vector.multi_reduction <maximumf>, %178, %cst_62 [1] : vector<16x16xf32> to vector<16xf32>
    %180 = vector.shape_cast %179 : vector<16xf32> to vector<16x1xf32>
    %181 = vector.broadcast %180 : vector<16x1xf32> to vector<16x16xf32>
    %182 = arith.subf %178, %181 : vector<16x16xf32>
    %183 = math.exp %182 : vector<16x16xf32>
    %cst_63 = arith.constant dense<0.000000e+00> : vector<16xf32>
    %184 = vector.multi_reduction <add>, %183, %cst_63 [1] : vector<16x16xf32> to vector<16xf32>
    %185 = vector.shape_cast %184 : vector<16xf32> to vector<16x1xf32>
    %186 = tpu.reciprocal %185 {approx = true} : vector<16x1xf32> -> vector<16x1xf32>
    %187 = vector.broadcast %186 : vector<16x1xf32> to vector<16x16xf32>
    %188 = arith.mulf %183, %187 : vector<16x16xf32>
    %189 = arith.truncf %188 : vector<16x16xf32> to vector<16x16xbf16>
    %190 = vector.extract_strided_slice %39 {offsets = [0, 224], sizes = [16, 32], strides = [1, 1]} : vector<16x256xbf16> to vector<16x32xbf16>
    %cst_64 = arith.constant dense<0.000000e+00> : vector<16x32xf32>
    %191 = tpu.matmul %189, %190, %cst_64 {dimension_numbers = #tpu.dot_dimension_numbers<[1], [0], [0], [1], [0, 0, 1, 1], [], []>} : vector<16x16xbf16>, vector<16x32xbf16>, vector<16x32xf32> -> vector<16x32xf32>
    %192 = tpu.concatenate %58, %77, %96, %115, %134, %153, %172, %191 in 1 : vector<16x32xf32>, vector<16x32xf32>, vector<16x32xf32>, vector<16x32xf32>, vector<16x32xf32>, vector<16x32xf32>, vector<16x32xf32>, vector<16x32xf32> -> vector<16x256xf32>
    %193 = arith.truncf %192 : vector<16x256xf32> to vector<16x256xbf16>
    %c0_65 = arith.constant 0 : index
    %c0_66 = arith.constant 0 : index
    %c0_67 = arith.constant 0 : index
    %194 = vector.load %arg6[%c0_65, %c0_66, %c0_67] : memref<1x256x256xbf16, #tpu.memory_space<vmem>>, vector<1x256x256xbf16>
    %195 = vector.shape_cast %194 : vector<1x256x256xbf16> to vector<256x256xbf16>
    %cst_68 = arith.constant dense<0.000000e+00> : vector<16x256xf32>
    %196 = tpu.matmul %193, %195, %cst_68 {dimension_numbers = #tpu.dot_dimension_numbers<[1], [0], [0], [1], [0, 0, 1, 1], [], []>} : vector<16x256xbf16>, vector<256x256xbf16>, vector<16x256xf32> -> vector<16x256xf32>
    %197 = arith.addf %3, %196 : vector<16x256xf32>
    %c0_69 = arith.constant 0 : index
    %c0_70 = arith.constant 0 : index
    %c0_71 = arith.constant 0 : index
    %198 = vector.load %arg7[%c0_69, %c0_70, %c0_71] : memref<1x1x256xf32, #tpu.memory_space<vmem>>, vector<1x1x256xf32>
    %199 = vector.shape_cast %198 : vector<1x1x256xf32> to vector<1x256xf32>
    %c0_72 = arith.constant 0 : index
    %c0_73 = arith.constant 0 : index
    %c0_74 = arith.constant 0 : index
    %200 = vector.load %arg8[%c0_72, %c0_73, %c0_74] : memref<1x1x256xf32, #tpu.memory_space<vmem>>, vector<1x1x256xf32>
    %201 = vector.shape_cast %200 : vector<1x1x256xf32> to vector<1x256xf32>
    %cst_75 = arith.constant dense<0.000000e+00> : vector<16xf32>
    %202 = vector.multi_reduction <add>, %197, %cst_75 [1] : vector<16x256xf32> to vector<16xf32>
    %203 = vector.shape_cast %202 : vector<16xf32> to vector<16x1xf32>
    %cst_76 = arith.constant 2.560000e+02 : f32
    %204 = vector.broadcast %cst_76 : f32 to vector<16x1xf32>
    %205 = arith.divf %203, %204 : vector<16x1xf32>
    %206 = vector.broadcast %205 : vector<16x1xf32> to vector<16x256xf32>
    %207 = arith.subf %197, %206 : vector<16x256xf32>
    %208 = arith.mulf %207, %207 : vector<16x256xf32>
    %cst_77 = arith.constant dense<0.000000e+00> : vector<16xf32>
    %209 = vector.multi_reduction <add>, %208, %cst_77 [1] : vector<16x256xf32> to vector<16xf32>
    %210 = vector.shape_cast %209 : vector<16xf32> to vector<16x1xf32>
    %cst_78 = arith.constant 2.560000e+02 : f32
    %211 = vector.broadcast %cst_78 : f32 to vector<16x1xf32>
    %212 = arith.divf %210, %211 : vector<16x1xf32>
    %213 = vector.broadcast %205 : vector<16x1xf32> to vector<16x256xf32>
    %214 = arith.subf %197, %213 : vector<16x256xf32>
    %cst_79 = arith.constant 9.99999974E-6 : f32
    %215 = vector.broadcast %cst_79 : f32 to vector<16x1xf32>
    %216 = arith.addf %212, %215 : vector<16x1xf32>
    %217 = math.rsqrt %216 : vector<16x1xf32>
    %218 = vector.broadcast %217 : vector<16x1xf32> to vector<16x256xf32>
    %219 = arith.mulf %214, %218 : vector<16x256xf32>
    %220 = vector.broadcast %199 : vector<1x256xf32> to vector<16x256xf32>
    %221 = arith.mulf %219, %220 : vector<16x256xf32>
    %222 = vector.broadcast %201 : vector<1x256xf32> to vector<16x256xf32>
    %223 = arith.addf %221, %222 : vector<16x256xf32>
    %224 = arith.truncf %223 : vector<16x256xf32> to vector<16x256xbf16>
    %c0_80 = arith.constant 0 : index
    %c0_81 = arith.constant 0 : index
    %c0_82 = arith.constant 0 : index
    %225 = vector.load %arg9[%c0_80, %c0_81, %c0_82] : memref<1x256x1024xbf16, #tpu.memory_space<vmem>>, vector<1x256x1024xbf16>
    %226 = vector.shape_cast %225 : vector<1x256x1024xbf16> to vector<256x1024xbf16>
    %cst_83 = arith.constant dense<0.000000e+00> : vector<16x1024xf32>
    %227 = tpu.matmul %224, %226, %cst_83 {dimension_numbers = #tpu.dot_dimension_numbers<[1], [0], [0], [1], [0, 0, 1, 1], [], []>} : vector<16x256xbf16>, vector<256x1024xbf16>, vector<16x1024xf32> -> vector<16x1024xf32>
    %c0_84 = arith.constant 0 : index
    %c0_85 = arith.constant 0 : index
    %c0_86 = arith.constant 0 : index
    %228 = vector.load %arg10[%c0_84, %c0_85, %c0_86] : memref<1x1x1024xf32, #tpu.memory_space<vmem>>, vector<1x1x1024xf32>
    %229 = vector.shape_cast %228 : vector<1x1x1024xf32> to vector<1x1024xf32>
    %230 = vector.broadcast %229 : vector<1x1024xf32> to vector<16x1024xf32>
    %231 = arith.addf %227, %230 : vector<16x1024xf32>
    %cst_87 = arith.constant 5.000000e-01 : f32
    %232 = vector.broadcast %cst_87 : f32 to vector<16x1024xf32>
    %233 = arith.mulf %232, %231 : vector<16x1024xf32>
    %cst_88 = arith.constant 0.707106769 : f32
    %234 = vector.broadcast %cst_88 : f32 to vector<16x1024xf32>
    %235 = arith.mulf %231, %234 : vector<16x1024xf32>
    %236 = math.absf %235 : vector<16x1024xf32>
    %cst_89 = arith.constant 0.327591091 : f32
    %237 = vector.broadcast %cst_89 : f32 to vector<16x1024xf32>
    %238 = arith.mulf %237, %236 : vector<16x1024xf32>
    %cst_90 = arith.constant 1.000000e+00 : f32
    %239 = vector.broadcast %cst_90 : f32 to vector<16x1024xf32>
    %240 = arith.addf %239, %238 : vector<16x1024xf32>
    %cst_91 = arith.constant 1.000000e+00 : f32
    %241 = vector.broadcast %cst_91 : f32 to vector<16x1024xf32>
    %242 = arith.divf %241, %240 : vector<16x1024xf32>
    %cst_92 = arith.constant 1.06140542 : f32
    %243 = vector.broadcast %cst_92 : f32 to vector<16x1024xf32>
    %244 = arith.mulf %243, %242 : vector<16x1024xf32>
    %cst_93 = arith.constant -1.45315206 : f32
    %245 = vector.broadcast %cst_93 : f32 to vector<16x1024xf32>
    %246 = arith.addf %244, %245 : vector<16x1024xf32>
    %247 = arith.mulf %246, %242 : vector<16x1024xf32>
    %cst_94 = arith.constant 1.42141378 : f32
    %248 = vector.broadcast %cst_94 : f32 to vector<16x1024xf32>
    %249 = arith.addf %247, %248 : vector<16x1024xf32>
    %250 = arith.mulf %249, %242 : vector<16x1024xf32>
    %cst_95 = arith.constant -0.284496725 : f32
    %251 = vector.broadcast %cst_95 : f32 to vector<16x1024xf32>
    %252 = arith.addf %250, %251 : vector<16x1024xf32>
    %253 = arith.mulf %252, %242 : vector<16x1024xf32>
    %cst_96 = arith.constant 0.254829586 : f32
    %254 = vector.broadcast %cst_96 : f32 to vector<16x1024xf32>
    %255 = arith.addf %253, %254 : vector<16x1024xf32>
    %256 = arith.mulf %255, %242 : vector<16x1024xf32>
    %cst_97 = arith.constant 0.000000e+00 : f32
    %257 = vector.broadcast %cst_97 : f32 to vector<16x1024xf32>
    %258 = arith.subf %257, %236 : vector<16x1024xf32>
    %259 = arith.mulf %258, %236 : vector<16x1024xf32>
    %260 = math.exp %259 : vector<16x1024xf32>
    %261 = arith.mulf %256, %260 : vector<16x1024xf32>
    %cst_98 = arith.constant 1.000000e+00 : f32
    %262 = vector.broadcast %cst_98 : f32 to vector<16x1024xf32>
    %263 = arith.subf %262, %261 : vector<16x1024xf32>
    %cst_99 = arith.constant 0.000000e+00 : f32
    %264 = vector.broadcast %cst_99 : f32 to vector<16x1024xf32>
    %265 = arith.cmpf oge, %235, %264 : vector<16x1024xf32>
    %cst_100 = arith.constant 0.000000e+00 : f32
    %266 = vector.broadcast %cst_100 : f32 to vector<16x1024xf32>
    %267 = arith.subf %266, %263 : vector<16x1024xf32>
    %268 = arith.select %265, %263, %267 : vector<16x1024xi1>, vector<16x1024xf32>
    %cst_101 = arith.constant 1.000000e+00 : f32
    %269 = vector.broadcast %cst_101 : f32 to vector<16x1024xf32>
    %270 = arith.addf %269, %268 : vector<16x1024xf32>
    %271 = arith.mulf %233, %270 : vector<16x1024xf32>
    %272 = arith.truncf %271 : vector<16x1024xf32> to vector<16x1024xbf16>
    %c0_102 = arith.constant 0 : index
    %c0_103 = arith.constant 0 : index
    %c0_104 = arith.constant 0 : index
    %273 = vector.load %arg11[%c0_102, %c0_103, %c0_104] : memref<1x1024x256xbf16, #tpu.memory_space<vmem>>, vector<1x1024x256xbf16>
    %274 = vector.shape_cast %273 : vector<1x1024x256xbf16> to vector<1024x256xbf16>
    %cst_105 = arith.constant dense<0.000000e+00> : vector<16x256xf32>
    %275 = tpu.matmul %272, %274, %cst_105 {dimension_numbers = #tpu.dot_dimension_numbers<[1], [0], [0], [1], [0, 0, 1, 1], [], []>} : vector<16x1024xbf16>, vector<1024x256xbf16>, vector<16x256xf32> -> vector<16x256xf32>
    %276 = arith.addf %197, %275 : vector<16x256xf32>
    %c0_106 = arith.constant 0 : index
    %c0_107 = arith.constant 0 : index
    %c0_108 = arith.constant 0 : index
    %277 = vector.load %arg12[%c0_106, %c0_107, %c0_108] : memref<1x1x256xf32, #tpu.memory_space<vmem>>, vector<1x1x256xf32>
    %278 = vector.shape_cast %277 : vector<1x1x256xf32> to vector<1x256xf32>
    %279 = vector.broadcast %278 : vector<1x256xf32> to vector<16x256xf32>
    %280 = arith.addf %276, %279 : vector<16x256xf32>
    %c7_i32 = arith.constant 7 : i32
    %281 = arith.cmpi slt, %arg0, %c7_i32 : i32
    %282 = arith.extui %281 : i1 to i32
    %c0_i32_109 = arith.constant 0 : i32
    %283 = arith.cmpi ne, %282, %c0_i32_109 : i32
    scf.if %283 {
      %c0_112 = arith.constant 0 : index
      %c0_113 = arith.constant 0 : index
      %287 = vector.load %arg19[%c0_112, %c0_113] : memref<16x256xf32, #tpu.memory_space<vmem>>, vector<16x256xf32>
      tpu.vector_store %arg19[%c0_112, %c0_113], %280 {strides = array<i32>} : memref<16x256xf32, #tpu.memory_space<vmem>>, vector<16x256xf32>,
    } else {
    }
    %c7_i32_110 = arith.constant 7 : i32
    %284 = arith.cmpi eq, %arg0, %c7_i32_110 : i32
    %285 = arith.extui %284 : i1 to i32
    %c0_i32_111 = arith.constant 0 : i32
    %286 = arith.cmpi ne, %285, %c0_i32_111 : i32
    scf.if %286 {
      %c0_112 = arith.constant 0 : index
      %c0_113 = arith.constant 0 : index
      %287 = vector.load %arg13[%c0_112, %c0_113] : memref<1x256xf32, #tpu.memory_space<vmem>>, vector<1x256xf32>
      %c0_114 = arith.constant 0 : index
      %c0_115 = arith.constant 0 : index
      %288 = vector.load %arg14[%c0_114, %c0_115] : memref<1x256xf32, #tpu.memory_space<vmem>>, vector<1x256xf32>
      %cst_116 = arith.constant dense<0.000000e+00> : vector<16xf32>
      %289 = vector.multi_reduction <add>, %280, %cst_116 [1] : vector<16x256xf32> to vector<16xf32>
      %290 = vector.shape_cast %289 : vector<16xf32> to vector<16x1xf32>
      %cst_117 = arith.constant 2.560000e+02 : f32
      %291 = vector.broadcast %cst_117 : f32 to vector<16x1xf32>
      %292 = arith.divf %290, %291 : vector<16x1xf32>
      %293 = vector.broadcast %292 : vector<16x1xf32> to vector<16x256xf32>
      %294 = arith.subf %280, %293 : vector<16x256xf32>
      %295 = arith.mulf %294, %294 : vector<16x256xf32>
      %cst_118 = arith.constant dense<0.000000e+00> : vector<16xf32>
      %296 = vector.multi_reduction <add>, %295, %cst_118 [1] : vector<16x256xf32> to vector<16xf32>
      %297 = vector.shape_cast %296 : vector<16xf32> to vector<16x1xf32>
      %cst_119 = arith.constant 2.560000e+02 : f32
      %298 = vector.broadcast %cst_119 : f32 to vector<16x1xf32>
      %299 = arith.divf %297, %298 : vector<16x1xf32>
      %300 = vector.broadcast %292 : vector<16x1xf32> to vector<16x256xf32>
      %301 = arith.subf %280, %300 : vector<16x256xf32>
      %cst_120 = arith.constant 9.99999974E-6 : f32
      %302 = vector.broadcast %cst_120 : f32 to vector<16x1xf32>
      %303 = arith.addf %299, %302 : vector<16x1xf32>
      %304 = math.rsqrt %303 : vector<16x1xf32>
      %305 = vector.broadcast %304 : vector<16x1xf32> to vector<16x256xf32>
      %306 = arith.mulf %301, %305 : vector<16x256xf32>
      %307 = vector.broadcast %287 : vector<1x256xf32> to vector<16x256xf32>
      %308 = arith.mulf %306, %307 : vector<16x256xf32>
      %309 = vector.broadcast %288 : vector<1x256xf32> to vector<16x256xf32>
      %310 = arith.addf %308, %309 : vector<16x256xf32>
      %311 = arith.truncf %310 : vector<16x256xf32> to vector<16x256xbf16>
      %c0_121 = arith.constant 0 : index
      %c0_122 = arith.constant 0 : index
      %312 = vector.load %arg15[%c0_121, %c0_122] : memref<256x256xbf16, #tpu.memory_space<vmem>>, vector<256x256xbf16>
      %cst_123 = arith.constant dense<0.000000e+00> : vector<16x256xf32>
      %313 = tpu.matmul %311, %312, %cst_123 {dimension_numbers = #tpu.dot_dimension_numbers<[1], [0], [0], [1], [0, 0, 1, 1], [], []>} : vector<16x256xbf16>, vector<256x256xbf16>, vector<16x256xf32> -> vector<16x256xf32>
      %c0_124 = arith.constant 0 : index
      %c0_125 = arith.constant 0 : index
      %314 = vector.load %arg16[%c0_124, %c0_125] : memref<1x256xf32, #tpu.memory_space<vmem>>, vector<1x256xf32>
      %315 = vector.broadcast %314 : vector<1x256xf32> to vector<16x256xf32>
      %316 = arith.addf %313, %315 : vector<16x256xf32>
      %c0_126 = arith.constant 0 : index
      %c0_127 = arith.constant 0 : index
      %317 = vector.load %arg19[%c0_126, %c0_127] : memref<16x256xf32, #tpu.memory_space<vmem>>, vector<16x256xf32>
      tpu.vector_store %arg19[%c0_126, %c0_127], %316 {strides = array<i32>} : memref<16x256xf32, #tpu.memory_space<vmem>>, vector<16x256xf32>,
      %c0_128 = arith.constant 0 : index
      %c0_129 = arith.constant 0 : index
      %318 = vector.load %arg17[%c0_128, %c0_129] : memref<256x256xbf16, #tpu.memory_space<vmem>>, vector<256x256xbf16>
      %cst_130 = arith.constant dense<0.000000e+00> : vector<16x256xf32>
      %319 = tpu.matmul %311, %318, %cst_130 {dimension_numbers = #tpu.dot_dimension_numbers<[1], [0], [0], [1], [0, 0, 1, 1], [], []>} : vector<16x256xbf16>, vector<256x256xbf16>, vector<16x256xf32> -> vector<16x256xf32>
      %c0_131 = arith.constant 0 : index
      %c0_132 = arith.constant 0 : index
      %320 = vector.load %arg18[%c0_131, %c0_132] : memref<1x256xf32, #tpu.memory_space<vmem>>, vector<1x256xf32>
      %321 = vector.broadcast %320 : vector<1x256xf32> to vector<16x256xf32>
      %322 = arith.addf %319, %321 : vector<16x256xf32>
      %c0_133 = arith.constant 0 : index
      %c0_134 = arith.constant 0 : index
      %323 = vector.load %arg20[%c0_133, %c0_134] : memref<16x256xf32, #tpu.memory_space<vmem>>, vector<16x256xf32>
      tpu.vector_store %arg20[%c0_133, %c0_134], %322 {strides = array<i32>} : memref<16x256xf32, #tpu.memory_space<vmem>>, vector<16x256xf32>,
    } else {
    }
    return
  }
  func.func @transform_0(%arg0: i32) -> (i32, i32) {
    %c0_i32 = arith.constant 0 : i32
    %c0_i32_0 = arith.constant 0 : i32
    %c0_i32_1 = arith.constant 0 : i32
    return %c0_i32, %c0_i32_0 : i32, i32
  }
  func.func @transform_1(%arg0: i32) -> (i32, i32, i32) {
    %c0_i32 = arith.constant 0 : i32
    %c0_i32_0 = arith.constant 0 : i32
    %c0_i32_1 = arith.constant 0 : i32
    %c0_i32_2 = arith.constant 0 : i32
    return %c0_i32, %c0_i32_0, %c0_i32_1 : i32, i32, i32
  }
  func.func @transform_2(%arg0: i32) -> (i32, i32, i32) {
    %c0_i32 = arith.constant 0 : i32
    %c0_i32_0 = arith.constant 0 : i32
    %c0_i32_1 = arith.constant 0 : i32
    return %arg0, %c0_i32, %c0_i32_0 : i32, i32, i32
  }
  func.func @transform_3(%arg0: i32) -> (i32, i32, i32) {
    %c0_i32 = arith.constant 0 : i32
    %c0_i32_0 = arith.constant 0 : i32
    %c0_i32_1 = arith.constant 0 : i32
    return %arg0, %c0_i32, %c0_i32_0 : i32, i32, i32
  }
  func.func @transform_4(%arg0: i32) -> (i32, i32, i32) {
    %c0_i32 = arith.constant 0 : i32
    %c0_i32_0 = arith.constant 0 : i32
    %c0_i32_1 = arith.constant 0 : i32
    return %arg0, %c0_i32, %c0_i32_0 : i32, i32, i32
  }
  func.func @transform_5(%arg0: i32) -> (i32, i32, i32) {
    %c0_i32 = arith.constant 0 : i32
    %c0_i32_0 = arith.constant 0 : i32
    %c0_i32_1 = arith.constant 0 : i32
    return %arg0, %c0_i32, %c0_i32_0 : i32, i32, i32
  }
  func.func @transform_6(%arg0: i32) -> (i32, i32, i32) {
    %c0_i32 = arith.constant 0 : i32
    %c0_i32_0 = arith.constant 0 : i32
    %c0_i32_1 = arith.constant 0 : i32
    return %arg0, %c0_i32, %c0_i32_0 : i32, i32, i32
  }
  func.func @transform_7(%arg0: i32) -> (i32, i32, i32) {
    %c0_i32 = arith.constant 0 : i32
    %c0_i32_0 = arith.constant 0 : i32
    %c0_i32_1 = arith.constant 0 : i32
    return %arg0, %c0_i32, %c0_i32_0 : i32, i32, i32
  }
  func.func @transform_8(%arg0: i32) -> (i32, i32, i32) {
    %c0_i32 = arith.constant 0 : i32
    %c0_i32_0 = arith.constant 0 : i32
    %c0_i32_1 = arith.constant 0 : i32
    return %arg0, %c0_i32, %c0_i32_0 : i32, i32, i32
  }
  func.func @transform_9(%arg0: i32) -> (i32, i32, i32) {
    %c0_i32 = arith.constant 0 : i32
    %c0_i32_0 = arith.constant 0 : i32
    %c0_i32_1 = arith.constant 0 : i32
    return %arg0, %c0_i32, %c0_i32_0 : i32, i32, i32
  }
  func.func @transform_10(%arg0: i32) -> (i32, i32, i32) {
    %c0_i32 = arith.constant 0 : i32
    %c0_i32_0 = arith.constant 0 : i32
    %c0_i32_1 = arith.constant 0 : i32
    return %arg0, %c0_i32, %c0_i32_0 : i32, i32, i32
  }
  func.func @transform_11(%arg0: i32) -> (i32, i32, i32) {
    %c0_i32 = arith.constant 0 : i32
    %c0_i32_0 = arith.constant 0 : i32
    %c0_i32_1 = arith.constant 0 : i32
    return %arg0, %c0_i32, %c0_i32_0 : i32, i32, i32
  }
  func.func @transform_12(%arg0: i32) -> (i32, i32) {
    %c0_i32 = arith.constant 0 : i32
    %c0_i32_0 = arith.constant 0 : i32
    %c0_i32_1 = arith.constant 0 : i32
    return %c0_i32, %c0_i32_0 : i32, i32
  }
  func.func @transform_13(%arg0: i32) -> (i32, i32) {
    %c0_i32 = arith.constant 0 : i32
    %c0_i32_0 = arith.constant 0 : i32
    %c0_i32_1 = arith.constant 0 : i32
    return %c0_i32, %c0_i32_0 : i32, i32
  }
  func.func @transform_14(%arg0: i32) -> (i32, i32) {
    %c0_i32 = arith.constant 0 : i32
    %c0_i32_0 = arith.constant 0 : i32
    %c0_i32_1 = arith.constant 0 : i32
    return %c0_i32, %c0_i32_0 : i32, i32
  }
  func.func @transform_15(%arg0: i32) -> (i32, i32) {
    %c0_i32 = arith.constant 0 : i32
    %c0_i32_0 = arith.constant 0 : i32
    %c0_i32_1 = arith.constant 0 : i32
    return %c0_i32, %c0_i32_0 : i32, i32
  }
  func.func @transform_16(%arg0: i32) -> (i32, i32) {
    %c0_i32 = arith.constant 0 : i32
    %c0_i32_0 = arith.constant 0 : i32
    %c0_i32_1 = arith.constant 0 : i32
    return %c0_i32, %c0_i32_0 : i32, i32
  }
  func.func @transform_17(%arg0: i32) -> (i32, i32) {
    %c0_i32 = arith.constant 0 : i32
    %c0_i32_0 = arith.constant 0 : i32
    %c0_i32_1 = arith.constant 0 : i32
    return %c0_i32, %c0_i32_0 : i32, i32
  }
  func.func @transform_18(%arg0: i32) -> (i32, i32) {
    %c0_i32 = arith.constant 0 : i32
    %c0_i32_0 = arith.constant 0 : i32
    %c0_i32_1 = arith.constant 0 : i32
    return %c0_i32, %c0_i32_0 : i32, i32
  }
  func.func @transform_19(%arg0: i32) -> (i32, i32) {
    %c0_i32 = arith.constant 0 : i32
    %c0_i32_0 = arith.constant 0 : i32
    %c0_i32_1 = arith.constant 0 : i32
    return %c0_i32, %c0_i32_0 : i32, i32
  }
}

module attributes {stable_mosaic.version = 11 : i64} {
  func.func @pair_kernel(%arg0: i32, %arg1: memref<16x256xf32, #tpu.memory_space<vmem>>, %arg2: memref<16x256xf32, #tpu.memory_space<vmem>>, %arg3: memref<64x256xbf16, #tpu.memory_space<vmem>>, %arg4: memref<256x256xbf16, #tpu.memory_space<vmem>>, %arg5: memref<1x256xf32, #tpu.memory_space<vmem>>, %arg6: memref<2x256xbf16, #tpu.memory_space<vmem>>, %arg7: memref<2x1xf32, #tpu.memory_space<vmem>>, %arg8: memref<2x256xf32, #tpu.memory_space<vmem>>) attributes {dimension_semantics = [#tpu.dimension_semantics<parallel>], iteration_bounds = array<i64: 1>, scalar_prefetch = 0 : i64, scratch_operands = 0 : i64, tpu.core_type = #tpu.core_type<tc>, window_params = [{transform_indices = @transform_0, window_bounds = array<i64: 16, 256>}, {pipeline_mode = #tpu.pipeline_mode<synchronous>, transform_indices = @transform_1, window_bounds = array<i64: 16, 256>}, {pipeline_mode = #tpu.pipeline_mode<synchronous>, transform_indices = @transform_2, window_bounds = array<i64: 64, 256>}, {pipeline_mode = #tpu.pipeline_mode<synchronous>, transform_indices = @transform_3, window_bounds = array<i64: 256, 256>}, {pipeline_mode = #tpu.pipeline_mode<synchronous>, transform_indices = @transform_4, window_bounds = array<i64: 1, 256>}, {pipeline_mode = #tpu.pipeline_mode<synchronous>, transform_indices = @transform_5, window_bounds = array<i64: 2, 256>}, {pipeline_mode = #tpu.pipeline_mode<synchronous>, transform_indices = @transform_6, window_bounds = array<i64: 2, 1>}, {transform_indices = @transform_7, window_bounds = array<i64: 2, 256>}]} {
    %0 = tpu.iota {dimensions = array<i32: 0>} : vector<16x16x64xi32>
    %c16_i32 = arith.constant 16 : i32
    %1 = arith.muli %arg0, %c16_i32 : i32
    %2 = vector.broadcast %1 : i32 to vector<16x16x64xi32>
    %3 = arith.addi %0, %2 : vector<16x16x64xi32>
    %4 = tpu.iota {dimensions = array<i32: 1>} : vector<16x16x64xi32>
    %5 = tpu.iota {dimensions = array<i32: 2>} : vector<16x16x64xi32>
    %6 = arith.subi %3, %4 : vector<16x16x64xi32>
    %c0_i32 = arith.constant 0 : i32
    %7 = vector.broadcast %c0_i32 : i32 to vector<16x16x64xi32>
    %8 = arith.cmpi slt, %6, %7 : vector<16x16x64xi32>
    %c32_i32 = arith.constant 32 : i32
    %c0_i32_0 = arith.constant 0 : i32
    %9 = vector.broadcast %c32_i32 : i32 to vector<16x16x64xi32>
    %10 = vector.broadcast %c0_i32_0 : i32 to vector<16x16x64xi32>
    %11 = arith.select %8, %9, %10 : vector<16x16x64xi1>, vector<16x16x64xi32>
    %c0_i32_1 = arith.constant 0 : i32
    %12 = vector.broadcast %c0_i32_1 : i32 to vector<16x16x64xi32>
    %13 = arith.cmpi slt, %6, %12 : vector<16x16x64xi32>
    %c0_i32_2 = arith.constant 0 : i32
    %14 = vector.broadcast %c0_i32_2 : i32 to vector<16x16x64xi32>
    %15 = arith.subi %14, %6 : vector<16x16x64xi32>
    %16 = arith.select %13, %15, %6 : vector<16x16x64xi1>, vector<16x16x64xi32>
    %c1_i32 = arith.constant 1 : i32
    %17 = vector.broadcast %c1_i32 : i32 to vector<16x16x64xi32>
    %18 = arith.maxsi %16, %17 : vector<16x16x64xi32>
    %19 = arith.sitofp %18 : vector<16x16x64xi32> to vector<16x16x64xf32>
    %cst = arith.constant 6.250000e-02 : f32
    %20 = vector.broadcast %cst : f32 to vector<16x16x64xf32>
    %21 = arith.mulf %19, %20 : vector<16x16x64xf32>
    %22 = math.log %21 : vector<16x16x64xf32>
    %cst_3 = arith.constant 0.360673755 : f32
    %23 = vector.broadcast %cst_3 : f32 to vector<16x16x64xf32>
    %24 = arith.mulf %22, %23 : vector<16x16x64xf32>
    %cst_4 = arith.constant 1.600000e+01 : f32
    %25 = vector.broadcast %cst_4 : f32 to vector<16x16x64xf32>
    %26 = arith.mulf %24, %25 : vector<16x16x64xf32>
    %27 = arith.fptosi %26 : vector<16x16x64xf32> to vector<16x16x64xi32>
    %c16_i32_5 = arith.constant 16 : i32
    %28 = vector.broadcast %c16_i32_5 : i32 to vector<16x16x64xi32>
    %29 = arith.addi %28, %27 : vector<16x16x64xi32>
    %c31_i32 = arith.constant 31 : i32
    %30 = vector.broadcast %c31_i32 : i32 to vector<16x16x64xi32>
    %31 = arith.minsi %29, %30 : vector<16x16x64xi32>
    %c16_i32_6 = arith.constant 16 : i32
    %32 = vector.broadcast %c16_i32_6 : i32 to vector<16x16x64xi32>
    %33 = arith.cmpi slt, %16, %32 : vector<16x16x64xi32>
    %34 = arith.select %33, %16, %31 : vector<16x16x64xi1>, vector<16x16x64xi32>
    %35 = arith.addi %11, %34 : vector<16x16x64xi32>
    %36 = arith.cmpi eq, %35, %5 : vector<16x16x64xi32>
    %cst_7 = arith.constant 1.000000e+00 : f32
    %cst_8 = arith.constant 0.000000e+00 : f32
    %37 = vector.broadcast %cst_7 : f32 to vector<16x16x64xf32>
    %38 = vector.broadcast %cst_8 : f32 to vector<16x16x64xf32>
    %39 = arith.select %36, %37, %38 : vector<16x16x64xi1>, vector<16x16x64xf32>
    %40 = arith.truncf %39 : vector<16x16x64xf32> to vector<16x16x64xbf16>
    %41 = vector.shape_cast %40 : vector<16x16x64xbf16> to vector<256x64xbf16>
    %c0 = arith.constant 0 : index
    %c0_9 = arith.constant 0 : index
    %42 = vector.load %arg3[%c0, %c0_9] : memref<64x256xbf16, #tpu.memory_space<vmem>>, vector<64x256xbf16>
    %cst_10 = arith.constant dense<0.000000e+00> : vector<256x256xf32>
    %43 = tpu.matmul %41, %42, %cst_10 {dimension_numbers = #tpu.dot_dimension_numbers<[1], [0], [0], [1], [0, 0, 1, 1], [], []>} : vector<256x64xbf16>, vector<64x256xbf16>, vector<256x256xf32> -> vector<256x256xf32>
    %c0_11 = arith.constant 0 : index
    %c0_12 = arith.constant 0 : index
    %44 = vector.load %arg1[%c0_11, %c0_12] : memref<16x256xf32, #tpu.memory_space<vmem>>, vector<16x256xf32>
    %45 = vector.shape_cast %44 : vector<16x256xf32> to vector<16x1x256xf32>
    %46 = vector.broadcast %45 : vector<16x1x256xf32> to vector<16x16x256xf32>
    %c0_13 = arith.constant 0 : index
    %c0_14 = arith.constant 0 : index
    %47 = vector.load %arg2[%c0_13, %c0_14] : memref<16x256xf32, #tpu.memory_space<vmem>>, vector<16x256xf32>
    %48 = vector.shape_cast %47 : vector<16x256xf32> to vector<1x16x256xf32>
    %49 = vector.broadcast %48 : vector<1x16x256xf32> to vector<16x16x256xf32>
    %50 = arith.mulf %46, %49 : vector<16x16x256xf32>
    %51 = vector.shape_cast %50 : vector<16x16x256xf32> to vector<256x256xf32>
    %52 = arith.addf %51, %43 : vector<256x256xf32>
    %53 = arith.truncf %52 : vector<256x256xf32> to vector<256x256xbf16>
    %c0_15 = arith.constant 0 : index
    %c0_16 = arith.constant 0 : index
    %54 = vector.load %arg4[%c0_15, %c0_16] : memref<256x256xbf16, #tpu.memory_space<vmem>>, vector<256x256xbf16>
    %cst_17 = arith.constant dense<0.000000e+00> : vector<256x256xf32>
    %55 = tpu.matmul %53, %54, %cst_17 {dimension_numbers = #tpu.dot_dimension_numbers<[1], [0], [0], [1], [0, 0, 1, 1], [], []>} : vector<256x256xbf16>, vector<256x256xbf16>, vector<256x256xf32> -> vector<256x256xf32>
    %c0_18 = arith.constant 0 : index
    %c0_19 = arith.constant 0 : index
    %56 = vector.load %arg5[%c0_18, %c0_19] : memref<1x256xf32, #tpu.memory_space<vmem>>, vector<1x256xf32>
    %57 = vector.broadcast %56 : vector<1x256xf32> to vector<256x256xf32>
    %58 = arith.addf %55, %57 : vector<256x256xf32>
    %cst_20 = arith.constant 0.000000e+00 : f32
    %59 = vector.broadcast %cst_20 : f32 to vector<256x256xf32>
    %60 = arith.maximumf %58, %59 : vector<256x256xf32>
    %61 = arith.truncf %60 : vector<256x256xf32> to vector<256x256xbf16>
    %c0_21 = arith.constant 0 : index
    %c0_22 = arith.constant 0 : index
    %62 = vector.load %arg6[%c0_21, %c0_22] : memref<2x256xbf16, #tpu.memory_space<vmem>>, vector<2x256xbf16>
    %cst_23 = arith.constant dense<0.000000e+00> : vector<2x256xf32>
    %63 = tpu.matmul %62, %61, %cst_23 {dimension_numbers = #tpu.dot_dimension_numbers<[1], [1], [0], [0], [0, 0, 1, 0], [], []>} : vector<2x256xbf16>, vector<256x256xbf16>, vector<2x256xf32> -> vector<2x256xf32>
    %c0_24 = arith.constant 0 : index
    %c0_25 = arith.constant 0 : index
    %64 = vector.load %arg7[%c0_24, %c0_25] : memref<2x1xf32, #tpu.memory_space<vmem>>, vector<2x1xf32>
    %65 = vector.broadcast %64 : vector<2x1xf32> to vector<2x256xf32>
    %66 = arith.addf %63, %65 : vector<2x256xf32>
    %c0_26 = arith.constant 0 : index
    %c0_27 = arith.constant 0 : index
    %67 = vector.load %arg8[%c0_26, %c0_27] : memref<2x256xf32, #tpu.memory_space<vmem>>, vector<2x256xf32>
    tpu.vector_store %arg8[%c0_26, %c0_27], %66 {strides = array<i32>} : memref<2x256xf32, #tpu.memory_space<vmem>>, vector<2x256xf32>,
    return
  }
  func.func @transform_0(%arg0: i32) -> (i32, i32) {
    %c0_i32 = arith.constant 0 : i32
    %c0_i32_0 = arith.constant 0 : i32
    return %arg0, %c0_i32 : i32, i32
  }
  func.func @transform_1(%arg0: i32) -> (i32, i32) {
    %c0_i32 = arith.constant 0 : i32
    %c0_i32_0 = arith.constant 0 : i32
    %c0_i32_1 = arith.constant 0 : i32
    return %c0_i32, %c0_i32_0 : i32, i32
  }
  func.func @transform_2(%arg0: i32) -> (i32, i32) {
    %c0_i32 = arith.constant 0 : i32
    %c0_i32_0 = arith.constant 0 : i32
    %c0_i32_1 = arith.constant 0 : i32
    return %c0_i32, %c0_i32_0 : i32, i32
  }
  func.func @transform_3(%arg0: i32) -> (i32, i32) {
    %c0_i32 = arith.constant 0 : i32
    %c0_i32_0 = arith.constant 0 : i32
    %c0_i32_1 = arith.constant 0 : i32
    return %c0_i32, %c0_i32_0 : i32, i32
  }
  func.func @transform_4(%arg0: i32) -> (i32, i32) {
    %c0_i32 = arith.constant 0 : i32
    %c0_i32_0 = arith.constant 0 : i32
    %c0_i32_1 = arith.constant 0 : i32
    return %c0_i32, %c0_i32_0 : i32, i32
  }
  func.func @transform_5(%arg0: i32) -> (i32, i32) {
    %c0_i32 = arith.constant 0 : i32
    %c0_i32_0 = arith.constant 0 : i32
    %c0_i32_1 = arith.constant 0 : i32
    return %c0_i32, %c0_i32_0 : i32, i32
  }
  func.func @transform_6(%arg0: i32) -> (i32, i32) {
    %c0_i32 = arith.constant 0 : i32
    %c0_i32_0 = arith.constant 0 : i32
    %c0_i32_1 = arith.constant 0 : i32
    return %c0_i32, %c0_i32_0 : i32, i32
  }
  func.func @transform_7(%arg0: i32) -> (i32, i32) {
    %c0_i32 = arith.constant 0 : i32
    %c0_i32_0 = arith.constant 0 : i32
    return %c0_i32, %arg0 : i32, i32
  }
}

</mosaic_0001>

<llo_original>
// kernel: main_model_forward.3
$region0: #{main_model_forward.3}
  #allocation0 [shape = 'u32[]', space=smem, size = 0x4, offset = 0x4, fixed_abs, tag = 'smem constant byte address 0x4 - core index']
  #allocation1 [shape = 'u32[144,128]{1,0:T(1,128)}', space=vmem, size = 0x12000, scoped, tag = 'internal scratch']
  %s0 = inlined_call_operand.vmem [shape: f32[16,256], index: 0, kind: input, shape index: {}]
  %s1 = inlined_call_operand.vmem [shape: f32[16,256], index: 1, kind: input, shape index: {}]
  %s2 = inlined_call_operand.vmem [shape: bf16[64,256], index: 2, kind: input, shape index: {}]
  %s3 = inlined_call_operand.vmem [shape: bf16[256,256], index: 3, kind: input, shape index: {}]
  %s4 = inlined_call_operand.vmem [shape: f32[1,256], index: 4, kind: input, shape index: {}]
  %s5 = inlined_call_operand.vmem [shape: bf16[2,256], index: 5, kind: input, shape index: {}]
  %s6 = inlined_call_operand.vmem [shape: f32[2,1], index: 6, kind: input, shape index: {}]
  %s7 = inlined_call_operand.vmem [shape: f32[2,256], index: 7, kind: output, shape index: {}]
  %s8 = sld [smem:[#allocation0]]
  $region38: #{main_model_forward.3} parent=0
    _
  %s10 = ssub.s32 1, %s8
  %s11 = scalar_select 0, %s10, %s8
  // Predicated region
  $region2: #{main_model_forward.3} parent=0 // pred_check
    _
  $region3: #{main_model_forward.3} parent=0 // pred_check_branch
    %13 = sbr.rel (0) target = $region5
  $region4: #{main_model_forward.3} parent=0 // pred_region
    _
  $region5: #{main_model_forward.3} parent=0 // pred_fallthru
    _
  // Predicated region
  $region6: #{main_model_forward.3} parent=0 // pred_check
    _
  $region7: #{main_model_forward.3} parent=0 // pred_check_branch
    %15 = sbr.rel (0) target = $region9
  $region8: #{main_model_forward.3} parent=0 // pred_region
    _
  $region9: #{main_model_forward.3} parent=0 // pred_fallthru
    _
  // Predicated region
  $region10: #{main_model_forward.3} parent=0 // pred_check
    _
  $region11: #{main_model_forward.3} parent=0 // pred_check_branch
    %17 = sbr.rel (0) target = $region13
  $region12: #{main_model_forward.3} parent=0 // pred_region
    _
  $region13: #{main_model_forward.3} parent=0 // pred_fallthru
    _
  // Predicated region
  $region14: #{main_model_forward.3} parent=0 // pred_check
    _
  $region15: #{main_model_forward.3} parent=0 // pred_check_branch
    %19 = sbr.rel (0) target = $region17
  $region16: #{main_model_forward.3} parent=0 // pred_region
    _
  $region17: #{main_model_forward.3} parent=0 // pred_fallthru
    _
  // Predicated region
  $region18: #{main_model_forward.3} parent=0 // pred_check
    _
  $region19: #{main_model_forward.3} parent=0 // pred_check_branch
    %21 = sbr.rel (0) target = $region21
  $region20: #{main_model_forward.3} parent=0 // pred_region
    _
  $region21: #{main_model_forward.3} parent=0 // pred_fallthru
    _
  // Predicated region
  $region22: #{main_model_forward.3} parent=0 // pred_check
    _
  $region23: #{main_model_forward.3} parent=0 // pred_check_branch
    %23 = sbr.rel (0) target = $region25
  $region24: #{main_model_forward.3} parent=0 // pred_region
    _
  $region25: #{main_model_forward.3} parent=0 // pred_fallthru
    _
  // Predicated region
  $region26: #{main_model_forward.3} parent=0 // pred_check
    _
  $region27: #{main_model_forward.3} parent=0 // pred_check_branch
    %25 = sbr.rel (0) target = $region29
  $region28: #{main_model_forward.3} parent=0 // pred_region
    _
  $region29: #{main_model_forward.3} parent=0 // pred_fallthru
    _
  %s27 = smul.u32 0, 16
  %v28 = vstv %s27
  %v29 = vadd.s32 %v28, 1
  %v30 = vadd.s32 %v28, 2
  %v31 = vadd.s32 %v28, 3
  %v32 = vadd.s32 %v28, 4
  %v33 = vadd.s32 %v28, 5
  %v34 = vadd.s32 %v28, 6
  %v35 = vadd.s32 %v28, 7
  %v36 = vadd.s32 %v28, 8
  %v37 = vadd.s32 %v28, 9
  %v38 = vadd.s32 %v28, 10
  %v39 = vadd.s32 %v28, 11
  %v40 = vadd.s32 %v28, 12
  %v41 = vadd.s32 %v28, 13
  %v42 = vadd.s32 %v28, 14
  %v43 = vadd.s32 %v28, 15
  %v44 = vlaneseq
  %v45 = vshrl.u32 %v44, 7
  %v46 = vadd.s32 %v45, 8
  %v47 = vlaneseq
  %v48 = vand.u32 %v47, 127
  %v49 = vsub.s32 %v28, %v45
  %v50 = vsub.s32 %v28, %v46
  %v51 = vsub.s32 %v29, %v45
  %v52 = vsub.s32 %v29, %v46
  %v53 = vsub.s32 %v30, %v45
  %v54 = vsub.s32 %v30, %v46
  %v55 = vsub.s32 %v31, %v45
  %v56 = vsub.s32 %v31, %v46
  %v57 = vsub.s32 %v32, %v45
  %v58 = vsub.s32 %v32, %v46
  %v59 = vsub.s32 %v33, %v45
  %v60 = vsub.s32 %v33, %v46
  %v61 = vsub.s32 %v34, %v45
  %v62 = vsub.s32 %v34, %v46
  %v63 = vsub.s32 %v35, %v45
  %v64 = vsub.s32 %v35, %v46
  %v65 = vsub.s32 %v36, %v45
  %v66 = vsub.s32 %v36, %v46
  %v67 = vsub.s32 %v37, %v45
  %v68 = vsub.s32 %v37, %v46
  %v69 = vsub.s32 %v38, %v45
  %v70 = vsub.s32 %v38, %v46
  %v71 = vsub.s32 %v39, %v45
  %v72 = vsub.s32 %v39, %v46
  %v73 = vsub.s32 %v40, %v45
  %v74 = vsub.s32 %v40, %v46
  %v75 = vsub.s32 %v41, %v45
  %v76 = vsub.s32 %v41, %v46
  %v77 = vsub.s32 %v42, %v45
  %v78 = vsub.s32 %v42, %v46
  %v79 = vsub.s32 %v43, %v45
  %v80 = vsub.s32 %v43, %v46
  %vm81 = vcmp.lt.s32.totalorder %v49, 0
  %vm82 = vcmp.lt.s32.totalorder %v50, 0
  %vm83 = vcmp.lt.s32.totalorder %v51, 0
  %vm84 = vcmp.lt.s32.totalorder %v52, 0
  %vm85 = vcmp.lt.s32.totalorder %v53, 0
  %vm86 = vcmp.lt.s32.totalorder %v54, 0
  %vm87 = vcmp.lt.s32.totalorder %v55, 0
  %vm88 = vcmp.lt.s32.totalorder %v56, 0
  %vm89 = vcmp.lt.s32.totalorder %v57, 0
  %vm90 = vcmp.lt.s32.totalorder %v58, 0
  %vm91 = vcmp.lt.s32.totalorder %v59, 0
  %vm92 = vcmp.lt.s32.totalorder %v60, 0
  %vm93 = vcmp.lt.s32.totalorder %v61, 0
  %vm94 = vcmp.lt.s32.totalorder %v62, 0
  %vm95 = vcmp.lt.s32.totalorder %v63, 0
  %vm96 = vcmp.lt.s32.totalorder %v64, 0
  %vm97 = vcmp.lt.s32.totalorder %v65, 0
  %vm98 = vcmp.lt.s32.totalorder %v66, 0
  %vm99 = vcmp.lt.s32.totalorder %v67, 0
  %vm100 = vcmp.lt.s32.totalorder %v68, 0
  %vm101 = vcmp.lt.s32.totalorder %v69, 0
  %vm102 = vcmp.lt.s32.totalorder %v70, 0
  %vm103 = vcmp.lt.s32.totalorder %v71, 0
  %vm104 = vcmp.lt.s32.totalorder %v72, 0
  %vm105 = vcmp.lt.s32.totalorder %v73, 0
  %vm106 = vcmp.lt.s32.totalorder %v74, 0
  %vm107 = vcmp.lt.s32.totalorder %v75, 0
  %vm108 = vcmp.lt.s32.totalorder %v76, 0
  %vm109 = vcmp.lt.s32.totalorder %v77, 0
  %vm110 = vcmp.lt.s32.totalorder %v78, 0
  %vm111 = vcmp.lt.s32.totalorder %v79, 0
  %vm112 = vcmp.lt.s32.totalorder %v80, 0
  %v113 = vsel %vm81, 32, 0
  %v114 = vsel %vm82, 32, 0
  %v115 = vsel %vm83, 32, 0
  %v116 = vsel %vm84, 32, 0
  %v117 = vsel %vm85, 32, 0
  %v118 = vsel %vm86, 32, 0
  %v119 = vsel %vm87, 32, 0
  %v120 = vsel %vm88, 32, 0
  %v121 = vsel %vm89, 32, 0
  %v122 = vsel %vm90, 32, 0
  %v123 = vsel %vm91, 32, 0
  %v124 = vsel %vm92, 32, 0
  %v125 = vsel %vm93, 32, 0
  %v126 = vsel %vm94, 32, 0
  %v127 = vsel %vm95, 32, 0
  %v128 = vsel %vm96, 32, 0
  %v129 = vsel %vm97, 32, 0
  %v130 = vsel %vm98, 32, 0
  %v131 = vsel %vm99, 32, 0
  %v132 = vsel %vm100, 32, 0
  %v133 = vsel %vm101, 32, 0
  %v134 = vsel %vm102, 32, 0
  %v135 = vsel %vm103, 32, 0
  %v136 = vsel %vm104, 32, 0
  %v137 = vsel %vm105, 32, 0
  %v138 = vsel %vm106, 32, 0
  %v139 = vsel %vm107, 32, 0
  %v140 = vsel %vm108, 32, 0
  %v141 = vsel %vm109, 32, 0
  %v142 = vsel %vm110, 32, 0
  %v143 = vsel %vm111, 32, 0
  %v144 = vsel %vm112, 32, 0
  %v145 = vsub.s32 0, %v49
  %v146 = vsub.s32 0, %v50
  %v147 = vsub.s32 0, %v51
  %v148 = vsub.s32 0, %v52
  %v149 = vsub.s32 0, %v53
  %v150 = vsub.s32 0, %v54
  %v151 = vsub.s32 0, %v55
  %v152 = vsub.s32 0, %v56
  %v153 = vsub.s32 0, %v57
  %v154 = vsub.s32 0, %v58
  %v155 = vsub.s32 0, %v59
  %v156 = vsub.s32 0, %v60
  %v157 = vsub.s32 0, %v61
  %v158 = vsub.s32 0, %v62
  %v159 = vsub.s32 0, %v63
  %v160 = vsub.s32 0, %v64
  %v161 = vsub.s32 0, %v65
  %v162 = vsub.s32 0, %v66
  %v163 = vsub.s32 0, %v67
  %v164 = vsub.s32 0, %v68
  %v165 = vsub.s32 0, %v69
  %v166 = vsub.s32 0, %v70
  %v167 = vsub.s32 0, %v71
  %v168 = vsub.s32 0, %v72
  %v169 = vsub.s32 0, %v73
  %v170 = vsub.s32 0, %v74
  %v171 = vsub.s32 0, %v75
  %v172 = vsub.s32 0, %v76
  %v173 = vsub.s32 0, %v77
  %v174 = vsub.s32 0, %v78
  %v175 = vsub.s32 0, %v79
  %v176 = vsub.s32 0, %v80
  %v177 = vsel %vm81, %v145, %v49
  %v178 = vsel %vm82, %v146, %v50
  %v179 = vsel %vm83, %v147, %v51
  %v180 = vsel %vm84, %v148, %v52
  %v181 = vsel %vm85, %v149, %v53
  %v182 = vsel %vm86, %v150, %v54
  %v183 = vsel %vm87, %v151, %v55
  %v184 = vsel %vm88, %v152, %v56
  %v185 = vsel %vm89, %v153, %v57
  %v186 = vsel %vm90, %v154, %v58
  %v187 = vsel %vm91, %v155, %v59
  %v188 = vsel %vm92, %v156, %v60
  %v189 = vsel %vm93, %v157, %v61
  %v190 = vsel %vm94, %v158, %v62
  %v191 = vsel %vm95, %v159, %v63
  %v192 = vsel %vm96, %v160, %v64
  %v193 = vsel %vm97, %v161, %v65
  %v194 = vsel %vm98, %v162, %v66
  %v195 = vsel %vm99, %v163, %v67
  %v196 = vsel %vm100, %v164, %v68
  %v197 = vsel %vm101, %v165, %v69
  %v198 = vsel %vm102, %v166, %v70
  %v199 = vsel %vm103, %v167, %v71
  %v200 = vsel %vm104, %v168, %v72
  %v201 = vsel %vm105, %v169, %v73
  %v202 = vsel %vm106, %v170, %v74
  %v203 = vsel %vm107, %v171, %v75
  %v204 = vsel %vm108, %v172, %v76
  %v205 = vsel %vm109, %v173, %v77
  %v206 = vsel %vm110, %v174, %v78
  %v207 = vsel %vm111, %v175, %v79
  %v208 = vsel %vm112, %v176, %v80
  %vm209 = vcmp.gt.s32.totalorder %v177, 1
  %v210 = vsel %vm209, %v177, 1
  %vm211 = vcmp.gt.s32.totalorder %v178, 1
  %v212 = vsel %vm211, %v178, 1
  %vm213 = vcmp.gt.s32.totalorder %v179, 1
  %v214 = vsel %vm213, %v179, 1
  %vm215 = vcmp.gt.s32.totalorder %v180, 1
  %v216 = vsel %vm215, %v180, 1
  %vm217 = vcmp.gt.s32.totalorder %v181, 1
  %v218 = vsel %vm217, %v181, 1
  %vm219 = vcmp.gt.s32.totalorder %v182, 1
  %v220 = vsel %vm219, %v182, 1
  %vm221 = vcmp.gt.s32.totalorder %v183, 1
  %v222 = vsel %vm221, %v183, 1
  %vm223 = vcmp.gt.s32.totalorder %v184, 1
  %v224 = vsel %vm223, %v184, 1
  %vm225 = vcmp.gt.s32.totalorder %v185, 1
  %v226 = vsel %vm225, %v185, 1
  %vm227 = vcmp.gt.s32.totalorder %v186, 1
  %v228 = vsel %vm227, %v186, 1
  %vm229 = vcmp.gt.s32.totalorder %v187, 1
  %v230 = vsel %vm229, %v187, 1
  %vm231 = vcmp.gt.s32.totalorder %v188, 1
  %v232 = vsel %vm231, %v188, 1
  %vm233 = vcmp.gt.s32.totalorder %v189, 1
  %v234 = vsel %vm233, %v189, 1
  %vm235 = vcmp.gt.s32.totalorder %v190, 1
  %v236 = vsel %vm235, %v190, 1
  %vm237 = vcmp.gt.s32.totalorder %v191, 1
  %v238 = vsel %vm237, %v191, 1
  %vm239 = vcmp.gt.s32.totalorder %v192, 1
  %v240 = vsel %vm239, %v192, 1
  %vm241 = vcmp.gt.s32.totalorder %v193, 1
  %v242 = vsel %vm241, %v193, 1
  %vm243 = vcmp.gt.s32.totalorder %v194, 1
  %v244 = vsel %vm243, %v194, 1
  %vm245 = vcmp.gt.s32.totalorder %v195, 1
  %v246 = vsel %vm245, %v195, 1
  %vm247 = vcmp.gt.s32.totalorder %v196, 1
  %v248 = vsel %vm247, %v196, 1
  %vm249 = vcmp.gt.s32.totalorder %v197, 1
  %v250 = vsel %vm249, %v197, 1
  %vm251 = vcmp.gt.s32.totalorder %v198, 1
  %v252 = vsel %vm251, %v198, 1
  %vm253 = vcmp.gt.s32.totalorder %v199, 1
  %v254 = vsel %vm253, %v199, 1
  %vm255 = vcmp.gt.s32.totalorder %v200, 1
  %v256 = vsel %vm255, %v200, 1
  %vm257 = vcmp.gt.s32.totalorder %v201, 1
  %v258 = vsel %vm257, %v201, 1
  %vm259 = vcmp.gt.s32.totalorder %v202, 1
  %v260 = vsel %vm259, %v202, 1
  %vm261 = vcmp.gt.s32.totalorder %v203, 1
  %v262 = vsel %vm261, %v203, 1
  %vm263 = vcmp.gt.s32.totalorder %v204, 1
  %v264 = vsel %vm263, %v204, 1
  %vm265 = vcmp.gt.s32.totalorder %v205, 1
  %v266 = vsel %vm265, %v205, 1
  %vm267 = vcmp.gt.s32.totalorder %v206, 1
  %v268 = vsel %vm267, %v206, 1
  %vm269 = vcmp.gt.s32.totalorder %v207, 1
  %v270 = vsel %vm269, %v207, 1
  %vm271 = vcmp.gt.s32.totalorder %v208, 1
  %v272 = vsel %vm271, %v208, 1
  %v273 = vcvt.s32.f32 %v210
  %v274 = vcvt.s32.f32 %v212
  %v275 = vcvt.s32.f32 %v214
  %v276 = vcvt.s32.f32 %v216
  %v277 = vcvt.s32.f32 %v218
  %v278 = vcvt.s32.f32 %v220
  %v279 = vcvt.s32.f32 %v222
  %v280 = vcvt.s32.f32 %v224
  %v281 = vcvt.s32.f32 %v226
  %v282 = vcvt.s32.f32 %v228
  %v283 = vcvt.s32.f32 %v230
  %v284 = vcvt.s32.f32 %v232
  %v285 = vcvt.s32.f32 %v234
  %v286 = vcvt.s32.f32 %v236
  %v287 = vcvt.s32.f32 %v238
  %v288 = vcvt.s32.f32 %v240
  %v289 = vcvt.s32.f32 %v242
  %v290 = vcvt.s32.f32 %v244
  %v291 = vcvt.s32.f32 %v246
  %v292 = vcvt.s32.f32 %v248
  %v293 = vcvt.s32.f32 %v250
  %v294 = vcvt.s32.f32 %v252
  %v295 = vcvt.s32.f32 %v254
  %v296 = vcvt.s32.f32 %v256
  %v297 = vcvt.s32.f32 %v258
  %v298 = vcvt.s32.f32 %v260
  %v299 = vcvt.s32.f32 %v262
  %v300 = vcvt.s32.f32 %v264
  %v301 = vcvt.s32.f32 %v266
  %v302 = vcvt.s32.f32 %v268
  %v303 = vcvt.s32.f32 %v270
  %v304 = vcvt.s32.f32 %v272
  %v305 = vmul.f32 %v273, 0.0625
  %v306 = vmul.f32 %v274, 0.0625
  %v307 = vmul.f32 %v275, 0.0625
  %v308 = vmul.f32 %v276, 0.0625
  %v309 = vmul.f32 %v277, 0.0625
  %v310 = vmul.f32 %v278, 0.0625
  %v311 = vmul.f32 %v279, 0.0625
  %v312 = vmul.f32 %v280, 0.0625
  %v313 = vmul.f32 %v281, 0.0625
  %v314 = vmul.f32 %v282, 0.0625
  %v315 = vmul.f32 %v283, 0.0625
  %v316 = vmul.f32 %v284, 0.0625
  %v317 = vmul.f32 %v285, 0.0625
  %v318 = vmul.f32 %v286, 0.0625
  %v319 = vmul.f32 %v287, 0.0625
  %v320 = vmul.f32 %v288, 0.0625
  %v321 = vmul.f32 %v289, 0.0625
  %v322 = vmul.f32 %v290, 0.0625
  %v323 = vmul.f32 %v291, 0.0625
  %v324 = vmul.f32 %v292, 0.0625
  %v325 = vmul.f32 %v293, 0.0625
  %v326 = vmul.f32 %v294, 0.0625
  %v327 = vmul.f32 %v295, 0.0625
  %v328 = vmul.f32 %v296, 0.0625
  %v329 = vmul.f32 %v297, 0.0625
  %v330 = vmul.f32 %v298, 0.0625
  %v331 = vmul.f32 %v299, 0.0625
  %v332 = vmul.f32 %v300, 0.0625
  %v333 = vmul.f32 %v301, 0.0625
  %v334 = vmul.f32 %v302, 0.0625
  %v335 = vmul.f32 %v303, 0.0625
  %v336 = vmul.f32 %v304, 0.0625
  %v337 = vlog2.pop %v305
  %v338 = vmul.f32 %v337, 0.6931472
  %v339 = vlog2.pop %v306
  %v340 = vmul.f32 %v339, 0.6931472
  %v341 = vlog2.pop %v307
  %v342 = vmul.f32 %v341, 0.6931472
  %v343 = vlog2.pop %v308
  %v344 = vmul.f32 %v343, 0.6931472
  %v345 = vlog2.pop %v309
  %v346 = vmul.f32 %v345, 0.6931472
  %v347 = vlog2.pop %v310
  %v348 = vmul.f32 %v347, 0.6931472
  %v349 = vlog2.pop %v311
  %v350 = vmul.f32 %v349, 0.6931472
  %v351 = vlog2.pop %v312
  %v352 = vmul.f32 %v351, 0.6931472
  %v353 = vlog2.pop %v313
  %v354 = vmul.f32 %v353, 0.6931472
  %v355 = vlog2.pop %v314
  %v356 = vmul.f32 %v355, 0.6931472
  %v357 = vlog2.pop %v315
  %v358 = vmul.f32 %v357, 0.6931472
  %v359 = vlog2.pop %v316
  %v360 = vmul.f32 %v359, 0.6931472
  %v361 = vlog2.pop %v317
  %v362 = vmul.f32 %v361, 0.6931472
  %v363 = vlog2.pop %v318
  %v364 = vmul.f32 %v363, 0.6931472
  %v365 = vlog2.pop %v319
  %v366 = vmul.f32 %v365, 0.6931472
  %v367 = vlog2.pop %v320
  %v368 = vmul.f32 %v367, 0.6931472
  %v369 = vlog2.pop %v321
  %v370 = vmul.f32 %v369, 0.6931472
  %v371 = vlog2.pop %v322
  %v372 = vmul.f32 %v371, 0.6931472
  %v373 = vlog2.pop %v323
  %v374 = vmul.f32 %v373, 0.6931472
  %v375 = vlog2.pop %v324
  %v376 = vmul.f32 %v375, 0.6931472
  %v377 = vlog2.pop %v325
  %v378 = vmul.f32 %v377, 0.6931472
  %v379 = vlog2.pop %v326
  %v380 = vmul.f32 %v379, 0.6931472
  %v381 = vlog2.pop %v327
  %v382 = vmul.f32 %v381, 0.6931472
  %v383 = vlog2.pop %v328
  %v384 = vmul.f32 %v383, 0.6931472
  %v385 = vlog2.pop %v329
  %v386 = vmul.f32 %v385, 0.6931472
  %v387 = vlog2.pop %v330
  %v388 = vmul.f32 %v387, 0.6931472
  %v389 = vlog2.pop %v331
  %v390 = vmul.f32 %v389, 0.6931472
  %v391 = vlog2.pop %v332
  %v392 = vmul.f32 %v391, 0.6931472
  %v393 = vlog2.pop %v333
  %v394 = vmul.f32 %v393, 0.6931472
  %v395 = vlog2.pop %v334
  %v396 = vmul.f32 %v395, 0.6931472
  %v397 = vlog2.pop %v335
  %v398 = vmul.f32 %v397, 0.6931472
  %v399 = vlog2.pop %v336
  %v400 = vmul.f32 %v399, 0.6931472
  %v401 = vmul.f32 %v338, 0.36067376
  %v402 = vmul.f32 %v340, 0.36067376
  %v403 = vmul.f32 %v342, 0.36067376
  %v404 = vmul.f32 %v344, 0.36067376
  %v405 = vmul.f32 %v346, 0.36067376
  %v406 = vmul.f32 %v348, 0.36067376
  %v407 = vmul.f32 %v350, 0.36067376
  %v408 = vmul.f32 %v352, 0.36067376
  %v409 = vmul.f32 %v354, 0.36067376
  %v410 = vmul.f32 %v356, 0.36067376
  %v411 = vmul.f32 %v358, 0.36067376
  %v412 = vmul.f32 %v360, 0.36067376
  %v413 = vmul.f32 %v362, 0.36067376
  %v414 = vmul.f32 %v364, 0.36067376
  %v415 = vmul.f32 %v366, 0.36067376
  %v416 = vmul.f32 %v368, 0.36067376
  %v417 = vmul.f32 %v370, 0.36067376
  %v418 = vmul.f32 %v372, 0.36067376
  %v419 = vmul.f32 %v374, 0.36067376
  %v420 = vmul.f32 %v376, 0.36067376
  %v421 = vmul.f32 %v378, 0.36067376
  %v422 = vmul.f32 %v380, 0.36067376
  %v423 = vmul.f32 %v382, 0.36067376
  %v424 = vmul.f32 %v384, 0.36067376
  %v425 = vmul.f32 %v386, 0.36067376
  %v426 = vmul.f32 %v388, 0.36067376
  %v427 = vmul.f32 %v390, 0.36067376
  %v428 = vmul.f32 %v392, 0.36067376
  %v429 = vmul.f32 %v394, 0.36067376
  %v430 = vmul.f32 %v396, 0.36067376
  %v431 = vmul.f32 %v398, 0.36067376
  %v432 = vmul.f32 %v400, 0.36067376
  %v433 = vmul.f32 %v401, 16.0
  %v434 = vmul.f32 %v402, 16.0
  %v435 = vmul.f32 %v403, 16.0
  %v436 = vmul.f32 %v404, 16.0
  %v437 = vmul.f32 %v405, 16.0
  %v438 = vmul.f32 %v406, 16.0
  %v439 = vmul.f32 %v407, 16.0
  %v440 = vmul.f32 %v408, 16.0
  %v441 = vmul.f32 %v409, 16.0
  %v442 = vmul.f32 %v410, 16.0
  %v443 = vmul.f32 %v411, 16.0
  %v444 = vmul.f32 %v412, 16.0
  %v445 = vmul.f32 %v413, 16.0
  %v446 = vmul.f32 %v414, 16.0
  %v447 = vmul.f32 %v415, 16.0
  %v448 = vmul.f32 %v416, 16.0
  %v449 = vmul.f32 %v417, 16.0
  %v450 = vmul.f32 %v418, 16.0
  %v451 = vmul.f32 %v419, 16.0
  %v452 = vmul.f32 %v420, 16.0
  %v453 = vmul.f32 %v421, 16.0
  %v454 = vmul.f32 %v422, 16.0
  %v455 = vmul.f32 %v423, 16.0
  %v456 = vmul.f32 %v424, 16.0
  %v457 = vmul.f32 %v425, 16.0
  %v458 = vmul.f32 %v426, 16.0
  %v459 = vmul.f32 %v427, 16.0
  %v460 = vmul.f32 %v428, 16.0
  %v461 = vmul.f32 %v429, 16.0
  %v462 = vmul.f32 %v430, 16.0
  %v463 = vmul.f32 %v431, 16.0
  %v464 = vmul.f32 %v432, 16.0
  %v465 = vcvt.f32.s32.to.zero.pseudo %v433
  %v466 = vcvt.f32.s32.to.zero.pseudo %v434
  %v467 = vcvt.f32.s32.to.zero.pseudo %v435
  %v468 = vcvt.f32.s32.to.zero.pseudo %v436
  %v469 = vcvt.f32.s32.to.zero.pseudo %v437
  %v470 = vcvt.f32.s32.to.zero.pseudo %v438
  %v471 = vcvt.f32.s32.to.zero.pseudo %v439
  %v472 = vcvt.f32.s32.to.zero.pseudo %v440
  %v473 = vcvt.f32.s32.to.zero.pseudo %v441
  %v474 = vcvt.f32.s32.to.zero.pseudo %v442
  %v475 = vcvt.f32.s32.to.zero.pseudo %v443
  %v476 = vcvt.f32.s32.to.zero.pseudo %v444
  %v477 = vcvt.f32.s32.to.zero.pseudo %v445
  %v478 = vcvt.f32.s32.to.zero.pseudo %v446
  %v479 = vcvt.f32.s32.to.zero.pseudo %v447
  %v480 = vcvt.f32.s32.to.zero.pseudo %v448
  %v481 = vcvt.f32.s32.to.zero.pseudo %v449
  %v482 = vcvt.f32.s32.to.zero.pseudo %v450
  %v483 = vcvt.f32.s32.to.zero.pseudo %v451
  %v484 = vcvt.f32.s32.to.zero.pseudo %v452
  %v485 = vcvt.f32.s32.to.zero.pseudo %v453
  %v486 = vcvt.f32.s32.to.zero.pseudo %v454
  %v487 = vcvt.f32.s32.to.zero.pseudo %v455
  %v488 = vcvt.f32.s32.to.zero.pseudo %v456
  %v489 = vcvt.f32.s32.to.zero.pseudo %v457
  %v490 = vcvt.f32.s32.to.zero.pseudo %v458
  %v491 = vcvt.f32.s32.to.zero.pseudo %v459
  %v492 = vcvt.f32.s32.to.zero.pseudo %v460
  %v493 = vcvt.f32.s32.to.zero.pseudo %v461
  %v494 = vcvt.f32.s32.to.zero.pseudo %v462
  %v495 = vcvt.f32.s32.to.zero.pseudo %v463
  %v496 = vcvt.f32.s32.to.zero.pseudo %v464
  %v497 = vadd.s32 %v465, 16
  %v498 = vadd.s32 %v466, 16
  %v499 = vadd.s32 %v467, 16
  %v500 = vadd.s32 %v468, 16
  %v501 = vadd.s32 %v469, 16
  %v502 = vadd.s32 %v470, 16
  %v503 = vadd.s32 %v471, 16
  %v504 = vadd.s32 %v472, 16
  %v505 = vadd.s32 %v473, 16
  %v506 = vadd.s32 %v474, 16
  %v507 = vadd.s32 %v475, 16
  %v508 = vadd.s32 %v476, 16
  %v509 = vadd.s32 %v477, 16
  %v510 = vadd.s32 %v478, 16
  %v511 = vadd.s32 %v479, 16
  %v512 = vadd.s32 %v480, 16
  %v513 = vadd.s32 %v481, 16
  %v514 = vadd.s32 %v482, 16
  %v515 = vadd.s32 %v483, 16
  %v516 = vadd.s32 %v484, 16
  %v517 = vadd.s32 %v485, 16
  %v518 = vadd.s32 %v486, 16
  %v519 = vadd.s32 %v487, 16
  %v520 = vadd.s32 %v488, 16
  %v521 = vadd.s32 %v489, 16
  %v522 = vadd.s32 %v490, 16
  %v523 = vadd.s32 %v491, 16
  %v524 = vadd.s32 %v492, 16
  %v525 = vadd.s32 %v493, 16
  %v526 = vadd.s32 %v494, 16
  %v527 = vadd.s32 %v495, 16
  %v528 = vadd.s32 %v496, 16
  %vm529 = vcmp.lt.s32.totalorder %v497, 31
  %v530 = vsel %vm529, %v497, 31
  %vm531 = vcmp.lt.s32.totalorder %v498, 31
  %v532 = vsel %vm531, %v498, 31
  %vm533 = vcmp.lt.s32.totalorder %v499, 31
  %v534 = vsel %vm533, %v499, 31
  %vm535 = vcmp.lt.s32.totalorder %v500, 31
  %v536 = vsel %vm535, %v500, 31
  %vm537 = vcmp.lt.s32.totalorder %v501, 31
  %v538 = vsel %vm537, %v501, 31
  %vm539 = vcmp.lt.s32.totalorder %v502, 31
  %v540 = vsel %vm539, %v502, 31
  %vm541 = vcmp.lt.s32.totalorder %v503, 31
  %v542 = vsel %vm541, %v503, 31
  %vm543 = vcmp.lt.s32.totalorder %v504, 31
  %v544 = vsel %vm543, %v504, 31
  %vm545 = vcmp.lt.s32.totalorder %v505, 31
  %v546 = vsel %vm545, %v505, 31
  %vm547 = vcmp.lt.s32.totalorder %v506, 31
  %v548 = vsel %vm547, %v506, 31
  %vm549 = vcmp.lt.s32.totalorder %v507, 31
  %v550 = vsel %vm549, %v507, 31
  %vm551 = vcmp.lt.s32.totalorder %v508, 31
  %v552 = vsel %vm551, %v508, 31
  %vm553 = vcmp.lt.s32.totalorder %v509, 31
  %v554 = vsel %vm553, %v509, 31
  %vm555 = vcmp.lt.s32.totalorder %v510, 31
  %v556 = vsel %vm555, %v510, 31
  %vm557 = vcmp.lt.s32.totalorder %v511, 31
  %v558 = vsel %vm557, %v511, 31
  %vm559 = vcmp.lt.s32.totalorder %v512, 31
  %v560 = vsel %vm559, %v512, 31
  %vm561 = vcmp.lt.s32.totalorder %v513, 31
  %v562 = vsel %vm561, %v513, 31
  %vm563 = vcmp.lt.s32.totalorder %v514, 31
  %v564 = vsel %vm563, %v514, 31
  %vm565 = vcmp.lt.s32.totalorder %v515, 31
  %v566 = vsel %vm565, %v515, 31
  %vm567 = vcmp.lt.s32.totalorder %v516, 31
  %v568 = vsel %vm567, %v516, 31
  %vm569 = vcmp.lt.s32.totalorder %v517, 31
  %v570 = vsel %vm569, %v517, 31
  %vm571 = vcmp.lt.s32.totalorder %v518, 31
  %v572 = vsel %vm571, %v518, 31
  %vm573 = vcmp.lt.s32.totalorder %v519, 31
  %v574 = vsel %vm573, %v519, 31
  %vm575 = vcmp.lt.s32.totalorder %v520, 31
  %v576 = vsel %vm575, %v520, 31
  %vm577 = vcmp.lt.s32.totalorder %v521, 31
  %v578 = vsel %vm577, %v521, 31
  %vm579 = vcmp.lt.s32.totalorder %v522, 31
  %v580 = vsel %vm579, %v522, 31
  %vm581 = vcmp.lt.s32.totalorder %v523, 31
  %v582 = vsel %vm581, %v523, 31
  %vm583 = vcmp.lt.s32.totalorder %v524, 31
  %v584 = vsel %vm583, %v524, 31
  %vm585 = vcmp.lt.s32.totalorder %v525, 31
  %v586 = vsel %vm585, %v525, 31
  %vm587 = vcmp.lt.s32.totalorder %v526, 31
  %v588 = vsel %vm587, %v526, 31
  %vm589 = vcmp.lt.s32.totalorder %v527, 31
  %v590 = vsel %vm589, %v527, 31
  %vm591 = vcmp.lt.s32.totalorder %v528, 31
  %v592 = vsel %vm591, %v528, 31
  %vm593 = vcmp.lt.s32.totalorder %v177, 16
  %vm594 = vcmp.lt.s32.totalorder %v178, 16
  %vm595 = vcmp.lt.s32.totalorder %v179, 16
  %vm596 = vcmp.lt.s32.totalorder %v180, 16
  %vm597 = vcmp.lt.s32.totalorder %v181, 16
  %vm598 = vcmp.lt.s32.totalorder %v182, 16
  %vm599 = vcmp.lt.s32.totalorder %v183, 16
  %vm600 = vcmp.lt.s32.totalorder %v184, 16
  %vm601 = vcmp.lt.s32.totalorder %v185, 16
  %vm602 = vcmp.lt.s32.totalorder %v186, 16
  %vm603 = vcmp.lt.s32.totalorder %v187, 16
  %vm604 = vcmp.lt.s32.totalorder %v188, 16
  %vm605 = vcmp.lt.s32.totalorder %v189, 16
  %vm606 = vcmp.lt.s32.totalorder %v190, 16
  %vm607 = vcmp.lt.s32.totalorder %v191, 16
  %vm608 = vcmp.lt.s32.totalorder %v192, 16
  %vm609 = vcmp.lt.s32.totalorder %v193, 16
  %vm610 = vcmp.lt.s32.totalorder %v194, 16
  %vm611 = vcmp.lt.s32.totalorder %v195, 16
  %vm612 = vcmp.lt.s32.totalorder %v196, 16
  %vm613 = vcmp.lt.s32.totalorder %v197, 16
  %vm614 = vcmp.lt.s32.totalorder %v198, 16
  %vm615 = vcmp.lt.s32.totalorder %v199, 16
  %vm616 = vcmp.lt.s32.totalorder %v200, 16
  %vm617 = vcmp.lt.s32.totalorder %v201, 16
  %vm618 = vcmp.lt.s32.totalorder %v202, 16
  %vm619 = vcmp.lt.s32.totalorder %v203, 16
  %vm620 = vcmp.lt.s32.totalorder %v204, 16
  %vm621 = vcmp.lt.s32.totalorder %v205, 16
  %vm622 = vcmp.lt.s32.totalorder %v206, 16
  %vm623 = vcmp.lt.s32.totalorder %v207, 16
  %vm624 = vcmp.lt.s32.totalorder %v208, 16
  %v625 = vsel %vm593, %v177, %v530
  %v626 = vsel %vm594, %v178, %v532
  %v627 = vsel %vm595, %v179, %v534
  %v628 = vsel %vm596, %v180, %v536
  %v629 = vsel %vm597, %v181, %v538
  %v630 = vsel %vm598, %v182, %v540
  %v631 = vsel %vm599, %v183, %v542
  %v632 = vsel %vm600, %v184, %v544
  %v633 = vsel %vm601, %v185, %v546
  %v634 = vsel %vm602, %v186, %v548
  %v635 = vsel %vm603, %v187, %v550
  %v636 = vsel %vm604, %v188, %v552
  %v637 = vsel %vm605, %v189, %v554
  %v638 = vsel %vm606, %v190, %v556
  %v639 = vsel %vm607, %v191, %v558
  %v640 = vsel %vm608, %v192, %v560
  %v641 = vsel %vm609, %v193, %v562
  %v642 = vsel %vm610, %v194, %v564
  %v643 = vsel %vm611, %v195, %v566
  %v644 = vsel %vm612, %v196, %v568
  %v645 = vsel %vm613, %v197, %v570
  %v646 = vsel %vm614, %v198, %v572
  %v647 = vsel %vm615, %v199, %v574
  %v648 = vsel %vm616, %v200, %v576
  %v649 = vsel %vm617, %v201, %v578
  %v650 = vsel %vm618, %v202, %v580
  %v651 = vsel %vm619, %v203, %v582
  %v652 = vsel %vm620, %v204, %v584
  %v653 = vsel %vm621, %v205, %v586
  %v654 = vsel %vm622, %v206, %v588
  %v655 = vsel %vm623, %v207, %v590
  %v656 = vsel %vm624, %v208, %v592
  %v657 = vadd.s32 %v113, %v625
  %v658 = vadd.s32 %v114, %v626
  %v659 = vadd.s32 %v115, %v627
  %v660 = vadd.s32 %v116, %v628
  %v661 = vadd.s32 %v117, %v629
  %v662 = vadd.s32 %v118, %v630
  %v663 = vadd.s32 %v119, %v631
  %v664 = vadd.s32 %v120, %v632
  %v665 = vadd.s32 %v121, %v633
  %v666 = vadd.s32 %v122, %v634
  %v667 = vadd.s32 %v123, %v635
  %v668 = vadd.s32 %v124, %v636
  %v669 = vadd.s32 %v125, %v637
  %v670 = vadd.s32 %v126, %v638
  %v671 = vadd.s32 %v127, %v639
  %v672 = vadd.s32 %v128, %v640
  %v673 = vadd.s32 %v129, %v641
  %v674 = vadd.s32 %v130, %v642
  %v675 = vadd.s32 %v131, %v643
  %v676 = vadd.s32 %v132, %v644
  %v677 = vadd.s32 %v133, %v645
  %v678 = vadd.s32 %v134, %v646
  %v679 = vadd.s32 %v135, %v647
  %v680 = vadd.s32 %v136, %v648
  %v681 = vadd.s32 %v137, %v649
  %v682 = vadd.s32 %v138, %v650
  %v683 = vadd.s32 %v139, %v651
  %v684 = vadd.s32 %v140, %v652
  %v685 = vadd.s32 %v141, %v653
  %v686 = vadd.s32 %v142, %v654
  %v687 = vadd.s32 %v143, %v655
  %v688 = vadd.s32 %v144, %v656
  %vm689 = vcmp.eq.s32.totalorder %v657, %v48
  %vm690 = vcmp.eq.s32.totalorder %v658, %v48
  %vm691 = vcmp.eq.s32.totalorder %v659, %v48
  %vm692 = vcmp.eq.s32.totalorder %v660, %v48
  %vm693 = vcmp.eq.s32.totalorder %v661, %v48
  %vm694 = vcmp.eq.s32.totalorder %v662, %v48
  %vm695 = vcmp.eq.s32.totalorder %v663, %v48
  %vm696 = vcmp.eq.s32.totalorder %v664, %v48
  %vm697 = vcmp.eq.s32.totalorder %v665, %v48
  %vm698 = vcmp.eq.s32.totalorder %v666, %v48
  %vm699 = vcmp.eq.s32.totalorder %v667, %v48
  %vm700 = vcmp.eq.s32.totalorder %v668, %v48
  %vm701 = vcmp.eq.s32.totalorder %v669, %v48
  %vm702 = vcmp.eq.s32.totalorder %v670, %v48
  %vm703 = vcmp.eq.s32.totalorder %v671, %v48
  %vm704 = vcmp.eq.s32.totalorder %v672, %v48
  %vm705 = vcmp.eq.s32.totalorder %v673, %v48
  %vm706 = vcmp.eq.s32.totalorder %v674, %v48
  %vm707 = vcmp.eq.s32.totalorder %v675, %v48
  %vm708 = vcmp.eq.s32.totalorder %v676, %v48
  %vm709 = vcmp.eq.s32.totalorder %v677, %v48
  %vm710 = vcmp.eq.s32.totalorder %v678, %v48
  %vm711 = vcmp.eq.s32.totalorder %v679, %v48
  %vm712 = vcmp.eq.s32.totalorder %v680, %v48
  %vm713 = vcmp.eq.s32.totalorder %v681, %v48
  %vm714 = vcmp.eq.s32.totalorder %v682, %v48
  %vm715 = vcmp.eq.s32.totalorder %v683, %v48
  %vm716 = vcmp.eq.s32.totalorder %v684, %v48
  %vm717 = vcmp.eq.s32.totalorder %v685, %v48
  %vm718 = vcmp.eq.s32.totalorder %v686, %v48
  %vm719 = vcmp.eq.s32.totalorder %v687, %v48
  %vm720 = vcmp.eq.s32.totalorder %v688, %v48
  %v721 = vsel %vm689, 1.0, 0.0
  %v722 = vsel %vm690, 1.0, 0.0
  %v723 = vsel %vm691, 1.0, 0.0
  %v724 = vsel %vm692, 1.0, 0.0
  %v725 = vsel %vm693, 1.0, 0.0
  %v726 = vsel %vm694, 1.0, 0.0
  %v727 = vsel %vm695, 1.0, 0.0
  %v728 = vsel %vm696, 1.0, 0.0
  %v729 = vsel %vm697, 1.0, 0.0
  %v730 = vsel %vm698, 1.0, 0.0
  %v731 = vsel %vm699, 1.0, 0.0
  %v732 = vsel %vm700, 1.0, 0.0
  %v733 = vsel %vm701, 1.0, 0.0
  %v734 = vsel %vm702, 1.0, 0.0
  %v735 = vsel %vm703, 1.0, 0.0
  %v736 = vsel %vm704, 1.0, 0.0
  %v737 = vsel %vm705, 1.0, 0.0
  %v738 = vsel %vm706, 1.0, 0.0
  %v739 = vsel %vm707, 1.0, 0.0
  %v740 = vsel %vm708, 1.0, 0.0
  %v741 = vsel %vm709, 1.0, 0.0
  %v742 = vsel %vm710, 1.0, 0.0
  %v743 = vsel %vm711, 1.0, 0.0
  %v744 = vsel %vm712, 1.0, 0.0
  %v745 = vsel %vm713, 1.0, 0.0
  %v746 = vsel %vm714, 1.0, 0.0
  %v747 = vsel %vm715, 1.0, 0.0
  %v748 = vsel %vm716, 1.0, 0.0
  %v749 = vsel %vm717, 1.0, 0.0
  %v750 = vsel %vm718, 1.0, 0.0
  %v751 = vsel %vm719, 1.0, 0.0
  %v752 = vsel %vm720, 1.0, 0.0
  %v753 = vpack.c.bf16 %v722, %v721
  %v754 = vpack.c.bf16 %v724, %v723
  %v755 = vpack.c.bf16 %v726, %v725
  %v756 = vpack.c.bf16 %v728, %v727
  %v757 = vpack.c.bf16 %v730, %v729
  %v758 = vpack.c.bf16 %v732, %v731
  %v759 = vpack.c.bf16 %v734, %v733
  %v760 = vpack.c.bf16 %v736, %v735
  %v761 = vpack.c.bf16 %v738, %v737
  %v762 = vpack.c.bf16 %v740, %v739
  %v763 = vpack.c.bf16 %v742, %v741
  %v764 = vpack.c.bf16 %v744, %v743
  %v765 = vpack.c.bf16 %v746, %v745
  %v766 = vpack.c.bf16 %v748, %v747
  %v767 = vpack.c.bf16 %v750, %v749
  %v768 = vpack.c.bf16 %v752, %v751
  %v769 = vld [vmem:[%s2] sm:$0xff]
  %v770 = vld [vmem:[%s2 + $0x8] sm:$0xff]
  %v771 = vld [vmem:[%s2 + $0x10] sm:$0xff]
  %v772 = vld [vmem:[%s2 + $0x18] sm:$0xff]
  %v773 = vld [vmem:[%s2 + $0x20] sm:$0xff]
  %v774 = vld [vmem:[%s2 + $0x28] sm:$0xff]
  %v775 = vld [vmem:[%s2 + $0x30] sm:$0xff]
  %v776 = vld [vmem:[%s2 + $0x38] sm:$0xff]
  %v785 = vunpack.c.l.b16 %v769
  %v786 = vunpack.c.h.b16 %v769
  %v787 = vunpack.c.l.b16 %v770
  %v788 = vunpack.c.h.b16 %v770
  %v789 = vunpack.c.l.b16 %v771
  %v790 = vunpack.c.h.b16 %v771
  %v791 = vunpack.c.l.b16 %v772
  %v792 = vunpack.c.h.b16 %v772
  %v793 = vunpack.c.l.b16 %v773
  %v794 = vunpack.c.h.b16 %v773
  %v795 = vunpack.c.l.b16 %v774
  %v796 = vunpack.c.h.b16 %v774
  %v797 = vunpack.c.l.b16 %v775
  %v798 = vunpack.c.h.b16 %v775
  %v799 = vunpack.c.l.b16 %v776
  %v800 = vunpack.c.h.b16 %v776
  %v801 = vpack.c.b16 %v787, %v785
  %v802 = vpack.c.b16 %v788, %v786
  %v803 = vpack.c.b16 %v791, %v789
  %v804 = vpack.c.b16 %v792, %v790
  %v805 = vpack.c.b16 %v795, %v793
  %v806 = vpack.c.b16 %v796, %v794
  %v807 = vpack.c.b16 %v799, %v797
  %v808 = vpack.c.b16 %v800, %v798
  %vm817 = vcmask 523264
  %v819 = vsel %vm817, %v753, 0
  %v822 = vsel %vm817, %v754, 0
  %v825 = vsel %vm817, %v755, 0
  %v828 = vsel %vm817, %v756, 0
  %v831 = vsel %vm817, %v757, 0
  %v834 = vsel %vm817, %v758, 0
  %v837 = vsel %vm817, %v759, 0
  %v840 = vsel %vm817, %v760, 0
  %v843 = vsel %vm817, %v761, 0
  %v846 = vsel %vm817, %v762, 0
  %v849 = vsel %vm817, %v763, 0
  %v852 = vsel %vm817, %v764, 0
  %v855 = vsel %vm817, %v765, 0
  %v858 = vsel %vm817, %v766, 0
  %v861 = vsel %vm817, %v767, 0
  %v864 = vsel %vm817, %v768, 0
  %866 = vmatprep.subr.bf16.mxu0 %v802
  %867 = vmatpush1.bf16.msra.mxu0 %v801
  %868 = vmatprep.subr.bf16.mxu0 %v804
  %869 = vmatpush1.bf16.msra.mxu0 %v803
  %870 = vmatprep.subr.bf16.mxu0 %v806
  %871 = vmatpush1.bf16.msra.mxu0 %v805
  %872 = vmatprep.subr.bf16.mxu0 %v808
  %873 = vmatpush1.bf16.msra.mxu0 %v807
  %874 = vmatprep.subr.bf16.mxu0 0
  %875 = vmatpush1.bf16.msra.mxu0 0
  %876 = vmatprep.subr.bf16.mxu0 0
  %877 = vmatpush1.bf16.msra.mxu0 0
  %878 = vmatprep.subr.bf16.mxu0 0
  %879 = vmatpush1.bf16.msra.mxu0 0
  %880 = vmatprep.subr.bf16.mxu0 0
  %881 = vmatpush1.bf16.msra.mxu0 0
  %882 = vmatprep.subr.bf16.mxu0 0
  %883 = vmatpush1.bf16.msra.mxu0 0
  %884 = vmatprep.subr.bf16.mxu0 0
  %885 = vmatpush1.bf16.msra.mxu0 0
  %886 = vmatprep.subr.bf16.mxu0 0
  %887 = vmatpush1.bf16.msra.mxu0 0
  %888 = vmatprep.subr.bf16.mxu0 0
  %889 = vmatpush1.bf16.msra.mxu0 0
  %890 = vmatprep.subr.bf16.mxu0 0
  %891 = vmatpush1.bf16.msra.mxu0 0
  %892 = vmatprep.subr.bf16.mxu0 0
  %893 = vmatpush1.bf16.msra.mxu0 0
  %894 = vmatprep.subr.bf16.mxu0 0
  %895 = vmatpush1.bf16.msra.mxu0 0
  %896 = vmatprep.subr.bf16.mxu0 0
  %897 = vmatpush1.bf16.msra.mxu0 0
  %898 = vmatprep.mubr.bf16.mxu0 0
  %899 = vmatmul.mubr.bf16.gmra.mrb[0].mxu0 %v819
  %v900 = vpop.f32.mrb[0].mxu0
  %v901 = vadd.f32 0.0, %v900
  %v902 = vpop.f32.mrb[0].mxu0
  %v903 = vadd.f32 0.0, %v902
  %v904 = vpop.f32.mrb[0].mxu0
  %v905 = vadd.f32 0.0, %v904
  %v906 = vpop.f32.mrb[0].mxu0
  %v907 = vadd.f32 0.0, %v906
  %908 = vmatprep.mubr.bf16.mxu0 0
  %909 = vmatmul.mubr.bf16.gmra.mrb[0].mxu0 %v822
  %v910 = vpop.f32.mrb[0].mxu0
  %v911 = vadd.f32 0.0, %v910
  %v912 = vpop.f32.mrb[0].mxu0
  %v913 = vadd.f32 0.0, %v912
  %v914 = vpop.f32.mrb[0].mxu0
  %v915 = vadd.f32 0.0, %v914
  %v916 = vpop.f32.mrb[0].mxu0
  %v917 = vadd.f32 0.0, %v916
  %918 = vmatprep.mubr.bf16.mxu0 0
  %919 = vmatmul.mubr.bf16.gmra.mrb[0].mxu0 %v825
  %v920 = vpop.f32.mrb[0].mxu0
  %v921 = vadd.f32 0.0, %v920
  %v922 = vpop.f32.mrb[0].mxu0
  %v923 = vadd.f32 0.0, %v922
  %v924 = vpop.f32.mrb[0].mxu0
  %v925 = vadd.f32 0.0, %v924
  %v926 = vpop.f32.mrb[0].mxu0
  %v927 = vadd.f32 0.0, %v926
  %928 = vmatprep.mubr.bf16.mxu0 0
  %929 = vmatmul.mubr.bf16.gmra.mrb[0].mxu0 %v828
  %v930 = vpop.f32.mrb[0].mxu0
  %v931 = vadd.f32 0.0, %v930
  %v932 = vpop.f32.mrb[0].mxu0
  %v933 = vadd.f32 0.0, %v932
  %v934 = vpop.f32.mrb[0].mxu0
  %v935 = vadd.f32 0.0, %v934
  %v936 = vpop.f32.mrb[0].mxu0
  %v937 = vadd.f32 0.0, %v936
  %938 = vmatprep.mubr.bf16.mxu0 0
  %939 = vmatmul.mubr.bf16.gmra.mrb[0].mxu0 %v831
  %v940 = vpop.f32.mrb[0].mxu0
  %v941 = vadd.f32 0.0, %v940
  %v942 = vpop.f32.mrb[0].mxu0
  %v943 = vadd.f32 0.0, %v942
  %v944 = vpop.f32.mrb[0].mxu0
  %v945 = vadd.f32 0.0, %v944
  %v946 = vpop.f32.mrb[0].mxu0
  %v947 = vadd.f32 0.0, %v946
  %948 = vmatprep.mubr.bf16.mxu0 0
  %949 = vmatmul.mubr.bf16.gmra.mrb[0].mxu0 %v834
  %v950 = vpop.f32.mrb[0].mxu0
  %v951 = vadd.f32 0.0, %v950
  %v952 = vpop.f32.mrb[0].mxu0
  %v953 = vadd.f32 0.0, %v952
  %v954 = vpop.f32.mrb[0].mxu0
  %v955 = vadd.f32 0.0, %v954
  %v956 = vpop.f32.mrb[0].mxu0
  %v957 = vadd.f32 0.0, %v956
  %958 = vmatprep.mubr.bf16.mxu0 0
  %959 = vmatmul.mubr.bf16.gmra.mrb[0].mxu0 %v837
  %v960 = vpop.f32.mrb[0].mxu0
  %v961 = vadd.f32 0.0, %v960
  %v962 = vpop.f32.mrb[0].mxu0
  %v963 = vadd.f32 0.0, %v962
  %v964 = vpop.f32.mrb[0].mxu0
  %v965 = vadd.f32 0.0, %v964
  %v966 = vpop.f32.mrb[0].mxu0
  %v967 = vadd.f32 0.0, %v966
  %968 = vmatprep.mubr.bf16.mxu0 0
  %969 = vmatmul.mubr.bf16.gmra.mrb[0].mxu0 %v840
  %v970 = vpop.f32.mrb[0].mxu0
  %v971 = vadd.f32 0.0, %v970
  %v972 = vpop.f32.mrb[0].mxu0
  %v973 = vadd.f32 0.0, %v972
  %v974 = vpop.f32.mrb[0].mxu0
  %v975 = vadd.f32 0.0, %v974
  %v976 = vpop.f32.mrb[0].mxu0
  %v977 = vadd.f32 0.0, %v976
  %978 = vmatprep.mubr.bf16.mxu0 0
  %979 = vmatmul.mubr.bf16.gmra.mrb[0].mxu0 %v843
  %v980 = vpop.f32.mrb[0].mxu0
  %v981 = vadd.f32 0.0, %v980
  %v982 = vpop.f32.mrb[0].mxu0
  %v983 = vadd.f32 0.0, %v982
  %v984 = vpop.f32.mrb[0].mxu0
  %v985 = vadd.f32 0.0, %v984
  %v986 = vpop.f32.mrb[0].mxu0
  %v987 = vadd.f32 0.0, %v986
  %988 = vmatprep.mubr.bf16.mxu0 0
  %989 = vmatmul.mubr.bf16.gmra.mrb[0].mxu0 %v846
  %v990 = vpop.f32.mrb[0].mxu0
  %v991 = vadd.f32 0.0, %v990
  %v992 = vpop.f32.mrb[0].mxu0
  %v993 = vadd.f32 0.0, %v992
  %v994 = vpop.f32.mrb[0].mxu0
  %v995 = vadd.f32 0.0, %v994
  %v996 = vpop.f32.mrb[0].mxu0
  %v997 = vadd.f32 0.0, %v996
  %998 = vmatprep.mubr.bf16.mxu0 0
  %999 = vmatmul.mubr.bf16.gmra.mrb[0].mxu0 %v849
  %v1000 = vpop.f32.mrb[0].mxu0
  %v1001 = vadd.f32 0.0, %v1000
  %v1002 = vpop.f32.mrb[0].mxu0
  %v1003 = vadd.f32 0.0, %v1002
  %v1004 = vpop.f32.mrb[0].mxu0
  %v1005 = vadd.f32 0.0, %v1004
  %v1006 = vpop.f32.mrb[0].mxu0
  %v1007 = vadd.f32 0.0, %v1006
  %1008 = vmatprep.mubr.bf16.mxu0 0
  %1009 = vmatmul.mubr.bf16.gmra.mrb[0].mxu0 %v852
  %v1010 = vpop.f32.mrb[0].mxu0
  %v1011 = vadd.f32 0.0, %v1010
  %v1012 = vpop.f32.mrb[0].mxu0
  %v1013 = vadd.f32 0.0, %v1012
  %v1014 = vpop.f32.mrb[0].mxu0
  %v1015 = vadd.f32 0.0, %v1014
  %v1016 = vpop.f32.mrb[0].mxu0
  %v1017 = vadd.f32 0.0, %v1016
  %1018 = vmatprep.mubr.bf16.mxu0 0
  %1019 = vmatmul.mubr.bf16.gmra.mrb[0].mxu0 %v855
  %v1020 = vpop.f32.mrb[0].mxu0
  %v1021 = vadd.f32 0.0, %v1020
  %v1022 = vpop.f32.mrb[0].mxu0
  %v1023 = vadd.f32 0.0, %v1022
  %v1024 = vpop.f32.mrb[0].mxu0
  %v1025 = vadd.f32 0.0, %v1024
  %v1026 = vpop.f32.mrb[0].mxu0
  %v1027 = vadd.f32 0.0, %v1026
  %1028 = vmatprep.mubr.bf16.mxu0 0
  %1029 = vmatmul.mubr.bf16.gmra.mrb[0].mxu0 %v858
  %v1030 = vpop.f32.mrb[0].mxu0
  %v1031 = vadd.f32 0.0, %v1030
  %v1032 = vpop.f32.mrb[0].mxu0
  %v1033 = vadd.f32 0.0, %v1032
  %v1034 = vpop.f32.mrb[0].mxu0
  %v1035 = vadd.f32 0.0, %v1034
  %v1036 = vpop.f32.mrb[0].mxu0
  %v1037 = vadd.f32 0.0, %v1036
  %1038 = vmatprep.mubr.bf16.mxu0 0
  %1039 = vmatmul.mubr.bf16.gmra.mrb[0].mxu0 %v861
  %v1040 = vpop.f32.mrb[0].mxu0
  %v1041 = vadd.f32 0.0, %v1040
  %v1042 = vpop.f32.mrb[0].mxu0
  %v1043 = vadd.f32 0.0, %v1042
  %v1044 = vpop.f32.mrb[0].mxu0
  %v1045 = vadd.f32 0.0, %v1044
  %v1046 = vpop.f32.mrb[0].mxu0
  %v1047 = vadd.f32 0.0, %v1046
  %1048 = vmatprep.mubr.bf16.mxu0 0
  %1049 = vmatmul.mubr.bf16.gmra.mrb[0].mxu0 %v864
  %v1050 = vpop.f32.mrb[0].mxu0
  %v1051 = vadd.f32 0.0, %v1050
  %v1052 = vpop.f32.mrb[0].mxu0
  %v1053 = vadd.f32 0.0, %v1052
  %v1054 = vpop.f32.mrb[0].mxu0
  %v1055 = vadd.f32 0.0, %v1054
  %v1056 = vpop.f32.mrb[0].mxu0
  %v1057 = vadd.f32 0.0, %v1056
  %1058 = vdwg.mxu0
  %v1059 = vld [vmem:[%s0] sm:$0xff]
  %v1060 = vld [vmem:[%s0 + $0x8] sm:$0xff]
  %v1061 = vld [vmem:[%s0 + $0x10] sm:$0xff]
  %v1062 = vld [vmem:[%s0 + $0x18] sm:$0xff]
  %v1067 = vcombine.low %v1059, %v1060
  %v1068 = vcombine.high %v1059, %v1060
  %v1070 = vunpack.c.l.s4 1966171168
  %v1071 = vunpack.c.0.s8 %v1070
  %v1072 = vlaneseq
  %v1073 = vshrl.u32 %v1072, 7
  %v1074 = vsub.s32 %v1071, %v1073
  %v1075 = vrot.slane %v1067, %v1074
  %v1077 = vunpack.c.l.s4 1966171168
  %v1078 = vunpack.c.0.s8 %v1077
  %v1079 = vlaneseq
  %v1080 = vshrl.u32 %v1079, 7
  %v1081 = vsub.s32 %v1078, %v1080
  %v1082 = vrot.slane %v1068, %v1081
  %v1083 = vcombine.high %v1075, %v1075
  %v1084 = vcombine.high %v1082, %v1082
  %v1086 = vunpack.c.l.s4 1966171168
  %v1087 = vunpack.c.0.s8 %v1086
  %v1088 = vlaneseq
  %v1089 = vshrl.u32 %v1088, 7
  %v1090 = vsub.s32 %v1087, %v1089
  %v1091 = vrot.slane %v1075, %v1090
  %v1093 = vunpack.c.l.s4 1966171168
  %v1094 = vunpack.c.0.s8 %v1093
  %v1095 = vlaneseq
  %v1096 = vshrl.u32 %v1095, 7
  %v1097 = vsub.s32 %v1094, %v1096
  %v1098 = vrot.slane %v1082, %v1097
  %v1100 = vunpack.c.l.s4 1966171168
  %v1101 = vunpack.c.0.s8 %v1100
  %v1102 = vlaneseq
  %v1103 = vshrl.u32 %v1102, 7
  %v1104 = vsub.s32 %v1101, %v1103
  %v1105 = vrot.slane %v1083, %v1104
  %v1107 = vunpack.c.l.s4 1966171168
  %v1108 = vunpack.c.0.s8 %v1107
  %v1109 = vlaneseq
  %v1110 = vshrl.u32 %v1109, 7
  %v1111 = vsub.s32 %v1108, %v1110
  %v1112 = vrot.slane %v1084, %v1111
  %v1113 = vcombine.high %v1091, %v1091
  %v1114 = vcombine.high %v1098, %v1098
  %v1115 = vcombine.high %v1105, %v1105
  %v1116 = vcombine.high %v1112, %v1112
  %v1117 = vcombine.low %v1061, %v1062
  %v1118 = vcombine.high %v1061, %v1062
  %v1120 = vunpack.c.l.s4 1966171168
  %v1121 = vunpack.c.0.s8 %v1120
  %v1122 = vlaneseq
  %v1123 = vshrl.u32 %v1122, 7
  %v1124 = vsub.s32 %v1121, %v1123
  %v1125 = vrot.slane %v1117, %v1124
  %v1127 = vunpack.c.l.s4 1966171168
  %v1128 = vunpack.c.0.s8 %v1127
  %v1129 = vlaneseq
  %v1130 = vshrl.u32 %v1129, 7
  %v1131 = vsub.s32 %v1128, %v1130
  %v1132 = vrot.slane %v1118, %v1131
  %v1133 = vcombine.high %v1125, %v1125
  %v1134 = vcombine.high %v1132, %v1132
  %v1136 = vunpack.c.l.s4 1966171168
  %v1137 = vunpack.c.0.s8 %v1136
  %v1138 = vlaneseq
  %v1139 = vshrl.u32 %v1138, 7
  %v1140 = vsub.s32 %v1137, %v1139
  %v1141 = vrot.slane %v1125, %v1140
  %v1143 = vunpack.c.l.s4 1966171168
  %v1144 = vunpack.c.0.s8 %v1143
  %v1145 = vlaneseq
  %v1146 = vshrl.u32 %v1145, 7
  %v1147 = vsub.s32 %v1144, %v1146
  %v1148 = vrot.slane %v1132, %v1147
  %v1150 = vunpack.c.l.s4 1966171168
  %v1151 = vunpack.c.0.s8 %v1150
  %v1152 = vlaneseq
  %v1153 = vshrl.u32 %v1152, 7
  %v1154 = vsub.s32 %v1151, %v1153
  %v1155 = vrot.slane %v1133, %v1154
  %v1157 = vunpack.c.l.s4 1966171168
  %v1158 = vunpack.c.0.s8 %v1157
  %v1159 = vlaneseq
  %v1160 = vshrl.u32 %v1159, 7
  %v1161 = vsub.s32 %v1158, %v1160
  %v1162 = vrot.slane %v1134, %v1161
  %v1163 = vcombine.high %v1141, %v1141
  %v1164 = vcombine.high %v1148, %v1148
  %v1165 = vcombine.high %v1155, %v1155
  %v1166 = vcombine.high %v1162, %v1162
  %v1167 = vlaneseq
  %v1168 = vshrl.u32 %v1167, 7
  %v1169 = vsub.s32 0, %v1168
  %v1170 = vrot.slane %v1091, %v1169
  %v1171 = vlaneseq
  %v1172 = vshrl.u32 %v1171, 7
  %v1173 = vsub.s32 1, %v1172
  %v1174 = vrot.slane %v1091, %v1173
  %v1175 = vlaneseq
  %v1176 = vshrl.u32 %v1175, 7
  %v1177 = vsub.s32 0, %v1176
  %v1178 = vrot.slane %v1105, %v1177
  %v1179 = vlaneseq
  %v1180 = vshrl.u32 %v1179, 7
  %v1181 = vsub.s32 1, %v1180
  %v1182 = vrot.slane %v1105, %v1181
  %v1183 = vlaneseq
  %v1184 = vshrl.u32 %v1183, 7
  %v1185 = vsub.s32 0, %v1184
  %v1186 = vrot.slane %v1113, %v1185
  %v1187 = vlaneseq
  %v1188 = vshrl.u32 %v1187, 7
  %v1189 = vsub.s32 1, %v1188
  %v1190 = vrot.slane %v1113, %v1189
  %v1191 = vlaneseq
  %v1192 = vshrl.u32 %v1191, 7
  %v1193 = vsub.s32 0, %v1192
  %v1194 = vrot.slane %v1115, %v1193
  %v1195 = vlaneseq
  %v1196 = vshrl.u32 %v1195, 7
  %v1197 = vsub.s32 1, %v1196
  %v1198 = vrot.slane %v1115, %v1197
  %v1199 = vlaneseq
  %v1200 = vshrl.u32 %v1199, 7
  %v1201 = vsub.s32 0, %v1200
  %v1202 = vrot.slane %v1098, %v1201
  %v1203 = vlaneseq
  %v1204 = vshrl.u32 %v1203, 7
  %v1205 = vsub.s32 1, %v1204
  %v1206 = vrot.slane %v1098, %v1205
  %v1207 = vlaneseq
  %v1208 = vshrl.u32 %v1207, 7
  %v1209 = vsub.s32 0, %v1208
  %v1210 = vrot.slane %v1112, %v1209
  %v1211 = vlaneseq
  %v1212 = vshrl.u32 %v1211, 7
  %v1213 = vsub.s32 1, %v1212
  %v1214 = vrot.slane %v1112, %v1213
  %v1215 = vlaneseq
  %v1216 = vshrl.u32 %v1215, 7
  %v1217 = vsub.s32 0, %v1216
  %v1218 = vrot.slane %v1114, %v1217
  %v1219 = vlaneseq
  %v1220 = vshrl.u32 %v1219, 7
  %v1221 = vsub.s32 1, %v1220
  %v1222 = vrot.slane %v1114, %v1221
  %v1223 = vlaneseq
  %v1224 = vshrl.u32 %v1223, 7
  %v1225 = vsub.s32 0, %v1224
  %v1226 = vrot.slane %v1116, %v1225
  %v1227 = vlaneseq
  %v1228 = vshrl.u32 %v1227, 7
  %v1229 = vsub.s32 1, %v1228
  %v1230 = vrot.slane %v1116, %v1229
  %v1231 = vlaneseq
  %v1232 = vshrl.u32 %v1231, 7
  %v1233 = vsub.s32 0, %v1232
  %v1234 = vrot.slane %v1141, %v1233
  %v1235 = vlaneseq
  %v1236 = vshrl.u32 %v1235, 7
  %v1237 = vsub.s32 1, %v1236
  %v1238 = vrot.slane %v1141, %v1237
  %v1239 = vlaneseq
  %v1240 = vshrl.u32 %v1239, 7
  %v1241 = vsub.s32 0, %v1240
  %v1242 = vrot.slane %v1155, %v1241
  %v1243 = vlaneseq
  %v1244 = vshrl.u32 %v1243, 7
  %v1245 = vsub.s32 1, %v1244
  %v1246 = vrot.slane %v1155, %v1245
  %v1247 = vlaneseq
  %v1248 = vshrl.u32 %v1247, 7
  %v1249 = vsub.s32 0, %v1248
  %v1250 = vrot.slane %v1163, %v1249
  %v1251 = vlaneseq
  %v1252 = vshrl.u32 %v1251, 7
  %v1253 = vsub.s32 1, %v1252
  %v1254 = vrot.slane %v1163, %v1253
  %v1255 = vlaneseq
  %v1256 = vshrl.u32 %v1255, 7
  %v1257 = vsub.s32 0, %v1256
  %v1258 = vrot.slane %v1165, %v1257
  %v1259 = vlaneseq
  %v1260 = vshrl.u32 %v1259, 7
  %v1261 = vsub.s32 1, %v1260
  %v1262 = vrot.slane %v1165, %v1261
  %v1263 = vlaneseq
  %v1264 = vshrl.u32 %v1263, 7
  %v1265 = vsub.s32 0, %v1264
  %v1266 = vrot.slane %v1148, %v1265
  %v1267 = vlaneseq
  %v1268 = vshrl.u32 %v1267, 7
  %v1269 = vsub.s32 1, %v1268
  %v1270 = vrot.slane %v1148, %v1269
  %v1271 = vlaneseq
  %v1272 = vshrl.u32 %v1271, 7
  %v1273 = vsub.s32 0, %v1272
  %v1274 = vrot.slane %v1162, %v1273
  %v1275 = vlaneseq
  %v1276 = vshrl.u32 %v1275, 7
  %v1277 = vsub.s32 1, %v1276
  %v1278 = vrot.slane %v1162, %v1277
  %v1279 = vlaneseq
  %v1280 = vshrl.u32 %v1279, 7
  %v1281 = vsub.s32 0, %v1280
  %v1282 = vrot.slane %v1164, %v1281
  %v1283 = vlaneseq
  %v1284 = vshrl.u32 %v1283, 7
  %v1285 = vsub.s32 1, %v1284
  %v1286 = vrot.slane %v1164, %v1285
  %v1287 = vlaneseq
  %v1288 = vshrl.u32 %v1287, 7
  %v1289 = vsub.s32 0, %v1288
  %v1290 = vrot.slane %v1166, %v1289
  %v1291 = vlaneseq
  %v1292 = vshrl.u32 %v1291, 7
  %v1293 = vsub.s32 1, %v1292
  %v1294 = vrot.slane %v1166, %v1293
  %v1327 = vld [vmem:[%s1] sm:$0xff]
  %v1328 = vld [vmem:[%s1 + $0x8] sm:$0xff]
  %v1329 = vld [vmem:[%s1 + $0x10] sm:$0xff]
  %v1330 = vld [vmem:[%s1 + $0x18] sm:$0xff]
  %v1331 = vmul.f32 %v1170, %v1327
  %v1332 = vmul.f32 %v1174, %v1328
  %v1333 = vmul.f32 %v1170, %v1329
  %v1334 = vmul.f32 %v1174, %v1330
  %v1335 = vmul.f32 %v1178, %v1327
  %v1336 = vmul.f32 %v1182, %v1328
  %v1337 = vmul.f32 %v1178, %v1329
  %v1338 = vmul.f32 %v1182, %v1330
  %v1339 = vmul.f32 %v1186, %v1327
  %v1340 = vmul.f32 %v1190, %v1328
  %v1341 = vmul.f32 %v1186, %v1329
  %v1342 = vmul.f32 %v1190, %v1330
  %v1343 = vmul.f32 %v1194, %v1327
  %v1344 = vmul.f32 %v1198, %v1328
  %v1345 = vmul.f32 %v1194, %v1329
  %v1346 = vmul.f32 %v1198, %v1330
  %v1347 = vmul.f32 %v1202, %v1327
  %v1348 = vmul.f32 %v1206, %v1328
  %v1349 = vmul.f32 %v1202, %v1329
  %v1350 = vmul.f32 %v1206, %v1330
  %v1351 = vmul.f32 %v1210, %v1327
  %v1352 = vmul.f32 %v1214, %v1328
  %v1353 = vmul.f32 %v1210, %v1329
  %v1354 = vmul.f32 %v1214, %v1330
  %v1355 = vmul.f32 %v1218, %v1327
  %v1356 = vmul.f32 %v1222, %v1328
  %v1357 = vmul.f32 %v1218, %v1329
  %v1358 = vmul.f32 %v1222, %v1330
  %v1359 = vmul.f32 %v1226, %v1327
  %v1360 = vmul.f32 %v1230, %v1328
  %v1361 = vmul.f32 %v1226, %v1329
  %v1362 = vmul.f32 %v1230, %v1330
  %v1363 = vmul.f32 %v1234, %v1327
  %v1364 = vmul.f32 %v1238, %v1328
  %v1365 = vmul.f32 %v1234, %v1329
  %v1366 = vmul.f32 %v1238, %v1330
  %v1367 = vmul.f32 %v1242, %v1327
  %v1368 = vmul.f32 %v1246, %v1328
  %v1369 = vmul.f32 %v1242, %v1329
  %v1370 = vmul.f32 %v1246, %v1330
  %v1371 = vmul.f32 %v1250, %v1327
  %v1372 = vmul.f32 %v1254, %v1328
  %v1373 = vmul.f32 %v1250, %v1329
  %v1374 = vmul.f32 %v1254, %v1330
  %v1375 = vmul.f32 %v1258, %v1327
  %v1376 = vmul.f32 %v1262, %v1328
  %v1377 = vmul.f32 %v1258, %v1329
  %v1378 = vmul.f32 %v1262, %v1330
  %v1379 = vmul.f32 %v1266, %v1327
  %v1380 = vmul.f32 %v1270, %v1328
  %v1381 = vmul.f32 %v1266, %v1329
  %v1382 = vmul.f32 %v1270, %v1330
  %v1383 = vmul.f32 %v1274, %v1327
  %v1384 = vmul.f32 %v1278, %v1328
  %v1385 = vmul.f32 %v1274, %v1329
  %v1386 = vmul.f32 %v1278, %v1330
  %v1387 = vmul.f32 %v1282, %v1327
  %v1388 = vmul.f32 %v1286, %v1328
  %v1389 = vmul.f32 %v1282, %v1329
  %v1390 = vmul.f32 %v1286, %v1330
  %v1391 = vmul.f32 %v1290, %v1327
  %v1392 = vmul.f32 %v1294, %v1328
  %v1393 = vmul.f32 %v1290, %v1329
  %v1394 = vmul.f32 %v1294, %v1330
  %v1395 = vadd.f32 %v1331, %v901
  %v1396 = vadd.f32 %v1332, %v903
  %v1397 = vadd.f32 %v1333, %v905
  %v1398 = vadd.f32 %v1334, %v907
  %v1399 = vadd.f32 %v1335, %v911
  %v1400 = vadd.f32 %v1336, %v913
  %v1401 = vadd.f32 %v1337, %v915
  %v1402 = vadd.f32 %v1338, %v917
  %v1403 = vadd.f32 %v1339, %v921
  %v1404 = vadd.f32 %v1340, %v923
  %v1405 = vadd.f32 %v1341, %v925
  %v1406 = vadd.f32 %v1342, %v927
  %v1407 = vadd.f32 %v1343, %v931
  %v1408 = vadd.f32 %v1344, %v933
  %v1409 = vadd.f32 %v1345, %v935
  %v1410 = vadd.f32 %v1346, %v937
  %v1411 = vadd.f32 %v1347, %v941
  %v1412 = vadd.f32 %v1348, %v943
  %v1413 = vadd.f32 %v1349, %v945
  %v1414 = vadd.f32 %v1350, %v947
  %v1415 = vadd.f32 %v1351, %v951
  %v1416 = vadd.f32 %v1352, %v953
  %v1417 = vadd.f32 %v1353, %v955
  %v1418 = vadd.f32 %v1354, %v957
  %v1419 = vadd.f32 %v1355, %v961
  %v1420 = vadd.f32 %v1356, %v963
  %v1421 = vadd.f32 %v1357, %v965
  %v1422 = vadd.f32 %v1358, %v967
  %v1423 = vadd.f32 %v1359, %v971
  %v1424 = vadd.f32 %v1360, %v973
  %v1425 = vadd.f32 %v1361, %v975
  %v1426 = vadd.f32 %v1362, %v977
  %v1427 = vadd.f32 %v1363, %v981
  %v1428 = vadd.f32 %v1364, %v983
  %v1429 = vadd.f32 %v1365, %v985
  %v1430 = vadd.f32 %v1366, %v987
  %v1431 = vadd.f32 %v1367, %v991
  %v1432 = vadd.f32 %v1368, %v993
  %v1433 = vadd.f32 %v1369, %v995
  %v1434 = vadd.f32 %v1370, %v997
  %v1435 = vadd.f32 %v1371, %v1001
  %v1436 = vadd.f32 %v1372, %v1003
  %v1437 = vadd.f32 %v1373, %v1005
  %v1438 = vadd.f32 %v1374, %v1007
  %v1439 = vadd.f32 %v1375, %v1011
  %v1440 = vadd.f32 %v1376, %v1013
  %v1441 = vadd.f32 %v1377, %v1015
  %v1442 = vadd.f32 %v1378, %v1017
  %v1443 = vadd.f32 %v1379, %v1021
  %v1444 = vadd.f32 %v1380, %v1023
  %v1445 = vadd.f32 %v1381, %v1025
  %v1446 = vadd.f32 %v1382, %v1027
  %v1447 = vadd.f32 %v1383, %v1031
  %v1448 = vadd.f32 %v1384, %v1033
  %v1449 = vadd.f32 %v1385, %v1035
  %v1450 = vadd.f32 %v1386, %v1037
  %v1451 = vadd.f32 %v1387, %v1041
  %v1452 = vadd.f32 %v1388, %v1043
  %v1453 = vadd.f32 %v1389, %v1045
  %v1454 = vadd.f32 %v1390, %v1047
  %v1455 = vadd.f32 %v1391, %v1051
  %v1456 = vadd.f32 %v1392, %v1053
  %v1457 = vadd.f32 %v1393, %v1055
  %v1458 = vadd.f32 %v1394, %v1057
  %v1459 = vpack.c.bf16 %v1397, %v1395
  %v1460 = vpack.c.bf16 %v1398, %v1396
  %v1461 = vpack.c.bf16 %v1401, %v1399
  %v1462 = vpack.c.bf16 %v1402, %v1400
  %v1463 = vpack.c.bf16 %v1405, %v1403
  %v1464 = vpack.c.bf16 %v1406, %v1404
  %v1465 = vpack.c.bf16 %v1409, %v1407
  %v1466 = vpack.c.bf16 %v1410, %v1408
  %v1467 = vpack.c.bf16 %v1413, %v1411
  %v1468 = vpack.c.bf16 %v1414, %v1412
  %v1469 = vpack.c.bf16 %v1417, %v1415
  %v1470 = vpack.c.bf16 %v1418, %v1416
  %v1471 = vpack.c.bf16 %v1421, %v1419
  %v1472 = vpack.c.bf16 %v1422, %v1420
  %v1473 = vpack.c.bf16 %v1425, %v1423
  %v1474 = vpack.c.bf16 %v1426, %v1424
  %v1475 = vpack.c.bf16 %v1429, %v1427
  %v1476 = vpack.c.bf16 %v1430, %v1428
  %v1477 = vpack.c.bf16 %v1433, %v1431
  %v1478 = vpack.c.bf16 %v1434, %v1432
  %v1479 = vpack.c.bf16 %v1437, %v1435
  %v1480 = vpack.c.bf16 %v1438, %v1436
  %v1481 = vpack.c.bf16 %v1441, %v1439
  %v1482 = vpack.c.bf16 %v1442, %v1440
  %v1483 = vpack.c.bf16 %v1445, %v1443
  %v1484 = vpack.c.bf16 %v1446, %v1444
  %v1485 = vpack.c.bf16 %v1449, %v1447
  %v1486 = vpack.c.bf16 %v1450, %v1448
  %v1487 = vpack.c.bf16 %v1453, %v1451
  %v1488 = vpack.c.bf16 %v1454, %v1452
  %v1489 = vpack.c.bf16 %v1457, %v1455
  %v1490 = vpack.c.bf16 %v1458, %v1456
  %v1491 = vld [vmem:[%s3] sm:$0xff]
  %v1492 = vld [vmem:[%s3 + $0x8] sm:$0xff]
  %v1493 = vld [vmem:[%s3 + $0x10] sm:$0xff]
  %v1494 = vld [vmem:[%s3 + $0x18] sm:$0xff]
  %v1495 = vld [vmem:[%s3 + $0x20] sm:$0xff]
  %v1496 = vld [vmem:[%s3 + $0x28] sm:$0xff]
  %v1497 = vld [vmem:[%s3 + $0x30] sm:$0xff]
  %v1498 = vld [vmem:[%s3 + $0x38] sm:$0xff]
  %v1499 = vld [vmem:[%s3 + $0x40] sm:$0xff]
  %v1500 = vld [vmem:[%s3 + $0x48] sm:$0xff]
  %v1501 = vld [vmem:[%s3 + $0x50] sm:$0xff]
  %v1502 = vld [vmem:[%s3 + $0x58] sm:$0xff]
  %v1503 = vld [vmem:[%s3 + $0x60] sm:$0xff]
  %v1504 = vld [vmem:[%s3 + $0x68] sm:$0xff]
  %v1505 = vld [vmem:[%s3 + $0x70] sm:$0xff]
  %v1506 = vld [vmem:[%s3 + $0x78] sm:$0xff]
  %v1507 = vld [vmem:[%s3 + $0x80] sm:$0xff]
  %v1508 = vld [vmem:[%s3 + $0x88] sm:$0xff]
  %v1509 = vld [vmem:[%s3 + $0x90] sm:$0xff]
  %v1510 = vld [vmem:[%s3 + $0x98] sm:$0xff]
  %v1511 = vld [vmem:[%s3 + $0xa0] sm:$0xff]
  %v1512 = vld [vmem:[%s3 + $0xa8] sm:$0xff]
  %v1513 = vld [vmem:[%s3 + $0xb0] sm:$0xff]
  %v1514 = vld [vmem:[%s3 + $0xb8] sm:$0xff]
  %v1515 = vld [vmem:[%s3 + $0xc0] sm:$0xff]
  %v1516 = vld [vmem:[%s3 + $0xc8] sm:$0xff]
  %v1517 = vld [vmem:[%s3 + $0xd0] sm:$0xff]
  %v1518 = vld [vmem:[%s3 + $0xd8] sm:$0xff]
  %v1519 = vld [vmem:[%s3 + $0xe0] sm:$0xff]
  %v1520 = vld [vmem:[%s3 + $0xe8] sm:$0xff]
  %v1521 = vld [vmem:[%s3 + $0xf0] sm:$0xff]
  %v1522 = vld [vmem:[%s3 + $0xf8] sm:$0xff]
  %v1523 = vld [vmem:[%s4] sm:$0x3]
  %v1525 = vlaneseq
  %v1526 = vshrl.u32 %v1525, 7
  %v1527 = vsub.s32 0, %v1526
  %v1528 = vrot.slane %v1523, %v1527
  %v1529 = vlaneseq
  %v1530 = vshrl.u32 %v1529, 7
  %v1531 = vsub.s32 1, %v1530
  %v1532 = vrot.slane %v1523, %v1531
  %v1567 = vunpack.c.l.b16 %v1491
  %v1568 = vunpack.c.h.b16 %v1491
  %v1569 = vunpack.c.l.b16 %v1492
  %v1570 = vunpack.c.h.b16 %v1492
  %v1571 = vunpack.c.l.b16 %v1493
  %v1572 = vunpack.c.h.b16 %v1493
  %v1573 = vunpack.c.l.b16 %v1494
  %v1574 = vunpack.c.h.b16 %v1494
  %v1575 = vunpack.c.l.b16 %v1495
  %v1576 = vunpack.c.h.b16 %v1495
  %v1577 = vunpack.c.l.b16 %v1496
  %v1578 = vunpack.c.h.b16 %v1496
  %v1579 = vunpack.c.l.b16 %v1497
  %v1580 = vunpack.c.h.b16 %v1497
  %v1581 = vunpack.c.l.b16 %v1498
  %v1582 = vunpack.c.h.b16 %v1498
  %v1583 = vunpack.c.l.b16 %v1499
  %v1584 = vunpack.c.h.b16 %v1499
  %v1585 = vunpack.c.l.b16 %v1500
  %v1586 = vunpack.c.h.b16 %v1500
  %v1587 = vunpack.c.l.b16 %v1501
  %v1588 = vunpack.c.h.b16 %v1501
  %v1589 = vunpack.c.l.b16 %v1502
  %v1590 = vunpack.c.h.b16 %v1502
  %v1591 = vunpack.c.l.b16 %v1503
  %v1592 = vunpack.c.h.b16 %v1503
  %v1593 = vunpack.c.l.b16 %v1504
  %v1594 = vunpack.c.h.b16 %v1504
  %v1595 = vunpack.c.l.b16 %v1505
  %v1596 = vunpack.c.h.b16 %v1505
  %v1597 = vunpack.c.l.b16 %v1506
  %v1598 = vunpack.c.h.b16 %v1506
  %v1599 = vunpack.c.l.b16 %v1507
  %v1600 = vunpack.c.h.b16 %v1507
  %v1601 = vunpack.c.l.b16 %v1508
  %v1602 = vunpack.c.h.b16 %v1508
  %v1603 = vunpack.c.l.b16 %v1509
  %v1604 = vunpack.c.h.b16 %v1509
  %v1605 = vunpack.c.l.b16 %v1510
  %v1606 = vunpack.c.h.b16 %v1510
  %v1607 = vunpack.c.l.b16 %v1511
  %v1608 = vunpack.c.h.b16 %v1511
  %v1609 = vunpack.c.l.b16 %v1512
  %v1610 = vunpack.c.h.b16 %v1512
  %v1611 = vunpack.c.l.b16 %v1513
  %v1612 = vunpack.c.h.b16 %v1513
  %v1613 = vunpack.c.l.b16 %v1514
  %v1614 = vunpack.c.h.b16 %v1514
  %v1615 = vunpack.c.l.b16 %v1515
  %v1616 = vunpack.c.h.b16 %v1515
  %v1617 = vunpack.c.l.b16 %v1516
  %v1618 = vunpack.c.h.b16 %v1516
  %v1619 = vunpack.c.l.b16 %v1517
  %v1620 = vunpack.c.h.b16 %v1517
  %v1621 = vunpack.c.l.b16 %v1518
  %v1622 = vunpack.c.h.b16 %v1518
  %v1623 = vunpack.c.l.b16 %v1519
  %v1624 = vunpack.c.h.b16 %v1519
  %v1625 = vunpack.c.l.b16 %v1520
  %v1626 = vunpack.c.h.b16 %v1520
  %v1627 = vunpack.c.l.b16 %v1521
  %v1628 = vunpack.c.h.b16 %v1521
  %v1629 = vunpack.c.l.b16 %v1522
  %v1630 = vunpack.c.h.b16 %v1522
  %v1631 = vpack.c.b16 %v1569, %v1567
  %v1632 = vpack.c.b16 %v1570, %v1568
  %v1633 = vpack.c.b16 %v1573, %v1571
  %v1634 = vpack.c.b16 %v1574, %v1572
  %v1635 = vpack.c.b16 %v1577, %v1575
  %v1636 = vpack.c.b16 %v1578, %v1576
  %v1637 = vpack.c.b16 %v1581, %v1579
  %v1638 = vpack.c.b16 %v1582, %v1580
  %v1639 = vpack.c.b16 %v1585, %v1583
  %v1640 = vpack.c.b16 %v1586, %v1584
  %v1641 = vpack.c.b16 %v1589, %v1587
  %v1642 = vpack.c.b16 %v1590, %v1588
  %v1643 = vpack.c.b16 %v1593, %v1591
  %v1644 = vpack.c.b16 %v1594, %v1592
  %v1645 = vpack.c.b16 %v1597, %v1595
  %v1646 = vpack.c.b16 %v1598, %v1596
  %v1647 = vpack.c.b16 %v1601, %v1599
  %v1648 = vpack.c.b16 %v1602, %v1600
  %v1649 = vpack.c.b16 %v1605, %v1603
  %v1650 = vpack.c.b16 %v1606, %v1604
  %v1651 = vpack.c.b16 %v1609, %v1607
  %v1652 = vpack.c.b16 %v1610, %v1608
  %v1653 = vpack.c.b16 %v1613, %v1611
  %v1654 = vpack.c.b16 %v1614, %v1612
  %v1655 = vpack.c.b16 %v1617, %v1615
  %v1656 = vpack.c.b16 %v1618, %v1616
  %v1657 = vpack.c.b16 %v1621, %v1619
  %v1658 = vpack.c.b16 %v1622, %v1620
  %v1659 = vpack.c.b16 %v1625, %v1623
  %v1660 = vpack.c.b16 %v1626, %v1624
  %v1661 = vpack.c.b16 %v1629, %v1627
  %v1662 = vpack.c.b16 %v1630, %v1628
  %1695 = vmatprep.subr.bf16.mxu0 %v1632
  %1696 = vmatpush1.bf16.msra.mxu0 %v1631
  %1697 = vmatprep.subr.bf16.mxu0 %v1634
  %1698 = vmatpush1.bf16.msra.mxu0 %v1633
  %1699 = vmatprep.subr.bf16.mxu0 %v1636
  %1700 = vmatpush1.bf16.msra.mxu0 %v1635
  %1701 = vmatprep.subr.bf16.mxu0 %v1638
  %1702 = vmatpush1.bf16.msra.mxu0 %v1637
  %1703 = vmatprep.subr.bf16.mxu0 %v1640
  %1704 = vmatpush1.bf16.msra.mxu0 %v1639
  %1705 = vmatprep.subr.bf16.mxu0 %v1642
  %1706 = vmatpush1.bf16.msra.mxu0 %v1641
  %1707 = vmatprep.subr.bf16.mxu0 %v1644
  %1708 = vmatpush1.bf16.msra.mxu0 %v1643
  %1709 = vmatprep.subr.bf16.mxu0 %v1646
  %1710 = vmatpush1.bf16.msra.mxu0 %v1645
  %1711 = vmatprep.subr.bf16.mxu0 %v1648
  %1712 = vmatpush1.bf16.msra.mxu0 %v1647
  %1713 = vmatprep.subr.bf16.mxu0 %v1650
  %1714 = vmatpush1.bf16.msra.mxu0 %v1649
  %1715 = vmatprep.subr.bf16.mxu0 %v1652
  %1716 = vmatpush1.bf16.msra.mxu0 %v1651
  %1717 = vmatprep.subr.bf16.mxu0 %v1654
  %1718 = vmatpush1.bf16.msra.mxu0 %v1653
  %1719 = vmatprep.subr.bf16.mxu0 %v1656
  %1720 = vmatpush1.bf16.msra.mxu0 %v1655
  %1721 = vmatprep.subr.bf16.mxu0 %v1658
  %1722 = vmatpush1.bf16.msra.mxu0 %v1657
  %1723 = vmatprep.subr.bf16.mxu0 %v1660
  %1724 = vmatpush1.bf16.msra.mxu0 %v1659
  %1725 = vmatprep.subr.bf16.mxu0 %v1662
  %1726 = vmatpush1.bf16.msra.mxu0 %v1661
  %1727 = vmatprep.mubr.bf16.mxu0 %v1460
  %1728 = vmatmul.mubr.bf16.gmra.mrb[0].mxu0 %v1459
  %v1729 = vpop.f32.mrb[0].mxu0
  %v1730 = vadd.f32 %v1528, %v1729
  %v1731 = vpop.f32.mrb[0].mxu0
  %v1732 = vadd.f32 %v1532, %v1731
  %v1733 = vpop.f32.mrb[0].mxu0
  %v1734 = vadd.f32 %v1528, %v1733
  %v1735 = vpop.f32.mrb[0].mxu0
  %v1736 = vadd.f32 %v1532, %v1735
  %1737 = vmatprep.mubr.bf16.mxu0 %v1462
  %1738 = vmatmul.mubr.bf16.gmra.mrb[0].mxu0 %v1461
  %v1739 = vpop.f32.mrb[0].mxu0
  %v1740 = vadd.f32 %v1528, %v1739
  %v1741 = vpop.f32.mrb[0].mxu0
  %v1742 = vadd.f32 %v1532, %v1741
  %v1743 = vpop.f32.mrb[0].mxu0
  %v1744 = vadd.f32 %v1528, %v1743
  %v1745 = vpop.f32.mrb[0].mxu0
  %v1746 = vadd.f32 %v1532, %v1745
  %1747 = vmatprep.mubr.bf16.mxu0 %v1464
  %1748 = vmatmul.mubr.bf16.gmra.mrb[0].mxu0 %v1463
  %v1749 = vpop.f32.mrb[0].mxu0
  %v1750 = vadd.f32 %v1528, %v1749
  %v1751 = vpop.f32.mrb[0].mxu0
  %v1752 = vadd.f32 %v1532, %v1751
  %v1753 = vpop.f32.mrb[0].mxu0
  %v1754 = vadd.f32 %v1528, %v1753
  %v1755 = vpop.f32.mrb[0].mxu0
  %v1756 = vadd.f32 %v1532, %v1755
  %1757 = vmatprep.mubr.bf16.mxu0 %v1466
  %1758 = vmatmul.mubr.bf16.gmra.mrb[0].mxu0 %v1465
  %v1759 = vpop.f32.mrb[0].mxu0
  %v1760 = vadd.f32 %v1528, %v1759
  %v1761 = vpop.f32.mrb[0].mxu0
  %v1762 = vadd.f32 %v1532, %v1761
  %v1763 = vpop.f32.mrb[0].mxu0
  %v1764 = vadd.f32 %v1528, %v1763
  %v1765 = vpop.f32.mrb[0].mxu0
  %v1766 = vadd.f32 %v1532, %v1765
  %1767 = vmatprep.mubr.bf16.mxu0 %v1468
  %1768 = vmatmul.mubr.bf16.gmra.mrb[0].mxu0 %v1467
  %v1769 = vpop.f32.mrb[0].mxu0
  %v1770 = vadd.f32 %v1528, %v1769
  %v1771 = vpop.f32.mrb[0].mxu0
  %v1772 = vadd.f32 %v1532, %v1771
  %v1773 = vpop.f32.mrb[0].mxu0
  %v1774 = vadd.f32 %v1528, %v1773
  %v1775 = vpop.f32.mrb[0].mxu0
  %v1776 = vadd.f32 %v1532, %v1775
  %1777 = vmatprep.mubr.bf16.mxu0 %v1470
  %1778 = vmatmul.mubr.bf16.gmra.mrb[0].mxu0 %v1469
  %v1779 = vpop.f32.mrb[0].mxu0
  %v1780 = vadd.f32 %v1528, %v1779
  %v1781 = vpop.f32.mrb[0].mxu0
  %v1782 = vadd.f32 %v1532, %v1781
  %v1783 = vpop.f32.mrb[0].mxu0
  %v1784 = vadd.f32 %v1528, %v1783
  %v1785 = vpop.f32.mrb[0].mxu0
  %v1786 = vadd.f32 %v1532, %v1785
  %1787 = vmatprep.mubr.bf16.mxu0 %v1472
  %1788 = vmatmul.mubr.bf16.gmra.mrb[0].mxu0 %v1471
  %v1789 = vpop.f32.mrb[0].mxu0
  %v1790 = vadd.f32 %v1528, %v1789
  %v1791 = vpop.f32.mrb[0].mxu0
  %v1792 = vadd.f32 %v1532, %v1791
  %v1793 = vpop.f32.mrb[0].mxu0
  %v1794 = vadd.f32 %v1528, %v1793
  %v1795 = vpop.f32.mrb[0].mxu0
  %v1796 = vadd.f32 %v1532, %v1795
  %1797 = vmatprep.mubr.bf16.mxu0 %v1474
  %1798 = vmatmul.mubr.bf16.gmra.mrb[0].mxu0 %v1473
  %v1799 = vpop.f32.mrb[0].mxu0
  %v1800 = vadd.f32 %v1528, %v1799
  %v1801 = vpop.f32.mrb[0].mxu0
  %v1802 = vadd.f32 %v1532, %v1801
  %v1803 = vpop.f32.mrb[0].mxu0
  %v1804 = vadd.f32 %v1528, %v1803
  %v1805 = vpop.f32.mrb[0].mxu0
  %v1806 = vadd.f32 %v1532, %v1805
  %1807 = vmatprep.mubr.bf16.mxu0 %v1476
  %1808 = vmatmul.mubr.bf16.gmra.mrb[0].mxu0 %v1475
  %v1809 = vpop.f32.mrb[0].mxu0
  %v1810 = vadd.f32 %v1528, %v1809
  %v1811 = vpop.f32.mrb[0].mxu0
  %v1812 = vadd.f32 %v1532, %v1811
  %v1813 = vpop.f32.mrb[0].mxu0
  %v1814 = vadd.f32 %v1528, %v1813
  %v1815 = vpop.f32.mrb[0].mxu0
  %v1816 = vadd.f32 %v1532, %v1815
  %1817 = vmatprep.mubr.bf16.mxu0 %v1478
  %1818 = vmatmul.mubr.bf16.gmra.mrb[0].mxu0 %v1477
  %v1819 = vpop.f32.mrb[0].mxu0
  %v1820 = vadd.f32 %v1528, %v1819
  %v1821 = vpop.f32.mrb[0].mxu0
  %v1822 = vadd.f32 %v1532, %v1821
  %v1823 = vpop.f32.mrb[0].mxu0
  %v1824 = vadd.f32 %v1528, %v1823
  %v1825 = vpop.f32.mrb[0].mxu0
  %v1826 = vadd.f32 %v1532, %v1825
  %1827 = vmatprep.mubr.bf16.mxu0 %v1480
  %1828 = vmatmul.mubr.bf16.gmra.mrb[0].mxu0 %v1479
  %v1829 = vpop.f32.mrb[0].mxu0
  %v1830 = vadd.f32 %v1528, %v1829
  %v1831 = vpop.f32.mrb[0].mxu0
  %v1832 = vadd.f32 %v1532, %v1831
  %v1833 = vpop.f32.mrb[0].mxu0
  %v1834 = vadd.f32 %v1528, %v1833
  %v1835 = vpop.f32.mrb[0].mxu0
  %v1836 = vadd.f32 %v1532, %v1835
  %1837 = vmatprep.mubr.bf16.mxu0 %v1482
  %1838 = vmatmul.mubr.bf16.gmra.mrb[0].mxu0 %v1481
  %v1839 = vpop.f32.mrb[0].mxu0
  %v1840 = vadd.f32 %v1528, %v1839
  %v1841 = vpop.f32.mrb[0].mxu0
  %v1842 = vadd.f32 %v1532, %v1841
  %v1843 = vpop.f32.mrb[0].mxu0
  %v1844 = vadd.f32 %v1528, %v1843
  %v1845 = vpop.f32.mrb[0].mxu0
  %v1846 = vadd.f32 %v1532, %v1845
  %1847 = vmatprep.mubr.bf16.mxu0 %v1484
  %1848 = vmatmul.mubr.bf16.gmra.mrb[0].mxu0 %v1483
  %v1849 = vpop.f32.mrb[0].mxu0
  %v1850 = vadd.f32 %v1528, %v1849
  %v1851 = vpop.f32.mrb[0].mxu0
  %v1852 = vadd.f32 %v1532, %v1851
  %v1853 = vpop.f32.mrb[0].mxu0
  %v1854 = vadd.f32 %v1528, %v1853
  %v1855 = vpop.f32.mrb[0].mxu0
  %v1856 = vadd.f32 %v1532, %v1855
  %1857 = vmatprep.mubr.bf16.mxu0 %v1486
  %1858 = vmatmul.mubr.bf16.gmra.mrb[0].mxu0 %v1485
  %v1859 = vpop.f32.mrb[0].mxu0
  %v1860 = vadd.f32 %v1528, %v1859
  %v1861 = vpop.f32.mrb[0].mxu0
  %v1862 = vadd.f32 %v1532, %v1861
  %v1863 = vpop.f32.mrb[0].mxu0
  %v1864 = vadd.f32 %v1528, %v1863
  %v1865 = vpop.f32.mrb[0].mxu0
  %v1866 = vadd.f32 %v1532, %v1865
  %1867 = vmatprep.mubr.bf16.mxu0 %v1488
  %1868 = vmatmul.mubr.bf16.gmra.mrb[0].mxu0 %v1487
  %v1869 = vpop.f32.mrb[0].mxu0
  %v1870 = vadd.f32 %v1528, %v1869
  %v1871 = vpop.f32.mrb[0].mxu0
  %v1872 = vadd.f32 %v1532, %v1871
  %v1873 = vpop.f32.mrb[0].mxu0
  %v1874 = vadd.f32 %v1528, %v1873
  %v1875 = vpop.f32.mrb[0].mxu0
  %v1876 = vadd.f32 %v1532, %v1875
  %1877 = vmatprep.mubr.bf16.mxu0 %v1490
  %1878 = vmatmul.mubr.bf16.gmra.mrb[0].mxu0 %v1489
  %v1879 = vpop.f32.mrb[0].mxu0
  %v1880 = vadd.f32 %v1528, %v1879
  %v1881 = vpop.f32.mrb[0].mxu0
  %v1882 = vadd.f32 %v1532, %v1881
  %v1883 = vpop.f32.mrb[0].mxu0
  %v1884 = vadd.f32 %v1528, %v1883
  %v1885 = vpop.f32.mrb[0].mxu0
  %v1886 = vadd.f32 %v1532, %v1885
  %1887 = vdwg.mxu0
  %v1888 = vmax.f32 %v1730, 0.0
  %v1889 = vmax.f32 %v1732, 0.0
  %v1890 = vmax.f32 %v1734, 0.0
  %v1891 = vmax.f32 %v1736, 0.0
  %v1892 = vmax.f32 %v1740, 0.0
  %v1893 = vmax.f32 %v1742, 0.0
  %v1894 = vmax.f32 %v1744, 0.0
  %v1895 = vmax.f32 %v1746, 0.0
  %v1896 = vmax.f32 %v1750, 0.0
  %v1897 = vmax.f32 %v1752, 0.0
  %v1898 = vmax.f32 %v1754, 0.0
  %v1899 = vmax.f32 %v1756, 0.0
  %v1900 = vmax.f32 %v1760, 0.0
  %v1901 = vmax.f32 %v1762, 0.0
  %v1902 = vmax.f32 %v1764, 0.0
  %v1903 = vmax.f32 %v1766, 0.0
  %v1904 = vmax.f32 %v1770, 0.0
  %v1905 = vmax.f32 %v1772, 0.0
  %v1906 = vmax.f32 %v1774, 0.0
  %v1907 = vmax.f32 %v1776, 0.0
  %v1908 = vmax.f32 %v1780, 0.0
  %v1909 = vmax.f32 %v1782, 0.0
  %v1910 = vmax.f32 %v1784, 0.0
  %v1911 = vmax.f32 %v1786, 0.0
  %v1912 = vmax.f32 %v1790, 0.0
  %v1913 = vmax.f32 %v1792, 0.0
  %v1914 = vmax.f32 %v1794, 0.0
  %v1915 = vmax.f32 %v1796, 0.0
  %v1916 = vmax.f32 %v1800, 0.0
  %v1917 = vmax.f32 %v1802, 0.0
  %v1918 = vmax.f32 %v1804, 0.0
  %v1919 = vmax.f32 %v1806, 0.0
  %v1920 = vmax.f32 %v1810, 0.0
  %v1921 = vmax.f32 %v1812, 0.0
  %v1922 = vmax.f32 %v1814, 0.0
  %v1923 = vmax.f32 %v1816, 0.0
  %v1924 = vmax.f32 %v1820, 0.0
  %v1925 = vmax.f32 %v1822, 0.0
  %v1926 = vmax.f32 %v1824, 0.0
  %v1927 = vmax.f32 %v1826, 0.0
  %v1928 = vmax.f32 %v1830, 0.0
  %v1929 = vmax.f32 %v1832, 0.0
  %v1930 = vmax.f32 %v1834, 0.0
  %v1931 = vmax.f32 %v1836, 0.0
  %v1932 = vmax.f32 %v1840, 0.0
  %v1933 = vmax.f32 %v1842, 0.0
  %v1934 = vmax.f32 %v1844, 0.0
  %v1935 = vmax.f32 %v1846, 0.0
  %v1936 = vmax.f32 %v1850, 0.0
  %v1937 = vmax.f32 %v1852, 0.0
  %v1938 = vmax.f32 %v1854, 0.0
  %v1939 = vmax.f32 %v1856, 0.0
  %v1940 = vmax.f32 %v1860, 0.0
  %v1941 = vmax.f32 %v1862, 0.0
  %v1942 = vmax.f32 %v1864, 0.0
  %v1943 = vmax.f32 %v1866, 0.0
  %v1944 = vmax.f32 %v1870, 0.0
  %v1945 = vmax.f32 %v1872, 0.0
  %v1946 = vmax.f32 %v1874, 0.0
  %v1947 = vmax.f32 %v1876, 0.0
  %v1948 = vmax.f32 %v1880, 0.0
  %v1949 = vmax.f32 %v1882, 0.0
  %v1950 = vmax.f32 %v1884, 0.0
  %v1951 = vmax.f32 %v1886, 0.0
  %v1952 = vpack.c.bf16 %v1890, %v1888
  %v1953 = vpack.c.bf16 %v1891, %v1889
  %v1954 = vpack.c.bf16 %v1894, %v1892
  %v1955 = vpack.c.bf16 %v1895, %v1893
  %v1956 = vpack.c.bf16 %v1898, %v1896
  %v1957 = vpack.c.bf16 %v1899, %v1897
  %v1958 = vpack.c.bf16 %v1902, %v1900
  %v1959 = vpack.c.bf16 %v1903, %v1901
  %v1960 = vpack.c.bf16 %v1906, %v1904
  %v1961 = vpack.c.bf16 %v1907, %v1905
  %v1962 = vpack.c.bf16 %v1910, %v1908
  %v1963 = vpack.c.bf16 %v1911, %v1909
  %v1964 = vpack.c.bf16 %v1914, %v1912
  %v1965 = vpack.c.bf16 %v1915, %v1913
  %v1966 = vpack.c.bf16 %v1918, %v1916
  %v1967 = vpack.c.bf16 %v1919, %v1917
  %v1968 = vpack.c.bf16 %v1922, %v1920
  %v1969 = vpack.c.bf16 %v1923, %v1921
  %v1970 = vpack.c.bf16 %v1926, %v1924
  %v1971 = vpack.c.bf16 %v1927, %v1925
  %v1972 = vpack.c.bf16 %v1930, %v1928
  %v1973 = vpack.c.bf16 %v1931, %v1929
  %v1974 = vpack.c.bf16 %v1934, %v1932
  %v1975 = vpack.c.bf16 %v1935, %v1933
  %v1976 = vpack.c.bf16 %v1938, %v1936
  %v1977 = vpack.c.bf16 %v1939, %v1937
  %v1978 = vpack.c.bf16 %v1942, %v1940
  %v1979 = vpack.c.bf16 %v1943, %v1941
  %v1980 = vpack.c.bf16 %v1946, %v1944
  %v1981 = vpack.c.bf16 %v1947, %v1945
  %v1982 = vpack.c.bf16 %v1950, %v1948
  %v1983 = vpack.c.bf16 %v1951, %v1949
  %v1984 = vld [vmem:[%s5] sm:$0x3]
  %v1985 = vld [vmem:[%s6] sm:$0x3]
  %1987 = vset.pattern.permute.xlu0 0
  %1988 = vperm.xlu0 %1987, %v1985
  %v1989 = vpop.permute.xlu0 %1988
  %v1993 = vunpack.c.l.s4 1966171168
  %v1994 = vunpack.c.0.s8 %v1993
  %v1995 = vlaneseq
  %v1996 = vshrl.u32 %v1995, 7
  %v1997 = vsub.s32 %v1994, %v1996
  %v1998 = vrot.slane %v1984, %v1997
  %v1999 = vcombine.high %v1998, %v1998
  %v2001 = vunpack.c.l.s4 1966171168
  %v2002 = vunpack.c.0.s8 %v2001
  %v2003 = vlaneseq
  %v2004 = vshrl.u32 %v2003, 7
  %v2005 = vsub.s32 %v2002, %v2004
  %v2006 = vrot.slane %v1998, %v2005
  %v2008 = vunpack.c.l.s4 1966171168
  %v2009 = vunpack.c.0.s8 %v2008
  %v2010 = vlaneseq
  %v2011 = vshrl.u32 %v2010, 7
  %v2012 = vsub.s32 %v2009, %v2011
  %v2013 = vrot.slane %v1999, %v2012
  %2016 = vmatprep.subr.bf16.mxu0 %v1953
  %2017 = vmatpush1.bf16.xpose.msra.mxu0 %v1952
  %2018 = vmatprep.subr.bf16.mxu0 %v1955
  %2019 = vmatpush1.bf16.xpose.msra.mxu0 %v1954
  %2020 = vmatprep.subr.bf16.mxu0 %v1957
  %2021 = vmatpush1.bf16.xpose.msra.mxu0 %v1956
  %2022 = vmatprep.subr.bf16.mxu0 %v1959
  %2023 = vmatpush1.bf16.xpose.msra.mxu0 %v1958
  %2024 = vmatprep.subr.bf16.mxu0 %v1961
  %2025 = vmatpush1.bf16.xpose.msra.mxu0 %v1960
  %2026 = vmatprep.subr.bf16.mxu0 %v1963
  %2027 = vmatpush1.bf16.xpose.msra.mxu0 %v1962
  %2028 = vmatprep.subr.bf16.mxu0 %v1965
  %2029 = vmatpush1.bf16.xpose.msra.mxu0 %v1964
  %2030 = vmatprep.subr.bf16.mxu0 %v1967
  %2031 = vmatpush1.bf16.xpose.msra.mxu0 %v1966
  %2032 = vmatprep.subr.bf16.mxu0 %v1969
  %2033 = vmatpush1.bf16.xpose.msra.mxu0 %v1968
  %2034 = vmatprep.subr.bf16.mxu0 %v1971
  %2035 = vmatpush1.bf16.xpose.msra.mxu0 %v1970
  %2036 = vmatprep.subr.bf16.mxu0 %v1973
  %2037 = vmatpush1.bf16.xpose.msra.mxu0 %v1972
  %2038 = vmatprep.subr.bf16.mxu0 %v1975
  %2039 = vmatpush1.bf16.xpose.msra.mxu0 %v1974
  %2040 = vmatprep.subr.bf16.mxu0 %v1977
  %2041 = vmatpush1.bf16.xpose.msra.mxu0 %v1976
  %2042 = vmatprep.subr.bf16.mxu0 %v1979
  %2043 = vmatpush1.bf16.xpose.msra.mxu0 %v1978
  %2044 = vmatprep.subr.bf16.mxu0 %v1981
  %2045 = vmatpush1.bf16.xpose.msra.mxu0 %v1980
  %2046 = vmatprep.subr.bf16.mxu0 %v1983
  %2047 = vmatpush1.bf16.xpose.msra.mxu0 %v1982
  %2048 = vmatprep.mubr.bf16.mxu0 %v2013
  %2049 = vmatmul.mubr.bf16.gmra.mrb[0].mxu0 %v2006
  %v2050 = vpop.f32.mrb[0].mxu0
  %v2051 = vadd.f32 %v1989, %v2050
  %v2052 = vpop.f32.mrb[0].mxu0
  %v2053 = vadd.f32 %v1989, %v2052
  %v2054 = vpop.f32.mrb[0].mxu0
  %v2055 = vpop.f32.mrb[0].mxu0
  %2056 = vdwg.mxu0
  %v2059 = vcombine.low %v2051, %v2053
  %v2061 = vunpack.c.l.s4 1983009808
  %v2062 = vunpack.c.0.s8 %v2061
  %v2063 = vlaneseq
  %v2064 = vshrl.u32 %v2063, 7
  %v2065 = vsub.s32 %v2062, %v2064
  %v2066 = vrot.slane %v2059, %v2065
  %2068 = vst [vmem:[%s7] sm:$0xf] %v2066
  // Predicated region
  $region30: #{main_model_forward.3} parent=0 // pred_check
    _
  $region31: #{main_model_forward.3} parent=0 // pred_check_branch
    %2070 = sbr.rel (0) target = $region33
  $region32: #{main_model_forward.3} parent=0 // pred_region
    _
  $region33: #{main_model_forward.3} parent=0 // pred_fallthru
    _
  // Predicated region
  $region34: #{main_model_forward.3} parent=0 // pred_check
    _
  $region35: #{main_model_forward.3} parent=0 // pred_check_branch
    %2072 = sbr.rel (0) target = $region37
  $region36: #{main_model_forward.3} parent=0 // pred_region
    _
  $region37: #{main_model_forward.3} parent=0 // pred_fallthru
    _

// kernel: main_model_forward.2
$region0: #{main_model_forward.2}
  #allocation0 [shape = 'u32[]', space=smem, size = 0x4, offset = 0x4, fixed_abs, tag = 'smem constant byte address 0x4 - core index']
  #allocation1 [shape = 'u32[144,128]{1,0:T(1,128)}', space=vmem, size = 0x12000, scoped, tag = 'internal scratch']
  %s0 = inlined_call_operand.vmem [shape: f32[16,256], index: 0, kind: input, shape index: {}]
  %s1 = inlined_call_operand.vmem [shape: f32[8,16,16], index: 1, kind: input, shape index: {}]
  %s2 = inlined_call_operand.hbm [shape: f32[8,1,256], index: 2, kind: input, shape index: {}]
  %s3 = inlined_call_operand.hbm [shape: f32[8,1,256], index: 3, kind: input, shape index: {}]
  %s4 = inlined_call_operand.hbm [shape: bf16[8,256,768], index: 4, kind: input, shape index: {}]
  %s5 = inlined_call_operand.hbm [shape: bf16[8,256,256], index: 5, kind: input, shape index: {}]
  %s6 = inlined_call_operand.hbm [shape: f32[8,1,256], index: 6, kind: input, shape index: {}]
  %s7 = inlined_call_operand.hbm [shape: f32[8,1,256], index: 7, kind: input, shape index: {}]
  %s8 = inlined_call_operand.hbm [shape: bf16[8,256,1024], index: 8, kind: input, shape index: {}]
  %s9 = inlined_call_operand.hbm [shape: f32[8,1,1024], index: 9, kind: input, shape index: {}]
  %s10 = inlined_call_operand.hbm [shape: bf16[8,1024,256], index: 10, kind: input, shape index: {}]
  %s11 = inlined_call_operand.hbm [shape: f32[8,1,256], index: 11, kind: input, shape index: {}]
  %s12 = inlined_call_operand.hbm [shape: f32[1,256], index: 12, kind: input, shape index: {}]
  %s13 = inlined_call_operand.hbm [shape: f32[1,256], index: 13, kind: input, shape index: {}]
  %s14 = inlined_call_operand.hbm [shape: bf16[256,256], index: 14, kind: input, shape index: {}]
  %s15 = inlined_call_operand.hbm [shape: f32[1,256], index: 15, kind: input, shape index: {}]
  %s16 = inlined_call_operand.hbm [shape: bf16[256,256], index: 16, kind: input, shape index: {}]
  %s17 = inlined_call_operand.hbm [shape: f32[1,256], index: 17, kind: input, shape index: {}]
  %s18 = inlined_call_operand.vmem [shape: f32[16,256], index: 18, kind: output, shape index: {0}]
  %s19 = inlined_call_operand.vmem [shape: f32[16,256], index: 19, kind: output, shape index: {1}]
  %20 = xla_tuple %s18, %s19
  %s21 = sld [smem:[#allocation0]]
  $region189: #{main_model_forward.2} parent=0
    _
  %s23 = ssub.s32 1, %s21
  %s24 = scalar_select 0, %s23, %s21
  $region1: #{main_model_forward.2} parent=0
    #allocation2 [shape = 'u8[2048]{0}', space=vmem, size = 0x800, scoped, tag = 'input window, operand 2']
    #allocation3 [shape = 's32[2]{0}', space=sflag, size = 0x8, scoped, tag = 'scoped memory for main_model_forward.2']
    #allocation4 [shape = 'u8[2048]{0}', space=vmem, size = 0x800, scoped, tag = 'input window, operand 3']
    #allocation5 [shape = 's32[2]{0}', space=sflag, size = 0x8, scoped, tag = 'scoped memory for main_model_forward.2']
    #allocation6 [shape = 'u8[786432]{0}', space=vmem, size = 0xc0000, scoped, tag = 'input window, operand 4']
    #allocation7 [shape = 'u8[262144]{0}', space=vmem, size = 0x40000, scoped, tag = 'input window, operand 5']
    #allocation8 [shape = 's32[2]{0}', space=sflag, size = 0x8, scoped, tag = 'scoped memory for main_model_forward.2']
    #allocation9 [shape = 'u8[2048]{0}', space=vmem, size = 0x800, scoped, tag = 'input window, operand 6']
    #allocation10 [shape = 'u8[2048]{0}', space=vmem, size = 0x800, scoped, tag = 'input window, operand 7']
    #allocation11 [shape = 's32[2]{0}', space=sflag, size = 0x8, scoped, tag = 'scoped memory for main_model_forward.2']
    #allocation12 [shape = 'u8[1048576]{0}', space=vmem, size = 0x100000, scoped, tag = 'input window, operand 8']
    #allocation13 [shape = 'u8[8192]{0}', space=vmem, size = 0x2000, scoped, tag = 'input window, operand 9']
    #allocation14 [shape = 's32[2]{0}', space=sflag, size = 0x8, scoped, tag = 'scoped memory for main_model_forward.2']
    #allocation15 [shape = 'u8[1048576]{0}', space=vmem, size = 0x100000, scoped, tag = 'input window, operand 10']
    #allocation16 [shape = 'u8[2048]{0}', space=vmem, size = 0x800, scoped, tag = 'input window, operand 11']
    #allocation17 [shape = 's32[2]{0}', space=sflag, size = 0x8, scoped, tag = 'scoped memory for main_model_forward.2']
    #allocation18 [shape = 'u8[1024]{0}', space=vmem, size = 0x400, scoped, tag = 'input window, operand 12, single buffered']
    #allocation19 [shape = 'u8[1024]{0}', space=vmem, size = 0x400, scoped, tag = 'input window, operand 13, single buffered']
    #allocation20 [shape = 's32[1]{0}', space=sflag, size = 0x4, scoped, tag = 'scoped memory for main_model_forward.2']
    #allocation21 [shape = 'u8[131072]{0}', space=vmem, size = 0x20000, scoped, tag = 'input window, operand 14, single buffered']
    #allocation22 [shape = 'u8[1024]{0}', space=vmem, size = 0x400, scoped, tag = 'input window, operand 15, single buffered']
    #allocation23 [shape = 's32[1]{0}', space=sflag, size = 0x4, scoped, tag = 'scoped memory for main_model_forward.2']
    #allocation24 [shape = 'u8[131072]{0}', space=vmem, size = 0x20000, scoped, tag = 'input window, operand 16, single buffered']
    #allocation25 [shape = 'u8[1024]{0}', space=vmem, size = 0x400, scoped, tag = 'input window, operand 17, single buffered']
    #allocation26 [shape = 's32[1]{0}', space=sflag, size = 0x4, scoped, tag = 'scoped memory for main_model_forward.2']
    %25 = vsyncpa [#allocation3], 0
    %s26 = scalar_lea.sflag [#allocation3], 1
    %27 = vsyncpa %s26, 0
    %28 = vsyncpa [#allocation5], 0
    %s29 = scalar_lea.sflag [#allocation5], 1
    %30 = vsyncpa %s29, 0
    %31 = vsyncpa [#allocation8], 0
    %s32 = scalar_lea.sflag [#allocation8], 1
    %33 = vsyncpa %s32, 0
    %34 = vsyncpa [#allocation11], 0
    %s35 = scalar_lea.sflag [#allocation11], 1
    %36 = vsyncpa %s35, 0
    %37 = vsyncpa [#allocation14], 0
    %s38 = scalar_lea.sflag [#allocation14], 1
    %39 = vsyncpa %s38, 0
    %40 = vsyncpa [#allocation17], 0
    %s41 = scalar_lea.sflag [#allocation17], 1
    %42 = vsyncpa %s41, 0
    %43 = vsyncpa [#allocation20], 0
    %44 = vsyncpa [#allocation23], 0
    %45 = vsyncpa [#allocation26], 0
    loop: start=0, step=1, limit=10
    $region2: #{main_model_forward.2} parent=1 // loop_pre_header
      _
    $region3: #{main_model_forward.2} parent=1 // loop_header
      %s47 = sphi 0, %s51
      %p48 = scmp.ge.s32.totalorder %s47, 10
      %s55 = sphi 0, %s55
      %s57 = sphi 0, %s55
      %s58 = sphi 0, %s57
      %s72 = sphi 0, %s58
      %s76 = sphi 0, %s76
      %s78 = sphi 0, %s76
      %s79 = sphi 0, %s78
      %s93 = sphi 0, %s79
      %s99 = sphi 0, %s101
      %s102 = sphi 0, %s99
      %s103 = sphi 0, %s102
      %s119 = sphi 0, %s103
      %s125 = sphi 0, %s127
      %s128 = sphi 0, %s125
      %s129 = sphi 0, %s128
      %s145 = sphi 0, %s129
      %s151 = sphi 0, %s153
      %s154 = sphi 0, %s151
      %s155 = sphi 0, %s154
      %s171 = sphi 0, %s155
      %s177 = sphi 0, %s179
      %s180 = sphi 0, %s177
      %s181 = sphi 0, %s180
      %s197 = sphi 0, %s181
      %s203 = sphi 0, %s205
      %s206 = sphi 0, %s203
      %s207 = sphi 0, %s206
      %s223 = sphi 0, %s207
      %s229 = sphi 0, %s231
      %s232 = sphi 0, %s229
      %s233 = sphi 0, %s232
      %s249 = sphi 0, %s233
      %s255 = sphi 0, %s257
      %s258 = sphi 0, %s255
      %s259 = sphi 0, %s258
      %s275 = sphi 0, %s259
      %s281 = sphi 0, %s283
      %s284 = sphi 0, %s281
      %s285 = sphi 0, %s284
      %s301 = sphi 0, %s285
      %s307 = sphi 0, %s309
      %s310 = sphi 0, %s307
      %s311 = sphi 0, %s310
      %s327 = sphi 0, %s311
      %s333 = sphi 0, %s335
      %s336 = sphi 0, %s333
      %s337 = sphi 0, %s336
      %s353 = sphi 0, %s337
      %s357 = sphi 0, %s357
      %s359 = sphi 0, %s357
      %s360 = sphi 0, %s359
      %s374 = sphi 0, %s360
      %s378 = sphi 0, %s378
      %s380 = sphi 0, %s378
      %s381 = sphi 0, %s380
      %s395 = sphi 0, %s381
      %s399 = sphi 0, %s399
      %s401 = sphi 0, %s399
      %s402 = sphi 0, %s401
      %s416 = sphi 0, %s402
      %s420 = sphi 0, %s420
      %s422 = sphi 0, %s420
      %s423 = sphi 0, %s422
      %s437 = sphi 0, %s423
      %s441 = sphi 0, %s441
      %s443 = sphi 0, %s441
      %s444 = sphi 0, %s443
      %s458 = sphi 0, %s444
      %s462 = sphi 0, %s462
      %s464 = sphi 0, %s462
      %s465 = sphi 0, %s464
      %s479 = sphi 0, %s465
      %s483 = sphi 0, %s483
      %s485 = sphi 0, %s483
      %s486 = sphi 0, %s485
      %s500 = sphi 0, %s486
      %s504 = sphi 0, %s504
      %s506 = sphi 0, %s504
      %s507 = sphi 0, %s506
      %s521 = sphi 0, %s507
    $region4: #{main_model_forward.2} parent=1 // loop_header_branch
      %50 = sbr.rel (%p48) target = $region8
    $region5: #{main_model_forward.2} parent=1 // loop_body
      %s52 = ssub.s32 %s47, 1
      %s53 = ssub.s32 %s47, 2
      %s54 = sadd.s32 %s47, 1
      %s56 = sadd.s32 %s55, 1
      %p59 = scmp.eq.s32.totalorder %s47, 7
      %p60 = scmp.ne.s32.totalorder %s55, %s57
      %p61 = scmp.eq.s32.totalorder %s47, 0
      %p62 = por %p60, %p61
      %p63 = scmp.ne.s32.totalorder %s55, %s57
      %p64 = scmp.eq.s32.totalorder %s52, 7
      %p65 = por %p63, %p64
      %p66 = scmp.ne.s32.totalorder %s57, %s58
      %p67 = scmp.eq.s32.totalorder %s52, 0
      %p68 = por %p66, %p67
      %p69 = scmp.ne.s32.totalorder %s57, %s58
      %p70 = scmp.eq.s32.totalorder %s53, 7
      %p71 = por %p69, %p70
      %p73 = scmp.ne.s32.totalorder %s58, %s72
      %p74 = scmp.eq.s32.totalorder %s53, 0
      %p75 = por %p73, %p74
      %s77 = sadd.s32 %s76, 1
      %p80 = scmp.eq.s32.totalorder %s47, 7
      %p81 = scmp.ne.s32.totalorder %s76, %s78
      %p82 = scmp.eq.s32.totalorder %s47, 0
      %p83 = por %p81, %p82
      %p84 = scmp.ne.s32.totalorder %s76, %s78
      %p85 = scmp.eq.s32.totalorder %s52, 7
      %p86 = por %p84, %p85
      %p87 = scmp.ne.s32.totalorder %s78, %s79
      %p88 = scmp.eq.s32.totalorder %s52, 0
      %p89 = por %p87, %p88
      %p90 = scmp.ne.s32.totalorder %s78, %s79
      %p91 = scmp.eq.s32.totalorder %s53, 7
      %p92 = por %p90, %p91
      %p94 = scmp.ne.s32.totalorder %s79, %s93
      %p95 = scmp.eq.s32.totalorder %s53, 0
      %p96 = por %p94, %p95
      %s97 = ssub.s32 %s47, %s54
      %p98 = scmp.eq.s32.totalorder %s97, 0
      %s100 = sadd.s32 %s99, 1
      %s101 = scalar_select %p98, %s99, %s100
      %p104 = pneg %p98
      %p105 = scmp.eq.s32.totalorder %s47, 7
      %p106 = por %p104, %p105
      %p107 = scmp.ne.s32.totalorder %s99, %s102
      %p108 = scmp.eq.s32.totalorder %s47, 0
      %p109 = por %p107, %p108
      %p110 = scmp.ne.s32.totalorder %s99, %s102
      %p111 = scmp.eq.s32.totalorder %s52, 7
      %p112 = por %p110, %p111
      %p113 = scmp.ne.s32.totalorder %s102, %s103
      %p114 = scmp.eq.s32.totalorder %s52, 0
      %p115 = por %p113, %p114
      %p116 = scmp.ne.s32.totalorder %s102, %s103
      %p117 = scmp.eq.s32.totalorder %s53, 7
      %p118 = por %p116, %p117
      %p120 = scmp.ne.s32.totalorder %s103, %s119
      %p121 = scmp.eq.s32.totalorder %s53, 0
      %p122 = por %p120, %p121
      %s123 = ssub.s32 %s47, %s54
      %p124 = scmp.eq.s32.totalorder %s123, 0
      %s126 = sadd.s32 %s125, 1
      %s127 = scalar_select %p124, %s125, %s126
      %p130 = pneg %p124
      %p131 = scmp.eq.s32.totalorder %s47, 7
      %p132 = por %p130, %p131
      %p133 = scmp.ne.s32.totalorder %s125, %s128
      %p134 = scmp.eq.s32.totalorder %s47, 0
      %p135 = por %p133, %p134
      %p136 = scmp.ne.s32.totalorder %s125, %s128
      %p137 = scmp.eq.s32.totalorder %s52, 7
      %p138 = por %p136, %p137
      %p139 = scmp.ne.s32.totalorder %s128, %s129
      %p140 = scmp.eq.s32.totalorder %s52, 0
      %p141 = por %p139, %p140
      %p142 = scmp.ne.s32.totalorder %s128, %s129
      %p143 = scmp.eq.s32.totalorder %s53, 7
      %p144 = por %p142, %p143
      %p146 = scmp.ne.s32.totalorder %s129, %s145
      %p147 = scmp.eq.s32.totalorder %s53, 0
      %p148 = por %p146, %p147
      %s149 = ssub.s32 %s47, %s54
      %p150 = scmp.eq.s32.totalorder %s149, 0
      %s152 = sadd.s32 %s151, 1
      %s153 = scalar_select %p150, %s151, %s152
      %p156 = pneg %p150
      %p157 = scmp.eq.s32.totalorder %s47, 7
      %p158 = por %p156, %p157
      %p159 = scmp.ne.s32.totalorder %s151, %s154
      %p160 = scmp.eq.s32.totalorder %s47, 0
      %p161 = por %p159, %p160
      %p162 = scmp.ne.s32.totalorder %s151, %s154
      %p163 = scmp.eq.s32.totalorder %s52, 7
      %p164 = por %p162, %p163
      %p165 = scmp.ne.s32.totalorder %s154, %s155
      %p166 = scmp.eq.s32.totalorder %s52, 0
      %p167 = por %p165, %p166
      %p168 = scmp.ne.s32.totalorder %s154, %s155
      %p169 = scmp.eq.s32.totalorder %s53, 7
      %p170 = por %p168, %p169
      %p172 = scmp.ne.s32.totalorder %s155, %s171
      %p173 = scmp.eq.s32.totalorder %s53, 0
      %p174 = por %p172, %p173
      %s175 = ssub.s32 %s47, %s54
      %p176 = scmp.eq.s32.totalorder %s175, 0
      %s178 = sadd.s32 %s177, 1
      %s179 = scalar_select %p176, %s177, %s178
      %p182 = pneg %p176
      %p183 = scmp.eq.s32.totalorder %s47, 7
      %p184 = por %p182, %p183
      %p185 = scmp.ne.s32.totalorder %s177, %s180
      %p186 = scmp.eq.s32.totalorder %s47, 0
      %p187 = por %p185, %p186
      %p188 = scmp.ne.s32.totalorder %s177, %s180
      %p189 = scmp.eq.s32.totalorder %s52, 7
      %p190 = por %p188, %p189
      %p191 = scmp.ne.s32.totalorder %s180, %s181
      %p192 = scmp.eq.s32.totalorder %s52, 0
      %p193 = por %p191, %p192
      %p194 = scmp.ne.s32.totalorder %s180, %s181
      %p195 = scmp.eq.s32.totalorder %s53, 7
      %p196 = por %p194, %p195
      %p198 = scmp.ne.s32.totalorder %s181, %s197
      %p199 = scmp.eq.s32.totalorder %s53, 0
      %p200 = por %p198, %p199
      %s201 = ssub.s32 %s47, %s54
      %p202 = scmp.eq.s32.totalorder %s201, 0
      %s204 = sadd.s32 %s203, 1
      %s205 = scalar_select %p202, %s203, %s204
      %p208 = pneg %p202
      %p209 = scmp.eq.s32.totalorder %s47, 7
      %p210 = por %p208, %p209
      %p211 = scmp.ne.s32.totalorder %s203, %s206
      %p212 = scmp.eq.s32.totalorder %s47, 0
      %p213 = por %p211, %p212
      %p214 = scmp.ne.s32.totalorder %s203, %s206
      %p215 = scmp.eq.s32.totalorder %s52, 7
      %p216 = por %p214, %p215
      %p217 = scmp.ne.s32.totalorder %s206, %s207
      %p218 = scmp.eq.s32.totalorder %s52, 0
      %p219 = por %p217, %p218
      %p220 = scmp.ne.s32.totalorder %s206, %s207
      %p221 = scmp.eq.s32.totalorder %s53, 7
      %p222 = por %p220, %p221
      %p224 = scmp.ne.s32.totalorder %s207, %s223
      %p225 = scmp.eq.s32.totalorder %s53, 0
      %p226 = por %p224, %p225
      %s227 = ssub.s32 %s47, %s54
      %p228 = scmp.eq.s32.totalorder %s227, 0
      %s230 = sadd.s32 %s229, 1
      %s231 = scalar_select %p228, %s229, %s230
      %p234 = pneg %p228
      %p235 = scmp.eq.s32.totalorder %s47, 7
      %p236 = por %p234, %p235
      %p237 = scmp.ne.s32.totalorder %s229, %s232
      %p238 = scmp.eq.s32.totalorder %s47, 0
      %p239 = por %p237, %p238
      %p240 = scmp.ne.s32.totalorder %s229, %s232
      %p241 = scmp.eq.s32.totalorder %s52, 7
      %p242 = por %p240, %p241
      %p243 = scmp.ne.s32.totalorder %s232, %s233
      %p244 = scmp.eq.s32.totalorder %s52, 0
      %p245 = por %p243, %p244
      %p246 = scmp.ne.s32.totalorder %s232, %s233
      %p247 = scmp.eq.s32.totalorder %s53, 7
      %p248 = por %p246, %p247
      %p250 = scmp.ne.s32.totalorder %s233, %s249
      %p251 = scmp.eq.s32.totalorder %s53, 0
      %p252 = por %p250, %p251
      %s253 = ssub.s32 %s47, %s54
      %p254 = scmp.eq.s32.totalorder %s253, 0
      %s256 = sadd.s32 %s255, 1
      %s257 = scalar_select %p254, %s255, %s256
      %p260 = pneg %p254
      %p261 = scmp.eq.s32.totalorder %s47, 7
      %p262 = por %p260, %p261
      %p263 = scmp.ne.s32.totalorder %s255, %s258
      %p264 = scmp.eq.s32.totalorder %s47, 0
      %p265 = por %p263, %p264
      %p266 = scmp.ne.s32.totalorder %s255, %s258
      %p267 = scmp.eq.s32.totalorder %s52, 7
      %p268 = por %p266, %p267
      %p269 = scmp.ne.s32.totalorder %s258, %s259
      %p270 = scmp.eq.s32.totalorder %s52, 0
      %p271 = por %p269, %p270
      %p272 = scmp.ne.s32.totalorder %s258, %s259
      %p273 = scmp.eq.s32.totalorder %s53, 7
      %p274 = por %p272, %p273
      %p276 = scmp.ne.s32.totalorder %s259, %s275
      %p277 = scmp.eq.s32.totalorder %s53, 0
      %p278 = por %p276, %p277
      %s279 = ssub.s32 %s47, %s54
      %p280 = scmp.eq.s32.totalorder %s279, 0
      %s282 = sadd.s32 %s281, 1
      %s283 = scalar_select %p280, %s281, %s282
      %p286 = pneg %p280
      %p287 = scmp.eq.s32.totalorder %s47, 7
      %p288 = por %p286, %p287
      %p289 = scmp.ne.s32.totalorder %s281, %s284
      %p290 = scmp.eq.s32.totalorder %s47, 0
      %p291 = por %p289, %p290
      %p292 = scmp.ne.s32.totalorder %s281, %s284
      %p293 = scmp.eq.s32.totalorder %s52, 7
      %p294 = por %p292, %p293
      %p295 = scmp.ne.s32.totalorder %s284, %s285
      %p296 = scmp.eq.s32.totalorder %s52, 0
      %p297 = por %p295, %p296
      %p298 = scmp.ne.s32.totalorder %s284, %s285
      %p299 = scmp.eq.s32.totalorder %s53, 7
      %p300 = por %p298, %p299
      %p302 = scmp.ne.s32.totalorder %s285, %s301
      %p303 = scmp.eq.s32.totalorder %s53, 0
      %p304 = por %p302, %p303
      %s305 = ssub.s32 %s47, %s54
      %p306 = scmp.eq.s32.totalorder %s305, 0
      %s308 = sadd.s32 %s307, 1
      %s309 = scalar_select %p306, %s307, %s308
      %p312 = pneg %p306
      %p313 = scmp.eq.s32.totalorder %s47, 7
      %p314 = por %p312, %p313
      %p315 = scmp.ne.s32.totalorder %s307, %s310
      %p316 = scmp.eq.s32.totalorder %s47, 0
      %p317 = por %p315, %p316
      %p318 = scmp.ne.s32.totalorder %s307, %s310
      %p319 = scmp.eq.s32.totalorder %s52, 7
      %p320 = por %p318, %p319
      %p321 = scmp.ne.s32.totalorder %s310, %s311
      %p322 = scmp.eq.s32.totalorder %s52, 0
      %p323 = por %p321, %p322
      %p324 = scmp.ne.s32.totalorder %s310, %s311
      %p325 = scmp.eq.s32.totalorder %s53, 7
      %p326 = por %p324, %p325
      %p328 = scmp.ne.s32.totalorder %s311, %s327
      %p329 = scmp.eq.s32.totalorder %s53, 0
      %p330 = por %p328, %p329
      %s331 = ssub.s32 %s47, %s54
      %p332 = scmp.eq.s32.totalorder %s331, 0
      %s334 = sadd.s32 %s333, 1
      %s335 = scalar_select %p332, %s333, %s334
      %p338 = pneg %p332
      %p339 = scmp.eq.s32.totalorder %s47, 7
      %p340 = por %p338, %p339
      %p341 = scmp.ne.s32.totalorder %s333, %s336
      %p342 = scmp.eq.s32.totalorder %s47, 0
      %p343 = por %p341, %p342
      %p344 = scmp.ne.s32.totalorder %s333, %s336
      %p345 = scmp.eq.s32.totalorder %s52, 7
      %p346 = por %p344, %p345
      %p347 = scmp.ne.s32.totalorder %s336, %s337
      %p348 = scmp.eq.s32.totalorder %s52, 0
      %p349 = por %p347, %p348
      %p350 = scmp.ne.s32.totalorder %s336, %s337
      %p351 = scmp.eq.s32.totalorder %s53, 7
      %p352 = por %p350, %p351
      %p354 = scmp.ne.s32.totalorder %s337, %s353
      %p355 = scmp.eq.s32.totalorder %s53, 0
      %p356 = por %p354, %p355
      %s358 = sadd.s32 %s357, 1
      %p361 = scmp.eq.s32.totalorder %s47, 7
      %p362 = scmp.ne.s32.totalorder %s357, %s359
      %p363 = scmp.eq.s32.totalorder %s47, 0
      %p364 = por %p362, %p363
      %p365 = scmp.ne.s32.totalorder %s357, %s359
      %p366 = scmp.eq.s32.totalorder %s52, 7
      %p367 = por %p365, %p366
      %p368 = scmp.ne.s32.totalorder %s359, %s360
      %p369 = scmp.eq.s32.totalorder %s52, 0
      %p370 = por %p368, %p369
      %p371 = scmp.ne.s32.totalorder %s359, %s360
      %p372 = scmp.eq.s32.totalorder %s53, 7
      %p373 = por %p371, %p372
      %p375 = scmp.ne.s32.totalorder %s360, %s374
      %p376 = scmp.eq.s32.totalorder %s53, 0
      %p377 = por %p375, %p376
      %s379 = sadd.s32 %s378, 1
      %p382 = scmp.eq.s32.totalorder %s47, 7
      %p383 = scmp.ne.s32.totalorder %s378, %s380
      %p384 = scmp.eq.s32.totalorder %s47, 0
      %p385 = por %p383, %p384
      %p386 = scmp.ne.s32.totalorder %s378, %s380
      %p387 = scmp.eq.s32.totalorder %s52, 7
      %p388 = por %p386, %p387
      %p389 = scmp.ne.s32.totalorder %s380, %s381
      %p390 = scmp.eq.s32.totalorder %s52, 0
      %p391 = por %p389, %p390
      %p392 = scmp.ne.s32.totalorder %s380, %s381
      %p393 = scmp.eq.s32.totalorder %s53, 7
      %p394 = por %p392, %p393
      %p396 = scmp.ne.s32.totalorder %s381, %s395
      %p397 = scmp.eq.s32.totalorder %s53, 0
      %p398 = por %p396, %p397
      %s400 = sadd.s32 %s399, 1
      %p403 = scmp.eq.s32.totalorder %s47, 7
      %p404 = scmp.ne.s32.totalorder %s399, %s401
      %p405 = scmp.eq.s32.totalorder %s47, 0
      %p406 = por %p404, %p405
      %p407 = scmp.ne.s32.totalorder %s399, %s401
      %p408 = scmp.eq.s32.totalorder %s52, 7
      %p409 = por %p407, %p408
      %p410 = scmp.ne.s32.totalorder %s401, %s402
      %p411 = scmp.eq.s32.totalorder %s52, 0
      %p412 = por %p410, %p411
      %p413 = scmp.ne.s32.totalorder %s401, %s402
      %p414 = scmp.eq.s32.totalorder %s53, 7
      %p415 = por %p413, %p414
      %p417 = scmp.ne.s32.totalorder %s402, %s416
      %p418 = scmp.eq.s32.totalorder %s53, 0
      %p419 = por %p417, %p418
      %s421 = sadd.s32 %s420, 1
      %p424 = scmp.eq.s32.totalorder %s47, 7
      %p425 = scmp.ne.s32.totalorder %s420, %s422
      %p426 = scmp.eq.s32.totalorder %s47, 0
      %p427 = por %p425, %p426
      %p428 = scmp.ne.s32.totalorder %s420, %s422
      %p429 = scmp.eq.s32.totalorder %s52, 7
      %p430 = por %p428, %p429
      %p431 = scmp.ne.s32.totalorder %s422, %s423
      %p432 = scmp.eq.s32.totalorder %s52, 0
      %p433 = por %p431, %p432
      %p434 = scmp.ne.s32.totalorder %s422, %s423
      %p435 = scmp.eq.s32.totalorder %s53, 7
      %p436 = por %p434, %p435
      %p438 = scmp.ne.s32.totalorder %s423, %s437
      %p439 = scmp.eq.s32.totalorder %s53, 0
      %p440 = por %p438, %p439
      %s442 = sadd.s32 %s441, 1
      %p445 = scmp.eq.s32.totalorder %s47, 7
      %p446 = scmp.ne.s32.totalorder %s441, %s443
      %p447 = scmp.eq.s32.totalorder %s47, 0
      %p448 = por %p446, %p447
      %p449 = scmp.ne.s32.totalorder %s441, %s443
      %p450 = scmp.eq.s32.totalorder %s52, 7
      %p451 = por %p449, %p450
      %p452 = scmp.ne.s32.totalorder %s443, %s444
      %p453 = scmp.eq.s32.totalorder %s52, 0
      %p454 = por %p452, %p453
      %p455 = scmp.ne.s32.totalorder %s443, %s444
      %p456 = scmp.eq.s32.totalorder %s53, 7
      %p457 = por %p455, %p456
      %p459 = scmp.ne.s32.totalorder %s444, %s458
      %p460 = scmp.eq.s32.totalorder %s53, 0
      %p461 = por %p459, %p460
      %s463 = sadd.s32 %s462, 1
      %p466 = scmp.eq.s32.totalorder %s47, 7
      %p467 = scmp.ne.s32.totalorder %s462, %s464
      %p468 = scmp.eq.s32.totalorder %s47, 0
      %p469 = por %p467, %p468
      %p470 = scmp.ne.s32.totalorder %s462, %s464
      %p471 = scmp.eq.s32.totalorder %s52, 7
      %p472 = por %p470, %p471
      %p473 = scmp.ne.s32.totalorder %s464, %s465
      %p474 = scmp.eq.s32.totalorder %s52, 0
      %p475 = por %p473, %p474
      %p476 = scmp.ne.s32.totalorder %s464, %s465
      %p477 = scmp.eq.s32.totalorder %s53, 7
      %p478 = por %p476, %p477
      %p480 = scmp.ne.s32.totalorder %s465, %s479
      %p481 = scmp.eq.s32.totalorder %s53, 0
      %p482 = por %p480, %p481
      %s484 = sadd.s32 %s483, 1
      %p487 = scmp.eq.s32.totalorder %s47, 7
      %p488 = scmp.ne.s32.totalorder %s483, %s485
      %p489 = scmp.eq.s32.totalorder %s47, 0
      %p490 = por %p488, %p489
      %p491 = scmp.ne.s32.totalorder %s483, %s485
      %p492 = scmp.eq.s32.totalorder %s52, 7
      %p493 = por %p491, %p492
      %p494 = scmp.ne.s32.totalorder %s485, %s486
      %p495 = scmp.eq.s32.totalorder %s52, 0
      %p496 = por %p494, %p495
      %p497 = scmp.ne.s32.totalorder %s485, %s486
      %p498 = scmp.eq.s32.totalorder %s53, 7
      %p499 = por %p497, %p498
      %p501 = scmp.ne.s32.totalorder %s486, %s500
      %p502 = scmp.eq.s32.totalorder %s53, 0
      %p503 = por %p501, %p502
      %s505 = sadd.s32 %s504, 1
      %p508 = scmp.eq.s32.totalorder %s47, 7
      %p509 = scmp.ne.s32.totalorder %s504, %s506
      %p510 = scmp.eq.s32.totalorder %s47, 0
      %p511 = por %p509, %p510
      %p512 = scmp.ne.s32.totalorder %s504, %s506
      %p513 = scmp.eq.s32.totalorder %s52, 7
      %p514 = por %p512, %p513
      %p515 = scmp.ne.s32.totalorder %s506, %s507
      %p516 = scmp.eq.s32.totalorder %s52, 0
      %p517 = por %p515, %p516
      %p518 = scmp.ne.s32.totalorder %s506, %s507
      %p519 = scmp.eq.s32.totalorder %s53, 7
      %p520 = por %p518, %p519
      %p522 = scmp.ne.s32.totalorder %s507, %s521
      %p523 = scmp.eq.s32.totalorder %s53, 0
      %p524 = por %p522, %p523
      %p525 = scmp.le.s32.totalorder 1, %s47
      %p526 = scmp.lt.s32.totalorder %s47, 9
      %p527 = pnand %p525, %p526
      %p528 = pneg %p527
      // Predicated region
      $region9: #{main_model_forward.2} parent=5 // pred_check
        _
      $region10: #{main_model_forward.2} parent=5 // pred_check_branch
        %530 = sbr.rel (%p527) target = $region12
      $region11: #{main_model_forward.2} parent=5 // pred_region
        %s531 = ssub.s32 %s47, 1
        // Predicated region
        $region13: #{main_model_forward.2} parent=11 // pred_check
          %p532 = pneg %p68
        $region14: #{main_model_forward.2} parent=11 // pred_check_branch
          %534 = sbr.rel (%p532) target = $region16
        $region15: #{main_model_forward.2} parent=11 // pred_region
          _
        $region16: #{main_model_forward.2} parent=11 // pred_fallthru
          _
        // Predicated region
        $region17: #{main_model_forward.2} parent=11 // pred_check
          %p535 = pneg %p89
        $region18: #{main_model_forward.2} parent=11 // pred_check_branch
          %537 = sbr.rel (%p535) target = $region20
        $region19: #{main_model_forward.2} parent=11 // pred_region
          _
        $region20: #{main_model_forward.2} parent=11 // pred_fallthru
          _
        // Predicated region
        $region21: #{main_model_forward.2} parent=11 // pred_check
          %p538 = pneg %p370
        $region22: #{main_model_forward.2} parent=11 // pred_check_branch
          %540 = sbr.rel (%p538) target = $region24
        $region23: #{main_model_forward.2} parent=11 // pred_region
          %s542 = ssub.s32 32, 32
          %543 = vsyncadd [#allocation17], %s542
          %s545 = sshll.u32 [#allocation18], 4
          %s546 = int_to_ptr.vmem [resolvable:$true] %s545
          %548 = dma.hbm_to_vmem [thread:$0]  %s12, 32, %s546, [#allocation17]
        $region24: #{main_model_forward.2} parent=11 // pred_fallthru
          _
        // Predicated region
        $region25: #{main_model_forward.2} parent=11 // pred_check
          %p549 = pneg %p391
        $region26: #{main_model_forward.2} parent=11 // pred_check_branch
          %551 = sbr.rel (%p549) target = $region28
        $region27: #{main_model_forward.2} parent=11 // pred_region
          %s553 = ssub.s32 32, 32
          %554 = vsyncadd [#allocation20], %s553
          %s556 = sshll.u32 [#allocation19], 4
          %s557 = int_to_ptr.vmem [resolvable:$true] %s556
          %559 = dma.hbm_to_vmem [thread:$0]  %s13, 32, %s557, [#allocation20]
        $region28: #{main_model_forward.2} parent=11 // pred_fallthru
          _
        // Predicated region
        $region29: #{main_model_forward.2} parent=11 // pred_check
          %p560 = pneg %p412
        $region30: #{main_model_forward.2} parent=11 // pred_check_branch
          %562 = sbr.rel (%p560) target = $region32
        $region31: #{main_model_forward.2} parent=11 // pred_region
          %s564 = ssub.s32 4096, 4096
          %565 = vsyncadd [#allocation20], %s564
          %s566 = sshll.u32 [#allocation21], 4
          %s567 = int_to_ptr.vmem [resolvable:$true] %s566
          %572 = dma.hbm_to_vmem [thread:$0]  %s14, 4096, %s567, [#allocation20], 128, 128, 8
        $region32: #{main_model_forward.2} parent=11 // pred_fallthru
          _
        // Predicated region
        $region33: #{main_model_forward.2} parent=11 // pred_check
          %p573 = pneg %p433
        $region34: #{main_model_forward.2} parent=11 // pred_check_branch
          %575 = sbr.rel (%p573) target = $region36
        $region35: #{main_model_forward.2} parent=11 // pred_region
          %s577 = ssub.s32 32, 32
          %578 = vsyncadd [#allocation23], %s577
          %s580 = sshll.u32 [#allocation22], 4
          %s581 = int_to_ptr.vmem [resolvable:$true] %s580
          %583 = dma.hbm_to_vmem [thread:$0]  %s15, 32, %s581, [#allocation23]
        $region36: #{main_model_forward.2} parent=11 // pred_fallthru
          _
        // Predicated region
        $region37: #{main_model_forward.2} parent=11 // pred_check
          %p584 = pneg %p454
        $region38: #{main_model_forward.2} parent=11 // pred_check_branch
          %586 = sbr.rel (%p584) target = $region40
        $region39: #{main_model_forward.2} parent=11 // pred_region
          %s588 = ssub.s32 4096, 4096
          %589 = vsyncadd [#allocation23], %s588
          %s590 = sshll.u32 [#allocation24], 4
          %s591 = int_to_ptr.vmem [resolvable:$true] %s590
          %596 = dma.hbm_to_vmem [thread:$0]  %s16, 4096, %s591, [#allocation23], 128, 128, 8
        $region40: #{main_model_forward.2} parent=11 // pred_fallthru
          _
        // Predicated region
        $region41: #{main_model_forward.2} parent=11 // pred_check
          %p597 = pneg %p475
        $region42: #{main_model_forward.2} parent=11 // pred_check_branch
          %599 = sbr.rel (%p597) target = $region44
        $region43: #{main_model_forward.2} parent=11 // pred_region
          %s601 = ssub.s32 32, 32
          %602 = vsyncadd [#allocation26], %s601
          %s604 = sshll.u32 [#allocation25], 4
          %s605 = int_to_ptr.vmem [resolvable:$true] %s604
          %607 = dma.hbm_to_vmem [thread:$0]  %s17, 32, %s605, [#allocation26]
        $region44: #{main_model_forward.2} parent=11 // pred_fallthru
          _
      $region12: #{main_model_forward.2} parent=5 // pred_fallthru
        _
      %p608 = scmp.lt.s32.totalorder %s47, 8
      // Predicated region
      $region45: #{main_model_forward.2} parent=5 // pred_check
        %p609 = pneg %p608
      $region46: #{main_model_forward.2} parent=5 // pred_check_branch
        %611 = sbr.rel (%p609) target = $region48
      $region47: #{main_model_forward.2} parent=5 // pred_region
        // Predicated region
        $region49: #{main_model_forward.2} parent=47 // pred_check
          %p612 = pneg %p109
        $region50: #{main_model_forward.2} parent=47 // pred_check_branch
          %614 = sbr.rel (%p612) target = $region52
        $region51: #{main_model_forward.2} parent=47 // pred_region
          %s615 = sand.u32 %s99, 1
          %s616 = scalar_lea.sflag [#allocation3], %s615
          %s617 = sand.u32 %s99, 1
          %s618 = smul.addr %s617, 2
          %s619 = scalar_lea.vmem [#allocation2], %s618
          %s621 = ssub.s32 32, 32
          %622 = vsyncadd %s616, %s621
          %s623 = smul.addr %s47, 2
          %s624 = smul.addr %s623, 16
          %s625 = scalar_lea.hbm %s2, %s624
          %s627 = sshll.u32 %s619, 4
          %s628 = int_to_ptr.vmem [resolvable:$true] %s627
          %630 = dma.hbm_to_vmem [thread:$0]  %s625, 32, %s628, %s616
        $region52: #{main_model_forward.2} parent=47 // pred_fallthru
          _
        // Predicated region
        $region53: #{main_model_forward.2} parent=47 // pred_check
          %p631 = pneg %p135
        $region54: #{main_model_forward.2} parent=47 // pred_check_branch
          %633 = sbr.rel (%p631) target = $region56
        $region55: #{main_model_forward.2} parent=47 // pred_region
          %s634 = sand.u32 %s47, 1
          %s635 = scalar_lea.sflag [#allocation5], %s634
          %s636 = sand.u32 %s125, 1
          %s637 = smul.addr %s636, 2
          %s638 = scalar_lea.vmem [#allocation4], %s637
          %s640 = ssub.s32 32, 32
          %641 = vsyncadd %s635, %s640
          %s642 = smul.addr %s47, 2
          %s643 = smul.addr %s642, 16
          %s644 = scalar_lea.hbm %s3, %s643
          %s646 = sshll.u32 %s638, 4
          %s647 = int_to_ptr.vmem [resolvable:$true] %s646
          %649 = dma.hbm_to_vmem [thread:$0]  %s644, 32, %s647, %s635
        $region56: #{main_model_forward.2} parent=47 // pred_fallthru
          _
        // Predicated region
        $region57: #{main_model_forward.2} parent=47 // pred_check
          %p650 = pneg %p161
        $region58: #{main_model_forward.2} parent=47 // pred_check_branch
          %652 = sbr.rel (%p650) target = $region60
        $region59: #{main_model_forward.2} parent=47 // pred_region
          %s653 = sand.u32 %s47, 1
          %s654 = scalar_lea.sflag [#allocation5], %s653
          %s655 = sand.u32 %s151, 1
          %s656 = smul.addr %s655, 768
          %s657 = scalar_lea.vmem [#allocation6], %s656
          %s659 = ssub.s32 12288, 12288
          %660 = vsyncadd %s654, %s659
          %s661 = smul.addr %s47, 192
          %s662 = smul.addr %s661, 64
          %s663 = scalar_lea.hbm %s4, %s662
          %s664 = sshll.u32 %s657, 4
          %s665 = int_to_ptr.vmem [resolvable:$true] %s664
          %670 = dma.hbm_to_vmem [thread:$0]  %s663, 12288, %s665, %s654, 384, 384, 24
        $region60: #{main_model_forward.2} parent=47 // pred_fallthru
          _
        // Predicated region
        $region61: #{main_model_forward.2} parent=47 // pred_check
          %p671 = pneg %p187
        $region62: #{main_model_forward.2} parent=47 // pred_check_branch
          %673 = sbr.rel (%p671) target = $region64
        $region63: #{main_model_forward.2} parent=47 // pred_region
          %s674 = sand.u32 %s47, 1
          %s675 = scalar_lea.sflag [#allocation8], %s674
          %s676 = sand.u32 %s177, 1
          %s677 = smul.addr %s676, 256
          %s678 = scalar_lea.vmem [#allocation7], %s677
          %s680 = ssub.s32 4096, 4096
          %681 = vsyncadd %s675, %s680
          %s682 = smul.addr %s47, 64
          %s683 = smul.addr %s682, 64
          %s684 = scalar_lea.hbm %s5, %s683
          %s685 = sshll.u32 %s678, 4
          %s686 = int_to_ptr.vmem [resolvable:$true] %s685
          %691 = dma.hbm_to_vmem [thread:$0]  %s684, 4096, %s686, %s675, 128, 128, 8
        $region64: #{main_model_forward.2} parent=47 // pred_fallthru
          _
        // Predicated region
        $region65: #{main_model_forward.2} parent=47 // pred_check
          %p692 = pneg %p213
        $region66: #{main_model_forward.2} parent=47 // pred_check_branch
          %694 = sbr.rel (%p692) target = $region68
        $region67: #{main_model_forward.2} parent=47 // pred_region
          %s695 = sand.u32 %s47, 1
          %s696 = scalar_lea.sflag [#allocation8], %s695
          %s697 = sand.u32 %s203, 1
          %s698 = smul.addr %s697, 2
          %s699 = scalar_lea.vmem [#allocation9], %s698
          %s701 = ssub.s32 32, 32
          %702 = vsyncadd %s696, %s701
          %s703 = smul.addr %s47, 2
          %s704 = smul.addr %s703, 16
          %s705 = scalar_lea.hbm %s6, %s704
          %s707 = sshll.u32 %s699, 4
          %s708 = int_to_ptr.vmem [resolvable:$true] %s707
          %710 = dma.hbm_to_vmem [thread:$0]  %s705, 32, %s708, %s696
        $region68: #{main_model_forward.2} parent=47 // pred_fallthru
          _
        // Predicated region
        $region69: #{main_model_forward.2} parent=47 // pred_check
          %p711 = pneg %p239
        $region70: #{main_model_forward.2} parent=47 // pred_check_branch
          %713 = sbr.rel (%p711) target = $region72
        $region71: #{main_model_forward.2} parent=47 // pred_region
          %s714 = sand.u32 %s47, 1
          %s715 = scalar_lea.sflag [#allocation11], %s714
          %s716 = sand.u32 %s229, 1
          %s717 = smul.addr %s716, 2
          %s718 = scalar_lea.vmem [#allocation10], %s717
          %s720 = ssub.s32 32, 32
          %721 = vsyncadd %s715, %s720
          %s722 = smul.addr %s47, 2
          %s723 = smul.addr %s722, 16
          %s724 = scalar_lea.hbm %s7, %s723
          %s726 = sshll.u32 %s718, 4
          %s727 = int_to_ptr.vmem [resolvable:$true] %s726
          %729 = dma.hbm_to_vmem [thread:$0]  %s724, 32, %s727, %s715
        $region72: #{main_model_forward.2} parent=47 // pred_fallthru
          _
        // Predicated region
        $region73: #{main_model_forward.2} parent=47 // pred_check
          %p730 = pneg %p265
        $region74: #{main_model_forward.2} parent=47 // pred_check_branch
          %732 = sbr.rel (%p730) target = $region76
        $region75: #{main_model_forward.2} parent=47 // pred_region
          %s733 = sand.u32 %s47, 1
          %s734 = scalar_lea.sflag [#allocation11], %s733
          %s735 = sand.u32 %s255, 1
          %s736 = smul.addr %s735, 1024
          %s737 = scalar_lea.vmem [#allocation12], %s736
          %s739 = ssub.s32 16384, 16384
          %740 = vsyncadd %s734, %s739
          %s741 = smul.addr %s47, 256
          %s742 = smul.addr %s741, 64
          %s743 = scalar_lea.hbm %s8, %s742
          %s744 = sshll.u32 %s737, 4
          %s745 = int_to_ptr.vmem [resolvable:$true] %s744
          %750 = dma.hbm_to_vmem [thread:$0]  %s743, 16384, %s745, %s734, 512, 512, 32
        $region76: #{main_model_forward.2} parent=47 // pred_fallthru
          _
        // Predicated region
        $region77: #{main_model_forward.2} parent=47 // pred_check
          %p751 = pneg %p291
        $region78: #{main_model_forward.2} parent=47 // pred_check_branch
          %753 = sbr.rel (%p751) target = $region80
        $region79: #{main_model_forward.2} parent=47 // pred_region
          %s754 = sand.u32 %s47, 1
          %s755 = scalar_lea.sflag [#allocation14], %s754
          %s756 = sand.u32 %s281, 1
          %s757 = smul.addr %s756, 8
          %s758 = scalar_lea.vmem [#allocation13], %s757
          %s760 = ssub.s32 128, 128
          %761 = vsyncadd %s755, %s760
          %s762 = smul.addr %s47, 8
          %s763 = smul.addr %s762, 16
          %s764 = scalar_lea.hbm %s9, %s763
          %s766 = sshll.u32 %s758, 4
          %s767 = int_to_ptr.vmem [resolvable:$true] %s766
          %769 = dma.hbm_to_vmem [thread:$0]  %s764, 128, %s767, %s755
        $region80: #{main_model_forward.2} parent=47 // pred_fallthru
          _
        // Predicated region
        $region81: #{main_model_forward.2} parent=47 // pred_check
          %p770 = pneg %p317
        $region82: #{main_model_forward.2} parent=47 // pred_check_branch
          %772 = sbr.rel (%p770) target = $region84
        $region83: #{main_model_forward.2} parent=47 // pred_region
          %s773 = sand.u32 %s47, 1
          %s774 = scalar_lea.sflag [#allocation14], %s773
          %s775 = sand.u32 %s307, 1
          %s776 = smul.addr %s775, 1024
          %s777 = scalar_lea.vmem [#allocation15], %s776
          %s779 = ssub.s32 16384, 16384
          %780 = vsyncadd %s774, %s779
          %s781 = smul.addr %s47, 256
          %s782 = smul.addr %s781, 64
          %s783 = scalar_lea.hbm %s10, %s782
          %s784 = sshll.u32 %s777, 4
          %s785 = int_to_ptr.vmem [resolvable:$true] %s784
          %790 = dma.hbm_to_vmem [thread:$0]  %s783, 16384, %s785, %s774, 128, 128, 8
        $region84: #{main_model_forward.2} parent=47 // pred_fallthru
          _
        // Predicated region
        $region85: #{main_model_forward.2} parent=47 // pred_check
          %p791 = pneg %p343
        $region86: #{main_model_forward.2} parent=47 // pred_check_branch
          %793 = sbr.rel (%p791) target = $region88
        $region87: #{main_model_forward.2} parent=47 // pred_region
          %s794 = sand.u32 %s47, 1
          %s795 = scalar_lea.sflag [#allocation17], %s794
          %s796 = sand.u32 %s333, 1
          %s797 = smul.addr %s796, 2
          %s798 = scalar_lea.vmem [#allocation16], %s797
          %s800 = ssub.s32 32, 32
          %801 = vsyncadd %s795, %s800
          %s802 = smul.addr %s47, 2
          %s803 = smul.addr %s802, 16
          %s804 = scalar_lea.hbm %s11, %s803
          %s806 = sshll.u32 %s798, 4
          %s807 = int_to_ptr.vmem [resolvable:$true] %s806
          %809 = dma.hbm_to_vmem [thread:$0]  %s804, 32, %s807, %s795
        $region88: #{main_model_forward.2} parent=47 // pred_fallthru
          _
      $region48: #{main_model_forward.2} parent=5 // pred_fallthru
        _
      %p810 = scmp.le.s32.totalorder 1, %s47
      %p811 = scmp.lt.s32.totalorder %s47, 9
      %p812 = pnand %p810, %p811
      %p813 = pneg %p812
      // Predicated region
      $region89: #{main_model_forward.2} parent=5 // pred_check
        _
      $region90: #{main_model_forward.2} parent=5 // pred_check_branch
        %815 = sbr.rel (%p812) target = $region92
      $region91: #{main_model_forward.2} parent=5 // pred_region
        %s816 = ssub.s32 %s47, 1
        %s817 = sand.u32 %s102, 1
        %s818 = scalar_lea.sflag [#allocation3], %s817
        %s819 = sand.u32 %s102, 1
        %s820 = smul.addr %s819, 2
        %s821 = scalar_lea.vmem [#allocation2], %s820
        // Predicated region
        $region93: #{main_model_forward.2} parent=91 // pred_check
          %p822 = pneg %p115
        $region94: #{main_model_forward.2} parent=91 // pred_check_branch
          %824 = sbr.rel (%p822) target = $region96
        $region95: #{main_model_forward.2} parent=91 // pred_region
          %825 = dma.done %s818, 32
        $region96: #{main_model_forward.2} parent=91 // pred_fallthru
          _
        %s826 = sand.u32 %s52, 1
        %s827 = scalar_lea.sflag [#allocation5], %s826
        %s828 = sand.u32 %s128, 1
        %s829 = smul.addr %s828, 2
        %s830 = scalar_lea.vmem [#allocation4], %s829
        // Predicated region
        $region97: #{main_model_forward.2} parent=91 // pred_check
          %p831 = pneg %p141
        $region98: #{main_model_forward.2} parent=91 // pred_check_branch
          %833 = sbr.rel (%p831) target = $region100
        $region99: #{main_model_forward.2} parent=91 // pred_region
          %834 = dma.done %s827, 32
        $region100: #{main_model_forward.2} parent=91 // pred_fallthru
          _
        %s835 = sand.u32 %s52, 1
        %s836 = scalar_lea.sflag [#allocation5], %s835
        %s837 = sand.u32 %s154, 1
        %s838 = smul.addr %s837, 768
        %s839 = scalar_lea.vmem [#allocation6], %s838
        // Predicated region
        $region101: #{main_model_forward.2} parent=91 // pred_check
          %p840 = pneg %p167
        $region102: #{main_model_forward.2} parent=91 // pred_check_branch
          %842 = sbr.rel (%p840) target = $region104
        $region103: #{main_model_forward.2} parent=91 // pred_region
          %843 = dma.done %s836, 12288
        $region104: #{main_model_forward.2} parent=91 // pred_fallthru
          _
        %s844 = sand.u32 %s52, 1
        %s845 = scalar_lea.sflag [#allocation8], %s844
        %s846 = sand.u32 %s180, 1
        %s847 = smul.addr %s846, 256
        %s848 = scalar_lea.vmem [#allocation7], %s847
        // Predicated region
        $region105: #{main_model_forward.2} parent=91 // pred_check
          %p849 = pneg %p193
        $region106: #{main_model_forward.2} parent=91 // pred_check_branch
          %851 = sbr.rel (%p849) target = $region108
        $region107: #{main_model_forward.2} parent=91 // pred_region
          %852 = dma.done %s845, 4096
        $region108: #{main_model_forward.2} parent=91 // pred_fallthru
          _
        %s853 = sand.u32 %s52, 1
        %s854 = scalar_lea.sflag [#allocation8], %s853
        %s855 = sand.u32 %s206, 1
        %s856 = smul.addr %s855, 2
        %s857 = scalar_lea.vmem [#allocation9], %s856
        // Predicated region
        $region109: #{main_model_forward.2} parent=91 // pred_check
          %p858 = pneg %p219
        $region110: #{main_model_forward.2} parent=91 // pred_check_branch
          %860 = sbr.rel (%p858) target = $region112
        $region111: #{main_model_forward.2} parent=91 // pred_region
          %861 = dma.done %s854, 32
        $region112: #{main_model_forward.2} parent=91 // pred_fallthru
          _
        %s862 = sand.u32 %s52, 1
        %s863 = scalar_lea.sflag [#allocation11], %s862
        %s864 = sand.u32 %s232, 1
        %s865 = smul.addr %s864, 2
        %s866 = scalar_lea.vmem [#allocation10], %s865
        // Predicated region
        $region113: #{main_model_forward.2} parent=91 // pred_check
          %p867 = pneg %p245
        $region114: #{main_model_forward.2} parent=91 // pred_check_branch
          %869 = sbr.rel (%p867) target = $region116
        $region115: #{main_model_forward.2} parent=91 // pred_region
          %870 = dma.done %s863, 32
        $region116: #{main_model_forward.2} parent=91 // pred_fallthru
          _
        %s871 = sand.u32 %s52, 1
        %s872 = scalar_lea.sflag [#allocation11], %s871
        %s873 = sand.u32 %s258, 1
        %s874 = smul.addr %s873, 1024
        %s875 = scalar_lea.vmem [#allocation12], %s874
        // Predicated region
        $region117: #{main_model_forward.2} parent=91 // pred_check
          %p876 = pneg %p271
        $region118: #{main_model_forward.2} parent=91 // pred_check_branch
          %878 = sbr.rel (%p876) target = $region120
        $region119: #{main_model_forward.2} parent=91 // pred_region
          %879 = dma.done %s872, 16384
        $region120: #{main_model_forward.2} parent=91 // pred_fallthru
          _
        %s880 = sand.u32 %s52, 1
        %s881 = scalar_lea.sflag [#allocation14], %s880
        %s882 = sand.u32 %s284, 1
        %s883 = smul.addr %s882, 8
        %s884 = scalar_lea.vmem [#allocation13], %s883
        // Predicated region
        $region121: #{main_model_forward.2} parent=91 // pred_check
          %p885 = pneg %p297
        $region122: #{main_model_forward.2} parent=91 // pred_check_branch
          %887 = sbr.rel (%p885) target = $region124
        $region123: #{main_model_forward.2} parent=91 // pred_region
          %888 = dma.done %s881, 128
        $region124: #{main_model_forward.2} parent=91 // pred_fallthru
          _
        %s889 = sand.u32 %s52, 1
        %s890 = scalar_lea.sflag [#allocation14], %s889
        %s891 = sand.u32 %s310, 1
        %s892 = smul.addr %s891, 1024
        %s893 = scalar_lea.vmem [#allocation15], %s892
        // Predicated region
        $region125: #{main_model_forward.2} parent=91 // pred_check
          %p894 = pneg %p323
        $region126: #{main_model_forward.2} parent=91 // pred_check_branch
          %896 = sbr.rel (%p894) target = $region128
        $region127: #{main_model_forward.2} parent=91 // pred_region
          %897 = dma.done %s890, 16384
        $region128: #{main_model_forward.2} parent=91 // pred_fallthru
          _
        %s898 = sand.u32 %s52, 1
        %s899 = scalar_lea.sflag [#allocation17], %s898
        %s900 = sand.u32 %s336, 1
        %s901 = smul.addr %s900, 2
        %s902 = scalar_lea.vmem [#allocation16], %s901
        // Predicated region
        $region129: #{main_model_forward.2} parent=91 // pred_check
          %p903 = pneg %p349
        $region130: #{main_model_forward.2} parent=91 // pred_check_branch
          %905 = sbr.rel (%p903) target = $region132
        $region131: #{main_model_forward.2} parent=91 // pred_region
          %906 = dma.done %s899, 32
        $region132: #{main_model_forward.2} parent=91 // pred_fallthru
          _
        // Predicated region
        $region133: #{main_model_forward.2} parent=91 // pred_check
          %p907 = pneg %p370
        $region134: #{main_model_forward.2} parent=91 // pred_check_branch
          %909 = sbr.rel (%p907) target = $region136
        $region135: #{main_model_forward.2} parent=91 // pred_region
          %910 = dma.done [#allocation17], 32
        $region136: #{main_model_forward.2} parent=91 // pred_fallthru
          _
        // Predicated region
        $region137: #{main_model_forward.2} parent=91 // pred_check
          %p911 = pneg %p391
        $region138: #{main_model_forward.2} parent=91 // pred_check_branch
          %913 = sbr.rel (%p911) target = $region140
        $region139: #{main_model_forward.2} parent=91 // pred_region
          %914 = dma.done [#allocation20], 32
        $region140: #{main_model_forward.2} parent=91 // pred_fallthru
          _
        // Predicated region
        $region141: #{main_model_forward.2} parent=91 // pred_check
          %p915 = pneg %p412
        $region142: #{main_model_forward.2} parent=91 // pred_check_branch
          %917 = sbr.rel (%p915) target = $region144
        $region143: #{main_model_forward.2} parent=91 // pred_region
          %918 = dma.done [#allocation20], 4096
        $region144: #{main_model_forward.2} parent=91 // pred_fallthru
          _
        // Predicated region
        $region145: #{main_model_forward.2} parent=91 // pred_check
          %p919 = pneg %p433
        $region146: #{main_model_forward.2} parent=91 // pred_check_branch
          %921 = sbr.rel (%p919) target = $region148
        $region147: #{main_model_forward.2} parent=91 // pred_region
          %922 = dma.done [#allocation23], 32
        $region148: #{main_model_forward.2} parent=91 // pred_fallthru
          _
        // Predicated region
        $region149: #{main_model_forward.2} parent=91 // pred_check
          %p923 = pneg %p454
        $region150: #{main_model_forward.2} parent=91 // pred_check_branch
          %925 = sbr.rel (%p923) target = $region152
        $region151: #{main_model_forward.2} parent=91 // pred_region
          %926 = dma.done [#allocation23], 4096
        $region152: #{main_model_forward.2} parent=91 // pred_fallthru
          _
        // Predicated region
        $region153: #{main_model_forward.2} parent=91 // pred_check
          %p927 = pneg %p475
        $region154: #{main_model_forward.2} parent=91 // pred_check_branch
          %929 = sbr.rel (%p927) target = $region156
        $region155: #{main_model_forward.2} parent=91 // pred_region
          %930 = dma.done [#allocation26], 32
        $region156: #{main_model_forward.2} parent=91 // pred_fallthru
          _
        %p931 = pneg %p68
        %p932 = pneg %p65
        %p933 = pneg %p89
        %p934 = pneg %p86
        %s935 = sand.u32 %s102, 1
        %s936 = scalar_lea.sflag [#allocation3], %s935
        %s937 = sand.u32 %s102, 1
        %s938 = smul.addr %s937, 2
        %s939 = scalar_lea.vmem [#allocation2], %s938
        %p940 = pneg %p115
        %p941 = pneg %p112
        %s942 = sand.u32 %s52, 1
        %s943 = scalar_lea.sflag [#allocation5], %s942
        %s944 = sand.u32 %s128, 1
        %s945 = smul.addr %s944, 2
        %s946 = scalar_lea.vmem [#allocation4], %s945
        %p947 = pneg %p141
        %p948 = pneg %p138
        %s949 = sand.u32 %s52, 1
        %s950 = scalar_lea.sflag [#allocation5], %s949
        %s951 = sand.u32 %s154, 1
        %s952 = smul.addr %s951, 768
        %s953 = scalar_lea.vmem [#allocation6], %s952
        %p954 = pneg %p167
        %p955 = pneg %p164
        %s956 = sand.u32 %s52, 1
        %s957 = scalar_lea.sflag [#allocation8], %s956
        %s958 = sand.u32 %s180, 1
        %s959 = smul.addr %s958, 256
        %s960 = scalar_lea.vmem [#allocation7], %s959
        %p961 = pneg %p193
        %p962 = pneg %p190
        %s963 = sand.u32 %s52, 1
        %s964 = scalar_lea.sflag [#allocation8], %s963
        %s965 = sand.u32 %s206, 1
        %s966 = smul.addr %s965, 2
        %s967 = scalar_lea.vmem [#allocation9], %s966
        %p968 = pneg %p219
        %p969 = pneg %p216
        %s970 = sand.u32 %s52, 1
        %s971 = scalar_lea.sflag [#allocation11], %s970
        %s972 = sand.u32 %s232, 1
        %s973 = smul.addr %s972, 2
        %s974 = scalar_lea.vmem [#allocation10], %s973
        %p975 = pneg %p245
        %p976 = pneg %p242
        %s977 = sand.u32 %s52, 1
        %s978 = scalar_lea.sflag [#allocation11], %s977
        %s979 = sand.u32 %s258, 1
        %s980 = smul.addr %s979, 1024
        %s981 = scalar_lea.vmem [#allocation12], %s980
        %p982 = pneg %p271
        %p983 = pneg %p268
        %s984 = sand.u32 %s52, 1
        %s985 = scalar_lea.sflag [#allocation14], %s984
        %s986 = sand.u32 %s284, 1
        %s987 = smul.addr %s986, 8
        %s988 = scalar_lea.vmem [#allocation13], %s987
        %p989 = pneg %p297
        %p990 = pneg %p294
        %s991 = sand.u32 %s52, 1
        %s992 = scalar_lea.sflag [#allocation14], %s991
        %s993 = sand.u32 %s310, 1
        %s994 = smul.addr %s993, 1024
        %s995 = scalar_lea.vmem [#allocation15], %s994
        %p996 = pneg %p323
        %p997 = pneg %p320
        %s998 = sand.u32 %s52, 1
        %s999 = scalar_lea.sflag [#allocation17], %s998
        %s1000 = sand.u32 %s336, 1
        %s1001 = smul.addr %s1000, 2
        %s1002 = scalar_lea.vmem [#allocation16], %s1001
        %p1003 = pneg %p349
        %p1004 = pneg %p346
        %p1005 = pneg %p370
        %p1006 = pneg %p367
        %p1007 = pneg %p391
        %p1008 = pneg %p388
        %p1009 = pneg %p412
        %p1010 = pneg %p409
        %p1011 = pneg %p433
        %p1012 = pneg %p430
        %p1013 = pneg %p454
        %p1014 = pneg %p451
        %p1015 = pneg %p475
        %p1016 = pneg %p472
        %p1017 = pneg %p496
        %p1018 = pneg %p493
        %p1019 = pneg %p517
        %p1020 = pneg %p514
        %p1022 = scmp.eq.s32.totalorder %s52, 0
        // Predicated region
        $region157: #{main_model_forward.2} parent=91 // pred_check
          %p1023 = pneg %p1022
        $region158: #{main_model_forward.2} parent=91 // pred_check_branch
          %1025 = sbr.rel (%p1023) target = $region160
        $region159: #{main_model_forward.2} parent=91 // pred_region
          %v1026 = vld [vmem:[%s0] sm:$0xff]
          %v1027 = vld [vmem:[%s0 + $0x8] sm:$0xff]
          %v1028 = vld [vmem:[%s0 + $0x10] sm:$0xff]
          %v1029 = vld [vmem:[%s0 + $0x18] sm:$0xff]
          %1030 = vst [vmem:[%s18] sm:$0xff] %v1026
          %1031 = vst [vmem:[%s18 + $0x8] sm:$0xff] %v1027
          %1032 = vst [vmem:[%s18 + $0x10] sm:$0xff] %v1028
          %1033 = vst [vmem:[%s18 + $0x18] sm:$0xff] %v1029
        $region160: #{main_model_forward.2} parent=91 // pred_fallthru
          _
        %v1034 = vld [vmem:[%s18] sm:$0xff]
        %v1035 = vld [vmem:[%s18 + $0x8] sm:$0xff]
        %v1036 = vld [vmem:[%s18 + $0x10] sm:$0xff]
        %v1037 = vld [vmem:[%s18 + $0x18] sm:$0xff]
        %v1038 = vld [vmem:[%s821] sm:$0x3]
        %v1039 = vld [vmem:[%s830] sm:$0x3]
        %v1040 = vadd.f32 %v1034, %v1035
        %1041 = vadd.xlane.f32.xlu0 %v1040
        %v1042 = vpop.xlane.xlu0 %1041
        %v1043 = vadd.f32 %v1036, %v1037
        %1044 = vadd.xlane.f32.xlu0 %v1043
        %v1045 = vpop.xlane.xlu0 %1044
        %v1046 = vrcp.pop 256.0
        %v1047 = vmul.f32 %v1042, %v1046
        %v1048 = vmul.f32 %v1045, %v1046
        %v1049 = vsub.f32 %v1034, %v1047
        %v1050 = vsub.f32 %v1035, %v1047
        %v1051 = vsub.f32 %v1036, %v1048
        %v1052 = vsub.f32 %v1037, %v1048
        %v1053 = vmul.f32 %v1049, %v1049
        %v1054 = vmul.f32 %v1050, %v1050
        %v1055 = vmul.f32 %v1051, %v1051
        %v1056 = vmul.f32 %v1052, %v1052
        %v1057 = vadd.f32 %v1053, %v1054
        %1058 = vadd.xlane.f32.xlu0 %v1057
        %v1059 = vpop.xlane.xlu0 %1058
        %v1060 = vadd.f32 %v1055, %v1056
        %1061 = vadd.xlane.f32.xlu0 %v1060
        %v1062 = vpop.xlane.xlu0 %1061
        %v1063 = vmul.f32 %v1059, %v1046
        %v1064 = vmul.f32 %v1062, %v1046
        %v1065 = vadd.f32 %v1063, 1e-05
        %v1066 = vadd.f32 %v1064, 1e-05
        %v1067 = vrsqrt.pop %v1065
        %v1068 = vrsqrt.pop %v1066
        %v1069 = vmul.f32 %v1049, %v1067
        %v1070 = vmul.f32 %v1050, %v1067
        %v1071 = vmul.f32 %v1051, %v1068
        %v1072 = vmul.f32 %v1052, %v1068
        %v1074 = vlaneseq
        %v1075 = vshrl.u32 %v1074, 7
        %v1076 = vsub.s32 0, %v1075
        %v1077 = vrot.slane %v1038, %v1076
        %v1078 = vlaneseq
        %v1079 = vshrl.u32 %v1078, 7
        %v1080 = vsub.s32 1, %v1079
        %v1081 = vrot.slane %v1038, %v1080
        %v1084 = vmul.f32 %v1069, %v1077
        %v1085 = vmul.f32 %v1070, %v1081
        %v1086 = vmul.f32 %v1071, %v1077
        %v1087 = vmul.f32 %v1072, %v1081
        %v1089 = vlaneseq
        %v1090 = vshrl.u32 %v1089, 7
        %v1091 = vsub.s32 0, %v1090
        %v1092 = vrot.slane %v1039, %v1091
        %v1093 = vlaneseq
        %v1094 = vshrl.u32 %v1093, 7
        %v1095 = vsub.s32 1, %v1094
        %v1096 = vrot.slane %v1039, %v1095
        %v1099 = vadd.f32 %v1084, %v1092
        %v1100 = vadd.f32 %v1085, %v1096
        %v1101 = vadd.f32 %v1086, %v1092
        %v1102 = vadd.f32 %v1087, %v1096
        %v1103 = vpack.c.bf16 %v1101, %v1099
        %v1104 = vpack.c.bf16 %v1102, %v1100
        %v1105 = vld [vmem:[%s839] sm:$0xff]
        %v1106 = vld [vmem:[%s839 + $0x8] sm:$0xff]
        %v1107 = vld [vmem:[%s839 + $0x10] sm:$0xff]
        %v1108 = vld [vmem:[%s839 + $0x18] sm:$0xff]
        %v1109 = vld [vmem:[%s839 + $0x20] sm:$0xff]
        %v1110 = vld [vmem:[%s839 + $0x28] sm:$0xff]
        %v1111 = vld [vmem:[%s839 + $0x30] sm:$0xff]
        %v1112 = vld [vmem:[%s839 + $0x38] sm:$0xff]
        %v1113 = vld [vmem:[%s839 + $0x40] sm:$0xff]
        %v1114 = vld [vmem:[%s839 + $0x48] sm:$0xff]
        %v1115 = vld [vmem:[%s839 + $0x50] sm:$0xff]
        %v1116 = vld [vmem:[%s839 + $0x58] sm:$0xff]
        %v1117 = vld [vmem:[%s839 + $0x60] sm:$0xff]
        %v1118 = vld [vmem:[%s839 + $0x68] sm:$0xff]
        %v1119 = vld [vmem:[%s839 + $0x70] sm:$0xff]
        %v1120 = vld [vmem:[%s839 + $0x78] sm:$0xff]
        %v1121 = vld [vmem:[%s839 + $0x80] sm:$0xff]
        %v1122 = vld [vmem:[%s839 + $0x88] sm:$0xff]
        %v1123 = vld [vmem:[%s839 + $0x90] sm:$0xff]
        %v1124 = vld [vmem:[%s839 + $0x98] sm:$0xff]
        %v1125 = vld [vmem:[%s839 + $0xa0] sm:$0xff]
        %v1126 = vld [vmem:[%s839 + $0xa8] sm:$0xff]
        %v1127 = vld [vmem:[%s839 + $0xb0] sm:$0xff]
        %v1128 = vld [vmem:[%s839 + $0xb8] sm:$0xff]
        %v1129 = vld [vmem:[%s839 + $0xc0] sm:$0xff]
        %v1130 = vld [vmem:[%s839 + $0xc8] sm:$0xff]
        %v1131 = vld [vmem:[%s839 + $0xd0] sm:$0xff]
        %v1132 = vld [vmem:[%s839 + $0xd8] sm:$0xff]
        %v1133 = vld [vmem:[%s839 + $0xe0] sm:$0xff]
        %v1134 = vld [vmem:[%s839 + $0xe8] sm:$0xff]
        %v1135 = vld [vmem:[%s839 + $0xf0] sm:$0xff]
        %v1136 = vld [vmem:[%s839 + $0xf8] sm:$0xff]
        %v1137 = vld [vmem:[%s839 + $0x100] sm:$0xff]
        %v1138 = vld [vmem:[%s839 + $0x108] sm:$0xff]
        %v1139 = vld [vmem:[%s839 + $0x110] sm:$0xff]
        %v1140 = vld [vmem:[%s839 + $0x118] sm:$0xff]
        %v1141 = vld [vmem:[%s839 + $0x120] sm:$0xff]
        %v1142 = vld [vmem:[%s839 + $0x128] sm:$0xff]
        %v1143 = vld [vmem:[%s839 + $0x130] sm:$0xff]
        %v1144 = vld [vmem:[%s839 + $0x138] sm:$0xff]
        %v1145 = vld [vmem:[%s839 + $0x140] sm:$0xff]
        %v1146 = vld [vmem:[%s839 + $0x148] sm:$0xff]
        %v1147 = vld [vmem:[%s839 + $0x150] sm:$0xff]
        %v1148 = vld [vmem:[%s839 + $0x158] sm:$0xff]
        %v1149 = vld [vmem:[%s839 + $0x160] sm:$0xff]
        %v1150 = vld [vmem:[%s839 + $0x168] sm:$0xff]
        %v1151 = vld [vmem:[%s839 + $0x170] sm:$0xff]
        %v1152 = vld [vmem:[%s839 + $0x178] sm:$0xff]
        %v1153 = vld [vmem:[%s839 + $0x180] sm:$0xff]
        %v1154 = vld [vmem:[%s839 + $0x188] sm:$0xff]
        %v1155 = vld [vmem:[%s839 + $0x190] sm:$0xff]
        %v1156 = vld [vmem:[%s839 + $0x198] sm:$0xff]
        %v1157 = vld [vmem:[%s839 + $0x1a0] sm:$0xff]
        %v1158 = vld [vmem:[%s839 + $0x1a8] sm:$0xff]
        %v1159 = vld [vmem:[%s839 + $0x1b0] sm:$0xff]
        %v1160 = vld [vmem:[%s839 + $0x1b8] sm:$0xff]
        %v1161 = vld [vmem:[%s839 + $0x1c0] sm:$0xff]
        %v1162 = vld [vmem:[%s839 + $0x1c8] sm:$0xff]
        %v1163 = vld [vmem:[%s839 + $0x1d0] sm:$0xff]
        %v1164 = vld [vmem:[%s839 + $0x1d8] sm:$0xff]
        %v1165 = vld [vmem:[%s839 + $0x1e0] sm:$0xff]
        %v1166 = vld [vmem:[%s839 + $0x1e8] sm:$0xff]
        %v1167 = vld [vmem:[%s839 + $0x1f0] sm:$0xff]
        %v1168 = vld [vmem:[%s839 + $0x1f8] sm:$0xff]
        %v1169 = vld [vmem:[%s839 + $0x200] sm:$0xff]
        %v1170 = vld [vmem:[%s839 + $0x208] sm:$0xff]
        %v1171 = vld [vmem:[%s839 + $0x210] sm:$0xff]
        %v1172 = vld [vmem:[%s839 + $0x218] sm:$0xff]
        %v1173 = vld [vmem:[%s839 + $0x220] sm:$0xff]
        %v1174 = vld [vmem:[%s839 + $0x228] sm:$0xff]
        %v1175 = vld [vmem:[%s839 + $0x230] sm:$0xff]
        %v1176 = vld [vmem:[%s839 + $0x238] sm:$0xff]
        %v1177 = vld [vmem:[%s839 + $0x240] sm:$0xff]
        %v1178 = vld [vmem:[%s839 + $0x248] sm:$0xff]
        %v1179 = vld [vmem:[%s839 + $0x250] sm:$0xff]
        %v1180 = vld [vmem:[%s839 + $0x258] sm:$0xff]
        %v1181 = vld [vmem:[%s839 + $0x260] sm:$0xff]
        %v1182 = vld [vmem:[%s839 + $0x268] sm:$0xff]
        %v1183 = vld [vmem:[%s839 + $0x270] sm:$0xff]
        %v1184 = vld [vmem:[%s839 + $0x278] sm:$0xff]
        %v1185 = vld [vmem:[%s839 + $0x280] sm:$0xff]
        %v1186 = vld [vmem:[%s839 + $0x288] sm:$0xff]
        %v1187 = vld [vmem:[%s839 + $0x290] sm:$0xff]
        %v1188 = vld [vmem:[%s839 + $0x298] sm:$0xff]
        %v1189 = vld [vmem:[%s839 + $0x2a0] sm:$0xff]
        %v1190 = vld [vmem:[%s839 + $0x2a8] sm:$0xff]
        %v1191 = vld [vmem:[%s839 + $0x2b0] sm:$0xff]
        %v1192 = vld [vmem:[%s839 + $0x2b8] sm:$0xff]
        %v1193 = vld [vmem:[%s839 + $0x2c0] sm:$0xff]
        %v1194 = vld [vmem:[%s839 + $0x2c8] sm:$0xff]
        %v1195 = vld [vmem:[%s839 + $0x2d0] sm:$0xff]
        %v1196 = vld [vmem:[%s839 + $0x2d8] sm:$0xff]
        %v1197 = vld [vmem:[%s839 + $0x2e0] sm:$0xff]
        %v1198 = vld [vmem:[%s839 + $0x2e8] sm:$0xff]
        %v1199 = vld [vmem:[%s839 + $0x2f0] sm:$0xff]
        %v1200 = vld [vmem:[%s839 + $0x2f8] sm:$0xff]
        %v1297 = vunpack.c.l.b16 %v1105
        %v1298 = vunpack.c.h.b16 %v1105
        %v1299 = vunpack.c.l.b16 %v1106
        %v1300 = vunpack.c.h.b16 %v1106
        %v1301 = vunpack.c.l.b16 %v1107
        %v1302 = vunpack.c.h.b16 %v1107
        %v1303 = vunpack.c.l.b16 %v1108
        %v1304 = vunpack.c.h.b16 %v1108
        %v1305 = vunpack.c.l.b16 %v1109
        %v1306 = vunpack.c.h.b16 %v1109
        %v1307 = vunpack.c.l.b16 %v1110
        %v1308 = vunpack.c.h.b16 %v1110
        %v1309 = vunpack.c.l.b16 %v1111
        %v1310 = vunpack.c.h.b16 %v1111
        %v1311 = vunpack.c.l.b16 %v1112
        %v1312 = vunpack.c.h.b16 %v1112
        %v1313 = vunpack.c.l.b16 %v1113
        %v1314 = vunpack.c.h.b16 %v1113
        %v1315 = vunpack.c.l.b16 %v1114
        %v1316 = vunpack.c.h.b16 %v1114
        %v1317 = vunpack.c.l.b16 %v1115
        %v1318 = vunpack.c.h.b16 %v1115
        %v1319 = vunpack.c.l.b16 %v1116
        %v1320 = vunpack.c.h.b16 %v1116
        %v1321 = vunpack.c.l.b16 %v1117
        %v1322 = vunpack.c.h.b16 %v1117
        %v1323 = vunpack.c.l.b16 %v1118
        %v1324 = vunpack.c.h.b16 %v1118
        %v1325 = vunpack.c.l.b16 %v1119
        %v1326 = vunpack.c.h.b16 %v1119
        %v1327 = vunpack.c.l.b16 %v1120
        %v1328 = vunpack.c.h.b16 %v1120
        %v1329 = vunpack.c.l.b16 %v1121
        %v1330 = vunpack.c.h.b16 %v1121
        %v1331 = vunpack.c.l.b16 %v1122
        %v1332 = vunpack.c.h.b16 %v1122
        %v1333 = vunpack.c.l.b16 %v1123
        %v1334 = vunpack.c.h.b16 %v1123
        %v1335 = vunpack.c.l.b16 %v1124
        %v1336 = vunpack.c.h.b16 %v1124
        %v1337 = vunpack.c.l.b16 %v1125
        %v1338 = vunpack.c.h.b16 %v1125
        %v1339 = vunpack.c.l.b16 %v1126
        %v1340 = vunpack.c.h.b16 %v1126
        %v1341 = vunpack.c.l.b16 %v1127
        %v1342 = vunpack.c.h.b16 %v1127
        %v1343 = vunpack.c.l.b16 %v1128
        %v1344 = vunpack.c.h.b16 %v1128
        %v1345 = vunpack.c.l.b16 %v1129
        %v1346 = vunpack.c.h.b16 %v1129
        %v1347 = vunpack.c.l.b16 %v1130
        %v1348 = vunpack.c.h.b16 %v1130
        %v1349 = vunpack.c.l.b16 %v1131
        %v1350 = vunpack.c.h.b16 %v1131
        %v1351 = vunpack.c.l.b16 %v1132
        %v1352 = vunpack.c.h.b16 %v1132
        %v1353 = vunpack.c.l.b16 %v1133
        %v1354 = vunpack.c.h.b16 %v1133
        %v1355 = vunpack.c.l.b16 %v1134
        %v1356 = vunpack.c.h.b16 %v1134
        %v1357 = vunpack.c.l.b16 %v1135
        %v1358 = vunpack.c.h.b16 %v1135
        %v1359 = vunpack.c.l.b16 %v1136
        %v1360 = vunpack.c.h.b16 %v1136
        %v1361 = vunpack.c.l.b16 %v1137
        %v1362 = vunpack.c.h.b16 %v1137
        %v1363 = vunpack.c.l.b16 %v1138
        %v1364 = vunpack.c.h.b16 %v1138
        %v1365 = vunpack.c.l.b16 %v1139
        %v1366 = vunpack.c.h.b16 %v1139
        %v1367 = vunpack.c.l.b16 %v1140
        %v1368 = vunpack.c.h.b16 %v1140
        %v1369 = vunpack.c.l.b16 %v1141
        %v1370 = vunpack.c.h.b16 %v1141
        %v1371 = vunpack.c.l.b16 %v1142
        %v1372 = vunpack.c.h.b16 %v1142
        %v1373 = vunpack.c.l.b16 %v1143
        %v1374 = vunpack.c.h.b16 %v1143
        %v1375 = vunpack.c.l.b16 %v1144
        %v1376 = vunpack.c.h.b16 %v1144
        %v1377 = vunpack.c.l.b16 %v1145
        %v1378 = vunpack.c.h.b16 %v1145
        %v1379 = vunpack.c.l.b16 %v1146
        %v1380 = vunpack.c.h.b16 %v1146
        %v1381 = vunpack.c.l.b16 %v1147
        %v1382 = vunpack.c.h.b16 %v1147
        %v1383 = vunpack.c.l.b16 %v1148
        %v1384 = vunpack.c.h.b16 %v1148
        %v1385 = vunpack.c.l.b16 %v1149
        %v1386 = vunpack.c.h.b16 %v1149
        %v1387 = vunpack.c.l.b16 %v1150
        %v1388 = vunpack.c.h.b16 %v1150
        %v1389 = vunpack.c.l.b16 %v1151
        %v1390 = vunpack.c.h.b16 %v1151
        %v1391 = vunpack.c.l.b16 %v1152
        %v1392 = vunpack.c.h.b16 %v1152
        %v1393 = vunpack.c.l.b16 %v1153
        %v1394 = vunpack.c.h.b16 %v1153
        %v1395 = vunpack.c.l.b16 %v1154
        %v1396 = vunpack.c.h.b16 %v1154
        %v1397 = vunpack.c.l.b16 %v1155
        %v1398 = vunpack.c.h.b16 %v1155
        %v1399 = vunpack.c.l.b16 %v1156
        %v1400 = vunpack.c.h.b16 %v1156
        %v1401 = vunpack.c.l.b16 %v1157
        %v1402 = vunpack.c.h.b16 %v1157
        %v1403 = vunpack.c.l.b16 %v1158
        %v1404 = vunpack.c.h.b16 %v1158
        %v1405 = vunpack.c.l.b16 %v1159
        %v1406 = vunpack.c.h.b16 %v1159
        %v1407 = vunpack.c.l.b16 %v1160
        %v1408 = vunpack.c.h.b16 %v1160
        %v1409 = vunpack.c.l.b16 %v1161
        %v1410 = vunpack.c.h.b16 %v1161
        %v1411 = vunpack.c.l.b16 %v1162
        %v1412 = vunpack.c.h.b16 %v1162
        %v1413 = vunpack.c.l.b16 %v1163
        %v1414 = vunpack.c.h.b16 %v1163
        %v1415 = vunpack.c.l.b16 %v1164
        %v1416 = vunpack.c.h.b16 %v1164
        %v1417 = vunpack.c.l.b16 %v1165
        %v1418 = vunpack.c.h.b16 %v1165
        %v1419 = vunpack.c.l.b16 %v1166
        %v1420 = vunpack.c.h.b16 %v1166
        %v1421 = vunpack.c.l.b16 %v1167
        %v1422 = vunpack.c.h.b16 %v1167
        %v1423 = vunpack.c.l.b16 %v1168
        %v1424 = vunpack.c.h.b16 %v1168
        %v1425 = vunpack.c.l.b16 %v1169
        %v1426 = vunpack.c.h.b16 %v1169
        %v1427 = vunpack.c.l.b16 %v1170
        %v1428 = vunpack.c.h.b16 %v1170
        %v1429 = vunpack.c.l.b16 %v1171
        %v1430 = vunpack.c.h.b16 %v1171
        %v1431 = vunpack.c.l.b16 %v1172
        %v1432 = vunpack.c.h.b16 %v1172
        %v1433 = vunpack.c.l.b16 %v1173
        %v1434 = vunpack.c.h.b16 %v1173
        %v1435 = vunpack.c.l.b16 %v1174
        %v1436 = vunpack.c.h.b16 %v1174
        %v1437 = vunpack.c.l.b16 %v1175
        %v1438 = vunpack.c.h.b16 %v1175
        %v1439 = vunpack.c.l.b16 %v1176
        %v1440 = vunpack.c.h.b16 %v1176
        %v1441 = vunpack.c.l.b16 %v1177
        %v1442 = vunpack.c.h.b16 %v1177
        %v1443 = vunpack.c.l.b16 %v1178
        %v1444 = vunpack.c.h.b16 %v1178
        %v1445 = vunpack.c.l.b16 %v1179
        %v1446 = vunpack.c.h.b16 %v1179
        %v1447 = vunpack.c.l.b16 %v1180
        %v1448 = vunpack.c.h.b16 %v1180
        %v1449 = vunpack.c.l.b16 %v1181
        %v1450 = vunpack.c.h.b16 %v1181
        %v1451 = vunpack.c.l.b16 %v1182
        %v1452 = vunpack.c.h.b16 %v1182
        %v1453 = vunpack.c.l.b16 %v1183
        %v1454 = vunpack.c.h.b16 %v1183
        %v1455 = vunpack.c.l.b16 %v1184
        %v1456 = vunpack.c.h.b16 %v1184
        %v1457 = vunpack.c.l.b16 %v1185
        %v1458 = vunpack.c.h.b16 %v1185
        %v1459 = vunpack.c.l.b16 %v1186
        %v1460 = vunpack.c.h.b16 %v1186
        %v1461 = vunpack.c.l.b16 %v1187
        %v1462 = vunpack.c.h.b16 %v1187
        %v1463 = vunpack.c.l.b16 %v1188
        %v1464 = vunpack.c.h.b16 %v1188
        %v1465 = vunpack.c.l.b16 %v1189
        %v1466 = vunpack.c.h.b16 %v1189
        %v1467 = vunpack.c.l.b16 %v1190
        %v1468 = vunpack.c.h.b16 %v1190
        %v1469 = vunpack.c.l.b16 %v1191
        %v1470 = vunpack.c.h.b16 %v1191
        %v1471 = vunpack.c.l.b16 %v1192
        %v1472 = vunpack.c.h.b16 %v1192
        %v1473 = vunpack.c.l.b16 %v1193
        %v1474 = vunpack.c.h.b16 %v1193
        %v1475 = vunpack.c.l.b16 %v1194
        %v1476 = vunpack.c.h.b16 %v1194
        %v1477 = vunpack.c.l.b16 %v1195
        %v1478 = vunpack.c.h.b16 %v1195
        %v1479 = vunpack.c.l.b16 %v1196
        %v1480 = vunpack.c.h.b16 %v1196
        %v1481 = vunpack.c.l.b16 %v1197
        %v1482 = vunpack.c.h.b16 %v1197
        %v1483 = vunpack.c.l.b16 %v1198
        %v1484 = vunpack.c.h.b16 %v1198
        %v1485 = vunpack.c.l.b16 %v1199
        %v1486 = vunpack.c.h.b16 %v1199
        %v1487 = vunpack.c.l.b16 %v1200
        %v1488 = vunpack.c.h.b16 %v1200
        %v1489 = vpack.c.b16 %v1303, %v1297
        %v1490 = vpack.c.b16 %v1304, %v1298
        %v1491 = vpack.c.b16 %v1305, %v1299
        %v1492 = vpack.c.b16 %v1306, %v1300
        %v1493 = vpack.c.b16 %v1307, %v1301
        %v1494 = vpack.c.b16 %v1308, %v1302
        %v1495 = vpack.c.b16 %v1315, %v1309
        %v1496 = vpack.c.b16 %v1316, %v1310
        %v1497 = vpack.c.b16 %v1317, %v1311
        %v1498 = vpack.c.b16 %v1318, %v1312
        %v1499 = vpack.c.b16 %v1319, %v1313
        %v1500 = vpack.c.b16 %v1320, %v1314
        %v1501 = vpack.c.b16 %v1327, %v1321
        %v1502 = vpack.c.b16 %v1328, %v1322
        %v1503 = vpack.c.b16 %v1329, %v1323
        %v1504 = vpack.c.b16 %v1330, %v1324
        %v1505 = vpack.c.b16 %v1331, %v1325
        %v1506 = vpack.c.b16 %v1332, %v1326
        %v1507 = vpack.c.b16 %v1339, %v1333
        %v1508 = vpack.c.b16 %v1340, %v1334
        %v1509 = vpack.c.b16 %v1341, %v1335
        %v1510 = vpack.c.b16 %v1342, %v1336
        %v1511 = vpack.c.b16 %v1343, %v1337
        %v1512 = vpack.c.b16 %v1344, %v1338
        %v1513 = vpack.c.b16 %v1351, %v1345
        %v1514 = vpack.c.b16 %v1352, %v1346
        %v1515 = vpack.c.b16 %v1353, %v1347
        %v1516 = vpack.c.b16 %v1354, %v1348
        %v1517 = vpack.c.b16 %v1355, %v1349
        %v1518 = vpack.c.b16 %v1356, %v1350
        %v1519 = vpack.c.b16 %v1363, %v1357
        %v1520 = vpack.c.b16 %v1364, %v1358
        %v1521 = vpack.c.b16 %v1365, %v1359
        %v1522 = vpack.c.b16 %v1366, %v1360
        %v1523 = vpack.c.b16 %v1367, %v1361
        %v1524 = vpack.c.b16 %v1368, %v1362
        %v1525 = vpack.c.b16 %v1375, %v1369
        %v1526 = vpack.c.b16 %v1376, %v1370
        %v1527 = vpack.c.b16 %v1377, %v1371
        %v1528 = vpack.c.b16 %v1378, %v1372
        %v1529 = vpack.c.b16 %v1379, %v1373
        %v1530 = vpack.c.b16 %v1380, %v1374
        %v1531 = vpack.c.b16 %v1387, %v1381
        %v1532 = vpack.c.b16 %v1388, %v1382
        %v1533 = vpack.c.b16 %v1389, %v1383
        %v1534 = vpack.c.b16 %v1390, %v1384
        %v1535 = vpack.c.b16 %v1391, %v1385
        %v1536 = vpack.c.b16 %v1392, %v1386
        %v1537 = vpack.c.b16 %v1399, %v1393
        %v1538 = vpack.c.b16 %v1400, %v1394
        %v1539 = vpack.c.b16 %v1401, %v1395
        %v1540 = vpack.c.b16 %v1402, %v1396
        %v1541 = vpack.c.b16 %v1403, %v1397
        %v1542 = vpack.c.b16 %v1404, %v1398
        %v1543 = vpack.c.b16 %v1411, %v1405
        %v1544 = vpack.c.b16 %v1412, %v1406
        %v1545 = vpack.c.b16 %v1413, %v1407
        %v1546 = vpack.c.b16 %v1414, %v1408
        %v1547 = vpack.c.b16 %v1415, %v1409
        %v1548 = vpack.c.b16 %v1416, %v1410
        %v1549 = vpack.c.b16 %v1423, %v1417
        %v1550 = vpack.c.b16 %v1424, %v1418
        %v1551 = vpack.c.b16 %v1425, %v1419
        %v1552 = vpack.c.b16 %v1426, %v1420
        %v1553 = vpack.c.b16 %v1427, %v1421
        %v1554 = vpack.c.b16 %v1428, %v1422
        %v1555 = vpack.c.b16 %v1435, %v1429
        %v1556 = vpack.c.b16 %v1436, %v1430
        %v1557 = vpack.c.b16 %v1437, %v1431
        %v1558 = vpack.c.b16 %v1438, %v1432
        %v1559 = vpack.c.b16 %v1439, %v1433
        %v1560 = vpack.c.b16 %v1440, %v1434
        %v1561 = vpack.c.b16 %v1447, %v1441
        %v1562 = vpack.c.b16 %v1448, %v1442
        %v1563 = vpack.c.b16 %v1449, %v1443
        %v1564 = vpack.c.b16 %v1450, %v1444
        %v1565 = vpack.c.b16 %v1451, %v1445
        %v1566 = vpack.c.b16 %v1452, %v1446
        %v1567 = vpack.c.b16 %v1459, %v1453
        %v1568 = vpack.c.b16 %v1460, %v1454
        %v1569 = vpack.c.b16 %v1461, %v1455
        %v1570 = vpack.c.b16 %v1462, %v1456
        %v1571 = vpack.c.b16 %v1463, %v1457
        %v1572 = vpack.c.b16 %v1464, %v1458
        %v1573 = vpack.c.b16 %v1471, %v1465
        %v1574 = vpack.c.b16 %v1472, %v1466
        %v1575 = vpack.c.b16 %v1473, %v1467
        %v1576 = vpack.c.b16 %v1474, %v1468
        %v1577 = vpack.c.b16 %v1475, %v1469
        %v1578 = vpack.c.b16 %v1476, %v1470
        %v1579 = vpack.c.b16 %v1483, %v1477
        %v1580 = vpack.c.b16 %v1484, %v1478
        %v1581 = vpack.c.b16 %v1485, %v1479
        %v1582 = vpack.c.b16 %v1486, %v1480
        %v1583 = vpack.c.b16 %v1487, %v1481
        %v1584 = vpack.c.b16 %v1488, %v1482
        %1681 = vmatprep.subr.bf16.mxu0 %v1490
        %1682 = vmatpush1.bf16.msra.mxu0 %v1489
        %1683 = vmatprep.subr.bf16.mxu0 %v1496
        %1684 = vmatpush1.bf16.msra.mxu0 %v1495
        %1685 = vmatprep.subr.bf16.mxu0 %v1502
        %1686 = vmatpush1.bf16.msra.mxu0 %v1501
        %1687 = vmatprep.subr.bf16.mxu0 %v1508
        %1688 = vmatpush1.bf16.msra.mxu0 %v1507
        %1689 = vmatprep.subr.bf16.mxu0 %v1514
        %1690 = vmatpush1.bf16.msra.mxu0 %v1513
        %1691 = vmatprep.subr.bf16.mxu0 %v1520
        %1692 = vmatpush1.bf16.msra.mxu0 %v1519
        %1693 = vmatprep.subr.bf16.mxu0 %v1526
        %1694 = vmatpush1.bf16.msra.mxu0 %v1525
        %1695 = vmatprep.subr.bf16.mxu0 %v1532
        %1696 = vmatpush1.bf16.msra.mxu0 %v1531
        %1697 = vmatprep.subr.bf16.mxu0 %v1538
        %1698 = vmatpush1.bf16.msra.mxu0 %v1537
        %1699 = vmatprep.subr.bf16.mxu0 %v1544
        %1700 = vmatpush1.bf16.msra.mxu0 %v1543
        %1701 = vmatprep.subr.bf16.mxu0 %v1550
        %1702 = vmatpush1.bf16.msra.mxu0 %v1549
        %1703 = vmatprep.subr.bf16.mxu0 %v1556
        %1704 = vmatpush1.bf16.msra.mxu0 %v1555
        %1705 = vmatprep.subr.bf16.mxu0 %v1562
        %1706 = vmatpush1.bf16.msra.mxu0 %v1561
        %1707 = vmatprep.subr.bf16.mxu0 %v1568
        %1708 = vmatpush1.bf16.msra.mxu0 %v1567
        %1709 = vmatprep.subr.bf16.mxu0 %v1574
        %1710 = vmatpush1.bf16.msra.mxu0 %v1573
        %1711 = vmatprep.subr.bf16.mxu0 %v1580
        %1712 = vmatpush1.bf16.msra.mxu0 %v1579
        %1713 = vmatprep.mubr.bf16.mxu0 %v1104
        %1714 = vmatmul.mubr.bf16.gmra.mrb[0].mxu0 %v1103
        %v1715 = vpop.f32.mrb[0].mxu0
        %v1716 = vadd.f32 0.0, %v1715
        %v1717 = vpop.f32.mrb[0].mxu0
        %v1718 = vadd.f32 0.0, %v1717
        %v1719 = vpop.f32.mrb[0].mxu0
        %v1720 = vadd.f32 0.0, %v1719
        %v1721 = vpop.f32.mrb[0].mxu0
        %v1722 = vadd.f32 0.0, %v1721
        %1723 = vdwg.mxu0
        %1724 = vmatprep.subr.bf16.mxu0 %v1492
        %1725 = vmatpush1.bf16.msra.mxu0 %v1491
        %1726 = vmatprep.subr.bf16.mxu0 %v1498
        %1727 = vmatpush1.bf16.msra.mxu0 %v1497
        %1728 = vmatprep.subr.bf16.mxu0 %v1504
        %1729 = vmatpush1.bf16.msra.mxu0 %v1503
        %1730 = vmatprep.subr.bf16.mxu0 %v1510
        %1731 = vmatpush1.bf16.msra.mxu0 %v1509
        %1732 = vmatprep.subr.bf16.mxu0 %v1516
        %1733 = vmatpush1.bf16.msra.mxu0 %v1515
        %1734 = vmatprep.subr.bf16.mxu0 %v1522
        %1735 = vmatpush1.bf16.msra.mxu0 %v1521
        %1736 = vmatprep.subr.bf16.mxu0 %v1528
        %1737 = vmatpush1.bf16.msra.mxu0 %v1527
        %1738 = vmatprep.subr.bf16.mxu0 %v1534
        %1739 = vmatpush1.bf16.msra.mxu0 %v1533
        %1740 = vmatprep.subr.bf16.mxu0 %v1540
        %1741 = vmatpush1.bf16.msra.mxu0 %v1539
        %1742 = vmatprep.subr.bf16.mxu0 %v1546
        %1743 = vmatpush1.bf16.msra.mxu0 %v1545
        %1744 = vmatprep.subr.bf16.mxu0 %v1552
        %1745 = vmatpush1.bf16.msra.mxu0 %v1551
        %1746 = vmatprep.subr.bf16.mxu0 %v1558
        %1747 = vmatpush1.bf16.msra.mxu0 %v1557
        %1748 = vmatprep.subr.bf16.mxu0 %v1564
        %1749 = vmatpush1.bf16.msra.mxu0 %v1563
        %1750 = vmatprep.subr.bf16.mxu0 %v1570
        %1751 = vmatpush1.bf16.msra.mxu0 %v1569
        %1752 = vmatprep.subr.bf16.mxu0 %v1576
        %1753 = vmatpush1.bf16.msra.mxu0 %v1575
        %1754 = vmatprep.subr.bf16.mxu0 %v1582
        %1755 = vmatpush1.bf16.msra.mxu0 %v1581
        %1756 = vmatprep.mubr.bf16.mxu0 %v1104
        %1757 = vmatmul.mubr.bf16.gmra.mrb[0].mxu0 %v1103
        %v1758 = vpop.f32.mrb[0].mxu0
        %v1759 = vadd.f32 0.0, %v1758
        %v1760 = vpop.f32.mrb[0].mxu0
        %v1761 = vadd.f32 0.0, %v1760
        %v1762 = vpop.f32.mrb[0].mxu0
        %v1763 = vadd.f32 0.0, %v1762
        %v1764 = vpop.f32.mrb[0].mxu0
        %v1765 = vadd.f32 0.0, %v1764
        %1766 = vdwg.mxu0
        %1767 = vmatprep.subr.bf16.mxu0 %v1494
        %1768 = vmatpush1.bf16.msra.mxu0 %v1493
        %1769 = vmatprep.subr.bf16.mxu0 %v1500
        %1770 = vmatpush1.bf16.msra.mxu0 %v1499
        %1771 = vmatprep.subr.bf16.mxu0 %v1506
        %1772 = vmatpush1.bf16.msra.mxu0 %v1505
        %1773 = vmatprep.subr.bf16.mxu0 %v1512
        %1774 = vmatpush1.bf16.msra.mxu0 %v1511
        %1775 = vmatprep.subr.bf16.mxu0 %v1518
        %1776 = vmatpush1.bf16.msra.mxu0 %v1517
        %1777 = vmatprep.subr.bf16.mxu0 %v1524
        %1778 = vmatpush1.bf16.msra.mxu0 %v1523
        %1779 = vmatprep.subr.bf16.mxu0 %v1530
        %1780 = vmatpush1.bf16.msra.mxu0 %v1529
        %1781 = vmatprep.subr.bf16.mxu0 %v1536
        %1782 = vmatpush1.bf16.msra.mxu0 %v1535
        %1783 = vmatprep.subr.bf16.mxu0 %v1542
        %1784 = vmatpush1.bf16.msra.mxu0 %v1541
        %1785 = vmatprep.subr.bf16.mxu0 %v1548
        %1786 = vmatpush1.bf16.msra.mxu0 %v1547
        %1787 = vmatprep.subr.bf16.mxu0 %v1554
        %1788 = vmatpush1.bf16.msra.mxu0 %v1553
        %1789 = vmatprep.subr.bf16.mxu0 %v1560
        %1790 = vmatpush1.bf16.msra.mxu0 %v1559
        %1791 = vmatprep.subr.bf16.mxu0 %v1566
        %1792 = vmatpush1.bf16.msra.mxu0 %v1565
        %1793 = vmatprep.subr.bf16.mxu0 %v1572
        %1794 = vmatpush1.bf16.msra.mxu0 %v1571
        %1795 = vmatprep.subr.bf16.mxu0 %v1578
        %1796 = vmatpush1.bf16.msra.mxu0 %v1577
        %1797 = vmatprep.subr.bf16.mxu0 %v1584
        %1798 = vmatpush1.bf16.msra.mxu0 %v1583
        %1799 = vmatprep.mubr.bf16.mxu0 %v1104
        %1800 = vmatmul.mubr.bf16.gmra.mrb[0].mxu0 %v1103
        %v1801 = vpop.f32.mrb[0].mxu0
        %v1802 = vadd.f32 0.0, %v1801
        %v1803 = vpop.f32.mrb[0].mxu0
        %v1804 = vadd.f32 0.0, %v1803
        %v1805 = vpop.f32.mrb[0].mxu0
        %v1806 = vadd.f32 0.0, %v1805
        %v1807 = vpop.f32.mrb[0].mxu0
        %v1808 = vadd.f32 0.0, %v1807
        %1809 = vdwg.mxu0
        %v1810 = vpack.c.bf16 %v1720, %v1716
        %v1811 = vpack.c.bf16 %v1722, %v1718
        %v1812 = vpack.c.bf16 %v1763, %v1759
        %v1813 = vpack.c.bf16 %v1765, %v1761
        %v1814 = vpack.c.bf16 %v1806, %v1802
        %v1815 = vpack.c.bf16 %v1808, %v1804
        %v1816 = vld [vmem:[%s1] sm:$0xff]
        %v1817 = vld [vmem:[%s1 + $0x8] sm:$0xff]
        %vm1818 = vcmask 261120
        %v1820 = vsel %vm1818, %v1810, 0
        %v1823 = vsel %vm1818, %v1812, 0
        %1825 = vmatprep.subr.bf16.mxu0 0
        %1826 = vmatpush1.bf16.xpose.msra.mxu0 %v1823
        %1827 = vmatprep.subr.bf16.mxu0 0
        %1828 = vmatpush1.bf16.xpose.msra.mxu0 0
        %1829 = vmatprep.subr.bf16.mxu0 0
        %1830 = vmatpush1.bf16.xpose.msra.mxu0 0
        %1831 = vmatprep.subr.bf16.mxu0 0
        %1832 = vmatpush1.bf16.xpose.msra.mxu0 0
        %1833 = vmatprep.subr.bf16.mxu0 0
        %1834 = vmatpush1.bf16.xpose.msra.mxu0 0
        %1835 = vmatprep.subr.bf16.mxu0 0
        %1836 = vmatpush1.bf16.xpose.msra.mxu0 0
        %1837 = vmatprep.subr.bf16.mxu0 0
        %1838 = vmatpush1.bf16.xpose.msra.mxu0 0
        %1839 = vmatprep.subr.bf16.mxu0 0
        %1840 = vmatpush1.bf16.xpose.msra.mxu0 0
        %1841 = vmatprep.subr.bf16.mxu0 0
        %1842 = vmatpush1.bf16.xpose.msra.mxu0 0
        %1843 = vmatprep.subr.bf16.mxu0 0
        %1844 = vmatpush1.bf16.xpose.msra.mxu0 0
        %1845 = vmatprep.subr.bf16.mxu0 0
        %1846 = vmatpush1.bf16.xpose.msra.mxu0 0
        %1847 = vmatprep.subr.bf16.mxu0 0
        %1848 = vmatpush1.bf16.xpose.msra.mxu0 0
        %1849 = vmatprep.subr.bf16.mxu0 0
        %1850 = vmatpush1.bf16.xpose.msra.mxu0 0
        %1851 = vmatprep.subr.bf16.mxu0 0
        %1852 = vmatpush1.bf16.xpose.msra.mxu0 0
        %1853 = vmatprep.subr.bf16.mxu0 0
        %1854 = vmatpush1.bf16.xpose.msra.mxu0 0
        %1855 = vmatprep.subr.bf16.mxu0 0
        %1856 = vmatpush1.bf16.xpose.msra.mxu0 0
        %1857 = vmatprep.mubr.bf16.mxu0 0
        %1858 = vmatmul.mubr.bf16.gmra.mrb[0].mxu0 %v1820
        %v1859 = vpop.f32.mrb[0].mxu0
        %v1860 = vadd.f32 %v1816, %v1859
        %v1861 = vpop.f32.mrb[0].mxu0
        %v1862 = vpop.f32.mrb[0].mxu0
        %v1863 = vadd.f32 %v1817, %v1862
        %v1864 = vpop.f32.mrb[0].mxu0
        %1865 = vdwg.mxu0
        %vm1866 = vcmask 130048
        %v1867 = vsel %vm1866, %v1860, -inf
        %1868 = vmax.xlane.f32.xlu0 %v1867
        %v1869 = vpop.xlane.xlu0 %1868
        %v1870 = vsel %vm1866, %v1863, -inf
        %1871 = vmax.xlane.f32.xlu0 %v1870
        %v1872 = vpop.xlane.xlu0 %1871
        %v1873 = vsub.f32 %v1860, %v1869
        %v1874 = vsub.f32 %v1863, %v1872
        %v1875 = vmul.f32 %v1873, 1.442695
        %v1876 = vpow.pop %v1875
        %v1877 = vmul.f32 %v1874, 1.442695
        %v1878 = vpow.pop %v1877
        %v1879 = vsel %vm1866, %v1876, 0.0
        %1880 = vadd.xlane.f32.xlu0 %v1879
        %v1881 = vpop.xlane.xlu0 %1880
        %v1882 = vsel %vm1866, %v1878, 0.0
        %1883 = vadd.xlane.f32.xlu0 %v1882
        %v1884 = vpop.xlane.xlu0 %1883
        %v1885 = vrcp.pop %v1881
        %v1886 = vrcp.pop %v1884
        %v1887 = vmul.f32 %v1876, %v1885
        %v1888 = vmul.f32 %v1878, %v1886
        %v1889 = vpack.c.bf16 %v1888, %v1887
        %v1891 = vsel %vm1866, %v1889, 0
        %1893 = vmatprep.subr.bf16.mxu0 0
        %1894 = vmatpush1.bf16.msra.mxu0 %v1814
        %1895 = vmatprep.subr.bf16.mxu0 0
        %1896 = vmatpush1.bf16.msra.mxu0 0
        %1897 = vmatprep.subr.bf16.mxu0 0
        %1898 = vmatpush1.bf16.msra.mxu0 0
        %1899 = vmatprep.subr.bf16.mxu0 0
        %1900 = vmatpush1.bf16.msra.mxu0 0
        %1901 = vmatprep.subr.bf16.mxu0 0
        %1902 = vmatpush1.bf16.msra.mxu0 0
        %1903 = vmatprep.subr.bf16.mxu0 0
        %1904 = vmatpush1.bf16.msra.mxu0 0
        %1905 = vmatprep.subr.bf16.mxu0 0
        %1906 = vmatpush1.bf16.msra.mxu0 0
        %1907 = vmatprep.subr.bf16.mxu0 0
        %1908 = vmatpush1.bf16.msra.mxu0 0
        %1909 = vmatprep.subr.bf16.mxu0 0
        %1910 = vmatpush1.bf16.msra.mxu0 0
        %1911 = vmatprep.subr.bf16.mxu0 0
        %1912 = vmatpush1.bf16.msra.mxu0 0
        %1913 = vmatprep.subr.bf16.mxu0 0
        %1914 = vmatpush1.bf16.msra.mxu0 0
        %1915 = vmatprep.subr.bf16.mxu0 0
        %1916 = vmatpush1.bf16.msra.mxu0 0
        %1917 = vmatprep.subr.bf16.mxu0 0
        %1918 = vmatpush1.bf16.msra.mxu0 0
        %1919 = vmatprep.subr.bf16.mxu0 0
        %1920 = vmatpush1.bf16.msra.mxu0 0
        %1921 = vmatprep.subr.bf16.mxu0 0
        %1922 = vmatpush1.bf16.msra.mxu0 0
        %1923 = vmatprep.subr.bf16.mxu0 0
        %1924 = vmatpush1.bf16.msra.mxu0 0
        %1925 = vmatprep.mubr.bf16.mxu0 0
        %1926 = vmatmul.mubr.bf16.gmra.mrb[0].mxu0 %v1891
        %v1927 = vpop.f32.mrb[0].mxu0
        %v1928 = vadd.f32 0.0, %v1927
        %v1929 = vpop.f32.mrb[0].mxu0
        %v1930 = vpop.f32.mrb[0].mxu0
        %v1931 = vadd.f32 0.0, %v1930
        %v1932 = vpop.f32.mrb[0].mxu0
        %1933 = vdwg.mxu0
        %s1934 = scalar_lea.vmem %s1, 16
        %v1935 = vld [vmem:[%s1934] sm:$0xff]
        %v1936 = vld [vmem:[%s1934 + $0x8] sm:$0xff]
        %1938 = vrot.lane.b32.xlu0 %v1810, 96
        %v1939 = vpop.permute.xlu0 %1938
        %1941 = vrot.lane.b32.xlu0 %v1812, 96
        %v1942 = vpop.permute.xlu0 %1941
        %v1944 = vsel %vm1818, %v1939, 0
        %v1947 = vsel %vm1818, %v1942, 0
        %1949 = vmatprep.subr.bf16.mxu0 0
        %1950 = vmatpush1.bf16.xpose.msra.mxu0 %v1947
        %1951 = vmatprep.subr.bf16.mxu0 0
        %1952 = vmatpush1.bf16.xpose.msra.mxu0 0
        %1953 = vmatprep.subr.bf16.mxu0 0
        %1954 = vmatpush1.bf16.xpose.msra.mxu0 0
        %1955 = vmatprep.subr.bf16.mxu0 0
        %1956 = vmatpush1.bf16.xpose.msra.mxu0 0
        %1957 = vmatprep.subr.bf16.mxu0 0
        %1958 = vmatpush1.bf16.xpose.msra.mxu0 0
        %1959 = vmatprep.subr.bf16.mxu0 0
        %1960 = vmatpush1.bf16.xpose.msra.mxu0 0
        %1961 = vmatprep.subr.bf16.mxu0 0
        %1962 = vmatpush1.bf16.xpose.msra.mxu0 0
        %1963 = vmatprep.subr.bf16.mxu0 0
        %1964 = vmatpush1.bf16.xpose.msra.mxu0 0
        %1965 = vmatprep.subr.bf16.mxu0 0
        %1966 = vmatpush1.bf16.xpose.msra.mxu0 0
        %1967 = vmatprep.subr.bf16.mxu0 0
        %1968 = vmatpush1.bf16.xpose.msra.mxu0 0
        %1969 = vmatprep.subr.bf16.mxu0 0
        %1970 = vmatpush1.bf16.xpose.msra.mxu0 0
        %1971 = vmatprep.subr.bf16.mxu0 0
        %1972 = vmatpush1.bf16.xpose.msra.mxu0 0
        %1973 = vmatprep.subr.bf16.mxu0 0
        %1974 = vmatpush1.bf16.xpose.msra.mxu0 0
        %1975 = vmatprep.subr.bf16.mxu0 0
        %1976 = vmatpush1.bf16.xpose.msra.mxu0 0
        %1977 = vmatprep.subr.bf16.mxu0 0
        %1978 = vmatpush1.bf16.xpose.msra.mxu0 0
        %1979 = vmatprep.subr.bf16.mxu0 0
        %1980 = vmatpush1.bf16.xpose.msra.mxu0 0
        %1981 = vmatprep.mubr.bf16.mxu0 0
        %1982 = vmatmul.mubr.bf16.gmra.mrb[0].mxu0 %v1944
        %v1983 = vpop.f32.mrb[0].mxu0
        %v1984 = vadd.f32 %v1935, %v1983
        %v1985 = vpop.f32.mrb[0].mxu0
        %v1986 = vpop.f32.mrb[0].mxu0
        %v1987 = vadd.f32 %v1936, %v1986
        %v1988 = vpop.f32.mrb[0].mxu0
        %1989 = vdwg.mxu0
        %v1990 = vsel %vm1866, %v1984, -inf
        %1991 = vmax.xlane.f32.xlu0 %v1990
        %v1992 = vpop.xlane.xlu0 %1991
        %v1993 = vsel %vm1866, %v1987, -inf
        %1994 = vmax.xlane.f32.xlu0 %v1993
        %v1995 = vpop.xlane.xlu0 %1994
        %v1996 = vsub.f32 %v1984, %v1992
        %v1997 = vsub.f32 %v1987, %v1995
        %v1998 = vmul.f32 %v1996, 1.442695
        %v1999 = vpow.pop %v1998
        %v2000 = vmul.f32 %v1997, 1.442695
        %v2001 = vpow.pop %v2000
        %v2002 = vsel %vm1866, %v1999, 0.0
        %2003 = vadd.xlane.f32.xlu0 %v2002
        %v2004 = vpop.xlane.xlu0 %2003
        %v2005 = vsel %vm1866, %v2001, 0.0
        %2006 = vadd.xlane.f32.xlu0 %v2005
        %v2007 = vpop.xlane.xlu0 %2006
        %v2008 = vrcp.pop %v2004
        %v2009 = vrcp.pop %v2007
        %v2010 = vmul.f32 %v1999, %v2008
        %v2011 = vmul.f32 %v2001, %v2009
        %v2012 = vpack.c.bf16 %v2011, %v2010
        %2014 = vrot.lane.b32.xlu0 %v1814, 96
        %v2015 = vpop.permute.xlu0 %2014
        %v2018 = vsel %vm1866, %v2012, 0
        %2020 = vmatprep.subr.bf16.mxu0 0
        %2021 = vmatpush1.bf16.msra.mxu0 %v2015
        %2022 = vmatprep.subr.bf16.mxu0 0
        %2023 = vmatpush1.bf16.msra.mxu0 0
        %2024 = vmatprep.subr.bf16.mxu0 0
        %2025 = vmatpush1.bf16.msra.mxu0 0
        %2026 = vmatprep.subr.bf16.mxu0 0
        %2027 = vmatpush1.bf16.msra.mxu0 0
        %2028 = vmatprep.subr.bf16.mxu0 0
        %2029 = vmatpush1.bf16.msra.mxu0 0
        %2030 = vmatprep.subr.bf16.mxu0 0
        %2031 = vmatpush1.bf16.msra.mxu0 0
        %2032 = vmatprep.subr.bf16.mxu0 0
        %2033 = vmatpush1.bf16.msra.mxu0 0
        %2034 = vmatprep.subr.bf16.mxu0 0
        %2035 = vmatpush1.bf16.msra.mxu0 0
        %2036 = vmatprep.subr.bf16.mxu0 0
        %2037 = vmatpush1.bf16.msra.mxu0 0
        %2038 = vmatprep.subr.bf16.mxu0 0
        %2039 = vmatpush1.bf16.msra.mxu0 0
        %2040 = vmatprep.subr.bf16.mxu0 0
        %2041 = vmatpush1.bf16.msra.mxu0 0
        %2042 = vmatprep.subr.bf16.mxu0 0
        %2043 = vmatpush1.bf16.msra.mxu0 0
        %2044 = vmatprep.subr.bf16.mxu0 0
        %2045 = vmatpush1.bf16.msra.mxu0 0
        %2046 = vmatprep.subr.bf16.mxu0 0
        %2047 = vmatpush1.bf16.msra.mxu0 0
        %2048 = vmatprep.subr.bf16.mxu0 0
        %2049 = vmatpush1.bf16.msra.mxu0 0
        %2050 = vmatprep.subr.bf16.mxu0 0
        %2051 = vmatpush1.bf16.msra.mxu0 0
        %2052 = vmatprep.mubr.bf16.mxu0 0
        %2053 = vmatmul.mubr.bf16.gmra.mrb[0].mxu0 %v2018
        %v2054 = vpop.f32.mrb[0].mxu0
        %v2055 = vadd.f32 0.0, %v2054
        %v2056 = vpop.f32.mrb[0].mxu0
        %v2057 = vpop.f32.mrb[0].mxu0
        %v2058 = vadd.f32 0.0, %v2057
        %v2059 = vpop.f32.mrb[0].mxu0
        %2060 = vdwg.mxu0
        %s2061 = scalar_lea.vmem %s1, 32
        %v2062 = vld [vmem:[%s2061] sm:$0xff]
        %v2063 = vld [vmem:[%s2061 + $0x8] sm:$0xff]
        %2064 = vrot.lane.b32.xlu0 %v1810, 64
        %v2065 = vpop.permute.xlu0 %2064
        %2066 = vrot.lane.b32.xlu0 %v1812, 64
        %v2067 = vpop.permute.xlu0 %2066
        %v2069 = vsel %vm1818, %v2065, 0
        %v2072 = vsel %vm1818, %v2067, 0
        %2074 = vmatprep.subr.bf16.mxu0 0
        %2075 = vmatpush1.bf16.xpose.msra.mxu0 %v2072
        %2076 = vmatprep.subr.bf16.mxu0 0
        %2077 = vmatpush1.bf16.xpose.msra.mxu0 0
        %2078 = vmatprep.subr.bf16.mxu0 0
        %2079 = vmatpush1.bf16.xpose.msra.mxu0 0
        %2080 = vmatprep.subr.bf16.mxu0 0
        %2081 = vmatpush1.bf16.xpose.msra.mxu0 0
        %2082 = vmatprep.subr.bf16.mxu0 0
        %2083 = vmatpush1.bf16.xpose.msra.mxu0 0
        %2084 = vmatprep.subr.bf16.mxu0 0
        %2085 = vmatpush1.bf16.xpose.msra.mxu0 0
        %2086 = vmatprep.subr.bf16.mxu0 0
        %2087 = vmatpush1.bf16.xpose.msra.mxu0 0
        %2088 = vmatprep.subr.bf16.mxu0 0
        %2089 = vmatpush1.bf16.xpose.msra.mxu0 0
        %2090 = vmatprep.subr.bf16.mxu0 0
        %2091 = vmatpush1.bf16.xpose.msra.mxu0 0
        %2092 = vmatprep.subr.bf16.mxu0 0
        %2093 = vmatpush1.bf16.xpose.msra.mxu0 0
        %2094 = vmatprep.subr.bf16.mxu0 0
        %2095 = vmatpush1.bf16.xpose.msra.mxu0 0
        %2096 = vmatprep.subr.bf16.mxu0 0
        %2097 = vmatpush1.bf16.xpose.msra.mxu0 0
        %2098 = vmatprep.subr.bf16.mxu0 0
        %2099 = vmatpush1.bf16.xpose.msra.mxu0 0
        %2100 = vmatprep.subr.bf16.mxu0 0
        %2101 = vmatpush1.bf16.xpose.msra.mxu0 0
        %2102 = vmatprep.subr.bf16.mxu0 0
        %2103 = vmatpush1.bf16.xpose.msra.mxu0 0
        %2104 = vmatprep.subr.bf16.mxu0 0
        %2105 = vmatpush1.bf16.xpose.msra.mxu0 0
        %2106 = vmatprep.mubr.bf16.mxu0 0
        %2107 = vmatmul.mubr.bf16.gmra.mrb[0].mxu0 %v2069
        %v2108 = vpop.f32.mrb[0].mxu0
        %v2109 = vadd.f32 %v2062, %v2108
        %v2110 = vpop.f32.mrb[0].mxu0
        %v2111 = vpop.f32.mrb[0].mxu0
        %v2112 = vadd.f32 %v2063, %v2111
        %v2113 = vpop.f32.mrb[0].mxu0
        %2114 = vdwg.mxu0
        %v2115 = vsel %vm1866, %v2109, -inf
        %2116 = vmax.xlane.f32.xlu0 %v2115
        %v2117 = vpop.xlane.xlu0 %2116
        %v2118 = vsel %vm1866, %v2112, -inf
        %2119 = vmax.xlane.f32.xlu0 %v2118
        %v2120 = vpop.xlane.xlu0 %2119
        %v2121 = vsub.f32 %v2109, %v2117
        %v2122 = vsub.f32 %v2112, %v2120
        %v2123 = vmul.f32 %v2121, 1.442695
        %v2124 = vpow.pop %v2123
        %v2125 = vmul.f32 %v2122, 1.442695
        %v2126 = vpow.pop %v2125
        %v2127 = vsel %vm1866, %v2124, 0.0
        %2128 = vadd.xlane.f32.xlu0 %v2127
        %v2129 = vpop.xlane.xlu0 %2128
        %v2130 = vsel %vm1866, %v2126, 0.0
        %2131 = vadd.xlane.f32.xlu0 %v2130
        %v2132 = vpop.xlane.xlu0 %2131
        %v2133 = vrcp.pop %v2129
        %v2134 = vrcp.pop %v2132
        %v2135 = vmul.f32 %v2124, %v2133
        %v2136 = vmul.f32 %v2126, %v2134
        %v2137 = vpack.c.bf16 %v2136, %v2135
        %2138 = vrot.lane.b32.xlu0 %v1814, 64
        %v2139 = vpop.permute.xlu0 %2138
        %v2142 = vsel %vm1866, %v2137, 0
        %2144 = vmatprep.subr.bf16.mxu0 0
        %2145 = vmatpush1.bf16.msra.mxu0 %v2139
        %2146 = vmatprep.subr.bf16.mxu0 0
        %2147 = vmatpush1.bf16.msra.mxu0 0
        %2148 = vmatprep.subr.bf16.mxu0 0
        %2149 = vmatpush1.bf16.msra.mxu0 0
        %2150 = vmatprep.subr.bf16.mxu0 0
        %2151 = vmatpush1.bf16.msra.mxu0 0
        %2152 = vmatprep.subr.bf16.mxu0 0
        %2153 = vmatpush1.bf16.msra.mxu0 0
        %2154 = vmatprep.subr.bf16.mxu0 0
        %2155 = vmatpush1.bf16.msra.mxu0 0
        %2156 = vmatprep.subr.bf16.mxu0 0
        %2157 = vmatpush1.bf16.msra.mxu0 0
        %2158 = vmatprep.subr.bf16.mxu0 0
        %2159 = vmatpush1.bf16.msra.mxu0 0
        %2160 = vmatprep.subr.bf16.mxu0 0
        %2161 = vmatpush1.bf16.msra.mxu0 0
        %2162 = vmatprep.subr.bf16.mxu0 0
        %2163 = vmatpush1.bf16.msra.mxu0 0
        %2164 = vmatprep.subr.bf16.mxu0 0
        %2165 = vmatpush1.bf16.msra.mxu0 0
        %2166 = vmatprep.subr.bf16.mxu0 0
        %2167 = vmatpush1.bf16.msra.mxu0 0
        %2168 = vmatprep.subr.bf16.mxu0 0
        %2169 = vmatpush1.bf16.msra.mxu0 0
        %2170 = vmatprep.subr.bf16.mxu0 0
        %2171 = vmatpush1.bf16.msra.mxu0 0
        %2172 = vmatprep.subr.bf16.mxu0 0
        %2173 = vmatpush1.bf16.msra.mxu0 0
        %2174 = vmatprep.subr.bf16.mxu0 0
        %2175 = vmatpush1.bf16.msra.mxu0 0
        %2176 = vmatprep.mubr.bf16.mxu0 0
        %2177 = vmatmul.mubr.bf16.gmra.mrb[0].mxu0 %v2142
        %v2178 = vpop.f32.mrb[0].mxu0
        %v2179 = vadd.f32 0.0, %v2178
        %v2180 = vpop.f32.mrb[0].mxu0
        %v2181 = vpop.f32.mrb[0].mxu0
        %v2182 = vadd.f32 0.0, %v2181
        %v2183 = vpop.f32.mrb[0].mxu0
        %2184 = vdwg.mxu0
        %s2185 = scalar_lea.vmem %s1, 48
        %v2186 = vld [vmem:[%s2185] sm:$0xff]
        %v2187 = vld [vmem:[%s2185 + $0x8] sm:$0xff]
        %2188 = vrot.lane.b32.xlu0 %v1810, 32
        %v2189 = vpop.permute.xlu0 %2188
        %2190 = vrot.lane.b32.xlu0 %v1812, 32
        %v2191 = vpop.permute.xlu0 %2190
        %v2193 = vsel %vm1818, %v2189, 0
        %v2196 = vsel %vm1818, %v2191, 0
        %2198 = vmatprep.subr.bf16.mxu0 0
        %2199 = vmatpush1.bf16.xpose.msra.mxu0 %v2196
        %2200 = vmatprep.subr.bf16.mxu0 0
        %2201 = vmatpush1.bf16.xpose.msra.mxu0 0
        %2202 = vmatprep.subr.bf16.mxu0 0
        %2203 = vmatpush1.bf16.xpose.msra.mxu0 0
        %2204 = vmatprep.subr.bf16.mxu0 0
        %2205 = vmatpush1.bf16.xpose.msra.mxu0 0
        %2206 = vmatprep.subr.bf16.mxu0 0
        %2207 = vmatpush1.bf16.xpose.msra.mxu0 0
        %2208 = vmatprep.subr.bf16.mxu0 0
        %2209 = vmatpush1.bf16.xpose.msra.mxu0 0
        %2210 = vmatprep.subr.bf16.mxu0 0
        %2211 = vmatpush1.bf16.xpose.msra.mxu0 0
        %2212 = vmatprep.subr.bf16.mxu0 0
        %2213 = vmatpush1.bf16.xpose.msra.mxu0 0
        %2214 = vmatprep.subr.bf16.mxu0 0
        %2215 = vmatpush1.bf16.xpose.msra.mxu0 0
        %2216 = vmatprep.subr.bf16.mxu0 0
        %2217 = vmatpush1.bf16.xpose.msra.mxu0 0
        %2218 = vmatprep.subr.bf16.mxu0 0
        %2219 = vmatpush1.bf16.xpose.msra.mxu0 0
        %2220 = vmatprep.subr.bf16.mxu0 0
        %2221 = vmatpush1.bf16.xpose.msra.mxu0 0
        %2222 = vmatprep.subr.bf16.mxu0 0
        %2223 = vmatpush1.bf16.xpose.msra.mxu0 0
        %2224 = vmatprep.subr.bf16.mxu0 0
        %2225 = vmatpush1.bf16.xpose.msra.mxu0 0
        %2226 = vmatprep.subr.bf16.mxu0 0
        %2227 = vmatpush1.bf16.xpose.msra.mxu0 0
        %2228 = vmatprep.subr.bf16.mxu0 0
        %2229 = vmatpush1.bf16.xpose.msra.mxu0 0
        %2230 = vmatprep.mubr.bf16.mxu0 0
        %2231 = vmatmul.mubr.bf16.gmra.mrb[0].mxu0 %v2193
        %v2232 = vpop.f32.mrb[0].mxu0
        %v2233 = vadd.f32 %v2186, %v2232
        %v2234 = vpop.f32.mrb[0].mxu0
        %v2235 = vpop.f32.mrb[0].mxu0
        %v2236 = vadd.f32 %v2187, %v2235
        %v2237 = vpop.f32.mrb[0].mxu0
        %2238 = vdwg.mxu0
        %v2239 = vsel %vm1866, %v2233, -inf
        %2240 = vmax.xlane.f32.xlu0 %v2239
        %v2241 = vpop.xlane.xlu0 %2240
        %v2242 = vsel %vm1866, %v2236, -inf
        %2243 = vmax.xlane.f32.xlu0 %v2242
        %v2244 = vpop.xlane.xlu0 %2243
        %v2245 = vsub.f32 %v2233, %v2241
        %v2246 = vsub.f32 %v2236, %v2244
        %v2247 = vmul.f32 %v2245, 1.442695
        %v2248 = vpow.pop %v2247
        %v2249 = vmul.f32 %v2246, 1.442695
        %v2250 = vpow.pop %v2249
        %v2251 = vsel %vm1866, %v2248, 0.0
        %2252 = vadd.xlane.f32.xlu0 %v2251
        %v2253 = vpop.xlane.xlu0 %2252
        %v2254 = vsel %vm1866, %v2250, 0.0
        %2255 = vadd.xlane.f32.xlu0 %v2254
        %v2256 = vpop.xlane.xlu0 %2255
        %v2257 = vrcp.pop %v2253
        %v2258 = vrcp.pop %v2256
        %v2259 = vmul.f32 %v2248, %v2257
        %v2260 = vmul.f32 %v2250, %v2258
        %v2261 = vpack.c.bf16 %v2260, %v2259
        %2262 = vrot.lane.b32.xlu0 %v1814, 32
        %v2263 = vpop.permute.xlu0 %2262
        %v2266 = vsel %vm1866, %v2261, 0
        %2268 = vmatprep.subr.bf16.mxu0 0
        %2269 = vmatpush1.bf16.msra.mxu0 %v2263
        %2270 = vmatprep.subr.bf16.mxu0 0
        %2271 = vmatpush1.bf16.msra.mxu0 0
        %2272 = vmatprep.subr.bf16.mxu0 0
        %2273 = vmatpush1.bf16.msra.mxu0 0
        %2274 = vmatprep.subr.bf16.mxu0 0
        %2275 = vmatpush1.bf16.msra.mxu0 0
        %2276 = vmatprep.subr.bf16.mxu0 0
        %2277 = vmatpush1.bf16.msra.mxu0 0
        %2278 = vmatprep.subr.bf16.mxu0 0
        %2279 = vmatpush1.bf16.msra.mxu0 0
        %2280 = vmatprep.subr.bf16.mxu0 0
        %2281 = vmatpush1.bf16.msra.mxu0 0
        %2282 = vmatprep.subr.bf16.mxu0 0
        %2283 = vmatpush1.bf16.msra.mxu0 0
        %2284 = vmatprep.subr.bf16.mxu0 0
        %2285 = vmatpush1.bf16.msra.mxu0 0
        %2286 = vmatprep.subr.bf16.mxu0 0
        %2287 = vmatpush1.bf16.msra.mxu0 0
        %2288 = vmatprep.subr.bf16.mxu0 0
        %2289 = vmatpush1.bf16.msra.mxu0 0
        %2290 = vmatprep.subr.bf16.mxu0 0
        %2291 = vmatpush1.bf16.msra.mxu0 0
        %2292 = vmatprep.subr.bf16.mxu0 0
        %2293 = vmatpush1.bf16.msra.mxu0 0
        %2294 = vmatprep.subr.bf16.mxu0 0
        %2295 = vmatpush1.bf16.msra.mxu0 0
        %2296 = vmatprep.subr.bf16.mxu0 0
        %2297 = vmatpush1.bf16.msra.mxu0 0
        %2298 = vmatprep.subr.bf16.mxu0 0
        %2299 = vmatpush1.bf16.msra.mxu0 0
        %2300 = vmatprep.mubr.bf16.mxu0 0
        %2301 = vmatmul.mubr.bf16.gmra.mrb[0].mxu0 %v2266
        %v2302 = vpop.f32.mrb[0].mxu0
        %v2303 = vadd.f32 0.0, %v2302
        %v2304 = vpop.f32.mrb[0].mxu0
        %v2305 = vpop.f32.mrb[0].mxu0
        %v2306 = vadd.f32 0.0, %v2305
        %v2307 = vpop.f32.mrb[0].mxu0
        %2308 = vdwg.mxu0
        %s2309 = scalar_lea.vmem %s1, 64
        %v2310 = vld [vmem:[%s2309] sm:$0xff]
        %v2311 = vld [vmem:[%s2309 + $0x8] sm:$0xff]
        %v2313 = vsel %vm1818, %v1811, 0
        %v2316 = vsel %vm1818, %v1813, 0
        %2318 = vmatprep.subr.bf16.mxu0 0
        %2319 = vmatpush1.bf16.xpose.msra.mxu0 %v2316
        %2320 = vmatprep.subr.bf16.mxu0 0
        %2321 = vmatpush1.bf16.xpose.msra.mxu0 0
        %2322 = vmatprep.subr.bf16.mxu0 0
        %2323 = vmatpush1.bf16.xpose.msra.mxu0 0
        %2324 = vmatprep.subr.bf16.mxu0 0
        %2325 = vmatpush1.bf16.xpose.msra.mxu0 0
        %2326 = vmatprep.subr.bf16.mxu0 0
        %2327 = vmatpush1.bf16.xpose.msra.mxu0 0
        %2328 = vmatprep.subr.bf16.mxu0 0
        %2329 = vmatpush1.bf16.xpose.msra.mxu0 0
        %2330 = vmatprep.subr.bf16.mxu0 0
        %2331 = vmatpush1.bf16.xpose.msra.mxu0 0
        %2332 = vmatprep.subr.bf16.mxu0 0
        %2333 = vmatpush1.bf16.xpose.msra.mxu0 0
        %2334 = vmatprep.subr.bf16.mxu0 0
        %2335 = vmatpush1.bf16.xpose.msra.mxu0 0
        %2336 = vmatprep.subr.bf16.mxu0 0
        %2337 = vmatpush1.bf16.xpose.msra.mxu0 0
        %2338 = vmatprep.subr.bf16.mxu0 0
        %2339 = vmatpush1.bf16.xpose.msra.mxu0 0
        %2340 = vmatprep.subr.bf16.mxu0 0
        %2341 = vmatpush1.bf16.xpose.msra.mxu0 0
        %2342 = vmatprep.subr.bf16.mxu0 0
        %2343 = vmatpush1.bf16.xpose.msra.mxu0 0
        %2344 = vmatprep.subr.bf16.mxu0 0
        %2345 = vmatpush1.bf16.xpose.msra.mxu0 0
        %2346 = vmatprep.subr.bf16.mxu0 0
        %2347 = vmatpush1.bf16.xpose.msra.mxu0 0
        %2348 = vmatprep.subr.bf16.mxu0 0
        %2349 = vmatpush1.bf16.xpose.msra.mxu0 0
        %2350 = vmatprep.mubr.bf16.mxu0 0
        %2351 = vmatmul.mubr.bf16.gmra.mrb[0].mxu0 %v2313
        %v2352 = vpop.f32.mrb[0].mxu0
        %v2353 = vadd.f32 %v2310, %v2352
        %v2354 = vpop.f32.mrb[0].mxu0
        %v2355 = vpop.f32.mrb[0].mxu0
        %v2356 = vadd.f32 %v2311, %v2355
        %v2357 = vpop.f32.mrb[0].mxu0
        %2358 = vdwg.mxu0
        %v2359 = vsel %vm1866, %v2353, -inf
        %2360 = vmax.xlane.f32.xlu0 %v2359
        %v2361 = vpop.xlane.xlu0 %2360
        %v2362 = vsel %vm1866, %v2356, -inf
        %2363 = vmax.xlane.f32.xlu0 %v2362
        %v2364 = vpop.xlane.xlu0 %2363
        %v2365 = vsub.f32 %v2353, %v2361
        %v2366 = vsub.f32 %v2356, %v2364
        %v2367 = vmul.f32 %v2365, 1.442695
        %v2368 = vpow.pop %v2367
        %v2369 = vmul.f32 %v2366, 1.442695
        %v2370 = vpow.pop %v2369
        %v2371 = vsel %vm1866, %v2368, 0.0
        %2372 = vadd.xlane.f32.xlu0 %v2371
        %v2373 = vpop.xlane.xlu0 %2372
        %v2374 = vsel %vm1866, %v2370, 0.0
        %2375 = vadd.xlane.f32.xlu0 %v2374
        %v2376 = vpop.xlane.xlu0 %2375
        %v2377 = vrcp.pop %v2373
        %v2378 = vrcp.pop %v2376
        %v2379 = vmul.f32 %v2368, %v2377
        %v2380 = vmul.f32 %v2370, %v2378
        %v2381 = vpack.c.bf16 %v2380, %v2379
        %v2383 = vsel %vm1866, %v2381, 0
        %2385 = vmatprep.subr.bf16.mxu0 0
        %2386 = vmatpush1.bf16.msra.mxu0 %v1815
        %2387 = vmatprep.subr.bf16.mxu0 0
        %2388 = vmatpush1.bf16.msra.mxu0 0
        %2389 = vmatprep.subr.bf16.mxu0 0
        %2390 = vmatpush1.bf16.msra.mxu0 0
        %2391 = vmatprep.subr.bf16.mxu0 0
        %2392 = vmatpush1.bf16.msra.mxu0 0
        %2393 = vmatprep.subr.bf16.mxu0 0
        %2394 = vmatpush1.bf16.msra.mxu0 0
        %2395 = vmatprep.subr.bf16.mxu0 0
        %2396 = vmatpush1.bf16.msra.mxu0 0
        %2397 = vmatprep.subr.bf16.mxu0 0
        %2398 = vmatpush1.bf16.msra.mxu0 0
        %2399 = vmatprep.subr.bf16.mxu0 0
        %2400 = vmatpush1.bf16.msra.mxu0 0
        %2401 = vmatprep.subr.bf16.mxu0 0
        %2402 = vmatpush1.bf16.msra.mxu0 0
        %2403 = vmatprep.subr.bf16.mxu0 0
        %2404 = vmatpush1.bf16.msra.mxu0 0
        %2405 = vmatprep.subr.bf16.mxu0 0
        %2406 = vmatpush1.bf16.msra.mxu0 0
        %2407 = vmatprep.subr.bf16.mxu0 0
        %2408 = vmatpush1.bf16.msra.mxu0 0
        %2409 = vmatprep.subr.bf16.mxu0 0
        %2410 = vmatpush1.bf16.msra.mxu0 0
        %2411 = vmatprep.subr.bf16.mxu0 0
        %2412 = vmatpush1.bf16.msra.mxu0 0
        %2413 = vmatprep.subr.bf16.mxu0 0
        %2414 = vmatpush1.bf16.msra.mxu0 0
        %2415 = vmatprep.subr.bf16.mxu0 0
        %2416 = vmatpush1.bf16.msra.mxu0 0
        %2417 = vmatprep.mubr.bf16.mxu0 0
        %2418 = vmatmul.mubr.bf16.gmra.mrb[0].mxu0 %v2383
        %v2419 = vpop.f32.mrb[0].mxu0
        %v2420 = vadd.f32 0.0, %v2419
        %v2421 = vpop.f32.mrb[0].mxu0
        %v2422 = vpop.f32.mrb[0].mxu0
        %v2423 = vadd.f32 0.0, %v2422
        %v2424 = vpop.f32.mrb[0].mxu0
        %2425 = vdwg.mxu0
        %s2426 = scalar_lea.vmem %s1, 80
        %v2427 = vld [vmem:[%s2426] sm:$0xff]
        %v2428 = vld [vmem:[%s2426 + $0x8] sm:$0xff]
        %2430 = vrot.lane.b32.xlu0 %v1811, 96
        %v2431 = vpop.permute.xlu0 %2430
        %2433 = vrot.lane.b32.xlu0 %v1813, 96
        %v2434 = vpop.permute.xlu0 %2433
        %v2436 = vsel %vm1818, %v2431, 0
        %v2439 = vsel %vm1818, %v2434, 0
        %2441 = vmatprep.subr.bf16.mxu0 0
        %2442 = vmatpush1.bf16.xpose.msra.mxu0 %v2439
        %2443 = vmatprep.subr.bf16.mxu0 0
        %2444 = vmatpush1.bf16.xpose.msra.mxu0 0
        %2445 = vmatprep.subr.bf16.mxu0 0
        %2446 = vmatpush1.bf16.xpose.msra.mxu0 0
        %2447 = vmatprep.subr.bf16.mxu0 0
        %2448 = vmatpush1.bf16.xpose.msra.mxu0 0
        %2449 = vmatprep.subr.bf16.mxu0 0
        %2450 = vmatpush1.bf16.xpose.msra.mxu0 0
        %2451 = vmatprep.subr.bf16.mxu0 0
        %2452 = vmatpush1.bf16.xpose.msra.mxu0 0
        %2453 = vmatprep.subr.bf16.mxu0 0
        %2454 = vmatpush1.bf16.xpose.msra.mxu0 0
        %2455 = vmatprep.subr.bf16.mxu0 0
        %2456 = vmatpush1.bf16.xpose.msra.mxu0 0
        %2457 = vmatprep.subr.bf16.mxu0 0
        %2458 = vmatpush1.bf16.xpose.msra.mxu0 0
        %2459 = vmatprep.subr.bf16.mxu0 0
        %2460 = vmatpush1.bf16.xpose.msra.mxu0 0
        %2461 = vmatprep.subr.bf16.mxu0 0
        %2462 = vmatpush1.bf16.xpose.msra.mxu0 0
        %2463 = vmatprep.subr.bf16.mxu0 0
        %2464 = vmatpush1.bf16.xpose.msra.mxu0 0
        %2465 = vmatprep.subr.bf16.mxu0 0
        %2466 = vmatpush1.bf16.xpose.msra.mxu0 0
        %2467 = vmatprep.subr.bf16.mxu0 0
        %2468 = vmatpush1.bf16.xpose.msra.mxu0 0
        %2469 = vmatprep.subr.bf16.mxu0 0
        %2470 = vmatpush1.bf16.xpose.msra.mxu0 0
        %2471 = vmatprep.subr.bf16.mxu0 0
        %2472 = vmatpush1.bf16.xpose.msra.mxu0 0
        %2473 = vmatprep.mubr.bf16.mxu0 0
        %2474 = vmatmul.mubr.bf16.gmra.mrb[0].mxu0 %v2436
        %v2475 = vpop.f32.mrb[0].mxu0
        %v2476 = vadd.f32 %v2427, %v2475
        %v2477 = vpop.f32.mrb[0].mxu0
        %v2478 = vpop.f32.mrb[0].mxu0
        %v2479 = vadd.f32 %v2428, %v2478
        %v2480 = vpop.f32.mrb[0].mxu0
        %2481 = vdwg.mxu0
        %v2482 = vsel %vm1866, %v2476, -inf
        %2483 = vmax.xlane.f32.xlu0 %v2482
        %v2484 = vpop.xlane.xlu0 %2483
        %v2485 = vsel %vm1866, %v2479, -inf
        %2486 = vmax.xlane.f32.xlu0 %v2485
        %v2487 = vpop.xlane.xlu0 %2486
        %v2488 = vsub.f32 %v2476, %v2484
        %v2489 = vsub.f32 %v2479, %v2487
        %v2490 = vmul.f32 %v2488, 1.442695
        %v2491 = vpow.pop %v2490
        %v2492 = vmul.f32 %v2489, 1.442695
        %v2493 = vpow.pop %v2492
        %v2494 = vsel %vm1866, %v2491, 0.0
        %2495 = vadd.xlane.f32.xlu0 %v2494
        %v2496 = vpop.xlane.xlu0 %2495
        %v2497 = vsel %vm1866, %v2493, 0.0
        %2498 = vadd.xlane.f32.xlu0 %v2497
        %v2499 = vpop.xlane.xlu0 %2498
        %v2500 = vrcp.pop %v2496
        %v2501 = vrcp.pop %v2499
        %v2502 = vmul.f32 %v2491, %v2500
        %v2503 = vmul.f32 %v2493, %v2501
        %v2504 = vpack.c.bf16 %v2503, %v2502
        %2506 = vrot.lane.b32.xlu0 %v1815, 96
        %v2507 = vpop.permute.xlu0 %2506
        %v2510 = vsel %vm1866, %v2504, 0
        %2512 = vmatprep.subr.bf16.mxu0 0
        %2513 = vmatpush1.bf16.msra.mxu0 %v2507
        %2514 = vmatprep.subr.bf16.mxu0 0
        %2515 = vmatpush1.bf16.msra.mxu0 0
        %2516 = vmatprep.subr.bf16.mxu0 0
        %2517 = vmatpush1.bf16.msra.mxu0 0
        %2518 = vmatprep.subr.bf16.mxu0 0
        %2519 = vmatpush1.bf16.msra.mxu0 0
        %2520 = vmatprep.subr.bf16.mxu0 0
        %2521 = vmatpush1.bf16.msra.mxu0 0
        %2522 = vmatprep.subr.bf16.mxu0 0
        %2523 = vmatpush1.bf16.msra.mxu0 0
        %2524 = vmatprep.subr.bf16.mxu0 0
        %2525 = vmatpush1.bf16.msra.mxu0 0
        %2526 = vmatprep.subr.bf16.mxu0 0
        %2527 = vmatpush1.bf16.msra.mxu0 0
        %2528 = vmatprep.subr.bf16.mxu0 0
        %2529 = vmatpush1.bf16.msra.mxu0 0
        %2530 = vmatprep.subr.bf16.mxu0 0
        %2531 = vmatpush1.bf16.msra.mxu0 0
        %2532 = vmatprep.subr.bf16.mxu0 0
        %2533 = vmatpush1.bf16.msra.mxu0 0
        %2534 = vmatprep.subr.bf16.mxu0 0
        %2535 = vmatpush1.bf16.msra.mxu0 0
        %2536 = vmatprep.subr.bf16.mxu0 0
        %2537 = vmatpush1.bf16.msra.mxu0 0
        %2538 = vmatprep.subr.bf16.mxu0 0
        %2539 = vmatpush1.bf16.msra.mxu0 0
        %2540 = vmatprep.subr.bf16.mxu0 0
        %2541 = vmatpush1.bf16.msra.mxu0 0
        %2542 = vmatprep.subr.bf16.mxu0 0
        %2543 = vmatpush1.bf16.msra.mxu0 0
        %2544 = vmatprep.mubr.bf16.mxu0 0
        %2545 = vmatmul.mubr.bf16.gmra.mrb[0].mxu0 %v2510
        %v2546 = vpop.f32.mrb[0].mxu0
        %v2547 = vadd.f32 0.0, %v2546
        %v2548 = vpop.f32.mrb[0].mxu0
        %v2549 = vpop.f32.mrb[0].mxu0
        %v2550 = vadd.f32 0.0, %v2549
        %v2551 = vpop.f32.mrb[0].mxu0
        %2552 = vdwg.mxu0
        %s2553 = scalar_lea.vmem %s1, 96
        %v2554 = vld [vmem:[%s2553] sm:$0xff]
        %v2555 = vld [vmem:[%s2553 + $0x8] sm:$0xff]
        %2556 = vrot.lane.b32.xlu0 %v1811, 64
        %v2557 = vpop.permute.xlu0 %2556
        %2558 = vrot.lane.b32.xlu0 %v1813, 64
        %v2559 = vpop.permute.xlu0 %2558
        %v2561 = vsel %vm1818, %v2557, 0
        %v2564 = vsel %vm1818, %v2559, 0
        %2566 = vmatprep.subr.bf16.mxu0 0
        %2567 = vmatpush1.bf16.xpose.msra.mxu0 %v2564
        %2568 = vmatprep.subr.bf16.mxu0 0
        %2569 = vmatpush1.bf16.xpose.msra.mxu0 0
        %2570 = vmatprep.subr.bf16.mxu0 0
        %2571 = vmatpush1.bf16.xpose.msra.mxu0 0
        %2572 = vmatprep.subr.bf16.mxu0 0
        %2573 = vmatpush1.bf16.xpose.msra.mxu0 0
        %2574 = vmatprep.subr.bf16.mxu0 0
        %2575 = vmatpush1.bf16.xpose.msra.mxu0 0
        %2576 = vmatprep.subr.bf16.mxu0 0
        %2577 = vmatpush1.bf16.xpose.msra.mxu0 0
        %2578 = vmatprep.subr.bf16.mxu0 0
        %2579 = vmatpush1.bf16.xpose.msra.mxu0 0
        %2580 = vmatprep.subr.bf16.mxu0 0
        %2581 = vmatpush1.bf16.xpose.msra.mxu0 0
        %2582 = vmatprep.subr.bf16.mxu0 0
        %2583 = vmatpush1.bf16.xpose.msra.mxu0 0
        %2584 = vmatprep.subr.bf16.mxu0 0
        %2585 = vmatpush1.bf16.xpose.msra.mxu0 0
        %2586 = vmatprep.subr.bf16.mxu0 0
        %2587 = vmatpush1.bf16.xpose.msra.mxu0 0
        %2588 = vmatprep.subr.bf16.mxu0 0
        %2589 = vmatpush1.bf16.xpose.msra.mxu0 0
        %2590 = vmatprep.subr.bf16.mxu0 0
        %2591 = vmatpush1.bf16.xpose.msra.mxu0 0
        %2592 = vmatprep.subr.bf16.mxu0 0
        %2593 = vmatpush1.bf16.xpose.msra.mxu0 0
        %2594 = vmatprep.subr.bf16.mxu0 0
        %2595 = vmatpush1.bf16.xpose.msra.mxu0 0
        %2596 = vmatprep.subr.bf16.mxu0 0
        %2597 = vmatpush1.bf16.xpose.msra.mxu0 0
        %2598 = vmatprep.mubr.bf16.mxu0 0
        %2599 = vmatmul.mubr.bf16.gmra.mrb[0].mxu0 %v2561
        %v2600 = vpop.f32.mrb[0].mxu0
        %v2601 = vadd.f32 %v2554, %v2600
        %v2602 = vpop.f32.mrb[0].mxu0
        %v2603 = vpop.f32.mrb[0].mxu0
        %v2604 = vadd.f32 %v2555, %v2603
        %v2605 = vpop.f32.mrb[0].mxu0
        %2606 = vdwg.mxu0
        %v2607 = vsel %vm1866, %v2601, -inf
        %2608 = vmax.xlane.f32.xlu0 %v2607
        %v2609 = vpop.xlane.xlu0 %2608
        %v2610 = vsel %vm1866, %v2604, -inf
        %2611 = vmax.xlane.f32.xlu0 %v2610
        %v2612 = vpop.xlane.xlu0 %2611
        %v2613 = vsub.f32 %v2601, %v2609
        %v2614 = vsub.f32 %v2604, %v2612
        %v2615 = vmul.f32 %v2613, 1.442695
        %v2616 = vpow.pop %v2615
        %v2617 = vmul.f32 %v2614, 1.442695
        %v2618 = vpow.pop %v2617
        %v2619 = vsel %vm1866, %v2616, 0.0
        %2620 = vadd.xlane.f32.xlu0 %v2619
        %v2621 = vpop.xlane.xlu0 %2620
        %v2622 = vsel %vm1866, %v2618, 0.0
        %2623 = vadd.xlane.f32.xlu0 %v2622
        %v2624 = vpop.xlane.xlu0 %2623
        %v2625 = vrcp.pop %v2621
        %v2626 = vrcp.pop %v2624
        %v2627 = vmul.f32 %v2616, %v2625
        %v2628 = vmul.f32 %v2618, %v2626
        %v2629 = vpack.c.bf16 %v2628, %v2627
        %2630 = vrot.lane.b32.xlu0 %v1815, 64
        %v2631 = vpop.permute.xlu0 %2630
        %v2634 = vsel %vm1866, %v2629, 0
        %2636 = vmatprep.subr.bf16.mxu0 0
        %2637 = vmatpush1.bf16.msra.mxu0 %v2631
        %2638 = vmatprep.subr.bf16.mxu0 0
        %2639 = vmatpush1.bf16.msra.mxu0 0
        %2640 = vmatprep.subr.bf16.mxu0 0
        %2641 = vmatpush1.bf16.msra.mxu0 0
        %2642 = vmatprep.subr.bf16.mxu0 0
        %2643 = vmatpush1.bf16.msra.mxu0 0
        %2644 = vmatprep.subr.bf16.mxu0 0
        %2645 = vmatpush1.bf16.msra.mxu0 0
        %2646 = vmatprep.subr.bf16.mxu0 0
        %2647 = vmatpush1.bf16.msra.mxu0 0
        %2648 = vmatprep.subr.bf16.mxu0 0
        %2649 = vmatpush1.bf16.msra.mxu0 0
        %2650 = vmatprep.subr.bf16.mxu0 0
        %2651 = vmatpush1.bf16.msra.mxu0 0
        %2652 = vmatprep.subr.bf16.mxu0 0
        %2653 = vmatpush1.bf16.msra.mxu0 0
        %2654 = vmatprep.subr.bf16.mxu0 0
        %2655 = vmatpush1.bf16.msra.mxu0 0
        %2656 = vmatprep.subr.bf16.mxu0 0
        %2657 = vmatpush1.bf16.msra.mxu0 0
        %2658 = vmatprep.subr.bf16.mxu0 0
        %2659 = vmatpush1.bf16.msra.mxu0 0
        %2660 = vmatprep.subr.bf16.mxu0 0
        %2661 = vmatpush1.bf16.msra.mxu0 0
        %2662 = vmatprep.subr.bf16.mxu0 0
        %2663 = vmatpush1.bf16.msra.mxu0 0
        %2664 = vmatprep.subr.bf16.mxu0 0
        %2665 = vmatpush1.bf16.msra.mxu0 0
        %2666 = vmatprep.subr.bf16.mxu0 0
        %2667 = vmatpush1.bf16.msra.mxu0 0
        %2668 = vmatprep.mubr.bf16.mxu0 0
        %2669 = vmatmul.mubr.bf16.gmra.mrb[0].mxu0 %v2634
        %v2670 = vpop.f32.mrb[0].mxu0
        %v2671 = vadd.f32 0.0, %v2670
        %v2672 = vpop.f32.mrb[0].mxu0
        %v2673 = vpop.f32.mrb[0].mxu0
        %v2674 = vadd.f32 0.0, %v2673
        %v2675 = vpop.f32.mrb[0].mxu0
        %2676 = vdwg.mxu0
        %s2677 = scalar_lea.vmem %s1, 112
        %v2678 = vld [vmem:[%s2677] sm:$0xff]
        %v2679 = vld [vmem:[%s2677 + $0x8] sm:$0xff]
        %2680 = vrot.lane.b32.xlu0 %v1811, 32
        %v2681 = vpop.permute.xlu0 %2680
        %2682 = vrot.lane.b32.xlu0 %v1813, 32
        %v2683 = vpop.permute.xlu0 %2682
        %v2685 = vsel %vm1818, %v2681, 0
        %v2688 = vsel %vm1818, %v2683, 0
        %2690 = vmatprep.subr.bf16.mxu0 0
        %2691 = vmatpush1.bf16.xpose.msra.mxu0 %v2688
        %2692 = vmatprep.subr.bf16.mxu0 0
        %2693 = vmatpush1.bf16.xpose.msra.mxu0 0
        %2694 = vmatprep.subr.bf16.mxu0 0
        %2695 = vmatpush1.bf16.xpose.msra.mxu0 0
        %2696 = vmatprep.subr.bf16.mxu0 0
        %2697 = vmatpush1.bf16.xpose.msra.mxu0 0
        %2698 = vmatprep.subr.bf16.mxu0 0
        %2699 = vmatpush1.bf16.xpose.msra.mxu0 0
        %2700 = vmatprep.subr.bf16.mxu0 0
        %2701 = vmatpush1.bf16.xpose.msra.mxu0 0
        %2702 = vmatprep.subr.bf16.mxu0 0
        %2703 = vmatpush1.bf16.xpose.msra.mxu0 0
        %2704 = vmatprep.subr.bf16.mxu0 0
        %2705 = vmatpush1.bf16.xpose.msra.mxu0 0
        %2706 = vmatprep.subr.bf16.mxu0 0
        %2707 = vmatpush1.bf16.xpose.msra.mxu0 0
        %2708 = vmatprep.subr.bf16.mxu0 0
        %2709 = vmatpush1.bf16.xpose.msra.mxu0 0
        %2710 = vmatprep.subr.bf16.mxu0 0
        %2711 = vmatpush1.bf16.xpose.msra.mxu0 0
        %2712 = vmatprep.subr.bf16.mxu0 0
        %2713 = vmatpush1.bf16.xpose.msra.mxu0 0
        %2714 = vmatprep.subr.bf16.mxu0 0
        %2715 = vmatpush1.bf16.xpose.msra.mxu0 0
        %2716 = vmatprep.subr.bf16.mxu0 0
        %2717 = vmatpush1.bf16.xpose.msra.mxu0 0
        %2718 = vmatprep.subr.bf16.mxu0 0
        %2719 = vmatpush1.bf16.xpose.msra.mxu0 0
        %2720 = vmatprep.subr.bf16.mxu0 0
        %2721 = vmatpush1.bf16.xpose.msra.mxu0 0
        %2722 = vmatprep.mubr.bf16.mxu0 0
        %2723 = vmatmul.mubr.bf16.gmra.mrb[0].mxu0 %v2685
        %v2724 = vpop.f32.mrb[0].mxu0
        %v2725 = vadd.f32 %v2678, %v2724
        %v2726 = vpop.f32.mrb[0].mxu0
        %v2727 = vpop.f32.mrb[0].mxu0
        %v2728 = vadd.f32 %v2679, %v2727
        %v2729 = vpop.f32.mrb[0].mxu0
        %2730 = vdwg.mxu0
        %v2731 = vsel %vm1866, %v2725, -inf
        %2732 = vmax.xlane.f32.xlu0 %v2731
        %v2733 = vpop.xlane.xlu0 %2732
        %v2734 = vsel %vm1866, %v2728, -inf
        %2735 = vmax.xlane.f32.xlu0 %v2734
        %v2736 = vpop.xlane.xlu0 %2735
        %v2737 = vsub.f32 %v2725, %v2733
        %v2738 = vsub.f32 %v2728, %v2736
        %v2739 = vmul.f32 %v2737, 1.442695
        %v2740 = vpow.pop %v2739
        %v2741 = vmul.f32 %v2738, 1.442695
        %v2742 = vpow.pop %v2741
        %v2743 = vsel %vm1866, %v2740, 0.0
        %2744 = vadd.xlane.f32.xlu0 %v2743
        %v2745 = vpop.xlane.xlu0 %2744
        %v2746 = vsel %vm1866, %v2742, 0.0
        %2747 = vadd.xlane.f32.xlu0 %v2746
        %v2748 = vpop.xlane.xlu0 %2747
        %v2749 = vrcp.pop %v2745
        %v2750 = vrcp.pop %v2748
        %v2751 = vmul.f32 %v2740, %v2749
        %v2752 = vmul.f32 %v2742, %v2750
        %v2753 = vpack.c.bf16 %v2752, %v2751
        %2754 = vrot.lane.b32.xlu0 %v1815, 32
        %v2755 = vpop.permute.xlu0 %2754
        %v2758 = vsel %vm1866, %v2753, 0
        %2760 = vmatprep.subr.bf16.mxu0 0
        %2761 = vmatpush1.bf16.msra.mxu0 %v2755
        %2762 = vmatprep.subr.bf16.mxu0 0
        %2763 = vmatpush1.bf16.msra.mxu0 0
        %2764 = vmatprep.subr.bf16.mxu0 0
        %2765 = vmatpush1.bf16.msra.mxu0 0
        %2766 = vmatprep.subr.bf16.mxu0 0
        %2767 = vmatpush1.bf16.msra.mxu0 0
        %2768 = vmatprep.subr.bf16.mxu0 0
        %2769 = vmatpush1.bf16.msra.mxu0 0
        %2770 = vmatprep.subr.bf16.mxu0 0
        %2771 = vmatpush1.bf16.msra.mxu0 0
        %2772 = vmatprep.subr.bf16.mxu0 0
        %2773 = vmatpush1.bf16.msra.mxu0 0
        %2774 = vmatprep.subr.bf16.mxu0 0
        %2775 = vmatpush1.bf16.msra.mxu0 0
        %2776 = vmatprep.subr.bf16.mxu0 0
        %2777 = vmatpush1.bf16.msra.mxu0 0
        %2778 = vmatprep.subr.bf16.mxu0 0
        %2779 = vmatpush1.bf16.msra.mxu0 0
        %2780 = vmatprep.subr.bf16.mxu0 0
        %2781 = vmatpush1.bf16.msra.mxu0 0
        %2782 = vmatprep.subr.bf16.mxu0 0
        %2783 = vmatpush1.bf16.msra.mxu0 0
        %2784 = vmatprep.subr.bf16.mxu0 0
        %2785 = vmatpush1.bf16.msra.mxu0 0
        %2786 = vmatprep.subr.bf16.mxu0 0
        %2787 = vmatpush1.bf16.msra.mxu0 0
        %2788 = vmatprep.subr.bf16.mxu0 0
        %2789 = vmatpush1.bf16.msra.mxu0 0
        %2790 = vmatprep.subr.bf16.mxu0 0
        %2791 = vmatpush1.bf16.msra.mxu0 0
        %2792 = vmatprep.mubr.bf16.mxu0 0
        %2793 = vmatmul.mubr.bf16.gmra.mrb[0].mxu0 %v2758
        %v2794 = vpop.f32.mrb[0].mxu0
        %v2795 = vadd.f32 0.0, %v2794
        %v2796 = vpop.f32.mrb[0].mxu0
        %v2797 = vpop.f32.mrb[0].mxu0
        %v2798 = vadd.f32 0.0, %v2797
        %v2799 = vpop.f32.mrb[0].mxu0
        %2800 = vdwg.mxu0
        %2803 = vrot.lane.b32.xlu0 %v2055, 32
        %v2804 = vpop.permute.xlu0 %2803
        %2805 = vrot.lane.b32.xlu0 %v2058, 32
        %v2806 = vpop.permute.xlu0 %2805
        %2811 = vrot.lane.b32.xlu0 %v2179, 64
        %v2812 = vpop.permute.xlu0 %2811
        %2813 = vrot.lane.b32.xlu0 %v2182, 64
        %v2814 = vpop.permute.xlu0 %2813
        %2819 = vrot.lane.b32.xlu0 %v2303, 96
        %v2820 = vpop.permute.xlu0 %2819
        %2821 = vrot.lane.b32.xlu0 %v2306, 96
        %v2822 = vpop.permute.xlu0 %2821
        %2827 = vrot.lane.b32.xlu0 %v2547, 32
        %v2828 = vpop.permute.xlu0 %2827
        %2829 = vrot.lane.b32.xlu0 %v2550, 32
        %v2830 = vpop.permute.xlu0 %2829
        %2835 = vrot.lane.b32.xlu0 %v2671, 64
        %v2836 = vpop.permute.xlu0 %2835
        %2837 = vrot.lane.b32.xlu0 %v2674, 64
        %v2838 = vpop.permute.xlu0 %2837
        %2843 = vrot.lane.b32.xlu0 %v2795, 96
        %v2844 = vpop.permute.xlu0 %2843
        %2845 = vrot.lane.b32.xlu0 %v2798, 96
        %v2846 = vpop.permute.xlu0 %2845
        %v2849 = vsel %vm1818, %v1928, %v2804
        %v2850 = vsel %vm1818, %v1931, %v2806
        %vm2851 = vcmask 523264
        %v2852 = vsel %vm2851, %v2849, %v2812
        %v2853 = vsel %vm2851, %v2850, %v2814
        %vm2854 = vcmask 785408
        %v2855 = vsel %vm2854, %v2852, %v2820
        %v2856 = vsel %vm2854, %v2853, %v2822
        %v2857 = vsel %vm1818, %v2420, %v2828
        %v2858 = vsel %vm1818, %v2423, %v2830
        %v2859 = vsel %vm2851, %v2857, %v2836
        %v2860 = vsel %vm2851, %v2858, %v2838
        %v2861 = vsel %vm2854, %v2859, %v2844
        %v2862 = vsel %vm2854, %v2860, %v2846
        %v2863 = vpack.c.bf16 %v2856, %v2855
        %v2864 = vpack.c.bf16 %v2862, %v2861
        %v2865 = vld [vmem:[%s848] sm:$0xff]
        %v2866 = vld [vmem:[%s848 + $0x8] sm:$0xff]
        %v2867 = vld [vmem:[%s848 + $0x10] sm:$0xff]
        %v2868 = vld [vmem:[%s848 + $0x18] sm:$0xff]
        %v2869 = vld [vmem:[%s848 + $0x20] sm:$0xff]
        %v2870 = vld [vmem:[%s848 + $0x28] sm:$0xff]
        %v2871 = vld [vmem:[%s848 + $0x30] sm:$0xff]
        %v2872 = vld [vmem:[%s848 + $0x38] sm:$0xff]
        %v2873 = vld [vmem:[%s848 + $0x40] sm:$0xff]
        %v2874 = vld [vmem:[%s848 + $0x48] sm:$0xff]
        %v2875 = vld [vmem:[%s848 + $0x50] sm:$0xff]
        %v2876 = vld [vmem:[%s848 + $0x58] sm:$0xff]
        %v2877 = vld [vmem:[%s848 + $0x60] sm:$0xff]
        %v2878 = vld [vmem:[%s848 + $0x68] sm:$0xff]
        %v2879 = vld [vmem:[%s848 + $0x70] sm:$0xff]
        %v2880 = vld [vmem:[%s848 + $0x78] sm:$0xff]
        %v2881 = vld [vmem:[%s848 + $0x80] sm:$0xff]
        %v2882 = vld [vmem:[%s848 + $0x88] sm:$0xff]
        %v2883 = vld [vmem:[%s848 + $0x90] sm:$0xff]
        %v2884 = vld [vmem:[%s848 + $0x98] sm:$0xff]
        %v2885 = vld [vmem:[%s848 + $0xa0] sm:$0xff]
        %v2886 = vld [vmem:[%s848 + $0xa8] sm:$0xff]
        %v2887 = vld [vmem:[%s848 + $0xb0] sm:$0xff]
        %v2888 = vld [vmem:[%s848 + $0xb8] sm:$0xff]
        %v2889 = vld [vmem:[%s848 + $0xc0] sm:$0xff]
        %v2890 = vld [vmem:[%s848 + $0xc8] sm:$0xff]
        %v2891 = vld [vmem:[%s848 + $0xd0] sm:$0xff]
        %v2892 = vld [vmem:[%s848 + $0xd8] sm:$0xff]
        %v2893 = vld [vmem:[%s848 + $0xe0] sm:$0xff]
        %v2894 = vld [vmem:[%s848 + $0xe8] sm:$0xff]
        %v2895 = vld [vmem:[%s848 + $0xf0] sm:$0xff]
        %v2896 = vld [vmem:[%s848 + $0xf8] sm:$0xff]
        %v2929 = vunpack.c.l.b16 %v2865
        %v2930 = vunpack.c.h.b16 %v2865
        %v2931 = vunpack.c.l.b16 %v2866
        %v2932 = vunpack.c.h.b16 %v2866
        %v2933 = vunpack.c.l.b16 %v2867
        %v2934 = vunpack.c.h.b16 %v2867
        %v2935 = vunpack.c.l.b16 %v2868
        %v2936 = vunpack.c.h.b16 %v2868
        %v2937 = vunpack.c.l.b16 %v2869
        %v2938 = vunpack.c.h.b16 %v2869
        %v2939 = vunpack.c.l.b16 %v2870
        %v2940 = vunpack.c.h.b16 %v2870
        %v2941 = vunpack.c.l.b16 %v2871
        %v2942 = vunpack.c.h.b16 %v2871
        %v2943 = vunpack.c.l.b16 %v2872
        %v2944 = vunpack.c.h.b16 %v2872
        %v2945 = vunpack.c.l.b16 %v2873
        %v2946 = vunpack.c.h.b16 %v2873
        %v2947 = vunpack.c.l.b16 %v2874
        %v2948 = vunpack.c.h.b16 %v2874
        %v2949 = vunpack.c.l.b16 %v2875
        %v2950 = vunpack.c.h.b16 %v2875
        %v2951 = vunpack.c.l.b16 %v2876
        %v2952 = vunpack.c.h.b16 %v2876
        %v2953 = vunpack.c.l.b16 %v2877
        %v2954 = vunpack.c.h.b16 %v2877
        %v2955 = vunpack.c.l.b16 %v2878
        %v2956 = vunpack.c.h.b16 %v2878
        %v2957 = vunpack.c.l.b16 %v2879
        %v2958 = vunpack.c.h.b16 %v2879
        %v2959 = vunpack.c.l.b16 %v2880
        %v2960 = vunpack.c.h.b16 %v2880
        %v2961 = vunpack.c.l.b16 %v2881
        %v2962 = vunpack.c.h.b16 %v2881
        %v2963 = vunpack.c.l.b16 %v2882
        %v2964 = vunpack.c.h.b16 %v2882
        %v2965 = vunpack.c.l.b16 %v2883
        %v2966 = vunpack.c.h.b16 %v2883
        %v2967 = vunpack.c.l.b16 %v2884
        %v2968 = vunpack.c.h.b16 %v2884
        %v2969 = vunpack.c.l.b16 %v2885
        %v2970 = vunpack.c.h.b16 %v2885
        %v2971 = vunpack.c.l.b16 %v2886
        %v2972 = vunpack.c.h.b16 %v2886
        %v2973 = vunpack.c.l.b16 %v2887
        %v2974 = vunpack.c.h.b16 %v2887
        %v2975 = vunpack.c.l.b16 %v2888
        %v2976 = vunpack.c.h.b16 %v2888
        %v2977 = vunpack.c.l.b16 %v2889
        %v2978 = vunpack.c.h.b16 %v2889
        %v2979 = vunpack.c.l.b16 %v2890
        %v2980 = vunpack.c.h.b16 %v2890
        %v2981 = vunpack.c.l.b16 %v2891
        %v2982 = vunpack.c.h.b16 %v2891
        %v2983 = vunpack.c.l.b16 %v2892
        %v2984 = vunpack.c.h.b16 %v2892
        %v2985 = vunpack.c.l.b16 %v2893
        %v2986 = vunpack.c.h.b16 %v2893
        %v2987 = vunpack.c.l.b16 %v2894
        %v2988 = vunpack.c.h.b16 %v2894
        %v2989 = vunpack.c.l.b16 %v2895
        %v2990 = vunpack.c.h.b16 %v2895
        %v2991 = vunpack.c.l.b16 %v2896
        %v2992 = vunpack.c.h.b16 %v2896
        %v2993 = vpack.c.b16 %v2931, %v2929
        %v2994 = vpack.c.b16 %v2932, %v2930
        %v2995 = vpack.c.b16 %v2935, %v2933
        %v2996 = vpack.c.b16 %v2936, %v2934
        %v2997 = vpack.c.b16 %v2939, %v2937
        %v2998 = vpack.c.b16 %v2940, %v2938
        %v2999 = vpack.c.b16 %v2943, %v2941
        %v3000 = vpack.c.b16 %v2944, %v2942
        %v3001 = vpack.c.b16 %v2947, %v2945
        %v3002 = vpack.c.b16 %v2948, %v2946
        %v3003 = vpack.c.b16 %v2951, %v2949
        %v3004 = vpack.c.b16 %v2952, %v2950
        %v3005 = vpack.c.b16 %v2955, %v2953
        %v3006 = vpack.c.b16 %v2956, %v2954
        %v3007 = vpack.c.b16 %v2959, %v2957
        %v3008 = vpack.c.b16 %v2960, %v2958
        %v3009 = vpack.c.b16 %v2963, %v2961
        %v3010 = vpack.c.b16 %v2964, %v2962
        %v3011 = vpack.c.b16 %v2967, %v2965
        %v3012 = vpack.c.b16 %v2968, %v2966
        %v3013 = vpack.c.b16 %v2971, %v2969
        %v3014 = vpack.c.b16 %v2972, %v2970
        %v3015 = vpack.c.b16 %v2975, %v2973
        %v3016 = vpack.c.b16 %v2976, %v2974
        %v3017 = vpack.c.b16 %v2979, %v2977
        %v3018 = vpack.c.b16 %v2980, %v2978
        %v3019 = vpack.c.b16 %v2983, %v2981
        %v3020 = vpack.c.b16 %v2984, %v2982
        %v3021 = vpack.c.b16 %v2987, %v2985
        %v3022 = vpack.c.b16 %v2988, %v2986
        %v3023 = vpack.c.b16 %v2991, %v2989
        %v3024 = vpack.c.b16 %v2992, %v2990
        %3057 = vmatprep.subr.bf16.mxu0 %v2994
        %3058 = vmatpush1.bf16.msra.mxu0 %v2993
        %3059 = vmatprep.subr.bf16.mxu0 %v2996
        %3060 = vmatpush1.bf16.msra.mxu0 %v2995
        %3061 = vmatprep.subr.bf16.mxu0 %v2998
        %3062 = vmatpush1.bf16.msra.mxu0 %v2997
        %3063 = vmatprep.subr.bf16.mxu0 %v3000
        %3064 = vmatpush1.bf16.msra.mxu0 %v2999
        %3065 = vmatprep.subr.bf16.mxu0 %v3002
        %3066 = vmatpush1.bf16.msra.mxu0 %v3001
        %3067 = vmatprep.subr.bf16.mxu0 %v3004
        %3068 = vmatpush1.bf16.msra.mxu0 %v3003
        %3069 = vmatprep.subr.bf16.mxu0 %v3006
        %3070 = vmatpush1.bf16.msra.mxu0 %v3005
        %3071 = vmatprep.subr.bf16.mxu0 %v3008
        %3072 = vmatpush1.bf16.msra.mxu0 %v3007
        %3073 = vmatprep.subr.bf16.mxu0 %v3010
        %3074 = vmatpush1.bf16.msra.mxu0 %v3009
        %3075 = vmatprep.subr.bf16.mxu0 %v3012
        %3076 = vmatpush1.bf16.msra.mxu0 %v3011
        %3077 = vmatprep.subr.bf16.mxu0 %v3014
        %3078 = vmatpush1.bf16.msra.mxu0 %v3013
        %3079 = vmatprep.subr.bf16.mxu0 %v3016
        %3080 = vmatpush1.bf16.msra.mxu0 %v3015
        %3081 = vmatprep.subr.bf16.mxu0 %v3018
        %3082 = vmatpush1.bf16.msra.mxu0 %v3017
        %3083 = vmatprep.subr.bf16.mxu0 %v3020
        %3084 = vmatpush1.bf16.msra.mxu0 %v3019
        %3085 = vmatprep.subr.bf16.mxu0 %v3022
        %3086 = vmatpush1.bf16.msra.mxu0 %v3021
        %3087 = vmatprep.subr.bf16.mxu0 %v3024
        %3088 = vmatpush1.bf16.msra.mxu0 %v3023
        %3089 = vmatprep.mubr.bf16.mxu0 %v2864
        %3090 = vmatmul.mubr.bf16.gmra.mrb[0].mxu0 %v2863
        %v3091 = vpop.f32.mrb[0].mxu0
        %v3092 = vadd.f32 0.0, %v3091
        %v3093 = vpop.f32.mrb[0].mxu0
        %v3094 = vadd.f32 0.0, %v3093
        %v3095 = vpop.f32.mrb[0].mxu0
        %v3096 = vadd.f32 0.0, %v3095
        %v3097 = vpop.f32.mrb[0].mxu0
        %v3098 = vadd.f32 0.0, %v3097
        %3099 = vdwg.mxu0
        %v3100 = vadd.f32 %v1034, %v3092
        %v3101 = vadd.f32 %v1035, %v3094
        %v3102 = vadd.f32 %v1036, %v3096
        %v3103 = vadd.f32 %v1037, %v3098
        %v3104 = vld [vmem:[%s857] sm:$0x3]
        %v3105 = vld [vmem:[%s866] sm:$0x3]
        %v3106 = vadd.f32 %v3100, %v3101
        %3107 = vadd.xlane.f32.xlu0 %v3106
        %v3108 = vpop.xlane.xlu0 %3107
        %v3109 = vadd.f32 %v3102, %v3103
        %3110 = vadd.xlane.f32.xlu0 %v3109
        %v3111 = vpop.xlane.xlu0 %3110
        %v3112 = vmul.f32 %v3108, %v1046
        %v3113 = vmul.f32 %v3111, %v1046
        %v3114 = vsub.f32 %v3100, %v3112
        %v3115 = vsub.f32 %v3101, %v3112
        %v3116 = vsub.f32 %v3102, %v3113
        %v3117 = vsub.f32 %v3103, %v3113
        %v3118 = vmul.f32 %v3114, %v3114
        %v3119 = vmul.f32 %v3115, %v3115
        %v3120 = vmul.f32 %v3116, %v3116
        %v3121 = vmul.f32 %v3117, %v3117
        %v3122 = vadd.f32 %v3118, %v3119
        %3123 = vadd.xlane.f32.xlu0 %v3122
        %v3124 = vpop.xlane.xlu0 %3123
        %v3125 = vadd.f32 %v3120, %v3121
        %3126 = vadd.xlane.f32.xlu0 %v3125
        %v3127 = vpop.xlane.xlu0 %3126
        %v3128 = vmul.f32 %v3124, %v1046
        %v3129 = vmul.f32 %v3127, %v1046
        %v3130 = vadd.f32 %v3128, 1e-05
        %v3131 = vadd.f32 %v3129, 1e-05
        %v3132 = vrsqrt.pop %v3130
        %v3133 = vrsqrt.pop %v3131
        %v3134 = vmul.f32 %v3114, %v3132
        %v3135 = vmul.f32 %v3115, %v3132
        %v3136 = vmul.f32 %v3116, %v3133
        %v3137 = vmul.f32 %v3117, %v3133
        %v3139 = vlaneseq
        %v3140 = vshrl.u32 %v3139, 7
        %v3141 = vsub.s32 0, %v3140
        %v3142 = vrot.slane %v3104, %v3141
        %v3143 = vlaneseq
        %v3144 = vshrl.u32 %v3143, 7
        %v3145 = vsub.s32 1, %v3144
        %v3146 = vrot.slane %v3104, %v3145
        %v3149 = vmul.f32 %v3134, %v3142
        %v3150 = vmul.f32 %v3135, %v3146
        %v3151 = vmul.f32 %v3136, %v3142
        %v3152 = vmul.f32 %v3137, %v3146
        %v3154 = vlaneseq
        %v3155 = vshrl.u32 %v3154, 7
        %v3156 = vsub.s32 0, %v3155
        %v3157 = vrot.slane %v3105, %v3156
        %v3158 = vlaneseq
        %v3159 = vshrl.u32 %v3158, 7
        %v3160 = vsub.s32 1, %v3159
        %v3161 = vrot.slane %v3105, %v3160
        %v3164 = vadd.f32 %v3149, %v3157
        %v3165 = vadd.f32 %v3150, %v3161
        %v3166 = vadd.f32 %v3151, %v3157
        %v3167 = vadd.f32 %v3152, %v3161
        %v3168 = vpack.c.bf16 %v3166, %v3164
        %v3169 = vpack.c.bf16 %v3167, %v3165
        %v3170 = vld [vmem:[%s875] sm:$0xff]
        %v3171 = vld [vmem:[%s875 + $0x8] sm:$0xff]
        %v3172 = vld [vmem:[%s875 + $0x10] sm:$0xff]
        %v3173 = vld [vmem:[%s875 + $0x18] sm:$0xff]
        %v3174 = vld [vmem:[%s875 + $0x20] sm:$0xff]
        %v3175 = vld [vmem:[%s875 + $0x28] sm:$0xff]
        %v3176 = vld [vmem:[%s875 + $0x30] sm:$0xff]
        %v3177 = vld [vmem:[%s875 + $0x38] sm:$0xff]
        %v3178 = vld [vmem:[%s875 + $0x40] sm:$0xff]
        %v3179 = vld [vmem:[%s875 + $0x48] sm:$0xff]
        %v3180 = vld [vmem:[%s875 + $0x50] sm:$0xff]
        %v3181 = vld [vmem:[%s875 + $0x58] sm:$0xff]
        %v3182 = vld [vmem:[%s875 + $0x60] sm:$0xff]
        %v3183 = vld [vmem:[%s875 + $0x68] sm:$0xff]
        %v3184 = vld [vmem:[%s875 + $0x70] sm:$0xff]
        %v3185 = vld [vmem:[%s875 + $0x78] sm:$0xff]
        %v3186 = vld [vmem:[%s875 + $0x80] sm:$0xff]
        %v3187 = vld [vmem:[%s875 + $0x88] sm:$0xff]
        %v3188 = vld [vmem:[%s875 + $0x90] sm:$0xff]
        %v3189 = vld [vmem:[%s875 + $0x98] sm:$0xff]
        %v3190 = vld [vmem:[%s875 + $0xa0] sm:$0xff]
        %v3191 = vld [vmem:[%s875 + $0xa8] sm:$0xff]
        %v3192 = vld [vmem:[%s875 + $0xb0] sm:$0xff]
        %v3193 = vld [vmem:[%s875 + $0xb8] sm:$0xff]
        %v3194 = vld [vmem:[%s875 + $0xc0] sm:$0xff]
        %v3195 = vld [vmem:[%s875 + $0xc8] sm:$0xff]
        %v3196 = vld [vmem:[%s875 + $0xd0] sm:$0xff]
        %v3197 = vld [vmem:[%s875 + $0xd8] sm:$0xff]
        %v3198 = vld [vmem:[%s875 + $0xe0] sm:$0xff]
        %v3199 = vld [vmem:[%s875 + $0xe8] sm:$0xff]
        %v3200 = vld [vmem:[%s875 + $0xf0] sm:$0xff]
        %v3201 = vld [vmem:[%s875 + $0xf8] sm:$0xff]
        %v3202 = vld [vmem:[%s875 + $0x100] sm:$0xff]
        %v3203 = vld [vmem:[%s875 + $0x108] sm:$0xff]
        %v3204 = vld [vmem:[%s875 + $0x110] sm:$0xff]
        %v3205 = vld [vmem:[%s875 + $0x118] sm:$0xff]
        %v3206 = vld [vmem:[%s875 + $0x120] sm:$0xff]
        %v3207 = vld [vmem:[%s875 + $0x128] sm:$0xff]
        %v3208 = vld [vmem:[%s875 + $0x130] sm:$0xff]
        %v3209 = vld [vmem:[%s875 + $0x138] sm:$0xff]
        %v3210 = vld [vmem:[%s875 + $0x140] sm:$0xff]
        %v3211 = vld [vmem:[%s875 + $0x148] sm:$0xff]
        %v3212 = vld [vmem:[%s875 + $0x150] sm:$0xff]
        %v3213 = vld [vmem:[%s875 + $0x158] sm:$0xff]
        %v3214 = vld [vmem:[%s875 + $0x160] sm:$0xff]
        %v3215 = vld [vmem:[%s875 + $0x168] sm:$0xff]
        %v3216 = vld [vmem:[%s875 + $0x170] sm:$0xff]
        %v3217 = vld [vmem:[%s875 + $0x178] sm:$0xff]
        %v3218 = vld [vmem:[%s875 + $0x180] sm:$0xff]
        %v3219 = vld [vmem:[%s875 + $0x188] sm:$0xff]
        %v3220 = vld [vmem:[%s875 + $0x190] sm:$0xff]
        %v3221 = vld [vmem:[%s875 + $0x198] sm:$0xff]
        %v3222 = vld [vmem:[%s875 + $0x1a0] sm:$0xff]
        %v3223 = vld [vmem:[%s875 + $0x1a8] sm:$0xff]
        %v3224 = vld [vmem:[%s875 + $0x1b0] sm:$0xff]
        %v3225 = vld [vmem:[%s875 + $0x1b8] sm:$0xff]
        %v3226 = vld [vmem:[%s875 + $0x1c0] sm:$0xff]
        %v3227 = vld [vmem:[%s875 + $0x1c8] sm:$0xff]
        %v3228 = vld [vmem:[%s875 + $0x1d0] sm:$0xff]
        %v3229 = vld [vmem:[%s875 + $0x1d8] sm:$0xff]
        %v3230 = vld [vmem:[%s875 + $0x1e0] sm:$0xff]
        %v3231 = vld [vmem:[%s875 + $0x1e8] sm:$0xff]
        %v3232 = vld [vmem:[%s875 + $0x1f0] sm:$0xff]
        %v3233 = vld [vmem:[%s875 + $0x1f8] sm:$0xff]
        %v3234 = vld [vmem:[%s875 + $0x200] sm:$0xff]
        %v3235 = vld [vmem:[%s875 + $0x208] sm:$0xff]
        %v3236 = vld [vmem:[%s875 + $0x210] sm:$0xff]
        %v3237 = vld [vmem:[%s875 + $0x218] sm:$0xff]
        %v3238 = vld [vmem:[%s875 + $0x220] sm:$0xff]
        %v3239 = vld [vmem:[%s875 + $0x228] sm:$0xff]
        %v3240 = vld [vmem:[%s875 + $0x230] sm:$0xff]
        %v3241 = vld [vmem:[%s875 + $0x238] sm:$0xff]
        %v3242 = vld [vmem:[%s875 + $0x240] sm:$0xff]
        %v3243 = vld [vmem:[%s875 + $0x248] sm:$0xff]
        %v3244 = vld [vmem:[%s875 + $0x250] sm:$0xff]
        %v3245 = vld [vmem:[%s875 + $0x258] sm:$0xff]
        %v3246 = vld [vmem:[%s875 + $0x260] sm:$0xff]
        %v3247 = vld [vmem:[%s875 + $0x268] sm:$0xff]
        %v3248 = vld [vmem:[%s875 + $0x270] sm:$0xff]
        %v3249 = vld [vmem:[%s875 + $0x278] sm:$0xff]
        %v3250 = vld [vmem:[%s875 + $0x280] sm:$0xff]
        %v3251 = vld [vmem:[%s875 + $0x288] sm:$0xff]
        %v3252 = vld [vmem:[%s875 + $0x290] sm:$0xff]
        %v3253 = vld [vmem:[%s875 + $0x298] sm:$0xff]
        %v3254 = vld [vmem:[%s875 + $0x2a0] sm:$0xff]
        %v3255 = vld [vmem:[%s875 + $0x2a8] sm:$0xff]
        %v3256 = vld [vmem:[%s875 + $0x2b0] sm:$0xff]
        %v3257 = vld [vmem:[%s875 + $0x2b8] sm:$0xff]
        %v3258 = vld [vmem:[%s875 + $0x2c0] sm:$0xff]
        %v3259 = vld [vmem:[%s875 + $0x2c8] sm:$0xff]
        %v3260 = vld [vmem:[%s875 + $0x2d0] sm:$0xff]
        %v3261 = vld [vmem:[%s875 + $0x2d8] sm:$0xff]
        %v3262 = vld [vmem:[%s875 + $0x2e0] sm:$0xff]
        %v3263 = vld [vmem:[%s875 + $0x2e8] sm:$0xff]
        %v3264 = vld [vmem:[%s875 + $0x2f0] sm:$0xff]
        %v3265 = vld [vmem:[%s875 + $0x2f8] sm:$0xff]
        %v3266 = vld [vmem:[%s875 + $0x300] sm:$0xff]
        %v3267 = vld [vmem:[%s875 + $0x308] sm:$0xff]
        %v3268 = vld [vmem:[%s875 + $0x310] sm:$0xff]
        %v3269 = vld [vmem:[%s875 + $0x318] sm:$0xff]
        %v3270 = vld [vmem:[%s875 + $0x320] sm:$0xff]
        %v3271 = vld [vmem:[%s875 + $0x328] sm:$0xff]
        %v3272 = vld [vmem:[%s875 + $0x330] sm:$0xff]
        %v3273 = vld [vmem:[%s875 + $0x338] sm:$0xff]
        %v3274 = vld [vmem:[%s875 + $0x340] sm:$0xff]
        %v3275 = vld [vmem:[%s875 + $0x348] sm:$0xff]
        %v3276 = vld [vmem:[%s875 + $0x350] sm:$0xff]
        %v3277 = vld [vmem:[%s875 + $0x358] sm:$0xff]
        %v3278 = vld [vmem:[%s875 + $0x360] sm:$0xff]
        %v3279 = vld [vmem:[%s875 + $0x368] sm:$0xff]
        %v3280 = vld [vmem:[%s875 + $0x370] sm:$0xff]
        %v3281 = vld [vmem:[%s875 + $0x378] sm:$0xff]
        %v3282 = vld [vmem:[%s875 + $0x380] sm:$0xff]
        %v3283 = vld [vmem:[%s875 + $0x388] sm:$0xff]
        %v3284 = vld [vmem:[%s875 + $0x390] sm:$0xff]
        %v3285 = vld [vmem:[%s875 + $0x398] sm:$0xff]
        %v3286 = vld [vmem:[%s875 + $0x3a0] sm:$0xff]
        %v3287 = vld [vmem:[%s875 + $0x3a8] sm:$0xff]
        %v3288 = vld [vmem:[%s875 + $0x3b0] sm:$0xff]
        %v3289 = vld [vmem:[%s875 + $0x3b8] sm:$0xff]
        %v3290 = vld [vmem:[%s875 + $0x3c0] sm:$0xff]
        %v3291 = vld [vmem:[%s875 + $0x3c8] sm:$0xff]
        %v3292 = vld [vmem:[%s875 + $0x3d0] sm:$0xff]
        %v3293 = vld [vmem:[%s875 + $0x3d8] sm:$0xff]
        %v3294 = vld [vmem:[%s875 + $0x3e0] sm:$0xff]
        %v3295 = vld [vmem:[%s875 + $0x3e8] sm:$0xff]
        %v3296 = vld [vmem:[%s875 + $0x3f0] sm:$0xff]
        %v3297 = vld [vmem:[%s875 + $0x3f8] sm:$0xff]
        %v3298 = vld [vmem:[%s884] sm:$0xff]
        %v3300 = vlaneseq
        %v3301 = vshrl.u32 %v3300, 7
        %v3302 = vsub.s32 0, %v3301
        %v3303 = vrot.slane %v3298, %v3302
        %v3304 = vlaneseq
        %v3305 = vshrl.u32 %v3304, 7
        %v3306 = vsub.s32 1, %v3305
        %v3307 = vrot.slane %v3298, %v3306
        %v3308 = vlaneseq
        %v3309 = vshrl.u32 %v3308, 7
        %v3310 = vsub.s32 2, %v3309
        %v3311 = vrot.slane %v3298, %v3310
        %v3312 = vlaneseq
        %v3313 = vshrl.u32 %v3312, 7
        %v3314 = vsub.s32 3, %v3313
        %v3315 = vrot.slane %v3298, %v3314
        %v3316 = vlaneseq
        %v3317 = vshrl.u32 %v3316, 7
        %v3318 = vsub.s32 4, %v3317
        %v3319 = vrot.slane %v3298, %v3318
        %v3320 = vlaneseq
        %v3321 = vshrl.u32 %v3320, 7
        %v3322 = vsub.s32 5, %v3321
        %v3323 = vrot.slane %v3298, %v3322
        %v3324 = vlaneseq
        %v3325 = vshrl.u32 %v3324, 7
        %v3326 = vsub.s32 6, %v3325
        %v3327 = vrot.slane %v3298, %v3326
        %v3328 = vlaneseq
        %v3329 = vshrl.u32 %v3328, 7
        %v3330 = vsub.s32 7, %v3329
        %v3331 = vrot.slane %v3298, %v3330
        %v3468 = vunpack.c.l.b16 %v3170
        %v3469 = vunpack.c.h.b16 %v3170
        %v3470 = vunpack.c.l.b16 %v3171
        %v3471 = vunpack.c.h.b16 %v3171
        %v3472 = vunpack.c.l.b16 %v3172
        %v3473 = vunpack.c.h.b16 %v3172
        %v3474 = vunpack.c.l.b16 %v3173
        %v3475 = vunpack.c.h.b16 %v3173
        %v3476 = vunpack.c.l.b16 %v3174
        %v3477 = vunpack.c.h.b16 %v3174
        %v3478 = vunpack.c.l.b16 %v3175
        %v3479 = vunpack.c.h.b16 %v3175
        %v3480 = vunpack.c.l.b16 %v3176
        %v3481 = vunpack.c.h.b16 %v3176
        %v3482 = vunpack.c.l.b16 %v3177
        %v3483 = vunpack.c.h.b16 %v3177
        %v3484 = vunpack.c.l.b16 %v3178
        %v3485 = vunpack.c.h.b16 %v3178
        %v3486 = vunpack.c.l.b16 %v3179
        %v3487 = vunpack.c.h.b16 %v3179
        %v3488 = vunpack.c.l.b16 %v3180
        %v3489 = vunpack.c.h.b16 %v3180
        %v3490 = vunpack.c.l.b16 %v3181
        %v3491 = vunpack.c.h.b16 %v3181
        %v3492 = vunpack.c.l.b16 %v3182
        %v3493 = vunpack.c.h.b16 %v3182
        %v3494 = vunpack.c.l.b16 %v3183
        %v3495 = vunpack.c.h.b16 %v3183
        %v3496 = vunpack.c.l.b16 %v3184
        %v3497 = vunpack.c.h.b16 %v3184
        %v3498 = vunpack.c.l.b16 %v3185
        %v3499 = vunpack.c.h.b16 %v3185
        %v3500 = vunpack.c.l.b16 %v3186
        %v3501 = vunpack.c.h.b16 %v3186
        %v3502 = vunpack.c.l.b16 %v3187
        %v3503 = vunpack.c.h.b16 %v3187
        %v3504 = vunpack.c.l.b16 %v3188
        %v3505 = vunpack.c.h.b16 %v3188
        %v3506 = vunpack.c.l.b16 %v3189
        %v3507 = vunpack.c.h.b16 %v3189
        %v3508 = vunpack.c.l.b16 %v3190
        %v3509 = vunpack.c.h.b16 %v3190
        %v3510 = vunpack.c.l.b16 %v3191
        %v3511 = vunpack.c.h.b16 %v3191
        %v3512 = vunpack.c.l.b16 %v3192
        %v3513 = vunpack.c.h.b16 %v3192
        %v3514 = vunpack.c.l.b16 %v3193
        %v3515 = vunpack.c.h.b16 %v3193
        %v3516 = vunpack.c.l.b16 %v3194
        %v3517 = vunpack.c.h.b16 %v3194
        %v3518 = vunpack.c.l.b16 %v3195
        %v3519 = vunpack.c.h.b16 %v3195
        %v3520 = vunpack.c.l.b16 %v3196
        %v3521 = vunpack.c.h.b16 %v3196
        %v3522 = vunpack.c.l.b16 %v3197
        %v3523 = vunpack.c.h.b16 %v3197
        %v3524 = vunpack.c.l.b16 %v3198
        %v3525 = vunpack.c.h.b16 %v3198
        %v3526 = vunpack.c.l.b16 %v3199
        %v3527 = vunpack.c.h.b16 %v3199
        %v3528 = vunpack.c.l.b16 %v3200
        %v3529 = vunpack.c.h.b16 %v3200
        %v3530 = vunpack.c.l.b16 %v3201
        %v3531 = vunpack.c.h.b16 %v3201
        %v3532 = vunpack.c.l.b16 %v3202
        %v3533 = vunpack.c.h.b16 %v3202
        %v3534 = vunpack.c.l.b16 %v3203
        %v3535 = vunpack.c.h.b16 %v3203
        %v3536 = vunpack.c.l.b16 %v3204
        %v3537 = vunpack.c.h.b16 %v3204
        %v3538 = vunpack.c.l.b16 %v3205
        %v3539 = vunpack.c.h.b16 %v3205
        %v3540 = vunpack.c.l.b16 %v3206
        %v3541 = vunpack.c.h.b16 %v3206
        %v3542 = vunpack.c.l.b16 %v3207
        %v3543 = vunpack.c.h.b16 %v3207
        %v3544 = vunpack.c.l.b16 %v3208
        %v3545 = vunpack.c.h.b16 %v3208
        %v3546 = vunpack.c.l.b16 %v3209
        %v3547 = vunpack.c.h.b16 %v3209
        %v3548 = vunpack.c.l.b16 %v3210
        %v3549 = vunpack.c.h.b16 %v3210
        %v3550 = vunpack.c.l.b16 %v3211
        %v3551 = vunpack.c.h.b16 %v3211
        %v3552 = vunpack.c.l.b16 %v3212
        %v3553 = vunpack.c.h.b16 %v3212
        %v3554 = vunpack.c.l.b16 %v3213
        %v3555 = vunpack.c.h.b16 %v3213
        %v3556 = vunpack.c.l.b16 %v3214
        %v3557 = vunpack.c.h.b16 %v3214
        %v3558 = vunpack.c.l.b16 %v3215
        %v3559 = vunpack.c.h.b16 %v3215
        %v3560 = vunpack.c.l.b16 %v3216
        %v3561 = vunpack.c.h.b16 %v3216
        %v3562 = vunpack.c.l.b16 %v3217
        %v3563 = vunpack.c.h.b16 %v3217
        %v3564 = vunpack.c.l.b16 %v3218
        %v3565 = vunpack.c.h.b16 %v3218
        %v3566 = vunpack.c.l.b16 %v3219
        %v3567 = vunpack.c.h.b16 %v3219
        %v3568 = vunpack.c.l.b16 %v3220
        %v3569 = vunpack.c.h.b16 %v3220
        %v3570 = vunpack.c.l.b16 %v3221
        %v3571 = vunpack.c.h.b16 %v3221
        %v3572 = vunpack.c.l.b16 %v3222
        %v3573 = vunpack.c.h.b16 %v3222
        %v3574 = vunpack.c.l.b16 %v3223
        %v3575 = vunpack.c.h.b16 %v3223
        %v3576 = vunpack.c.l.b16 %v3224
        %v3577 = vunpack.c.h.b16 %v3224
        %v3578 = vunpack.c.l.b16 %v3225
        %v3579 = vunpack.c.h.b16 %v3225
        %v3580 = vunpack.c.l.b16 %v3226
        %v3581 = vunpack.c.h.b16 %v3226
        %v3582 = vunpack.c.l.b16 %v3227
        %v3583 = vunpack.c.h.b16 %v3227
        %v3584 = vunpack.c.l.b16 %v3228
        %v3585 = vunpack.c.h.b16 %v3228
        %v3586 = vunpack.c.l.b16 %v3229
        %v3587 = vunpack.c.h.b16 %v3229
        %v3588 = vunpack.c.l.b16 %v3230
        %v3589 = vunpack.c.h.b16 %v3230
        %v3590 = vunpack.c.l.b16 %v3231
        %v3591 = vunpack.c.h.b16 %v3231
        %v3592 = vunpack.c.l.b16 %v3232
        %v3593 = vunpack.c.h.b16 %v3232
        %v3594 = vunpack.c.l.b16 %v3233
        %v3595 = vunpack.c.h.b16 %v3233
        %v3596 = vunpack.c.l.b16 %v3234
        %v3597 = vunpack.c.h.b16 %v3234
        %v3598 = vunpack.c.l.b16 %v3235
        %v3599 = vunpack.c.h.b16 %v3235
        %v3600 = vunpack.c.l.b16 %v3236
        %v3601 = vunpack.c.h.b16 %v3236
        %v3602 = vunpack.c.l.b16 %v3237
        %v3603 = vunpack.c.h.b16 %v3237
        %v3604 = vunpack.c.l.b16 %v3238
        %v3605 = vunpack.c.h.b16 %v3238
        %v3606 = vunpack.c.l.b16 %v3239
        %v3607 = vunpack.c.h.b16 %v3239
        %v3608 = vunpack.c.l.b16 %v3240
        %v3609 = vunpack.c.h.b16 %v3240
        %v3610 = vunpack.c.l.b16 %v3241
        %v3611 = vunpack.c.h.b16 %v3241
        %v3612 = vunpack.c.l.b16 %v3242
        %v3613 = vunpack.c.h.b16 %v3242
        %v3614 = vunpack.c.l.b16 %v3243
        %v3615 = vunpack.c.h.b16 %v3243
        %v3616 = vunpack.c.l.b16 %v3244
        %v3617 = vunpack.c.h.b16 %v3244
        %v3618 = vunpack.c.l.b16 %v3245
        %v3619 = vunpack.c.h.b16 %v3245
        %v3620 = vunpack.c.l.b16 %v3246
        %v3621 = vunpack.c.h.b16 %v3246
        %v3622 = vunpack.c.l.b16 %v3247
        %v3623 = vunpack.c.h.b16 %v3247
        %v3624 = vunpack.c.l.b16 %v3248
        %v3625 = vunpack.c.h.b16 %v3248
        %v3626 = vunpack.c.l.b16 %v3249
        %v3627 = vunpack.c.h.b16 %v3249
        %v3628 = vunpack.c.l.b16 %v3250
        %v3629 = vunpack.c.h.b16 %v3250
        %v3630 = vunpack.c.l.b16 %v3251
        %v3631 = vunpack.c.h.b16 %v3251
        %v3632 = vunpack.c.l.b16 %v3252
        %v3633 = vunpack.c.h.b16 %v3252
        %v3634 = vunpack.c.l.b16 %v3253
        %v3635 = vunpack.c.h.b16 %v3253
        %v3636 = vunpack.c.l.b16 %v3254
        %v3637 = vunpack.c.h.b16 %v3254
        %v3638 = vunpack.c.l.b16 %v3255
        %v3639 = vunpack.c.h.b16 %v3255
        %v3640 = vunpack.c.l.b16 %v3256
        %v3641 = vunpack.c.h.b16 %v3256
        %v3642 = vunpack.c.l.b16 %v3257
        %v3643 = vunpack.c.h.b16 %v3257
        %v3644 = vunpack.c.l.b16 %v3258
        %v3645 = vunpack.c.h.b16 %v3258
        %v3646 = vunpack.c.l.b16 %v3259
        %v3647 = vunpack.c.h.b16 %v3259
        %v3648 = vunpack.c.l.b16 %v3260
        %v3649 = vunpack.c.h.b16 %v3260
        %v3650 = vunpack.c.l.b16 %v3261
        %v3651 = vunpack.c.h.b16 %v3261
        %v3652 = vunpack.c.l.b16 %v3262
        %v3653 = vunpack.c.h.b16 %v3262
        %v3654 = vunpack.c.l.b16 %v3263
        %v3655 = vunpack.c.h.b16 %v3263
        %v3656 = vunpack.c.l.b16 %v3264
        %v3657 = vunpack.c.h.b16 %v3264
        %v3658 = vunpack.c.l.b16 %v3265
        %v3659 = vunpack.c.h.b16 %v3265
        %v3660 = vunpack.c.l.b16 %v3266
        %v3661 = vunpack.c.h.b16 %v3266
        %v3662 = vunpack.c.l.b16 %v3267
        %v3663 = vunpack.c.h.b16 %v3267
        %v3664 = vunpack.c.l.b16 %v3268
        %v3665 = vunpack.c.h.b16 %v3268
        %v3666 = vunpack.c.l.b16 %v3269
        %v3667 = vunpack.c.h.b16 %v3269
        %v3668 = vunpack.c.l.b16 %v3270
        %v3669 = vunpack.c.h.b16 %v3270
        %v3670 = vunpack.c.l.b16 %v3271
        %v3671 = vunpack.c.h.b16 %v3271
        %v3672 = vunpack.c.l.b16 %v3272
        %v3673 = vunpack.c.h.b16 %v3272
        %v3674 = vunpack.c.l.b16 %v3273
        %v3675 = vunpack.c.h.b16 %v3273
        %v3676 = vunpack.c.l.b16 %v3274
        %v3677 = vunpack.c.h.b16 %v3274
        %v3678 = vunpack.c.l.b16 %v3275
        %v3679 = vunpack.c.h.b16 %v3275
        %v3680 = vunpack.c.l.b16 %v3276
        %v3681 = vunpack.c.h.b16 %v3276
        %v3682 = vunpack.c.l.b16 %v3277
        %v3683 = vunpack.c.h.b16 %v3277
        %v3684 = vunpack.c.l.b16 %v3278
        %v3685 = vunpack.c.h.b16 %v3278
        %v3686 = vunpack.c.l.b16 %v3279
        %v3687 = vunpack.c.h.b16 %v3279
        %v3688 = vunpack.c.l.b16 %v3280
        %v3689 = vunpack.c.h.b16 %v3280
        %v3690 = vunpack.c.l.b16 %v3281
        %v3691 = vunpack.c.h.b16 %v3281
        %v3692 = vunpack.c.l.b16 %v3282
        %v3693 = vunpack.c.h.b16 %v3282
        %v3694 = vunpack.c.l.b16 %v3283
        %v3695 = vunpack.c.h.b16 %v3283
        %v3696 = vunpack.c.l.b16 %v3284
        %v3697 = vunpack.c.h.b16 %v3284
        %v3698 = vunpack.c.l.b16 %v3285
        %v3699 = vunpack.c.h.b16 %v3285
        %v3700 = vunpack.c.l.b16 %v3286
        %v3701 = vunpack.c.h.b16 %v3286
        %v3702 = vunpack.c.l.b16 %v3287
        %v3703 = vunpack.c.h.b16 %v3287
        %v3704 = vunpack.c.l.b16 %v3288
        %v3705 = vunpack.c.h.b16 %v3288
        %v3706 = vunpack.c.l.b16 %v3289
        %v3707 = vunpack.c.h.b16 %v3289
        %v3708 = vunpack.c.l.b16 %v3290
        %v3709 = vunpack.c.h.b16 %v3290
        %v3710 = vunpack.c.l.b16 %v3291
        %v3711 = vunpack.c.h.b16 %v3291
        %v3712 = vunpack.c.l.b16 %v3292
        %v3713 = vunpack.c.h.b16 %v3292
        %v3714 = vunpack.c.l.b16 %v3293
        %v3715 = vunpack.c.h.b16 %v3293
        %v3716 = vunpack.c.l.b16 %v3294
        %v3717 = vunpack.c.h.b16 %v3294
        %v3718 = vunpack.c.l.b16 %v3295
        %v3719 = vunpack.c.h.b16 %v3295
        %v3720 = vunpack.c.l.b16 %v3296
        %v3721 = vunpack.c.h.b16 %v3296
        %v3722 = vunpack.c.l.b16 %v3297
        %v3723 = vunpack.c.h.b16 %v3297
        %v3724 = vpack.c.b16 %v3476, %v3468
        %v3725 = vpack.c.b16 %v3477, %v3469
        %v3726 = vpack.c.b16 %v3478, %v3470
        %v3727 = vpack.c.b16 %v3479, %v3471
        %v3728 = vpack.c.b16 %v3480, %v3472
        %v3729 = vpack.c.b16 %v3481, %v3473
        %v3730 = vpack.c.b16 %v3482, %v3474
        %v3731 = vpack.c.b16 %v3483, %v3475
        %v3732 = vpack.c.b16 %v3492, %v3484
        %v3733 = vpack.c.b16 %v3493, %v3485
        %v3734 = vpack.c.b16 %v3494, %v3486
        %v3735 = vpack.c.b16 %v3495, %v3487
        %v3736 = vpack.c.b16 %v3496, %v3488
        %v3737 = vpack.c.b16 %v3497, %v3489
        %v3738 = vpack.c.b16 %v3498, %v3490
        %v3739 = vpack.c.b16 %v3499, %v3491
        %v3740 = vpack.c.b16 %v3508, %v3500
        %v3741 = vpack.c.b16 %v3509, %v3501
        %v3742 = vpack.c.b16 %v3510, %v3502
        %v3743 = vpack.c.b16 %v3511, %v3503
        %v3744 = vpack.c.b16 %v3512, %v3504
        %v3745 = vpack.c.b16 %v3513, %v3505
        %v3746 = vpack.c.b16 %v3514, %v3506
        %v3747 = vpack.c.b16 %v3515, %v3507
        %v3748 = vpack.c.b16 %v3524, %v3516
        %v3749 = vpack.c.b16 %v3525, %v3517
        %v3750 = vpack.c.b16 %v3526, %v3518
        %v3751 = vpack.c.b16 %v3527, %v3519
        %v3752 = vpack.c.b16 %v3528, %v3520
        %v3753 = vpack.c.b16 %v3529, %v3521
        %v3754 = vpack.c.b16 %v3530, %v3522
        %v3755 = vpack.c.b16 %v3531, %v3523
        %v3756 = vpack.c.b16 %v3540, %v3532
        %v3757 = vpack.c.b16 %v3541, %v3533
        %v3758 = vpack.c.b16 %v3542, %v3534
        %v3759 = vpack.c.b16 %v3543, %v3535
        %v3760 = vpack.c.b16 %v3544, %v3536
        %v3761 = vpack.c.b16 %v3545, %v3537
        %v3762 = vpack.c.b16 %v3546, %v3538
        %v3763 = vpack.c.b16 %v3547, %v3539
        %v3764 = vpack.c.b16 %v3556, %v3548
        %v3765 = vpack.c.b16 %v3557, %v3549
        %v3766 = vpack.c.b16 %v3558, %v3550
        %v3767 = vpack.c.b16 %v3559, %v3551
        %v3768 = vpack.c.b16 %v3560, %v3552
        %v3769 = vpack.c.b16 %v3561, %v3553
        %v3770 = vpack.c.b16 %v3562, %v3554
        %v3771 = vpack.c.b16 %v3563, %v3555
        %v3772 = vpack.c.b16 %v3572, %v3564
        %v3773 = vpack.c.b16 %v3573, %v3565
        %v3774 = vpack.c.b16 %v3574, %v3566
        %v3775 = vpack.c.b16 %v3575, %v3567
        %v3776 = vpack.c.b16 %v3576, %v3568
        %v3777 = vpack.c.b16 %v3577, %v3569
        %v3778 = vpack.c.b16 %v3578, %v3570
        %v3779 = vpack.c.b16 %v3579, %v3571
        %v3780 = vpack.c.b16 %v3588, %v3580
        %v3781 = vpack.c.b16 %v3589, %v3581
        %v3782 = vpack.c.b16 %v3590, %v3582
        %v3783 = vpack.c.b16 %v3591, %v3583
        %v3784 = vpack.c.b16 %v3592, %v3584
        %v3785 = vpack.c.b16 %v3593, %v3585
        %v3786 = vpack.c.b16 %v3594, %v3586
        %v3787 = vpack.c.b16 %v3595, %v3587
        %v3788 = vpack.c.b16 %v3604, %v3596
        %v3789 = vpack.c.b16 %v3605, %v3597
        %v3790 = vpack.c.b16 %v3606, %v3598
        %v3791 = vpack.c.b16 %v3607, %v3599
        %v3792 = vpack.c.b16 %v3608, %v3600
        %v3793 = vpack.c.b16 %v3609, %v3601
        %v3794 = vpack.c.b16 %v3610, %v3602
        %v3795 = vpack.c.b16 %v3611, %v3603
        %v3796 = vpack.c.b16 %v3620, %v3612
        %v3797 = vpack.c.b16 %v3621, %v3613
        %v3798 = vpack.c.b16 %v3622, %v3614
        %v3799 = vpack.c.b16 %v3623, %v3615
        %v3800 = vpack.c.b16 %v3624, %v3616
        %v3801 = vpack.c.b16 %v3625, %v3617
        %v3802 = vpack.c.b16 %v3626, %v3618
        %v3803 = vpack.c.b16 %v3627, %v3619
        %v3804 = vpack.c.b16 %v3636, %v3628
        %v3805 = vpack.c.b16 %v3637, %v3629
        %v3806 = vpack.c.b16 %v3638, %v3630
        %v3807 = vpack.c.b16 %v3639, %v3631
        %v3808 = vpack.c.b16 %v3640, %v3632
        %v3809 = vpack.c.b16 %v3641, %v3633
        %v3810 = vpack.c.b16 %v3642, %v3634
        %v3811 = vpack.c.b16 %v3643, %v3635
        %v3812 = vpack.c.b16 %v3652, %v3644
        %v3813 = vpack.c.b16 %v3653, %v3645
        %v3814 = vpack.c.b16 %v3654, %v3646
        %v3815 = vpack.c.b16 %v3655, %v3647
        %v3816 = vpack.c.b16 %v3656, %v3648
        %v3817 = vpack.c.b16 %v3657, %v3649
        %v3818 = vpack.c.b16 %v3658, %v3650
        %v3819 = vpack.c.b16 %v3659, %v3651
        %v3820 = vpack.c.b16 %v3668, %v3660
        %v3821 = vpack.c.b16 %v3669, %v3661
        %v3822 = vpack.c.b16 %v3670, %v3662
        %v3823 = vpack.c.b16 %v3671, %v3663
        %v3824 = vpack.c.b16 %v3672, %v3664
        %v3825 = vpack.c.b16 %v3673, %v3665
        %v3826 = vpack.c.b16 %v3674, %v3666
        %v3827 = vpack.c.b16 %v3675, %v3667
        %v3828 = vpack.c.b16 %v3684, %v3676
        %v3829 = vpack.c.b16 %v3685, %v3677
        %v3830 = vpack.c.b16 %v3686, %v3678
        %v3831 = vpack.c.b16 %v3687, %v3679
        %v3832 = vpack.c.b16 %v3688, %v3680
        %v3833 = vpack.c.b16 %v3689, %v3681
        %v3834 = vpack.c.b16 %v3690, %v3682
        %v3835 = vpack.c.b16 %v3691, %v3683
        %v3836 = vpack.c.b16 %v3700, %v3692
        %v3837 = vpack.c.b16 %v3701, %v3693
        %v3838 = vpack.c.b16 %v3702, %v3694
        %v3839 = vpack.c.b16 %v3703, %v3695
        %v3840 = vpack.c.b16 %v3704, %v3696
        %v3841 = vpack.c.b16 %v3705, %v3697
        %v3842 = vpack.c.b16 %v3706, %v3698
        %v3843 = vpack.c.b16 %v3707, %v3699
        %v3844 = vpack.c.b16 %v3716, %v3708
        %v3845 = vpack.c.b16 %v3717, %v3709
        %v3846 = vpack.c.b16 %v3718, %v3710
        %v3847 = vpack.c.b16 %v3719, %v3711
        %v3848 = vpack.c.b16 %v3720, %v3712
        %v3849 = vpack.c.b16 %v3721, %v3713
        %v3850 = vpack.c.b16 %v3722, %v3714
        %v3851 = vpack.c.b16 %v3723, %v3715
        %3980 = vmatprep.subr.bf16.mxu0 %v3725
        %3981 = vmatpush1.bf16.msra.mxu0 %v3724
        %3982 = vmatprep.subr.bf16.mxu0 %v3733
        %3983 = vmatpush1.bf16.msra.mxu0 %v3732
        %3984 = vmatprep.subr.bf16.mxu0 %v3741
        %3985 = vmatpush1.bf16.msra.mxu0 %v3740
        %3986 = vmatprep.subr.bf16.mxu0 %v3749
        %3987 = vmatpush1.bf16.msra.mxu0 %v3748
        %3988 = vmatprep.subr.bf16.mxu0 %v3757
        %3989 = vmatpush1.bf16.msra.mxu0 %v3756
        %3990 = vmatprep.subr.bf16.mxu0 %v3765
        %3991 = vmatpush1.bf16.msra.mxu0 %v3764
        %3992 = vmatprep.subr.bf16.mxu0 %v3773
        %3993 = vmatpush1.bf16.msra.mxu0 %v3772
        %3994 = vmatprep.subr.bf16.mxu0 %v3781
        %3995 = vmatpush1.bf16.msra.mxu0 %v3780
        %3996 = vmatprep.subr.bf16.mxu0 %v3789
        %3997 = vmatpush1.bf16.msra.mxu0 %v3788
        %3998 = vmatprep.subr.bf16.mxu0 %v3797
        %3999 = vmatpush1.bf16.msra.mxu0 %v3796
        %4000 = vmatprep.subr.bf16.mxu0 %v3805
        %4001 = vmatpush1.bf16.msra.mxu0 %v3804
        %4002 = vmatprep.subr.bf16.mxu0 %v3813
        %4003 = vmatpush1.bf16.msra.mxu0 %v3812
        %4004 = vmatprep.subr.bf16.mxu0 %v3821
        %4005 = vmatpush1.bf16.msra.mxu0 %v3820
        %4006 = vmatprep.subr.bf16.mxu0 %v3829
        %4007 = vmatpush1.bf16.msra.mxu0 %v3828
        %4008 = vmatprep.subr.bf16.mxu0 %v3837
        %4009 = vmatpush1.bf16.msra.mxu0 %v3836
        %4010 = vmatprep.subr.bf16.mxu0 %v3845
        %4011 = vmatpush1.bf16.msra.mxu0 %v3844
        %4012 = vmatprep.mubr.bf16.mxu0 %v3169
        %4013 = vmatmul.mubr.bf16.gmra.mrb[0].mxu0 %v3168
        %v4014 = vpop.f32.mrb[0].mxu0
        %v4015 = vadd.f32 %v3303, %v4014
        %v4016 = vpop.f32.mrb[0].mxu0
        %v4017 = vadd.f32 %v3307, %v4016
        %v4018 = vpop.f32.mrb[0].mxu0
        %v4019 = vadd.f32 %v3303, %v4018
        %v4020 = vpop.f32.mrb[0].mxu0
        %v4021 = vadd.f32 %v3307, %v4020
        %4022 = vdwg.mxu0
        %4023 = vmatprep.subr.bf16.mxu0 %v3727
        %4024 = vmatpush1.bf16.msra.mxu0 %v3726
        %4025 = vmatprep.subr.bf16.mxu0 %v3735
        %4026 = vmatpush1.bf16.msra.mxu0 %v3734
        %4027 = vmatprep.subr.bf16.mxu0 %v3743
        %4028 = vmatpush1.bf16.msra.mxu0 %v3742
        %4029 = vmatprep.subr.bf16.mxu0 %v3751
        %4030 = vmatpush1.bf16.msra.mxu0 %v3750
        %4031 = vmatprep.subr.bf16.mxu0 %v3759
        %4032 = vmatpush1.bf16.msra.mxu0 %v3758
        %4033 = vmatprep.subr.bf16.mxu0 %v3767
        %4034 = vmatpush1.bf16.msra.mxu0 %v3766
        %4035 = vmatprep.subr.bf16.mxu0 %v3775
        %4036 = vmatpush1.bf16.msra.mxu0 %v3774
        %4037 = vmatprep.subr.bf16.mxu0 %v3783
        %4038 = vmatpush1.bf16.msra.mxu0 %v3782
        %4039 = vmatprep.subr.bf16.mxu0 %v3791
        %4040 = vmatpush1.bf16.msra.mxu0 %v3790
        %4041 = vmatprep.subr.bf16.mxu0 %v3799
        %4042 = vmatpush1.bf16.msra.mxu0 %v3798
        %4043 = vmatprep.subr.bf16.mxu0 %v3807
        %4044 = vmatpush1.bf16.msra.mxu0 %v3806
        %4045 = vmatprep.subr.bf16.mxu0 %v3815
        %4046 = vmatpush1.bf16.msra.mxu0 %v3814
        %4047 = vmatprep.subr.bf16.mxu0 %v3823
        %4048 = vmatpush1.bf16.msra.mxu0 %v3822
        %4049 = vmatprep.subr.bf16.mxu0 %v3831
        %4050 = vmatpush1.bf16.msra.mxu0 %v3830
        %4051 = vmatprep.subr.bf16.mxu0 %v3839
        %4052 = vmatpush1.bf16.msra.mxu0 %v3838
        %4053 = vmatprep.subr.bf16.mxu0 %v3847
        %4054 = vmatpush1.bf16.msra.mxu0 %v3846
        %4055 = vmatprep.mubr.bf16.mxu0 %v3169
        %4056 = vmatmul.mubr.bf16.gmra.mrb[0].mxu0 %v3168
        %v4057 = vpop.f32.mrb[0].mxu0
        %v4058 = vadd.f32 %v3311, %v4057
        %v4059 = vpop.f32.mrb[0].mxu0
        %v4060 = vadd.f32 %v3315, %v4059
        %v4061 = vpop.f32.mrb[0].mxu0
        %v4062 = vadd.f32 %v3311, %v4061
        %v4063 = vpop.f32.mrb[0].mxu0
        %v4064 = vadd.f32 %v3315, %v4063
        %4065 = vdwg.mxu0
        %4066 = vmatprep.subr.bf16.mxu0 %v3729
        %4067 = vmatpush1.bf16.msra.mxu0 %v3728
        %4068 = vmatprep.subr.bf16.mxu0 %v3737
        %4069 = vmatpush1.bf16.msra.mxu0 %v3736
        %4070 = vmatprep.subr.bf16.mxu0 %v3745
        %4071 = vmatpush1.bf16.msra.mxu0 %v3744
        %4072 = vmatprep.subr.bf16.mxu0 %v3753
        %4073 = vmatpush1.bf16.msra.mxu0 %v3752
        %4074 = vmatprep.subr.bf16.mxu0 %v3761
        %4075 = vmatpush1.bf16.msra.mxu0 %v3760
        %4076 = vmatprep.subr.bf16.mxu0 %v3769
        %4077 = vmatpush1.bf16.msra.mxu0 %v3768
        %4078 = vmatprep.subr.bf16.mxu0 %v3777
        %4079 = vmatpush1.bf16.msra.mxu0 %v3776
        %4080 = vmatprep.subr.bf16.mxu0 %v3785
        %4081 = vmatpush1.bf16.msra.mxu0 %v3784
        %4082 = vmatprep.subr.bf16.mxu0 %v3793
        %4083 = vmatpush1.bf16.msra.mxu0 %v3792
        %4084 = vmatprep.subr.bf16.mxu0 %v3801
        %4085 = vmatpush1.bf16.msra.mxu0 %v3800
        %4086 = vmatprep.subr.bf16.mxu0 %v3809
        %4087 = vmatpush1.bf16.msra.mxu0 %v3808
        %4088 = vmatprep.subr.bf16.mxu0 %v3817
        %4089 = vmatpush1.bf16.msra.mxu0 %v3816
        %4090 = vmatprep.subr.bf16.mxu0 %v3825
        %4091 = vmatpush1.bf16.msra.mxu0 %v3824
        %4092 = vmatprep.subr.bf16.mxu0 %v3833
        %4093 = vmatpush1.bf16.msra.mxu0 %v3832
        %4094 = vmatprep.subr.bf16.mxu0 %v3841
        %4095 = vmatpush1.bf16.msra.mxu0 %v3840
        %4096 = vmatprep.subr.bf16.mxu0 %v3849
        %4097 = vmatpush1.bf16.msra.mxu0 %v3848
        %4098 = vmatprep.mubr.bf16.mxu0 %v3169
        %4099 = vmatmul.mubr.bf16.gmra.mrb[0].mxu0 %v3168
        %v4100 = vpop.f32.mrb[0].mxu0
        %v4101 = vadd.f32 %v3319, %v4100
        %v4102 = vpop.f32.mrb[0].mxu0
        %v4103 = vadd.f32 %v3323, %v4102
        %v4104 = vpop.f32.mrb[0].mxu0
        %v4105 = vadd.f32 %v3319, %v4104
        %v4106 = vpop.f32.mrb[0].mxu0
        %v4107 = vadd.f32 %v3323, %v4106
        %4108 = vdwg.mxu0
        %4109 = vmatprep.subr.bf16.mxu0 %v3731
        %4110 = vmatpush1.bf16.msra.mxu0 %v3730
        %4111 = vmatprep.subr.bf16.mxu0 %v3739
        %4112 = vmatpush1.bf16.msra.mxu0 %v3738
        %4113 = vmatprep.subr.bf16.mxu0 %v3747
        %4114 = vmatpush1.bf16.msra.mxu0 %v3746
        %4115 = vmatprep.subr.bf16.mxu0 %v3755
        %4116 = vmatpush1.bf16.msra.mxu0 %v3754
        %4117 = vmatprep.subr.bf16.mxu0 %v3763
        %4118 = vmatpush1.bf16.msra.mxu0 %v3762
        %4119 = vmatprep.subr.bf16.mxu0 %v3771
        %4120 = vmatpush1.bf16.msra.mxu0 %v3770
        %4121 = vmatprep.subr.bf16.mxu0 %v3779
        %4122 = vmatpush1.bf16.msra.mxu0 %v3778
        %4123 = vmatprep.subr.bf16.mxu0 %v3787
        %4124 = vmatpush1.bf16.msra.mxu0 %v3786
        %4125 = vmatprep.subr.bf16.mxu0 %v3795
        %4126 = vmatpush1.bf16.msra.mxu0 %v3794
        %4127 = vmatprep.subr.bf16.mxu0 %v3803
        %4128 = vmatpush1.bf16.msra.mxu0 %v3802
        %4129 = vmatprep.subr.bf16.mxu0 %v3811
        %4130 = vmatpush1.bf16.msra.mxu0 %v3810
        %4131 = vmatprep.subr.bf16.mxu0 %v3819
        %4132 = vmatpush1.bf16.msra.mxu0 %v3818
        %4133 = vmatprep.subr.bf16.mxu0 %v3827
        %4134 = vmatpush1.bf16.msra.mxu0 %v3826
        %4135 = vmatprep.subr.bf16.mxu0 %v3835
        %4136 = vmatpush1.bf16.msra.mxu0 %v3834
        %4137 = vmatprep.subr.bf16.mxu0 %v3843
        %4138 = vmatpush1.bf16.msra.mxu0 %v3842
        %4139 = vmatprep.subr.bf16.mxu0 %v3851
        %4140 = vmatpush1.bf16.msra.mxu0 %v3850
        %4141 = vmatprep.mubr.bf16.mxu0 %v3169
        %4142 = vmatmul.mubr.bf16.gmra.mrb[0].mxu0 %v3168
        %v4143 = vpop.f32.mrb[0].mxu0
        %v4144 = vadd.f32 %v3327, %v4143
        %v4145 = vpop.f32.mrb[0].mxu0
        %v4146 = vadd.f32 %v3331, %v4145
        %v4147 = vpop.f32.mrb[0].mxu0
        %v4148 = vadd.f32 %v3327, %v4147
        %v4149 = vpop.f32.mrb[0].mxu0
        %v4150 = vadd.f32 %v3331, %v4149
        %4151 = vdwg.mxu0
        %v4152 = vmul.f32 %v4015, 0.5
        %v4153 = vmul.f32 %v4017, 0.5
        %v4154 = vmul.f32 %v4058, 0.5
        %v4155 = vmul.f32 %v4060, 0.5
        %v4156 = vmul.f32 %v4101, 0.5
        %v4157 = vmul.f32 %v4103, 0.5
        %v4158 = vmul.f32 %v4144, 0.5
        %v4159 = vmul.f32 %v4146, 0.5
        %v4160 = vmul.f32 %v4019, 0.5
        %v4161 = vmul.f32 %v4021, 0.5
        %v4162 = vmul.f32 %v4062, 0.5
        %v4163 = vmul.f32 %v4064, 0.5
        %v4164 = vmul.f32 %v4105, 0.5
        %v4165 = vmul.f32 %v4107, 0.5
        %v4166 = vmul.f32 %v4148, 0.5
        %v4167 = vmul.f32 %v4150, 0.5
        %v4168 = vmul.f32 %v4015, 0.70710677
        %v4169 = vmul.f32 %v4017, 0.70710677
        %v4170 = vmul.f32 %v4058, 0.70710677
        %v4171 = vmul.f32 %v4060, 0.70710677
        %v4172 = vmul.f32 %v4101, 0.70710677
        %v4173 = vmul.f32 %v4103, 0.70710677
        %v4174 = vmul.f32 %v4144, 0.70710677
        %v4175 = vmul.f32 %v4146, 0.70710677
        %v4176 = vmul.f32 %v4019, 0.70710677
        %v4177 = vmul.f32 %v4021, 0.70710677
        %v4178 = vmul.f32 %v4062, 0.70710677
        %v4179 = vmul.f32 %v4064, 0.70710677
        %v4180 = vmul.f32 %v4105, 0.70710677
        %v4181 = vmul.f32 %v4107, 0.70710677
        %v4182 = vmul.f32 %v4148, 0.70710677
        %v4183 = vmul.f32 %v4150, 0.70710677
        %v4184 = vand.u32 2147483647, %v4168
        %v4185 = vand.u32 2147483647, %v4169
        %v4186 = vand.u32 2147483647, %v4170
        %v4187 = vand.u32 2147483647, %v4171
        %v4188 = vand.u32 2147483647, %v4172
        %v4189 = vand.u32 2147483647, %v4173
        %v4190 = vand.u32 2147483647, %v4174
        %v4191 = vand.u32 2147483647, %v4175
        %v4192 = vand.u32 2147483647, %v4176
        %v4193 = vand.u32 2147483647, %v4177
        %v4194 = vand.u32 2147483647, %v4178
        %v4195 = vand.u32 2147483647, %v4179
        %v4196 = vand.u32 2147483647, %v4180
        %v4197 = vand.u32 2147483647, %v4181
        %v4198 = vand.u32 2147483647, %v4182
        %v4199 = vand.u32 2147483647, %v4183
        %v4200 = vmul.f32 %v4184, 0.3275911
        %v4201 = vmul.f32 %v4185, 0.3275911
        %v4202 = vmul.f32 %v4186, 0.3275911
        %v4203 = vmul.f32 %v4187, 0.3275911
        %v4204 = vmul.f32 %v4188, 0.3275911
        %v4205 = vmul.f32 %v4189, 0.3275911
        %v4206 = vmul.f32 %v4190, 0.3275911
        %v4207 = vmul.f32 %v4191, 0.3275911
        %v4208 = vmul.f32 %v4192, 0.3275911
        %v4209 = vmul.f32 %v4193, 0.3275911
        %v4210 = vmul.f32 %v4194, 0.3275911
        %v4211 = vmul.f32 %v4195, 0.3275911
        %v4212 = vmul.f32 %v4196, 0.3275911
        %v4213 = vmul.f32 %v4197, 0.3275911
        %v4214 = vmul.f32 %v4198, 0.3275911
        %v4215 = vmul.f32 %v4199, 0.3275911
        %v4216 = vadd.f32 %v4200, 1.0
        %v4217 = vadd.f32 %v4201, 1.0
        %v4218 = vadd.f32 %v4202, 1.0
        %v4219 = vadd.f32 %v4203, 1.0
        %v4220 = vadd.f32 %v4204, 1.0
        %v4221 = vadd.f32 %v4205, 1.0
        %v4222 = vadd.f32 %v4206, 1.0
        %v4223 = vadd.f32 %v4207, 1.0
        %v4224 = vadd.f32 %v4208, 1.0
        %v4225 = vadd.f32 %v4209, 1.0
        %v4226 = vadd.f32 %v4210, 1.0
        %v4227 = vadd.f32 %v4211, 1.0
        %v4228 = vadd.f32 %v4212, 1.0
        %v4229 = vadd.f32 %v4213, 1.0
        %v4230 = vadd.f32 %v4214, 1.0
        %v4231 = vadd.f32 %v4215, 1.0
        %v4232 = vrcp.pop %v4216
        %v4233 = vmul.f32 1.0, %v4232
        %v4234 = vrcp.pop %v4217
        %v4235 = vmul.f32 1.0, %v4234
        %v4236 = vrcp.pop %v4218
        %v4237 = vmul.f32 1.0, %v4236
        %v4238 = vrcp.pop %v4219
        %v4239 = vmul.f32 1.0, %v4238
        %v4240 = vrcp.pop %v4220
        %v4241 = vmul.f32 1.0, %v4240
        %v4242 = vrcp.pop %v4221
        %v4243 = vmul.f32 1.0, %v4242
        %v4244 = vrcp.pop %v4222
        %v4245 = vmul.f32 1.0, %v4244
        %v4246 = vrcp.pop %v4223
        %v4247 = vmul.f32 1.0, %v4246
        %v4248 = vrcp.pop %v4224
        %v4249 = vmul.f32 1.0, %v4248
        %v4250 = vrcp.pop %v4225
        %v4251 = vmul.f32 1.0, %v4250
        %v4252 = vrcp.pop %v4226
        %v4253 = vmul.f32 1.0, %v4252
        %v4254 = vrcp.pop %v4227
        %v4255 = vmul.f32 1.0, %v4254
        %v4256 = vrcp.pop %v4228
        %v4257 = vmul.f32 1.0, %v4256
        %v4258 = vrcp.pop %v4229
        %v4259 = vmul.f32 1.0, %v4258
        %v4260 = vrcp.pop %v4230
        %v4261 = vmul.f32 1.0, %v4260
        %v4262 = vrcp.pop %v4231
        %v4263 = vmul.f32 1.0, %v4262
        %v4264 = vmul.f32 %v4233, 1.0614054
        %v4265 = vmul.f32 %v4235, 1.0614054
        %v4266 = vmul.f32 %v4237, 1.0614054
        %v4267 = vmul.f32 %v4239, 1.0614054
        %v4268 = vmul.f32 %v4241, 1.0614054
        %v4269 = vmul.f32 %v4243, 1.0614054
        %v4270 = vmul.f32 %v4245, 1.0614054
        %v4271 = vmul.f32 %v4247, 1.0614054
        %v4272 = vmul.f32 %v4249, 1.0614054
        %v4273 = vmul.f32 %v4251, 1.0614054
        %v4274 = vmul.f32 %v4253, 1.0614054
        %v4275 = vmul.f32 %v4255, 1.0614054
        %v4276 = vmul.f32 %v4257, 1.0614054
        %v4277 = vmul.f32 %v4259, 1.0614054
        %v4278 = vmul.f32 %v4261, 1.0614054
        %v4279 = vmul.f32 %v4263, 1.0614054
        %v4280 = vadd.f32 %v4264, -1.4531521
        %v4281 = vadd.f32 %v4265, -1.4531521
        %v4282 = vadd.f32 %v4266, -1.4531521
        %v4283 = vadd.f32 %v4267, -1.4531521
        %v4284 = vadd.f32 %v4268, -1.4531521
        %v4285 = vadd.f32 %v4269, -1.4531521
        %v4286 = vadd.f32 %v4270, -1.4531521
        %v4287 = vadd.f32 %v4271, -1.4531521
        %v4288 = vadd.f32 %v4272, -1.4531521
        %v4289 = vadd.f32 %v4273, -1.4531521
        %v4290 = vadd.f32 %v4274, -1.4531521
        %v4291 = vadd.f32 %v4275, -1.4531521
        %v4292 = vadd.f32 %v4276, -1.4531521
        %v4293 = vadd.f32 %v4277, -1.4531521
        %v4294 = vadd.f32 %v4278, -1.4531521
        %v4295 = vadd.f32 %v4279, -1.4531521
        %v4296 = vmul.f32 %v4280, %v4233
        %v4297 = vmul.f32 %v4281, %v4235
        %v4298 = vmul.f32 %v4282, %v4237
        %v4299 = vmul.f32 %v4283, %v4239
        %v4300 = vmul.f32 %v4284, %v4241
        %v4301 = vmul.f32 %v4285, %v4243
        %v4302 = vmul.f32 %v4286, %v4245
        %v4303 = vmul.f32 %v4287, %v4247
        %v4304 = vmul.f32 %v4288, %v4249
        %v4305 = vmul.f32 %v4289, %v4251
        %v4306 = vmul.f32 %v4290, %v4253
        %v4307 = vmul.f32 %v4291, %v4255
        %v4308 = vmul.f32 %v4292, %v4257
        %v4309 = vmul.f32 %v4293, %v4259
        %v4310 = vmul.f32 %v4294, %v4261
        %v4311 = vmul.f32 %v4295, %v4263
        %v4312 = vadd.f32 %v4296, 1.4214138
        %v4313 = vadd.f32 %v4297, 1.4214138
        %v4314 = vadd.f32 %v4298, 1.4214138
        %v4315 = vadd.f32 %v4299, 1.4214138
        %v4316 = vadd.f32 %v4300, 1.4214138
        %v4317 = vadd.f32 %v4301, 1.4214138
        %v4318 = vadd.f32 %v4302, 1.4214138
        %v4319 = vadd.f32 %v4303, 1.4214138
        %v4320 = vadd.f32 %v4304, 1.4214138
        %v4321 = vadd.f32 %v4305, 1.4214138
        %v4322 = vadd.f32 %v4306, 1.4214138
        %v4323 = vadd.f32 %v4307, 1.4214138
        %v4324 = vadd.f32 %v4308, 1.4214138
        %v4325 = vadd.f32 %v4309, 1.4214138
        %v4326 = vadd.f32 %v4310, 1.4214138
        %v4327 = vadd.f32 %v4311, 1.4214138
        %v4328 = vmul.f32 %v4312, %v4233
        %v4329 = vmul.f32 %v4313, %v4235
        %v4330 = vmul.f32 %v4314, %v4237
        %v4331 = vmul.f32 %v4315, %v4239
        %v4332 = vmul.f32 %v4316, %v4241
        %v4333 = vmul.f32 %v4317, %v4243
        %v4334 = vmul.f32 %v4318, %v4245
        %v4335 = vmul.f32 %v4319, %v4247
        %v4336 = vmul.f32 %v4320, %v4249
        %v4337 = vmul.f32 %v4321, %v4251
        %v4338 = vmul.f32 %v4322, %v4253
        %v4339 = vmul.f32 %v4323, %v4255
        %v4340 = vmul.f32 %v4324, %v4257
        %v4341 = vmul.f32 %v4325, %v4259
        %v4342 = vmul.f32 %v4326, %v4261
        %v4343 = vmul.f32 %v4327, %v4263
        %v4344 = vadd.f32 %v4328, -0.28449672
        %v4345 = vadd.f32 %v4329, -0.28449672
        %v4346 = vadd.f32 %v4330, -0.28449672
        %v4347 = vadd.f32 %v4331, -0.28449672
        %v4348 = vadd.f32 %v4332, -0.28449672
        %v4349 = vadd.f32 %v4333, -0.28449672
        %v4350 = vadd.f32 %v4334, -0.28449672
        %v4351 = vadd.f32 %v4335, -0.28449672
        %v4352 = vadd.f32 %v4336, -0.28449672
        %v4353 = vadd.f32 %v4337, -0.28449672
        %v4354 = vadd.f32 %v4338, -0.28449672
        %v4355 = vadd.f32 %v4339, -0.28449672
        %v4356 = vadd.f32 %v4340, -0.28449672
        %v4357 = vadd.f32 %v4341, -0.28449672
        %v4358 = vadd.f32 %v4342, -0.28449672
        %v4359 = vadd.f32 %v4343, -0.28449672
        %v4360 = vmul.f32 %v4344, %v4233
        %v4361 = vmul.f32 %v4345, %v4235
        %v4362 = vmul.f32 %v4346, %v4237
        %v4363 = vmul.f32 %v4347, %v4239
        %v4364 = vmul.f32 %v4348, %v4241
        %v4365 = vmul.f32 %v4349, %v4243
        %v4366 = vmul.f32 %v4350, %v4245
        %v4367 = vmul.f32 %v4351, %v4247
        %v4368 = vmul.f32 %v4352, %v4249
        %v4369 = vmul.f32 %v4353, %v4251
        %v4370 = vmul.f32 %v4354, %v4253
        %v4371 = vmul.f32 %v4355, %v4255
        %v4372 = vmul.f32 %v4356, %v4257
        %v4373 = vmul.f32 %v4357, %v4259
        %v4374 = vmul.f32 %v4358, %v4261
        %v4375 = vmul.f32 %v4359, %v4263
        %v4376 = vadd.f32 %v4360, 0.2548296
        %v4377 = vadd.f32 %v4361, 0.2548296
        %v4378 = vadd.f32 %v4362, 0.2548296
        %v4379 = vadd.f32 %v4363, 0.2548296
        %v4380 = vadd.f32 %v4364, 0.2548296
        %v4381 = vadd.f32 %v4365, 0.2548296
        %v4382 = vadd.f32 %v4366, 0.2548296
        %v4383 = vadd.f32 %v4367, 0.2548296
        %v4384 = vadd.f32 %v4368, 0.2548296
        %v4385 = vadd.f32 %v4369, 0.2548296
        %v4386 = vadd.f32 %v4370, 0.2548296
        %v4387 = vadd.f32 %v4371, 0.2548296
        %v4388 = vadd.f32 %v4372, 0.2548296
        %v4389 = vadd.f32 %v4373, 0.2548296
        %v4390 = vadd.f32 %v4374, 0.2548296
        %v4391 = vadd.f32 %v4375, 0.2548296
        %v4392 = vmul.f32 %v4376, %v4233
        %v4393 = vmul.f32 %v4377, %v4235
        %v4394 = vmul.f32 %v4378, %v4237
        %v4395 = vmul.f32 %v4379, %v4239
        %v4396 = vmul.f32 %v4380, %v4241
        %v4397 = vmul.f32 %v4381, %v4243
        %v4398 = vmul.f32 %v4382, %v4245
        %v4399 = vmul.f32 %v4383, %v4247
        %v4400 = vmul.f32 %v4384, %v4249
        %v4401 = vmul.f32 %v4385, %v4251
        %v4402 = vmul.f32 %v4386, %v4253
        %v4403 = vmul.f32 %v4387, %v4255
        %v4404 = vmul.f32 %v4388, %v4257
        %v4405 = vmul.f32 %v4389, %v4259
        %v4406 = vmul.f32 %v4390, %v4261
        %v4407 = vmul.f32 %v4391, %v4263
        %v4408 = vsub.f32 0.0, %v4184
        %v4409 = vsub.f32 0.0, %v4185
        %v4410 = vsub.f32 0.0, %v4186
        %v4411 = vsub.f32 0.0, %v4187
        %v4412 = vsub.f32 0.0, %v4188
        %v4413 = vsub.f32 0.0, %v4189
        %v4414 = vsub.f32 0.0, %v4190
        %v4415 = vsub.f32 0.0, %v4191
        %v4416 = vsub.f32 0.0, %v4192
        %v4417 = vsub.f32 0.0, %v4193
        %v4418 = vsub.f32 0.0, %v4194
        %v4419 = vsub.f32 0.0, %v4195
        %v4420 = vsub.f32 0.0, %v4196
        %v4421 = vsub.f32 0.0, %v4197
        %v4422 = vsub.f32 0.0, %v4198
        %v4423 = vsub.f32 0.0, %v4199
        %v4424 = vmul.f32 %v4408, %v4184
        %v4425 = vmul.f32 %v4409, %v4185
        %v4426 = vmul.f32 %v4410, %v4186
        %v4427 = vmul.f32 %v4411, %v4187
        %v4428 = vmul.f32 %v4412, %v4188
        %v4429 = vmul.f32 %v4413, %v4189
        %v4430 = vmul.f32 %v4414, %v4190
        %v4431 = vmul.f32 %v4415, %v4191
        %v4432 = vmul.f32 %v4416, %v4192
        %v4433 = vmul.f32 %v4417, %v4193
        %v4434 = vmul.f32 %v4418, %v4194
        %v4435 = vmul.f32 %v4419, %v4195
        %v4436 = vmul.f32 %v4420, %v4196
        %v4437 = vmul.f32 %v4421, %v4197
        %v4438 = vmul.f32 %v4422, %v4198
        %v4439 = vmul.f32 %v4423, %v4199
        %v4440 = vmul.f32 %v4424, 1.442695
        %v4441 = vpow.pop %v4440
        %v4442 = vmul.f32 %v4425, 1.442695
        %v4443 = vpow.pop %v4442
        %v4444 = vmul.f32 %v4426, 1.442695
        %v4445 = vpow.pop %v4444
        %v4446 = vmul.f32 %v4427, 1.442695
        %v4447 = vpow.pop %v4446
        %v4448 = vmul.f32 %v4428, 1.442695
        %v4449 = vpow.pop %v4448
        %v4450 = vmul.f32 %v4429, 1.442695
        %v4451 = vpow.pop %v4450
        %v4452 = vmul.f32 %v4430, 1.442695
        %v4453 = vpow.pop %v4452
        %v4454 = vmul.f32 %v4431, 1.442695
        %v4455 = vpow.pop %v4454
        %v4456 = vmul.f32 %v4432, 1.442695
        %v4457 = vpow.pop %v4456
        %v4458 = vmul.f32 %v4433, 1.442695
        %v4459 = vpow.pop %v4458
        %v4460 = vmul.f32 %v4434, 1.442695
        %v4461 = vpow.pop %v4460
        %v4462 = vmul.f32 %v4435, 1.442695
        %v4463 = vpow.pop %v4462
        %v4464 = vmul.f32 %v4436, 1.442695
        %v4465 = vpow.pop %v4464
        %v4466 = vmul.f32 %v4437, 1.442695
        %v4467 = vpow.pop %v4466
        %v4468 = vmul.f32 %v4438, 1.442695
        %v4469 = vpow.pop %v4468
        %v4470 = vmul.f32 %v4439, 1.442695
        %v4471 = vpow.pop %v4470
        %v4472 = vmul.f32 %v4392, %v4441
        %v4473 = vmul.f32 %v4393, %v4443
        %v4474 = vmul.f32 %v4394, %v4445
        %v4475 = vmul.f32 %v4395, %v4447
        %v4476 = vmul.f32 %v4396, %v4449
        %v4477 = vmul.f32 %v4397, %v4451
        %v4478 = vmul.f32 %v4398, %v4453
        %v4479 = vmul.f32 %v4399, %v4455
        %v4480 = vmul.f32 %v4400, %v4457
        %v4481 = vmul.f32 %v4401, %v4459
        %v4482 = vmul.f32 %v4402, %v4461
        %v4483 = vmul.f32 %v4403, %v4463
        %v4484 = vmul.f32 %v4404, %v4465
        %v4485 = vmul.f32 %v4405, %v4467
        %v4486 = vmul.f32 %v4406, %v4469
        %v4487 = vmul.f32 %v4407, %v4471
        %v4488 = vsub.f32 1.0, %v4472
        %v4489 = vsub.f32 1.0, %v4473
        %v4490 = vsub.f32 1.0, %v4474
        %v4491 = vsub.f32 1.0, %v4475
        %v4492 = vsub.f32 1.0, %v4476
        %v4493 = vsub.f32 1.0, %v4477
        %v4494 = vsub.f32 1.0, %v4478
        %v4495 = vsub.f32 1.0, %v4479
        %v4496 = vsub.f32 1.0, %v4480
        %v4497 = vsub.f32 1.0, %v4481
        %v4498 = vsub.f32 1.0, %v4482
        %v4499 = vsub.f32 1.0, %v4483
        %v4500 = vsub.f32 1.0, %v4484
        %v4501 = vsub.f32 1.0, %v4485
        %v4502 = vsub.f32 1.0, %v4486
        %v4503 = vsub.f32 1.0, %v4487
        %vm4504 = vcmp.ge.f32.partialorder %v4168, 0.0
        %vm4505 = vcmp.ge.f32.partialorder %v4169, 0.0
        %vm4506 = vcmp.ge.f32.partialorder %v4170, 0.0
        %vm4507 = vcmp.ge.f32.partialorder %v4171, 0.0
        %vm4508 = vcmp.ge.f32.partialorder %v4172, 0.0
        %vm4509 = vcmp.ge.f32.partialorder %v4173, 0.0
        %vm4510 = vcmp.ge.f32.partialorder %v4174, 0.0
        %vm4511 = vcmp.ge.f32.partialorder %v4175, 0.0
        %vm4512 = vcmp.ge.f32.partialorder %v4176, 0.0
        %vm4513 = vcmp.ge.f32.partialorder %v4177, 0.0
        %vm4514 = vcmp.ge.f32.partialorder %v4178, 0.0
        %vm4515 = vcmp.ge.f32.partialorder %v4179, 0.0
        %vm4516 = vcmp.ge.f32.partialorder %v4180, 0.0
        %vm4517 = vcmp.ge.f32.partialorder %v4181, 0.0
        %vm4518 = vcmp.ge.f32.partialorder %v4182, 0.0
        %vm4519 = vcmp.ge.f32.partialorder %v4183, 0.0
        %v4520 = vsub.f32 0.0, %v4488
        %v4521 = vsub.f32 0.0, %v4489
        %v4522 = vsub.f32 0.0, %v4490
        %v4523 = vsub.f32 0.0, %v4491
        %v4524 = vsub.f32 0.0, %v4492
        %v4525 = vsub.f32 0.0, %v4493
        %v4526 = vsub.f32 0.0, %v4494
        %v4527 = vsub.f32 0.0, %v4495
        %v4528 = vsub.f32 0.0, %v4496
        %v4529 = vsub.f32 0.0, %v4497
        %v4530 = vsub.f32 0.0, %v4498
        %v4531 = vsub.f32 0.0, %v4499
        %v4532 = vsub.f32 0.0, %v4500
        %v4533 = vsub.f32 0.0, %v4501
        %v4534 = vsub.f32 0.0, %v4502
        %v4535 = vsub.f32 0.0, %v4503
        %v4536 = vsel %vm4504, %v4488, %v4520
        %v4537 = vsel %vm4505, %v4489, %v4521
        %v4538 = vsel %vm4506, %v4490, %v4522
        %v4539 = vsel %vm4507, %v4491, %v4523
        %v4540 = vsel %vm4508, %v4492, %v4524
        %v4541 = vsel %vm4509, %v4493, %v4525
        %v4542 = vsel %vm4510, %v4494, %v4526
        %v4543 = vsel %vm4511, %v4495, %v4527
        %v4544 = vsel %vm4512, %v4496, %v4528
        %v4545 = vsel %vm4513, %v4497, %v4529
        %v4546 = vsel %vm4514, %v4498, %v4530
        %v4547 = vsel %vm4515, %v4499, %v4531
        %v4548 = vsel %vm4516, %v4500, %v4532
        %v4549 = vsel %vm4517, %v4501, %v4533
        %v4550 = vsel %vm4518, %v4502, %v4534
        %v4551 = vsel %vm4519, %v4503, %v4535
        %v4552 = vadd.f32 %v4536, 1.0
        %v4553 = vadd.f32 %v4537, 1.0
        %v4554 = vadd.f32 %v4538, 1.0
        %v4555 = vadd.f32 %v4539, 1.0
        %v4556 = vadd.f32 %v4540, 1.0
        %v4557 = vadd.f32 %v4541, 1.0
        %v4558 = vadd.f32 %v4542, 1.0
        %v4559 = vadd.f32 %v4543, 1.0
        %v4560 = vadd.f32 %v4544, 1.0
        %v4561 = vadd.f32 %v4545, 1.0
        %v4562 = vadd.f32 %v4546, 1.0
        %v4563 = vadd.f32 %v4547, 1.0
        %v4564 = vadd.f32 %v4548, 1.0
        %v4565 = vadd.f32 %v4549, 1.0
        %v4566 = vadd.f32 %v4550, 1.0
        %v4567 = vadd.f32 %v4551, 1.0
        %v4568 = vmul.f32 %v4152, %v4552
        %v4569 = vmul.f32 %v4153, %v4553
        %v4570 = vmul.f32 %v4154, %v4554
        %v4571 = vmul.f32 %v4155, %v4555
        %v4572 = vmul.f32 %v4156, %v4556
        %v4573 = vmul.f32 %v4157, %v4557
        %v4574 = vmul.f32 %v4158, %v4558
        %v4575 = vmul.f32 %v4159, %v4559
        %v4576 = vmul.f32 %v4160, %v4560
        %v4577 = vmul.f32 %v4161, %v4561
        %v4578 = vmul.f32 %v4162, %v4562
        %v4579 = vmul.f32 %v4163, %v4563
        %v4580 = vmul.f32 %v4164, %v4564
        %v4581 = vmul.f32 %v4165, %v4565
        %v4582 = vmul.f32 %v4166, %v4566
        %v4583 = vmul.f32 %v4167, %v4567
        %v4584 = vpack.c.bf16 %v4576, %v4568
        %v4585 = vpack.c.bf16 %v4577, %v4569
        %v4586 = vpack.c.bf16 %v4578, %v4570
        %v4587 = vpack.c.bf16 %v4579, %v4571
        %v4588 = vpack.c.bf16 %v4580, %v4572
        %v4589 = vpack.c.bf16 %v4581, %v4573
        %v4590 = vpack.c.bf16 %v4582, %v4574
        %v4591 = vpack.c.bf16 %v4583, %v4575
        %v4592 = vld [vmem:[%s893] sm:$0xff]
        %v4593 = vld [vmem:[%s893 + $0x8] sm:$0xff]
        %v4594 = vld [vmem:[%s893 + $0x10] sm:$0xff]
        %v4595 = vld [vmem:[%s893 + $0x18] sm:$0xff]
        %v4596 = vld [vmem:[%s893 + $0x20] sm:$0xff]
        %v4597 = vld [vmem:[%s893 + $0x28] sm:$0xff]
        %v4598 = vld [vmem:[%s893 + $0x30] sm:$0xff]
        %v4599 = vld [vmem:[%s893 + $0x38] sm:$0xff]
        %v4600 = vld [vmem:[%s893 + $0x40] sm:$0xff]
        %v4601 = vld [vmem:[%s893 + $0x48] sm:$0xff]
        %v4602 = vld [vmem:[%s893 + $0x50] sm:$0xff]
        %v4603 = vld [vmem:[%s893 + $0x58] sm:$0xff]
        %v4604 = vld [vmem:[%s893 + $0x60] sm:$0xff]
        %v4605 = vld [vmem:[%s893 + $0x68] sm:$0xff]
        %v4606 = vld [vmem:[%s893 + $0x70] sm:$0xff]
        %v4607 = vld [vmem:[%s893 + $0x78] sm:$0xff]
        %v4608 = vld [vmem:[%s893 + $0x80] sm:$0xff]
        %v4609 = vld [vmem:[%s893 + $0x88] sm:$0xff]
        %v4610 = vld [vmem:[%s893 + $0x90] sm:$0xff]
        %v4611 = vld [vmem:[%s893 + $0x98] sm:$0xff]
        %v4612 = vld [vmem:[%s893 + $0xa0] sm:$0xff]
        %v4613 = vld [vmem:[%s893 + $0xa8] sm:$0xff]
        %v4614 = vld [vmem:[%s893 + $0xb0] sm:$0xff]
        %v4615 = vld [vmem:[%s893 + $0xb8] sm:$0xff]
        %v4616 = vld [vmem:[%s893 + $0xc0] sm:$0xff]
        %v4617 = vld [vmem:[%s893 + $0xc8] sm:$0xff]
        %v4618 = vld [vmem:[%s893 + $0xd0] sm:$0xff]
        %v4619 = vld [vmem:[%s893 + $0xd8] sm:$0xff]
        %v4620 = vld [vmem:[%s893 + $0xe0] sm:$0xff]
        %v4621 = vld [vmem:[%s893 + $0xe8] sm:$0xff]
        %v4622 = vld [vmem:[%s893 + $0xf0] sm:$0xff]
        %v4623 = vld [vmem:[%s893 + $0xf8] sm:$0xff]
        %v4624 = vld [vmem:[%s893 + $0x100] sm:$0xff]
        %v4625 = vld [vmem:[%s893 + $0x108] sm:$0xff]
        %v4626 = vld [vmem:[%s893 + $0x110] sm:$0xff]
        %v4627 = vld [vmem:[%s893 + $0x118] sm:$0xff]
        %v4628 = vld [vmem:[%s893 + $0x120] sm:$0xff]
        %v4629 = vld [vmem:[%s893 + $0x128] sm:$0xff]
        %v4630 = vld [vmem:[%s893 + $0x130] sm:$0xff]
        %v4631 = vld [vmem:[%s893 + $0x138] sm:$0xff]
        %v4632 = vld [vmem:[%s893 + $0x140] sm:$0xff]
        %v4633 = vld [vmem:[%s893 + $0x148] sm:$0xff]
        %v4634 = vld [vmem:[%s893 + $0x150] sm:$0xff]
        %v4635 = vld [vmem:[%s893 + $0x158] sm:$0xff]
        %v4636 = vld [vmem:[%s893 + $0x160] sm:$0xff]
        %v4637 = vld [vmem:[%s893 + $0x168] sm:$0xff]
        %v4638 = vld [vmem:[%s893 + $0x170] sm:$0xff]
        %v4639 = vld [vmem:[%s893 + $0x178] sm:$0xff]
        %v4640 = vld [vmem:[%s893 + $0x180] sm:$0xff]
        %v4641 = vld [vmem:[%s893 + $0x188] sm:$0xff]
        %v4642 = vld [vmem:[%s893 + $0x190] sm:$0xff]
        %v4643 = vld [vmem:[%s893 + $0x198] sm:$0xff]
        %v4644 = vld [vmem:[%s893 + $0x1a0] sm:$0xff]
        %v4645 = vld [vmem:[%s893 + $0x1a8] sm:$0xff]
        %v4646 = vld [vmem:[%s893 + $0x1b0] sm:$0xff]
        %v4647 = vld [vmem:[%s893 + $0x1b8] sm:$0xff]
        %v4648 = vld [vmem:[%s893 + $0x1c0] sm:$0xff]
        %v4649 = vld [vmem:[%s893 + $0x1c8] sm:$0xff]
        %v4650 = vld [vmem:[%s893 + $0x1d0] sm:$0xff]
        %v4651 = vld [vmem:[%s893 + $0x1d8] sm:$0xff]
        %v4652 = vld [vmem:[%s893 + $0x1e0] sm:$0xff]
        %v4653 = vld [vmem:[%s893 + $0x1e8] sm:$0xff]
        %v4654 = vld [vmem:[%s893 + $0x1f0] sm:$0xff]
        %v4655 = vld [vmem:[%s893 + $0x1f8] sm:$0xff]
        %v4656 = vld [vmem:[%s893 + $0x200] sm:$0xff]
        %v4657 = vld [vmem:[%s893 + $0x208] sm:$0xff]
        %v4658 = vld [vmem:[%s893 + $0x210] sm:$0xff]
        %v4659 = vld [vmem:[%s893 + $0x218] sm:$0xff]
        %v4660 = vld [vmem:[%s893 + $0x220] sm:$0xff]
        %v4661 = vld [vmem:[%s893 + $0x228] sm:$0xff]
        %v4662 = vld [vmem:[%s893 + $0x230] sm:$0xff]
        %v4663 = vld [vmem:[%s893 + $0x238] sm:$0xff]
        %v4664 = vld [vmem:[%s893 + $0x240] sm:$0xff]
        %v4665 = vld [vmem:[%s893 + $0x248] sm:$0xff]
        %v4666 = vld [vmem:[%s893 + $0x250] sm:$0xff]
        %v4667 = vld [vmem:[%s893 + $0x258] sm:$0xff]
        %v4668 = vld [vmem:[%s893 + $0x260] sm:$0xff]
        %v4669 = vld [vmem:[%s893 + $0x268] sm:$0xff]
        %v4670 = vld [vmem:[%s893 + $0x270] sm:$0xff]
        %v4671 = vld [vmem:[%s893 + $0x278] sm:$0xff]
        %v4672 = vld [vmem:[%s893 + $0x280] sm:$0xff]
        %v4673 = vld [vmem:[%s893 + $0x288] sm:$0xff]
        %v4674 = vld [vmem:[%s893 + $0x290] sm:$0xff]
        %v4675 = vld [vmem:[%s893 + $0x298] sm:$0xff]
        %v4676 = vld [vmem:[%s893 + $0x2a0] sm:$0xff]
        %v4677 = vld [vmem:[%s893 + $0x2a8] sm:$0xff]
        %v4678 = vld [vmem:[%s893 + $0x2b0] sm:$0xff]
        %v4679 = vld [vmem:[%s893 + $0x2b8] sm:$0xff]
        %v4680 = vld [vmem:[%s893 + $0x2c0] sm:$0xff]
        %v4681 = vld [vmem:[%s893 + $0x2c8] sm:$0xff]
        %v4682 = vld [vmem:[%s893 + $0x2d0] sm:$0xff]
        %v4683 = vld [vmem:[%s893 + $0x2d8] sm:$0xff]
        %v4684 = vld [vmem:[%s893 + $0x2e0] sm:$0xff]
        %v4685 = vld [vmem:[%s893 + $0x2e8] sm:$0xff]
        %v4686 = vld [vmem:[%s893 + $0x2f0] sm:$0xff]
        %v4687 = vld [vmem:[%s893 + $0x2f8] sm:$0xff]
        %v4688 = vld [vmem:[%s893 + $0x300] sm:$0xff]
        %v4689 = vld [vmem:[%s893 + $0x308] sm:$0xff]
        %v4690 = vld [vmem:[%s893 + $0x310] sm:$0xff]
        %v4691 = vld [vmem:[%s893 + $0x318] sm:$0xff]
        %v4692 = vld [vmem:[%s893 + $0x320] sm:$0xff]
        %v4693 = vld [vmem:[%s893 + $0x328] sm:$0xff]
        %v4694 = vld [vmem:[%s893 + $0x330] sm:$0xff]
        %v4695 = vld [vmem:[%s893 + $0x338] sm:$0xff]
        %v4696 = vld [vmem:[%s893 + $0x340] sm:$0xff]
        %v4697 = vld [vmem:[%s893 + $0x348] sm:$0xff]
        %v4698 = vld [vmem:[%s893 + $0x350] sm:$0xff]
        %v4699 = vld [vmem:[%s893 + $0x358] sm:$0xff]
        %v4700 = vld [vmem:[%s893 + $0x360] sm:$0xff]
        %v4701 = vld [vmem:[%s893 + $0x368] sm:$0xff]
        %v4702 = vld [vmem:[%s893 + $0x370] sm:$0xff]
        %v4703 = vld [vmem:[%s893 + $0x378] sm:$0xff]
        %v4704 = vld [vmem:[%s893 + $0x380] sm:$0xff]
        %v4705 = vld [vmem:[%s893 + $0x388] sm:$0xff]
        %v4706 = vld [vmem:[%s893 + $0x390] sm:$0xff]
        %v4707 = vld [vmem:[%s893 + $0x398] sm:$0xff]
        %v4708 = vld [vmem:[%s893 + $0x3a0] sm:$0xff]
        %v4709 = vld [vmem:[%s893 + $0x3a8] sm:$0xff]
        %v4710 = vld [vmem:[%s893 + $0x3b0] sm:$0xff]
        %v4711 = vld [vmem:[%s893 + $0x3b8] sm:$0xff]
        %v4712 = vld [vmem:[%s893 + $0x3c0] sm:$0xff]
        %v4713 = vld [vmem:[%s893 + $0x3c8] sm:$0xff]
        %v4714 = vld [vmem:[%s893 + $0x3d0] sm:$0xff]
        %v4715 = vld [vmem:[%s893 + $0x3d8] sm:$0xff]
        %v4716 = vld [vmem:[%s893 + $0x3e0] sm:$0xff]
        %v4717 = vld [vmem:[%s893 + $0x3e8] sm:$0xff]
        %v4718 = vld [vmem:[%s893 + $0x3f0] sm:$0xff]
        %v4719 = vld [vmem:[%s893 + $0x3f8] sm:$0xff]
        %v4848 = vunpack.c.l.b16 %v4592
        %v4849 = vunpack.c.h.b16 %v4592
        %v4850 = vunpack.c.l.b16 %v4593
        %v4851 = vunpack.c.h.b16 %v4593
        %v4852 = vunpack.c.l.b16 %v4594
        %v4853 = vunpack.c.h.b16 %v4594
        %v4854 = vunpack.c.l.b16 %v4595
        %v4855 = vunpack.c.h.b16 %v4595
        %v4856 = vunpack.c.l.b16 %v4596
        %v4857 = vunpack.c.h.b16 %v4596
        %v4858 = vunpack.c.l.b16 %v4597
        %v4859 = vunpack.c.h.b16 %v4597
        %v4860 = vunpack.c.l.b16 %v4598
        %v4861 = vunpack.c.h.b16 %v4598
        %v4862 = vunpack.c.l.b16 %v4599
        %v4863 = vunpack.c.h.b16 %v4599
        %v4864 = vunpack.c.l.b16 %v4600
        %v4865 = vunpack.c.h.b16 %v4600
        %v4866 = vunpack.c.l.b16 %v4601
        %v4867 = vunpack.c.h.b16 %v4601
        %v4868 = vunpack.c.l.b16 %v4602
        %v4869 = vunpack.c.h.b16 %v4602
        %v4870 = vunpack.c.l.b16 %v4603
        %v4871 = vunpack.c.h.b16 %v4603
        %v4872 = vunpack.c.l.b16 %v4604
        %v4873 = vunpack.c.h.b16 %v4604
        %v4874 = vunpack.c.l.b16 %v4605
        %v4875 = vunpack.c.h.b16 %v4605
        %v4876 = vunpack.c.l.b16 %v4606
        %v4877 = vunpack.c.h.b16 %v4606
        %v4878 = vunpack.c.l.b16 %v4607
        %v4879 = vunpack.c.h.b16 %v4607
        %v4880 = vunpack.c.l.b16 %v4608
        %v4881 = vunpack.c.h.b16 %v4608
        %v4882 = vunpack.c.l.b16 %v4609
        %v4883 = vunpack.c.h.b16 %v4609
        %v4884 = vunpack.c.l.b16 %v4610
        %v4885 = vunpack.c.h.b16 %v4610
        %v4886 = vunpack.c.l.b16 %v4611
        %v4887 = vunpack.c.h.b16 %v4611
        %v4888 = vunpack.c.l.b16 %v4612
        %v4889 = vunpack.c.h.b16 %v4612
        %v4890 = vunpack.c.l.b16 %v4613
        %v4891 = vunpack.c.h.b16 %v4613
        %v4892 = vunpack.c.l.b16 %v4614
        %v4893 = vunpack.c.h.b16 %v4614
        %v4894 = vunpack.c.l.b16 %v4615
        %v4895 = vunpack.c.h.b16 %v4615
        %v4896 = vunpack.c.l.b16 %v4616
        %v4897 = vunpack.c.h.b16 %v4616
        %v4898 = vunpack.c.l.b16 %v4617
        %v4899 = vunpack.c.h.b16 %v4617
        %v4900 = vunpack.c.l.b16 %v4618
        %v4901 = vunpack.c.h.b16 %v4618
        %v4902 = vunpack.c.l.b16 %v4619
        %v4903 = vunpack.c.h.b16 %v4619
        %v4904 = vunpack.c.l.b16 %v4620
        %v4905 = vunpack.c.h.b16 %v4620
        %v4906 = vunpack.c.l.b16 %v4621
        %v4907 = vunpack.c.h.b16 %v4621
        %v4908 = vunpack.c.l.b16 %v4622
        %v4909 = vunpack.c.h.b16 %v4622
        %v4910 = vunpack.c.l.b16 %v4623
        %v4911 = vunpack.c.h.b16 %v4623
        %v4912 = vunpack.c.l.b16 %v4624
        %v4913 = vunpack.c.h.b16 %v4624
        %v4914 = vunpack.c.l.b16 %v4625
        %v4915 = vunpack.c.h.b16 %v4625
        %v4916 = vunpack.c.l.b16 %v4626
        %v4917 = vunpack.c.h.b16 %v4626
        %v4918 = vunpack.c.l.b16 %v4627
        %v4919 = vunpack.c.h.b16 %v4627
        %v4920 = vunpack.c.l.b16 %v4628
        %v4921 = vunpack.c.h.b16 %v4628
        %v4922 = vunpack.c.l.b16 %v4629
        %v4923 = vunpack.c.h.b16 %v4629
        %v4924 = vunpack.c.l.b16 %v4630
        %v4925 = vunpack.c.h.b16 %v4630
        %v4926 = vunpack.c.l.b16 %v4631
        %v4927 = vunpack.c.h.b16 %v4631
        %v4928 = vunpack.c.l.b16 %v4632
        %v4929 = vunpack.c.h.b16 %v4632
        %v4930 = vunpack.c.l.b16 %v4633
        %v4931 = vunpack.c.h.b16 %v4633
        %v4932 = vunpack.c.l.b16 %v4634
        %v4933 = vunpack.c.h.b16 %v4634
        %v4934 = vunpack.c.l.b16 %v4635
        %v4935 = vunpack.c.h.b16 %v4635
        %v4936 = vunpack.c.l.b16 %v4636
        %v4937 = vunpack.c.h.b16 %v4636
        %v4938 = vunpack.c.l.b16 %v4637
        %v4939 = vunpack.c.h.b16 %v4637
        %v4940 = vunpack.c.l.b16 %v4638
        %v4941 = vunpack.c.h.b16 %v4638
        %v4942 = vunpack.c.l.b16 %v4639
        %v4943 = vunpack.c.h.b16 %v4639
        %v4944 = vunpack.c.l.b16 %v4640
        %v4945 = vunpack.c.h.b16 %v4640
        %v4946 = vunpack.c.l.b16 %v4641
        %v4947 = vunpack.c.h.b16 %v4641
        %v4948 = vunpack.c.l.b16 %v4642
        %v4949 = vunpack.c.h.b16 %v4642
        %v4950 = vunpack.c.l.b16 %v4643
        %v4951 = vunpack.c.h.b16 %v4643
        %v4952 = vunpack.c.l.b16 %v4644
        %v4953 = vunpack.c.h.b16 %v4644
        %v4954 = vunpack.c.l.b16 %v4645
        %v4955 = vunpack.c.h.b16 %v4645
        %v4956 = vunpack.c.l.b16 %v4646
        %v4957 = vunpack.c.h.b16 %v4646
        %v4958 = vunpack.c.l.b16 %v4647
        %v4959 = vunpack.c.h.b16 %v4647
        %v4960 = vunpack.c.l.b16 %v4648
        %v4961 = vunpack.c.h.b16 %v4648
        %v4962 = vunpack.c.l.b16 %v4649
        %v4963 = vunpack.c.h.b16 %v4649
        %v4964 = vunpack.c.l.b16 %v4650
        %v4965 = vunpack.c.h.b16 %v4650
        %v4966 = vunpack.c.l.b16 %v4651
        %v4967 = vunpack.c.h.b16 %v4651
        %v4968 = vunpack.c.l.b16 %v4652
        %v4969 = vunpack.c.h.b16 %v4652
        %v4970 = vunpack.c.l.b16 %v4653
        %v4971 = vunpack.c.h.b16 %v4653
        %v4972 = vunpack.c.l.b16 %v4654
        %v4973 = vunpack.c.h.b16 %v4654
        %v4974 = vunpack.c.l.b16 %v4655
        %v4975 = vunpack.c.h.b16 %v4655
        %v4976 = vunpack.c.l.b16 %v4656
        %v4977 = vunpack.c.h.b16 %v4656
        %v4978 = vunpack.c.l.b16 %v4657
        %v4979 = vunpack.c.h.b16 %v4657
        %v4980 = vunpack.c.l.b16 %v4658
        %v4981 = vunpack.c.h.b16 %v4658
        %v4982 = vunpack.c.l.b16 %v4659
        %v4983 = vunpack.c.h.b16 %v4659
        %v4984 = vunpack.c.l.b16 %v4660
        %v4985 = vunpack.c.h.b16 %v4660
        %v4986 = vunpack.c.l.b16 %v4661
        %v4987 = vunpack.c.h.b16 %v4661
        %v4988 = vunpack.c.l.b16 %v4662
        %v4989 = vunpack.c.h.b16 %v4662
        %v4990 = vunpack.c.l.b16 %v4663
        %v4991 = vunpack.c.h.b16 %v4663
        %v4992 = vunpack.c.l.b16 %v4664
        %v4993 = vunpack.c.h.b16 %v4664
        %v4994 = vunpack.c.l.b16 %v4665
        %v4995 = vunpack.c.h.b16 %v4665
        %v4996 = vunpack.c.l.b16 %v4666
        %v4997 = vunpack.c.h.b16 %v4666
        %v4998 = vunpack.c.l.b16 %v4667
        %v4999 = vunpack.c.h.b16 %v4667
        %v5000 = vunpack.c.l.b16 %v4668
        %v5001 = vunpack.c.h.b16 %v4668
        %v5002 = vunpack.c.l.b16 %v4669
        %v5003 = vunpack.c.h.b16 %v4669
        %v5004 = vunpack.c.l.b16 %v4670
        %v5005 = vunpack.c.h.b16 %v4670
        %v5006 = vunpack.c.l.b16 %v4671
        %v5007 = vunpack.c.h.b16 %v4671
        %v5008 = vunpack.c.l.b16 %v4672
        %v5009 = vunpack.c.h.b16 %v4672
        %v5010 = vunpack.c.l.b16 %v4673
        %v5011 = vunpack.c.h.b16 %v4673
        %v5012 = vunpack.c.l.b16 %v4674
        %v5013 = vunpack.c.h.b16 %v4674
        %v5014 = vunpack.c.l.b16 %v4675
        %v5015 = vunpack.c.h.b16 %v4675
        %v5016 = vunpack.c.l.b16 %v4676
        %v5017 = vunpack.c.h.b16 %v4676
        %v5018 = vunpack.c.l.b16 %v4677
        %v5019 = vunpack.c.h.b16 %v4677
        %v5020 = vunpack.c.l.b16 %v4678
        %v5021 = vunpack.c.h.b16 %v4678
        %v5022 = vunpack.c.l.b16 %v4679
        %v5023 = vunpack.c.h.b16 %v4679
        %v5024 = vunpack.c.l.b16 %v4680
        %v5025 = vunpack.c.h.b16 %v4680
        %v5026 = vunpack.c.l.b16 %v4681
        %v5027 = vunpack.c.h.b16 %v4681
        %v5028 = vunpack.c.l.b16 %v4682
        %v5029 = vunpack.c.h.b16 %v4682
        %v5030 = vunpack.c.l.b16 %v4683
        %v5031 = vunpack.c.h.b16 %v4683
        %v5032 = vunpack.c.l.b16 %v4684
        %v5033 = vunpack.c.h.b16 %v4684
        %v5034 = vunpack.c.l.b16 %v4685
        %v5035 = vunpack.c.h.b16 %v4685
        %v5036 = vunpack.c.l.b16 %v4686
        %v5037 = vunpack.c.h.b16 %v4686
        %v5038 = vunpack.c.l.b16 %v4687
        %v5039 = vunpack.c.h.b16 %v4687
        %v5040 = vunpack.c.l.b16 %v4688
        %v5041 = vunpack.c.h.b16 %v4688
        %v5042 = vunpack.c.l.b16 %v4689
        %v5043 = vunpack.c.h.b16 %v4689
        %v5044 = vunpack.c.l.b16 %v4690
        %v5045 = vunpack.c.h.b16 %v4690
        %v5046 = vunpack.c.l.b16 %v4691
        %v5047 = vunpack.c.h.b16 %v4691
        %v5048 = vunpack.c.l.b16 %v4692
        %v5049 = vunpack.c.h.b16 %v4692
        %v5050 = vunpack.c.l.b16 %v4693
        %v5051 = vunpack.c.h.b16 %v4693
        %v5052 = vunpack.c.l.b16 %v4694
        %v5053 = vunpack.c.h.b16 %v4694
        %v5054 = vunpack.c.l.b16 %v4695
        %v5055 = vunpack.c.h.b16 %v4695
        %v5056 = vunpack.c.l.b16 %v4696
        %v5057 = vunpack.c.h.b16 %v4696
        %v5058 = vunpack.c.l.b16 %v4697
        %v5059 = vunpack.c.h.b16 %v4697
        %v5060 = vunpack.c.l.b16 %v4698
        %v5061 = vunpack.c.h.b16 %v4698
        %v5062 = vunpack.c.l.b16 %v4699
        %v5063 = vunpack.c.h.b16 %v4699
        %v5064 = vunpack.c.l.b16 %v4700
        %v5065 = vunpack.c.h.b16 %v4700
        %v5066 = vunpack.c.l.b16 %v4701
        %v5067 = vunpack.c.h.b16 %v4701
        %v5068 = vunpack.c.l.b16 %v4702
        %v5069 = vunpack.c.h.b16 %v4702
        %v5070 = vunpack.c.l.b16 %v4703
        %v5071 = vunpack.c.h.b16 %v4703
        %v5072 = vunpack.c.l.b16 %v4704
        %v5073 = vunpack.c.h.b16 %v4704
        %v5074 = vunpack.c.l.b16 %v4705
        %v5075 = vunpack.c.h.b16 %v4705
        %v5076 = vunpack.c.l.b16 %v4706
        %v5077 = vunpack.c.h.b16 %v4706
        %v5078 = vunpack.c.l.b16 %v4707
        %v5079 = vunpack.c.h.b16 %v4707
        %v5080 = vunpack.c.l.b16 %v4708
        %v5081 = vunpack.c.h.b16 %v4708
        %v5082 = vunpack.c.l.b16 %v4709
        %v5083 = vunpack.c.h.b16 %v4709
        %v5084 = vunpack.c.l.b16 %v4710
        %v5085 = vunpack.c.h.b16 %v4710
        %v5086 = vunpack.c.l.b16 %v4711
        %v5087 = vunpack.c.h.b16 %v4711
        %v5088 = vunpack.c.l.b16 %v4712
        %v5089 = vunpack.c.h.b16 %v4712
        %v5090 = vunpack.c.l.b16 %v4713
        %v5091 = vunpack.c.h.b16 %v4713
        %v5092 = vunpack.c.l.b16 %v4714
        %v5093 = vunpack.c.h.b16 %v4714
        %v5094 = vunpack.c.l.b16 %v4715
        %v5095 = vunpack.c.h.b16 %v4715
        %v5096 = vunpack.c.l.b16 %v4716
        %v5097 = vunpack.c.h.b16 %v4716
        %v5098 = vunpack.c.l.b16 %v4717
        %v5099 = vunpack.c.h.b16 %v4717
        %v5100 = vunpack.c.l.b16 %v4718
        %v5101 = vunpack.c.h.b16 %v4718
        %v5102 = vunpack.c.l.b16 %v4719
        %v5103 = vunpack.c.h.b16 %v4719
        %v5104 = vpack.c.b16 %v4850, %v4848
        %v5105 = vpack.c.b16 %v4851, %v4849
        %v5106 = vpack.c.b16 %v4854, %v4852
        %v5107 = vpack.c.b16 %v4855, %v4853
        %v5108 = vpack.c.b16 %v4858, %v4856
        %v5109 = vpack.c.b16 %v4859, %v4857
        %v5110 = vpack.c.b16 %v4862, %v4860
        %v5111 = vpack.c.b16 %v4863, %v4861
        %v5112 = vpack.c.b16 %v4866, %v4864
        %v5113 = vpack.c.b16 %v4867, %v4865
        %v5114 = vpack.c.b16 %v4870, %v4868
        %v5115 = vpack.c.b16 %v4871, %v4869
        %v5116 = vpack.c.b16 %v4874, %v4872
        %v5117 = vpack.c.b16 %v4875, %v4873
        %v5118 = vpack.c.b16 %v4878, %v4876
        %v5119 = vpack.c.b16 %v4879, %v4877
        %v5120 = vpack.c.b16 %v4882, %v4880
        %v5121 = vpack.c.b16 %v4883, %v4881
        %v5122 = vpack.c.b16 %v4886, %v4884
        %v5123 = vpack.c.b16 %v4887, %v4885
        %v5124 = vpack.c.b16 %v4890, %v4888
        %v5125 = vpack.c.b16 %v4891, %v4889
        %v5126 = vpack.c.b16 %v4894, %v4892
        %v5127 = vpack.c.b16 %v4895, %v4893
        %v5128 = vpack.c.b16 %v4898, %v4896
        %v5129 = vpack.c.b16 %v4899, %v4897
        %v5130 = vpack.c.b16 %v4902, %v4900
        %v5131 = vpack.c.b16 %v4903, %v4901
        %v5132 = vpack.c.b16 %v4906, %v4904
        %v5133 = vpack.c.b16 %v4907, %v4905
        %v5134 = vpack.c.b16 %v4910, %v4908
        %v5135 = vpack.c.b16 %v4911, %v4909
        %v5136 = vpack.c.b16 %v4914, %v4912
        %v5137 = vpack.c.b16 %v4915, %v4913
        %v5138 = vpack.c.b16 %v4918, %v4916
        %v5139 = vpack.c.b16 %v4919, %v4917
        %v5140 = vpack.c.b16 %v4922, %v4920
        %v5141 = vpack.c.b16 %v4923, %v4921
        %v5142 = vpack.c.b16 %v4926, %v4924
        %v5143 = vpack.c.b16 %v4927, %v4925
        %v5144 = vpack.c.b16 %v4930, %v4928
        %v5145 = vpack.c.b16 %v4931, %v4929
        %v5146 = vpack.c.b16 %v4934, %v4932
        %v5147 = vpack.c.b16 %v4935, %v4933
        %v5148 = vpack.c.b16 %v4938, %v4936
        %v5149 = vpack.c.b16 %v4939, %v4937
        %v5150 = vpack.c.b16 %v4942, %v4940
        %v5151 = vpack.c.b16 %v4943, %v4941
        %v5152 = vpack.c.b16 %v4946, %v4944
        %v5153 = vpack.c.b16 %v4947, %v4945
        %v5154 = vpack.c.b16 %v4950, %v4948
        %v5155 = vpack.c.b16 %v4951, %v4949
        %v5156 = vpack.c.b16 %v4954, %v4952
        %v5157 = vpack.c.b16 %v4955, %v4953
        %v5158 = vpack.c.b16 %v4958, %v4956
        %v5159 = vpack.c.b16 %v4959, %v4957
        %v5160 = vpack.c.b16 %v4962, %v4960
        %v5161 = vpack.c.b16 %v4963, %v4961
        %v5162 = vpack.c.b16 %v4966, %v4964
        %v5163 = vpack.c.b16 %v4967, %v4965
        %v5164 = vpack.c.b16 %v4970, %v4968
        %v5165 = vpack.c.b16 %v4971, %v4969
        %v5166 = vpack.c.b16 %v4974, %v4972
        %v5167 = vpack.c.b16 %v4975, %v4973
        %v5168 = vpack.c.b16 %v4978, %v4976
        %v5169 = vpack.c.b16 %v4979, %v4977
        %v5170 = vpack.c.b16 %v4982, %v4980
        %v5171 = vpack.c.b16 %v4983, %v4981
        %v5172 = vpack.c.b16 %v4986, %v4984
        %v5173 = vpack.c.b16 %v4987, %v4985
        %v5174 = vpack.c.b16 %v4990, %v4988
        %v5175 = vpack.c.b16 %v4991, %v4989
        %v5176 = vpack.c.b16 %v4994, %v4992
        %v5177 = vpack.c.b16 %v4995, %v4993
        %v5178 = vpack.c.b16 %v4998, %v4996
        %v5179 = vpack.c.b16 %v4999, %v4997
        %v5180 = vpack.c.b16 %v5002, %v5000
        %v5181 = vpack.c.b16 %v5003, %v5001
        %v5182 = vpack.c.b16 %v5006, %v5004
        %v5183 = vpack.c.b16 %v5007, %v5005
        %v5184 = vpack.c.b16 %v5010, %v5008
        %v5185 = vpack.c.b16 %v5011, %v5009
        %v5186 = vpack.c.b16 %v5014, %v5012
        %v5187 = vpack.c.b16 %v5015, %v5013
        %v5188 = vpack.c.b16 %v5018, %v5016
        %v5189 = vpack.c.b16 %v5019, %v5017
        %v5190 = vpack.c.b16 %v5022, %v5020
        %v5191 = vpack.c.b16 %v5023, %v5021
        %v5192 = vpack.c.b16 %v5026, %v5024
        %v5193 = vpack.c.b16 %v5027, %v5025
        %v5194 = vpack.c.b16 %v5030, %v5028
        %v5195 = vpack.c.b16 %v5031, %v5029
        %v5196 = vpack.c.b16 %v5034, %v5032
        %v5197 = vpack.c.b16 %v5035, %v5033
        %v5198 = vpack.c.b16 %v5038, %v5036
        %v5199 = vpack.c.b16 %v5039, %v5037
        %v5200 = vpack.c.b16 %v5042, %v5040
        %v5201 = vpack.c.b16 %v5043, %v5041
        %v5202 = vpack.c.b16 %v5046, %v5044
        %v5203 = vpack.c.b16 %v5047, %v5045
        %v5204 = vpack.c.b16 %v5050, %v5048
        %v5205 = vpack.c.b16 %v5051, %v5049
        %v5206 = vpack.c.b16 %v5054, %v5052
        %v5207 = vpack.c.b16 %v5055, %v5053
        %v5208 = vpack.c.b16 %v5058, %v5056
        %v5209 = vpack.c.b16 %v5059, %v5057
        %v5210 = vpack.c.b16 %v5062, %v5060
        %v5211 = vpack.c.b16 %v5063, %v5061
        %v5212 = vpack.c.b16 %v5066, %v5064
        %v5213 = vpack.c.b16 %v5067, %v5065
        %v5214 = vpack.c.b16 %v5070, %v5068
        %v5215 = vpack.c.b16 %v5071, %v5069
        %v5216 = vpack.c.b16 %v5074, %v5072
        %v5217 = vpack.c.b16 %v5075, %v5073
        %v5218 = vpack.c.b16 %v5078, %v5076
        %v5219 = vpack.c.b16 %v5079, %v5077
        %v5220 = vpack.c.b16 %v5082, %v5080
        %v5221 = vpack.c.b16 %v5083, %v5081
        %v5222 = vpack.c.b16 %v5086, %v5084
        %v5223 = vpack.c.b16 %v5087, %v5085
        %v5224 = vpack.c.b16 %v5090, %v5088
        %v5225 = vpack.c.b16 %v5091, %v5089
        %v5226 = vpack.c.b16 %v5094, %v5092
        %v5227 = vpack.c.b16 %v5095, %v5093
        %v5228 = vpack.c.b16 %v5098, %v5096
        %v5229 = vpack.c.b16 %v5099, %v5097
        %v5230 = vpack.c.b16 %v5102, %v5100
        %v5231 = vpack.c.b16 %v5103, %v5101
        %5360 = vmatprep.subr.bf16.mxu0 %v5105
        %5361 = vmatpush1.bf16.msra.mxu0 %v5104
        %5362 = vmatprep.subr.bf16.mxu0 %v5107
        %5363 = vmatpush1.bf16.msra.mxu0 %v5106
        %5364 = vmatprep.subr.bf16.mxu0 %v5109
        %5365 = vmatpush1.bf16.msra.mxu0 %v5108
        %5366 = vmatprep.subr.bf16.mxu0 %v5111
        %5367 = vmatpush1.bf16.msra.mxu0 %v5110
        %5368 = vmatprep.subr.bf16.mxu0 %v5113
        %5369 = vmatpush1.bf16.msra.mxu0 %v5112
        %5370 = vmatprep.subr.bf16.mxu0 %v5115
        %5371 = vmatpush1.bf16.msra.mxu0 %v5114
        %5372 = vmatprep.subr.bf16.mxu0 %v5117
        %5373 = vmatpush1.bf16.msra.mxu0 %v5116
        %5374 = vmatprep.subr.bf16.mxu0 %v5119
        %5375 = vmatpush1.bf16.msra.mxu0 %v5118
        %5376 = vmatprep.subr.bf16.mxu0 %v5121
        %5377 = vmatpush1.bf16.msra.mxu0 %v5120
        %5378 = vmatprep.subr.bf16.mxu0 %v5123
        %5379 = vmatpush1.bf16.msra.mxu0 %v5122
        %5380 = vmatprep.subr.bf16.mxu0 %v5125
        %5381 = vmatpush1.bf16.msra.mxu0 %v5124
        %5382 = vmatprep.subr.bf16.mxu0 %v5127
        %5383 = vmatpush1.bf16.msra.mxu0 %v5126
        %5384 = vmatprep.subr.bf16.mxu0 %v5129
        %5385 = vmatpush1.bf16.msra.mxu0 %v5128
        %5386 = vmatprep.subr.bf16.mxu0 %v5131
        %5387 = vmatpush1.bf16.msra.mxu0 %v5130
        %5388 = vmatprep.subr.bf16.mxu0 %v5133
        %5389 = vmatpush1.bf16.msra.mxu0 %v5132
        %5390 = vmatprep.subr.bf16.mxu0 %v5135
        %5391 = vmatpush1.bf16.msra.mxu0 %v5134
        %5392 = vmatprep.mubr.bf16.mxu0 %v4585
        %5393 = vmatmul.mubr.bf16.gmra.mrb[0].mxu0 %v4584
        %v5394 = vpop.f32.mrb[0].mxu0
        %v5395 = vadd.f32 0.0, %v5394
        %v5396 = vpop.f32.mrb[0].mxu0
        %v5397 = vadd.f32 0.0, %v5396
        %v5398 = vpop.f32.mrb[0].mxu0
        %v5399 = vadd.f32 0.0, %v5398
        %v5400 = vpop.f32.mrb[0].mxu0
        %v5401 = vadd.f32 0.0, %v5400
        %5402 = vdwg.mxu0
        %5403 = vmatprep.subr.bf16.mxu0 %v5137
        %5404 = vmatpush1.bf16.msra.mxu0 %v5136
        %5405 = vmatprep.subr.bf16.mxu0 %v5139
        %5406 = vmatpush1.bf16.msra.mxu0 %v5138
        %5407 = vmatprep.subr.bf16.mxu0 %v5141
        %5408 = vmatpush1.bf16.msra.mxu0 %v5140
        %5409 = vmatprep.subr.bf16.mxu0 %v5143
        %5410 = vmatpush1.bf16.msra.mxu0 %v5142
        %5411 = vmatprep.subr.bf16.mxu0 %v5145
        %5412 = vmatpush1.bf16.msra.mxu0 %v5144
        %5413 = vmatprep.subr.bf16.mxu0 %v5147
        %5414 = vmatpush1.bf16.msra.mxu0 %v5146
        %5415 = vmatprep.subr.bf16.mxu0 %v5149
        %5416 = vmatpush1.bf16.msra.mxu0 %v5148
        %5417 = vmatprep.subr.bf16.mxu0 %v5151
        %5418 = vmatpush1.bf16.msra.mxu0 %v5150
        %5419 = vmatprep.subr.bf16.mxu0 %v5153
        %5420 = vmatpush1.bf16.msra.mxu0 %v5152
        %5421 = vmatprep.subr.bf16.mxu0 %v5155
        %5422 = vmatpush1.bf16.msra.mxu0 %v5154
        %5423 = vmatprep.subr.bf16.mxu0 %v5157
        %5424 = vmatpush1.bf16.msra.mxu0 %v5156
        %5425 = vmatprep.subr.bf16.mxu0 %v5159
        %5426 = vmatpush1.bf16.msra.mxu0 %v5158
        %5427 = vmatprep.subr.bf16.mxu0 %v5161
        %5428 = vmatpush1.bf16.msra.mxu0 %v5160
        %5429 = vmatprep.subr.bf16.mxu0 %v5163
        %5430 = vmatpush1.bf16.msra.mxu0 %v5162
        %5431 = vmatprep.subr.bf16.mxu0 %v5165
        %5432 = vmatpush1.bf16.msra.mxu0 %v5164
        %5433 = vmatprep.subr.bf16.mxu0 %v5167
        %5434 = vmatpush1.bf16.msra.mxu0 %v5166
        %5435 = vmatprep.mubr.bf16.mxu0 %v4587
        %5436 = vmatmul.mubr.bf16.gmra.mrb[0].mxu0 %v4586
        %v5437 = vpop.f32.mrb[0].mxu0
        %v5438 = vadd.f32 %v5395, %v5437
        %v5439 = vpop.f32.mrb[0].mxu0
        %v5440 = vadd.f32 %v5397, %v5439
        %v5441 = vpop.f32.mrb[0].mxu0
        %v5442 = vadd.f32 %v5399, %v5441
        %v5443 = vpop.f32.mrb[0].mxu0
        %v5444 = vadd.f32 %v5401, %v5443
        %5445 = vdwg.mxu0
        %5446 = vmatprep.subr.bf16.mxu0 %v5169
        %5447 = vmatpush1.bf16.msra.mxu0 %v5168
        %5448 = vmatprep.subr.bf16.mxu0 %v5171
        %5449 = vmatpush1.bf16.msra.mxu0 %v5170
        %5450 = vmatprep.subr.bf16.mxu0 %v5173
        %5451 = vmatpush1.bf16.msra.mxu0 %v5172
        %5452 = vmatprep.subr.bf16.mxu0 %v5175
        %5453 = vmatpush1.bf16.msra.mxu0 %v5174
        %5454 = vmatprep.subr.bf16.mxu0 %v5177
        %5455 = vmatpush1.bf16.msra.mxu0 %v5176
        %5456 = vmatprep.subr.bf16.mxu0 %v5179
        %5457 = vmatpush1.bf16.msra.mxu0 %v5178
        %5458 = vmatprep.subr.bf16.mxu0 %v5181
        %5459 = vmatpush1.bf16.msra.mxu0 %v5180
        %5460 = vmatprep.subr.bf16.mxu0 %v5183
        %5461 = vmatpush1.bf16.msra.mxu0 %v5182
        %5462 = vmatprep.subr.bf16.mxu0 %v5185
        %5463 = vmatpush1.bf16.msra.mxu0 %v5184
        %5464 = vmatprep.subr.bf16.mxu0 %v5187
        %5465 = vmatpush1.bf16.msra.mxu0 %v5186
        %5466 = vmatprep.subr.bf16.mxu0 %v5189
        %5467 = vmatpush1.bf16.msra.mxu0 %v5188
        %5468 = vmatprep.subr.bf16.mxu0 %v5191
        %5469 = vmatpush1.bf16.msra.mxu0 %v5190
        %5470 = vmatprep.subr.bf16.mxu0 %v5193
        %5471 = vmatpush1.bf16.msra.mxu0 %v5192
        %5472 = vmatprep.subr.bf16.mxu0 %v5195
        %5473 = vmatpush1.bf16.msra.mxu0 %v5194
        %5474 = vmatprep.subr.bf16.mxu0 %v5197
        %5475 = vmatpush1.bf16.msra.mxu0 %v5196
        %5476 = vmatprep.subr.bf16.mxu0 %v5199
        %5477 = vmatpush1.bf16.msra.mxu0 %v5198
        %5478 = vmatprep.mubr.bf16.mxu0 %v4589
        %5479 = vmatmul.mubr.bf16.gmra.mrb[0].mxu0 %v4588
        %v5480 = vpop.f32.mrb[0].mxu0
        %v5481 = vadd.f32 %v5438, %v5480
        %v5482 = vpop.f32.mrb[0].mxu0
        %v5483 = vadd.f32 %v5440, %v5482
        %v5484 = vpop.f32.mrb[0].mxu0
        %v5485 = vadd.f32 %v5442, %v5484
        %v5486 = vpop.f32.mrb[0].mxu0
        %v5487 = vadd.f32 %v5444, %v5486
        %5488 = vdwg.mxu0
        %5489 = vmatprep.subr.bf16.mxu0 %v5201
        %5490 = vmatpush1.bf16.msra.mxu0 %v5200
        %5491 = vmatprep.subr.bf16.mxu0 %v5203
        %5492 = vmatpush1.bf16.msra.mxu0 %v5202
        %5493 = vmatprep.subr.bf16.mxu0 %v5205
        %5494 = vmatpush1.bf16.msra.mxu0 %v5204
        %5495 = vmatprep.subr.bf16.mxu0 %v5207
        %5496 = vmatpush1.bf16.msra.mxu0 %v5206
        %5497 = vmatprep.subr.bf16.mxu0 %v5209
        %5498 = vmatpush1.bf16.msra.mxu0 %v5208
        %5499 = vmatprep.subr.bf16.mxu0 %v5211
        %5500 = vmatpush1.bf16.msra.mxu0 %v5210
        %5501 = vmatprep.subr.bf16.mxu0 %v5213
        %5502 = vmatpush1.bf16.msra.mxu0 %v5212
        %5503 = vmatprep.subr.bf16.mxu0 %v5215
        %5504 = vmatpush1.bf16.msra.mxu0 %v5214
        %5505 = vmatprep.subr.bf16.mxu0 %v5217
        %5506 = vmatpush1.bf16.msra.mxu0 %v5216
        %5507 = vmatprep.subr.bf16.mxu0 %v5219
        %5508 = vmatpush1.bf16.msra.mxu0 %v5218
        %5509 = vmatprep.subr.bf16.mxu0 %v5221
        %5510 = vmatpush1.bf16.msra.mxu0 %v5220
        %5511 = vmatprep.subr.bf16.mxu0 %v5223
        %5512 = vmatpush1.bf16.msra.mxu0 %v5222
        %5513 = vmatprep.subr.bf16.mxu0 %v5225
        %5514 = vmatpush1.bf16.msra.mxu0 %v5224
        %5515 = vmatprep.subr.bf16.mxu0 %v5227
        %5516 = vmatpush1.bf16.msra.mxu0 %v5226
        %5517 = vmatprep.subr.bf16.mxu0 %v5229
        %5518 = vmatpush1.bf16.msra.mxu0 %v5228
        %5519 = vmatprep.subr.bf16.mxu0 %v5231
        %5520 = vmatpush1.bf16.msra.mxu0 %v5230
        %5521 = vmatprep.mubr.bf16.mxu0 %v4591
        %5522 = vmatmul.mubr.bf16.gmra.mrb[0].mxu0 %v4590
        %v5523 = vpop.f32.mrb[0].mxu0
        %v5524 = vadd.f32 %v5481, %v5523
        %v5525 = vpop.f32.mrb[0].mxu0
        %v5526 = vadd.f32 %v5483, %v5525
        %v5527 = vpop.f32.mrb[0].mxu0
        %v5528 = vadd.f32 %v5485, %v5527
        %v5529 = vpop.f32.mrb[0].mxu0
        %v5530 = vadd.f32 %v5487, %v5529
        %5531 = vdwg.mxu0
        %v5532 = vadd.f32 %v3100, %v5524
        %v5533 = vadd.f32 %v3101, %v5526
        %v5534 = vadd.f32 %v3102, %v5528
        %v5535 = vadd.f32 %v3103, %v5530
        %v5536 = vld [vmem:[%s902] sm:$0x3]
        %v5538 = vlaneseq
        %v5539 = vshrl.u32 %v5538, 7
        %v5540 = vsub.s32 0, %v5539
        %v5541 = vrot.slane %v5536, %v5540
        %v5542 = vlaneseq
        %v5543 = vshrl.u32 %v5542, 7
        %v5544 = vsub.s32 1, %v5543
        %v5545 = vrot.slane %v5536, %v5544
        %v5548 = vadd.f32 %v5532, %v5541
        %v5549 = vadd.f32 %v5533, %v5545
        %v5550 = vadd.f32 %v5534, %v5541
        %v5551 = vadd.f32 %v5535, %v5545
        %p5552 = scmp.lt.s32.totalorder %s52, 7
        // Predicated region
        $region161: #{main_model_forward.2} parent=91 // pred_check
          %p5553 = pneg %p5552
        $region162: #{main_model_forward.2} parent=91 // pred_check_branch
          %5555 = sbr.rel (%p5553) target = $region164
        $region163: #{main_model_forward.2} parent=91 // pred_region
          %5556 = vst [vmem:[%s18] sm:$0xff] %v5548
          %5557 = vst [vmem:[%s18 + $0x8] sm:$0xff] %v5549
          %5558 = vst [vmem:[%s18 + $0x10] sm:$0xff] %v5550
          %5559 = vst [vmem:[%s18 + $0x18] sm:$0xff] %v5551
        $region164: #{main_model_forward.2} parent=91 // pred_fallthru
          _
        %p5560 = scmp.eq.s32.totalorder %s52, 7
        // Predicated region
        $region165: #{main_model_forward.2} parent=91 // pred_check
          %p5561 = pneg %p5560
        $region166: #{main_model_forward.2} parent=91 // pred_check_branch
          %5563 = sbr.rel (%p5561) target = $region168
        $region167: #{main_model_forward.2} parent=91 // pred_region
          %v5564 = vld [vmem:[#allocation18] sm:$0x3]
          %v5565 = vld [vmem:[#allocation19] sm:$0x3]
          %v5566 = vadd.f32 %v5548, %v5549
          %5567 = vadd.xlane.f32.xlu0 %v5566
          %v5568 = vpop.xlane.xlu0 %5567
          %v5569 = vadd.f32 %v5550, %v5551
          %5570 = vadd.xlane.f32.xlu0 %v5569
          %v5571 = vpop.xlane.xlu0 %5570
          %v5572 = vmul.f32 %v5568, %v1046
          %v5573 = vmul.f32 %v5571, %v1046
          %v5574 = vsub.f32 %v5548, %v5572
          %v5575 = vsub.f32 %v5549, %v5572
          %v5576 = vsub.f32 %v5550, %v5573
          %v5577 = vsub.f32 %v5551, %v5573
          %v5578 = vmul.f32 %v5574, %v5574
          %v5579 = vmul.f32 %v5575, %v5575
          %v5580 = vmul.f32 %v5576, %v5576
          %v5581 = vmul.f32 %v5577, %v5577
          %v5582 = vadd.f32 %v5578, %v5579
          %5583 = vadd.xlane.f32.xlu0 %v5582
          %v5584 = vpop.xlane.xlu0 %5583
          %v5585 = vadd.f32 %v5580, %v5581
          %5586 = vadd.xlane.f32.xlu0 %v5585
          %v5587 = vpop.xlane.xlu0 %5586
          %v5588 = vmul.f32 %v5584, %v1046
          %v5589 = vmul.f32 %v5587, %v1046
          %v5590 = vadd.f32 %v5588, 1e-05
          %v5591 = vadd.f32 %v5589, 1e-05
          %v5592 = vrsqrt.pop %v5590
          %v5593 = vrsqrt.pop %v5591
          %v5594 = vmul.f32 %v5574, %v5592
          %v5595 = vmul.f32 %v5575, %v5592
          %v5596 = vmul.f32 %v5576, %v5593
          %v5597 = vmul.f32 %v5577, %v5593
          %v5599 = vlaneseq
          %v5600 = vshrl.u32 %v5599, 7
          %v5601 = vsub.s32 0, %v5600
          %v5602 = vrot.slane %v5564, %v5601
          %v5603 = vlaneseq
          %v5604 = vshrl.u32 %v5603, 7
          %v5605 = vsub.s32 1, %v5604
          %v5606 = vrot.slane %v5564, %v5605
          %v5609 = vmul.f32 %v5594, %v5602
          %v5610 = vmul.f32 %v5595, %v5606
          %v5611 = vmul.f32 %v5596, %v5602
          %v5612 = vmul.f32 %v5597, %v5606
          %v5614 = vlaneseq
          %v5615 = vshrl.u32 %v5614, 7
          %v5616 = vsub.s32 0, %v5615
          %v5617 = vrot.slane %v5565, %v5616
          %v5618 = vlaneseq
          %v5619 = vshrl.u32 %v5618, 7
          %v5620 = vsub.s32 1, %v5619
          %v5621 = vrot.slane %v5565, %v5620
          %v5624 = vadd.f32 %v5609, %v5617
          %v5625 = vadd.f32 %v5610, %v5621
          %v5626 = vadd.f32 %v5611, %v5617
          %v5627 = vadd.f32 %v5612, %v5621
          %v5628 = vpack.c.bf16 %v5626, %v5624
          %v5629 = vpack.c.bf16 %v5627, %v5625
          %v5630 = vld [vmem:[#allocation21] sm:$0xff]
          %v5631 = vld [vmem:[#allocation21 + $0x8] sm:$0xff]
          %v5632 = vld [vmem:[#allocation21 + $0x10] sm:$0xff]
          %v5633 = vld [vmem:[#allocation21 + $0x18] sm:$0xff]
          %v5634 = vld [vmem:[#allocation21 + $0x20] sm:$0xff]
          %v5635 = vld [vmem:[#allocation21 + $0x28] sm:$0xff]
          %v5636 = vld [vmem:[#allocation21 + $0x30] sm:$0xff]
          %v5637 = vld [vmem:[#allocation21 + $0x38] sm:$0xff]
          %v5638 = vld [vmem:[#allocation21 + $0x40] sm:$0xff]
          %v5639 = vld [vmem:[#allocation21 + $0x48] sm:$0xff]
          %v5640 = vld [vmem:[#allocation21 + $0x50] sm:$0xff]
          %v5641 = vld [vmem:[#allocation21 + $0x58] sm:$0xff]
          %v5642 = vld [vmem:[#allocation21 + $0x60] sm:$0xff]
          %v5643 = vld [vmem:[#allocation21 + $0x68] sm:$0xff]
          %v5644 = vld [vmem:[#allocation21 + $0x70] sm:$0xff]
          %v5645 = vld [vmem:[#allocation21 + $0x78] sm:$0xff]
          %v5646 = vld [vmem:[#allocation21 + $0x80] sm:$0xff]
          %v5647 = vld [vmem:[#allocation21 + $0x88] sm:$0xff]
          %v5648 = vld [vmem:[#allocation21 + $0x90] sm:$0xff]
          %v5649 = vld [vmem:[#allocation21 + $0x98] sm:$0xff]
          %v5650 = vld [vmem:[#allocation21 + $0xa0] sm:$0xff]
          %v5651 = vld [vmem:[#allocation21 + $0xa8] sm:$0xff]
          %v5652 = vld [vmem:[#allocation21 + $0xb0] sm:$0xff]
          %v5653 = vld [vmem:[#allocation21 + $0xb8] sm:$0xff]
          %v5654 = vld [vmem:[#allocation21 + $0xc0] sm:$0xff]
          %v5655 = vld [vmem:[#allocation21 + $0xc8] sm:$0xff]
          %v5656 = vld [vmem:[#allocation21 + $0xd0] sm:$0xff]
          %v5657 = vld [vmem:[#allocation21 + $0xd8] sm:$0xff]
          %v5658 = vld [vmem:[#allocation21 + $0xe0] sm:$0xff]
          %v5659 = vld [vmem:[#allocation21 + $0xe8] sm:$0xff]
          %v5660 = vld [vmem:[#allocation21 + $0xf0] sm:$0xff]
          %v5661 = vld [vmem:[#allocation21 + $0xf8] sm:$0xff]
          %v5662 = vld [vmem:[#allocation22] sm:$0x3]
          %v5664 = vlaneseq
          %v5665 = vshrl.u32 %v5664, 7
          %v5666 = vsub.s32 0, %v5665
          %v5667 = vrot.slane %v5662, %v5666
          %v5668 = vlaneseq
          %v5669 = vshrl.u32 %v5668, 7
          %v5670 = vsub.s32 1, %v5669
          %v5671 = vrot.slane %v5662, %v5670
          %v5706 = vunpack.c.l.b16 %v5630
          %v5707 = vunpack.c.h.b16 %v5630
          %v5708 = vunpack.c.l.b16 %v5631
          %v5709 = vunpack.c.h.b16 %v5631
          %v5710 = vunpack.c.l.b16 %v5632
          %v5711 = vunpack.c.h.b16 %v5632
          %v5712 = vunpack.c.l.b16 %v5633
          %v5713 = vunpack.c.h.b16 %v5633
          %v5714 = vunpack.c.l.b16 %v5634
          %v5715 = vunpack.c.h.b16 %v5634
          %v5716 = vunpack.c.l.b16 %v5635
          %v5717 = vunpack.c.h.b16 %v5635
          %v5718 = vunpack.c.l.b16 %v5636
          %v5719 = vunpack.c.h.b16 %v5636
          %v5720 = vunpack.c.l.b16 %v5637
          %v5721 = vunpack.c.h.b16 %v5637
          %v5722 = vunpack.c.l.b16 %v5638
          %v5723 = vunpack.c.h.b16 %v5638
          %v5724 = vunpack.c.l.b16 %v5639
          %v5725 = vunpack.c.h.b16 %v5639
          %v5726 = vunpack.c.l.b16 %v5640
          %v5727 = vunpack.c.h.b16 %v5640
          %v5728 = vunpack.c.l.b16 %v5641
          %v5729 = vunpack.c.h.b16 %v5641
          %v5730 = vunpack.c.l.b16 %v5642
          %v5731 = vunpack.c.h.b16 %v5642
          %v5732 = vunpack.c.l.b16 %v5643
          %v5733 = vunpack.c.h.b16 %v5643
          %v5734 = vunpack.c.l.b16 %v5644
          %v5735 = vunpack.c.h.b16 %v5644
          %v5736 = vunpack.c.l.b16 %v5645
          %v5737 = vunpack.c.h.b16 %v5645
          %v5738 = vunpack.c.l.b16 %v5646
          %v5739 = vunpack.c.h.b16 %v5646
          %v5740 = vunpack.c.l.b16 %v5647
          %v5741 = vunpack.c.h.b16 %v5647
          %v5742 = vunpack.c.l.b16 %v5648
          %v5743 = vunpack.c.h.b16 %v5648
          %v5744 = vunpack.c.l.b16 %v5649
          %v5745 = vunpack.c.h.b16 %v5649
          %v5746 = vunpack.c.l.b16 %v5650
          %v5747 = vunpack.c.h.b16 %v5650
          %v5748 = vunpack.c.l.b16 %v5651
          %v5749 = vunpack.c.h.b16 %v5651
          %v5750 = vunpack.c.l.b16 %v5652
          %v5751 = vunpack.c.h.b16 %v5652
          %v5752 = vunpack.c.l.b16 %v5653
          %v5753 = vunpack.c.h.b16 %v5653
          %v5754 = vunpack.c.l.b16 %v5654
          %v5755 = vunpack.c.h.b16 %v5654
          %v5756 = vunpack.c.l.b16 %v5655
          %v5757 = vunpack.c.h.b16 %v5655
          %v5758 = vunpack.c.l.b16 %v5656
          %v5759 = vunpack.c.h.b16 %v5656
          %v5760 = vunpack.c.l.b16 %v5657
          %v5761 = vunpack.c.h.b16 %v5657
          %v5762 = vunpack.c.l.b16 %v5658
          %v5763 = vunpack.c.h.b16 %v5658
          %v5764 = vunpack.c.l.b16 %v5659
          %v5765 = vunpack.c.h.b16 %v5659
          %v5766 = vunpack.c.l.b16 %v5660
          %v5767 = vunpack.c.h.b16 %v5660
          %v5768 = vunpack.c.l.b16 %v5661
          %v5769 = vunpack.c.h.b16 %v5661
          %v5770 = vpack.c.b16 %v5708, %v5706
          %v5771 = vpack.c.b16 %v5709, %v5707
          %v5772 = vpack.c.b16 %v5712, %v5710
          %v5773 = vpack.c.b16 %v5713, %v5711
          %v5774 = vpack.c.b16 %v5716, %v5714
          %v5775 = vpack.c.b16 %v5717, %v5715
          %v5776 = vpack.c.b16 %v5720, %v5718
          %v5777 = vpack.c.b16 %v5721, %v5719
          %v5778 = vpack.c.b16 %v5724, %v5722
          %v5779 = vpack.c.b16 %v5725, %v5723
          %v5780 = vpack.c.b16 %v5728, %v5726
          %v5781 = vpack.c.b16 %v5729, %v5727
          %v5782 = vpack.c.b16 %v5732, %v5730
          %v5783 = vpack.c.b16 %v5733, %v5731
          %v5784 = vpack.c.b16 %v5736, %v5734
          %v5785 = vpack.c.b16 %v5737, %v5735
          %v5786 = vpack.c.b16 %v5740, %v5738
          %v5787 = vpack.c.b16 %v5741, %v5739
          %v5788 = vpack.c.b16 %v5744, %v5742
          %v5789 = vpack.c.b16 %v5745, %v5743
          %v5790 = vpack.c.b16 %v5748, %v5746
          %v5791 = vpack.c.b16 %v5749, %v5747
          %v5792 = vpack.c.b16 %v5752, %v5750
          %v5793 = vpack.c.b16 %v5753, %v5751
          %v5794 = vpack.c.b16 %v5756, %v5754
          %v5795 = vpack.c.b16 %v5757, %v5755
          %v5796 = vpack.c.b16 %v5760, %v5758
          %v5797 = vpack.c.b16 %v5761, %v5759
          %v5798 = vpack.c.b16 %v5764, %v5762
          %v5799 = vpack.c.b16 %v5765, %v5763
          %v5800 = vpack.c.b16 %v5768, %v5766
          %v5801 = vpack.c.b16 %v5769, %v5767
          %5834 = vmatprep.subr.bf16.mxu0 %v5771
          %5835 = vmatpush1.bf16.msra.mxu0 %v5770
          %5836 = vmatprep.subr.bf16.mxu0 %v5773
          %5837 = vmatpush1.bf16.msra.mxu0 %v5772
          %5838 = vmatprep.subr.bf16.mxu0 %v5775
          %5839 = vmatpush1.bf16.msra.mxu0 %v5774
          %5840 = vmatprep.subr.bf16.mxu0 %v5777
          %5841 = vmatpush1.bf16.msra.mxu0 %v5776
          %5842 = vmatprep.subr.bf16.mxu0 %v5779
          %5843 = vmatpush1.bf16.msra.mxu0 %v5778
          %5844 = vmatprep.subr.bf16.mxu0 %v5781
          %5845 = vmatpush1.bf16.msra.mxu0 %v5780
          %5846 = vmatprep.subr.bf16.mxu0 %v5783
          %5847 = vmatpush1.bf16.msra.mxu0 %v5782
          %5848 = vmatprep.subr.bf16.mxu0 %v5785
          %5849 = vmatpush1.bf16.msra.mxu0 %v5784
          %5850 = vmatprep.subr.bf16.mxu0 %v5787
          %5851 = vmatpush1.bf16.msra.mxu0 %v5786
          %5852 = vmatprep.subr.bf16.mxu0 %v5789
          %5853 = vmatpush1.bf16.msra.mxu0 %v5788
          %5854 = vmatprep.subr.bf16.mxu0 %v5791
          %5855 = vmatpush1.bf16.msra.mxu0 %v5790
          %5856 = vmatprep.subr.bf16.mxu0 %v5793
          %5857 = vmatpush1.bf16.msra.mxu0 %v5792
          %5858 = vmatprep.subr.bf16.mxu0 %v5795
          %5859 = vmatpush1.bf16.msra.mxu0 %v5794
          %5860 = vmatprep.subr.bf16.mxu0 %v5797
          %5861 = vmatpush1.bf16.msra.mxu0 %v5796
          %5862 = vmatprep.subr.bf16.mxu0 %v5799
          %5863 = vmatpush1.bf16.msra.mxu0 %v5798
          %5864 = vmatprep.subr.bf16.mxu0 %v5801
          %5865 = vmatpush1.bf16.msra.mxu0 %v5800
          %5866 = vmatprep.mubr.bf16.mxu0 %v5629
          %5867 = vmatmul.mubr.bf16.gmra.mrb[0].mxu0 %v5628
          %v5868 = vpop.f32.mrb[0].mxu0
          %v5869 = vadd.f32 %v5667, %v5868
          %v5870 = vpop.f32.mrb[0].mxu0
          %v5871 = vadd.f32 %v5671, %v5870
          %v5872 = vpop.f32.mrb[0].mxu0
          %v5873 = vadd.f32 %v5667, %v5872
          %v5874 = vpop.f32.mrb[0].mxu0
          %v5875 = vadd.f32 %v5671, %v5874
          %5876 = vdwg.mxu0
          %5877 = vst [vmem:[%s18] sm:$0xff] %v5869
          %5878 = vst [vmem:[%s18 + $0x8] sm:$0xff] %v5871
          %5879 = vst [vmem:[%s18 + $0x10] sm:$0xff] %v5873
          %5880 = vst [vmem:[%s18 + $0x18] sm:$0xff] %v5875
          %v5881 = vld [vmem:[#allocation24] sm:$0xff]
          %v5882 = vld [vmem:[#allocation24 + $0x8] sm:$0xff]
          %v5883 = vld [vmem:[#allocation24 + $0x10] sm:$0xff]
          %v5884 = vld [vmem:[#allocation24 + $0x18] sm:$0xff]
          %v5885 = vld [vmem:[#allocation24 + $0x20] sm:$0xff]
          %v5886 = vld [vmem:[#allocation24 + $0x28] sm:$0xff]
          %v5887 = vld [vmem:[#allocation24 + $0x30] sm:$0xff]
          %v5888 = vld [vmem:[#allocation24 + $0x38] sm:$0xff]
          %v5889 = vld [vmem:[#allocation24 + $0x40] sm:$0xff]
          %v5890 = vld [vmem:[#allocation24 + $0x48] sm:$0xff]
          %v5891 = vld [vmem:[#allocation24 + $0x50] sm:$0xff]
          %v5892 = vld [vmem:[#allocation24 + $0x58] sm:$0xff]
          %v5893 = vld [vmem:[#allocation24 + $0x60] sm:$0xff]
          %v5894 = vld [vmem:[#allocation24 + $0x68] sm:$0xff]
          %v5895 = vld [vmem:[#allocation24 + $0x70] sm:$0xff]
          %v5896 = vld [vmem:[#allocation24 + $0x78] sm:$0xff]
          %v5897 = vld [vmem:[#allocation24 + $0x80] sm:$0xff]
          %v5898 = vld [vmem:[#allocation24 + $0x88] sm:$0xff]
          %v5899 = vld [vmem:[#allocation24 + $0x90] sm:$0xff]
          %v5900 = vld [vmem:[#allocation24 + $0x98] sm:$0xff]
          %v5901 = vld [vmem:[#allocation24 + $0xa0] sm:$0xff]
          %v5902 = vld [vmem:[#allocation24 + $0xa8] sm:$0xff]
          %v5903 = vld [vmem:[#allocation24 + $0xb0] sm:$0xff]
          %v5904 = vld [vmem:[#allocation24 + $0xb8] sm:$0xff]
          %v5905 = vld [vmem:[#allocation24 + $0xc0] sm:$0xff]
          %v5906 = vld [vmem:[#allocation24 + $0xc8] sm:$0xff]
          %v5907 = vld [vmem:[#allocation24 + $0xd0] sm:$0xff]
          %v5908 = vld [vmem:[#allocation24 + $0xd8] sm:$0xff]
          %v5909 = vld [vmem:[#allocation24 + $0xe0] sm:$0xff]
          %v5910 = vld [vmem:[#allocation24 + $0xe8] sm:$0xff]
          %v5911 = vld [vmem:[#allocation24 + $0xf0] sm:$0xff]
          %v5912 = vld [vmem:[#allocation24 + $0xf8] sm:$0xff]
          %v5913 = vld [vmem:[#allocation25] sm:$0x3]
          %v5915 = vlaneseq
          %v5916 = vshrl.u32 %v5915, 7
          %v5917 = vsub.s32 0, %v5916
          %v5918 = vrot.slane %v5913, %v5917
          %v5919 = vlaneseq
          %v5920 = vshrl.u32 %v5919, 7
          %v5921 = vsub.s32 1, %v5920
          %v5922 = vrot.slane %v5913, %v5921
          %v5957 = vunpack.c.l.b16 %v5881
          %v5958 = vunpack.c.h.b16 %v5881
          %v5959 = vunpack.c.l.b16 %v5882
          %v5960 = vunpack.c.h.b16 %v5882
          %v5961 = vunpack.c.l.b16 %v5883
          %v5962 = vunpack.c.h.b16 %v5883
          %v5963 = vunpack.c.l.b16 %v5884
          %v5964 = vunpack.c.h.b16 %v5884
          %v5965 = vunpack.c.l.b16 %v5885
          %v5966 = vunpack.c.h.b16 %v5885
          %v5967 = vunpack.c.l.b16 %v5886
          %v5968 = vunpack.c.h.b16 %v5886
          %v5969 = vunpack.c.l.b16 %v5887
          %v5970 = vunpack.c.h.b16 %v5887
          %v5971 = vunpack.c.l.b16 %v5888
          %v5972 = vunpack.c.h.b16 %v5888
          %v5973 = vunpack.c.l.b16 %v5889
          %v5974 = vunpack.c.h.b16 %v5889
          %v5975 = vunpack.c.l.b16 %v5890
          %v5976 = vunpack.c.h.b16 %v5890
          %v5977 = vunpack.c.l.b16 %v5891
          %v5978 = vunpack.c.h.b16 %v5891
          %v5979 = vunpack.c.l.b16 %v5892
          %v5980 = vunpack.c.h.b16 %v5892
          %v5981 = vunpack.c.l.b16 %v5893
          %v5982 = vunpack.c.h.b16 %v5893
          %v5983 = vunpack.c.l.b16 %v5894
          %v5984 = vunpack.c.h.b16 %v5894
          %v5985 = vunpack.c.l.b16 %v5895
          %v5986 = vunpack.c.h.b16 %v5895
          %v5987 = vunpack.c.l.b16 %v5896
          %v5988 = vunpack.c.h.b16 %v5896
          %v5989 = vunpack.c.l.b16 %v5897
          %v5990 = vunpack.c.h.b16 %v5897
          %v5991 = vunpack.c.l.b16 %v5898
          %v5992 = vunpack.c.h.b16 %v5898
          %v5993 = vunpack.c.l.b16 %v5899
          %v5994 = vunpack.c.h.b16 %v5899
          %v5995 = vunpack.c.l.b16 %v5900
          %v5996 = vunpack.c.h.b16 %v5900
          %v5997 = vunpack.c.l.b16 %v5901
          %v5998 = vunpack.c.h.b16 %v5901
          %v5999 = vunpack.c.l.b16 %v5902
          %v6000 = vunpack.c.h.b16 %v5902
          %v6001 = vunpack.c.l.b16 %v5903
          %v6002 = vunpack.c.h.b16 %v5903
          %v6003 = vunpack.c.l.b16 %v5904
          %v6004 = vunpack.c.h.b16 %v5904
          %v6005 = vunpack.c.l.b16 %v5905
          %v6006 = vunpack.c.h.b16 %v5905
          %v6007 = vunpack.c.l.b16 %v5906
          %v6008 = vunpack.c.h.b16 %v5906
          %v6009 = vunpack.c.l.b16 %v5907
          %v6010 = vunpack.c.h.b16 %v5907
          %v6011 = vunpack.c.l.b16 %v5908
          %v6012 = vunpack.c.h.b16 %v5908
          %v6013 = vunpack.c.l.b16 %v5909
          %v6014 = vunpack.c.h.b16 %v5909
          %v6015 = vunpack.c.l.b16 %v5910
          %v6016 = vunpack.c.h.b16 %v5910
          %v6017 = vunpack.c.l.b16 %v5911
          %v6018 = vunpack.c.h.b16 %v5911
          %v6019 = vunpack.c.l.b16 %v5912
          %v6020 = vunpack.c.h.b16 %v5912
          %v6021 = vpack.c.b16 %v5959, %v5957
          %v6022 = vpack.c.b16 %v5960, %v5958
          %v6023 = vpack.c.b16 %v5963, %v5961
          %v6024 = vpack.c.b16 %v5964, %v5962
          %v6025 = vpack.c.b16 %v5967, %v5965
          %v6026 = vpack.c.b16 %v5968, %v5966
          %v6027 = vpack.c.b16 %v5971, %v5969
          %v6028 = vpack.c.b16 %v5972, %v5970
          %v6029 = vpack.c.b16 %v5975, %v5973
          %v6030 = vpack.c.b16 %v5976, %v5974
          %v6031 = vpack.c.b16 %v5979, %v5977
          %v6032 = vpack.c.b16 %v5980, %v5978
          %v6033 = vpack.c.b16 %v5983, %v5981
          %v6034 = vpack.c.b16 %v5984, %v5982
          %v6035 = vpack.c.b16 %v5987, %v5985
          %v6036 = vpack.c.b16 %v5988, %v5986
          %v6037 = vpack.c.b16 %v5991, %v5989
          %v6038 = vpack.c.b16 %v5992, %v5990
          %v6039 = vpack.c.b16 %v5995, %v5993
          %v6040 = vpack.c.b16 %v5996, %v5994
          %v6041 = vpack.c.b16 %v5999, %v5997
          %v6042 = vpack.c.b16 %v6000, %v5998
          %v6043 = vpack.c.b16 %v6003, %v6001
          %v6044 = vpack.c.b16 %v6004, %v6002
          %v6045 = vpack.c.b16 %v6007, %v6005
          %v6046 = vpack.c.b16 %v6008, %v6006
          %v6047 = vpack.c.b16 %v6011, %v6009
          %v6048 = vpack.c.b16 %v6012, %v6010
          %v6049 = vpack.c.b16 %v6015, %v6013
          %v6050 = vpack.c.b16 %v6016, %v6014
          %v6051 = vpack.c.b16 %v6019, %v6017
          %v6052 = vpack.c.b16 %v6020, %v6018
          %6085 = vmatprep.subr.bf16.mxu0 %v6022
          %6086 = vmatpush1.bf16.msra.mxu0 %v6021
          %6087 = vmatprep.subr.bf16.mxu0 %v6024
          %6088 = vmatpush1.bf16.msra.mxu0 %v6023
          %6089 = vmatprep.subr.bf16.mxu0 %v6026
          %6090 = vmatpush1.bf16.msra.mxu0 %v6025
          %6091 = vmatprep.subr.bf16.mxu0 %v6028
          %6092 = vmatpush1.bf16.msra.mxu0 %v6027
          %6093 = vmatprep.subr.bf16.mxu0 %v6030
          %6094 = vmatpush1.bf16.msra.mxu0 %v6029
          %6095 = vmatprep.subr.bf16.mxu0 %v6032
          %6096 = vmatpush1.bf16.msra.mxu0 %v6031
          %6097 = vmatprep.subr.bf16.mxu0 %v6034
          %6098 = vmatpush1.bf16.msra.mxu0 %v6033
          %6099 = vmatprep.subr.bf16.mxu0 %v6036
          %6100 = vmatpush1.bf16.msra.mxu0 %v6035
          %6101 = vmatprep.subr.bf16.mxu0 %v6038
          %6102 = vmatpush1.bf16.msra.mxu0 %v6037
          %6103 = vmatprep.subr.bf16.mxu0 %v6040
          %6104 = vmatpush1.bf16.msra.mxu0 %v6039
          %6105 = vmatprep.subr.bf16.mxu0 %v6042
          %6106 = vmatpush1.bf16.msra.mxu0 %v6041
          %6107 = vmatprep.subr.bf16.mxu0 %v6044
          %6108 = vmatpush1.bf16.msra.mxu0 %v6043
          %6109 = vmatprep.subr.bf16.mxu0 %v6046
          %6110 = vmatpush1.bf16.msra.mxu0 %v6045
          %6111 = vmatprep.subr.bf16.mxu0 %v6048
          %6112 = vmatpush1.bf16.msra.mxu0 %v6047
          %6113 = vmatprep.subr.bf16.mxu0 %v6050
          %6114 = vmatpush1.bf16.msra.mxu0 %v6049
          %6115 = vmatprep.subr.bf16.mxu0 %v6052
          %6116 = vmatpush1.bf16.msra.mxu0 %v6051
          %6117 = vmatprep.mubr.bf16.mxu0 %v5629
          %6118 = vmatmul.mubr.bf16.gmra.mrb[0].mxu0 %v5628
          %v6119 = vpop.f32.mrb[0].mxu0
          %v6120 = vadd.f32 %v5918, %v6119
          %v6121 = vpop.f32.mrb[0].mxu0
          %v6122 = vadd.f32 %v5922, %v6121
          %v6123 = vpop.f32.mrb[0].mxu0
          %v6124 = vadd.f32 %v5918, %v6123
          %v6125 = vpop.f32.mrb[0].mxu0
          %v6126 = vadd.f32 %v5922, %v6125
          %6127 = vdwg.mxu0
          %6128 = vst [vmem:[%s19] sm:$0xff] %v6120
          %6129 = vst [vmem:[%s19 + $0x8] sm:$0xff] %v6122
          %6130 = vst [vmem:[%s19 + $0x10] sm:$0xff] %v6124
          %6131 = vst [vmem:[%s19 + $0x18] sm:$0xff] %v6126
        $region168: #{main_model_forward.2} parent=91 // pred_fallthru
          _
        // Predicated region
        $region169: #{main_model_forward.2} parent=91 // pred_check
          %p6132 = pneg %p493
        $region170: #{main_model_forward.2} parent=91 // pred_check_branch
          %6134 = sbr.rel (%p6132) target = $region172
        $region171: #{main_model_forward.2} parent=91 // pred_region
          _
        $region172: #{main_model_forward.2} parent=91 // pred_fallthru
          _
        // Predicated region
        $region173: #{main_model_forward.2} parent=91 // pred_check
          %p6135 = pneg %p514
        $region174: #{main_model_forward.2} parent=91 // pred_check_branch
          %6137 = sbr.rel (%p6135) target = $region176
        $region175: #{main_model_forward.2} parent=91 // pred_region
          _
        $region176: #{main_model_forward.2} parent=91 // pred_fallthru
          _
        // Predicated region
        $region177: #{main_model_forward.2} parent=91 // pred_check
          %p6138 = pneg %p493
        $region178: #{main_model_forward.2} parent=91 // pred_check_branch
          %6140 = sbr.rel (%p6138) target = $region180
        $region179: #{main_model_forward.2} parent=91 // pred_region
          _
        $region180: #{main_model_forward.2} parent=91 // pred_fallthru
          _
        // Predicated region
        $region181: #{main_model_forward.2} parent=91 // pred_check
          %p6141 = pneg %p514
        $region182: #{main_model_forward.2} parent=91 // pred_check_branch
          %6143 = sbr.rel (%p6141) target = $region184
        $region183: #{main_model_forward.2} parent=91 // pred_region
          _
        $region184: #{main_model_forward.2} parent=91 // pred_fallthru
          _
      $region92: #{main_model_forward.2} parent=5 // pred_fallthru
        _
      %p6144 = scmp.le.s32.totalorder 2, %s47
      // Predicated region
      $region185: #{main_model_forward.2} parent=5 // pred_check
        %p6145 = pneg %p6144
      $region186: #{main_model_forward.2} parent=5 // pred_check_branch
        %6147 = sbr.rel (%p6145) target = $region188
      $region187: #{main_model_forward.2} parent=5 // pred_region
        %s6148 = ssub.s32 %s47, 2
      $region188: #{main_model_forward.2} parent=5 // pred_fallthru
        _
    $region6: #{main_model_forward.2} parent=1 // loop_footer
      %s51 = sadd.s32 1, %s47
    $region7: #{main_model_forward.2} parent=1 // loop_footer_branch
      %46 = sbr.rel target = $region3
    $region8: #{main_model_forward.2} parent=1 // loop_exit
      _
    %6149 = vsyncpa [#allocation3], 1
    %s6150 = scalar_lea.sflag [#allocation3], 1
    %6151 = vsyncpa %s6150, 1
    %6152 = vsyncpa [#allocation5], 1
    %s6153 = scalar_lea.sflag [#allocation5], 1
    %6154 = vsyncpa %s6153, 1
    %6155 = vsyncpa [#allocation8], 1
    %s6156 = scalar_lea.sflag [#allocation8], 1
    %6157 = vsyncpa %s6156, 1
    %6158 = vsyncpa [#allocation11], 1
    %s6159 = scalar_lea.sflag [#allocation11], 1
    %6160 = vsyncpa %s6159, 1
    %6161 = vsyncpa [#allocation14], 1
    %s6162 = scalar_lea.sflag [#allocation14], 1
    %6163 = vsyncpa %s6162, 1
    %6164 = vsyncpa [#allocation17], 1
    %s6165 = scalar_lea.sflag [#allocation17], 1
    %6166 = vsyncpa %s6165, 1
    %6167 = vsyncpa [#allocation20], 1
    %6168 = vsyncpa [#allocation23], 1
    %6169 = vsyncpa [#allocation26], 1

</llo_original>
